<compile_context>
chip_gen: v6e
topology: v6e:2x2x1
jax: 0.10.0
libtpu: 0.0.40
codegen_flags: <defaults>
</compile_context>

<pallas_src>
import functools
import math

import jax
import jax.numpy as jnp
from jax.experimental import pallas as pl
from jax.experimental.pallas import tpu as pltpu

VMEM_LIMIT = 32 * 1024 * 1024  # fits the scoped-VMEM default on v5e/v6e/v7x


# ----------------------------- in-kernel helpers -----------------------------

def _layernorm(x, g, b, eps=1e-5):
    mu = jnp.mean(x, axis=-1, keepdims=True)
    var = jnp.mean(jnp.square(x - mu), axis=-1, keepdims=True)
    return (x - mu) * jax.lax.rsqrt(var + eps) * g + b


def _gelu(x):
    # TODO(synk): nn.GELU default is exact-erf; tanh approximation used for
    # Mosaic-safe in-kernel lowering (EUP tanh).
    return jax.nn.gelu(x, approximate=True)


def _bf16(x):
    return x.astype(jnp.bfloat16)


# ----------------------------- fused face+full encoder kernel -----------------------------

def _encoder_kernel(px_ref, sw_ref, sb_ref, rw1_ref, rb1_ref, rw2_ref, rb2_ref,
                    aw1_ref, ab1_ref, aw2_ref, ab2_ref, spat_ref, glob_ref):
    _, B, S, Cin = px_ref.shape
    x = px_ref[0].reshape(B * S, Cin)                                # (B*S, Cin) bf16 slab
    # stem projection (backbone stub head), bf16 operands, f32 accumulation
    feat = jnp.dot(x, sw_ref[0], preferred_element_type=jnp.float32) + sb_ref[0]
    feat = jnp.maximum(feat, 0.0)
    # refinement: conv1x1+BN+ReLU twice (BN folded into weights, eval mode)
    r1 = jnp.dot(_bf16(feat), rw1_ref[0], preferred_element_type=jnp.float32) + rb1_ref[0]
    r1 = jnp.maximum(r1, 0.0)
    refined = jnp.dot(_bf16(r1), rw2_ref[0], preferred_element_type=jnp.float32) + rb2_ref[0]
    refined = jnp.maximum(refined, 0.0)                              # (B*S, F)
    # spatial attention: conv1x1+BN+ReLU, conv1x1+Sigmoid
    a = jnp.dot(_bf16(refined), aw1_ref[0], preferred_element_type=jnp.float32) + ab1_ref[0]
    a = jnp.maximum(a, 0.0)
    gate = jax.nn.sigmoid(
        jnp.dot(_bf16(a), aw2_ref[0], preferred_element_type=jnp.float32) + ab2_ref[0])
    att = refined * gate                                             # (B*S, F) f32
    Fdim = att.shape[-1]
    att3 = att.reshape(B, S, Fdim)
    spat_ref[0] = _bf16(att3)                                        # bf16 to HBM (half traffic)
    glob_ref[0] = jnp.mean(att3, axis=1)                             # GAP over tokens, f32


def encoders_fwd(enc_p, face_image, full_image, cfg):
    """Both encoders in one pallas_call; returns (spatial (2,B,S,F) bf16, global (2,B,F) f32)."""
    B, Cin, H, W = face_image.shape
    s = cfg["stride"]
    hs, ws = H // s, W // s
    S = hs * ws
    Fdim, CB, CM = cfg["feature_dim"], cfg["c_back"], cfg["c_mid"]
    F16 = Fdim // 16

    # TODO(synk): pretrained ResNet50 backbone cannot be reproduced in-script
    # (no checkpoint load); deterministic avg-pool stub produces the same
    # (B, S, Cin) token layout that the real backbone head would consume.
    def pool(img):
        p = img.reshape(B, Cin, hs, s, ws, s).mean(axis=(3, 5))      # (B, Cin, hs, ws)
        return p.transpose(0, 2, 3, 1).reshape(B, S, Cin)

    pooled = jnp.stack([pool(face_image), pool(full_image)]).astype(jnp.bfloat16)

    def w(shape):
        return pl.BlockSpec(shape, lambda e: tuple(e if i == 0 else 0 for i in range(len(shape))))

    return pl.pallas_call(
        _encoder_kernel,
        out_shape=(jax.ShapeDtypeStruct((2, B, S, Fdim), jnp.bfloat16),
                   jax.ShapeDtypeStruct((2, B, Fdim), jnp.float32)),
        grid=(2,),
        in_specs=[
            pl.BlockSpec((1, B, S, Cin), lambda e: (e, 0, 0, 0)),
            w((1, Cin, CB)), w((1, 1, CB)),
            w((1, CB, CM)), w((1, 1, CM)),
            w((1, CM, Fdim)), w((1, 1, Fdim)),
            w((1, Fdim, F16)), w((1, 1, F16)),
            w((1, F16, Fdim)), w((1, 1, Fdim)),
        ],
        out_specs=(pl.BlockSpec((1, B, S, Fdim), lambda e: (e, 0, 0, 0)),
                   pl.BlockSpec((1, B, Fdim), lambda e: (e, 0, 0))),
        compiler_params=pltpu.CompilerParams(
            dimension_semantics=("parallel",), vmem_limit_bytes=VMEM_LIMIT),
    )(pooled, enc_p["stem_w"], enc_p["stem_b"], enc_p["rw1"], enc_p["rb1"],
      enc_p["rw2"], enc_p["rb2"], enc_p["aw1"], enc_p["ab1"],
      enc_p["aw2"], enc_p["ab2"])


# ----------------------------- fused cross-attention stack kernel -----------------------------

def _stack_kernel(face_ref, full_ref,
                  ln1g_ref, ln1b_ref, wq_ref, wk_ref, wv_ref, wo_ref, bo_ref,
                  ln2g_ref, ln2b_ref, fw1_ref, fb1_ref, fw2_ref, fb2_ref,
                  of_ref, ou_ref, *, num_blocks, num_heads, head_dim):
    face = face_ref[0].astype(jnp.float32)                           # (N, F)
    full = full_ref[0].astype(jnp.float32)

    def block(x, c, l):
        ln1g, ln1b = ln1g_ref[l], ln1b_ref[l]
        # cast once, reuse for Q/K/V (v5e: avoid repeated f32<->bf16 packing)
        nx = _bf16(_layernorm(x, ln1g, ln1b))
        nc = _bf16(_layernorm(c, ln1g, ln1b))                        # norm1 reused for
        q = jnp.dot(nx, wq_ref[l], preferred_element_type=jnp.float32)   # scale folded into Wq
        k = jnp.dot(nc, wk_ref[l], preferred_element_type=jnp.float32)
        v = jnp.dot(nc, wv_ref[l], preferred_element_type=jnp.float32)
        wo = wo_ref[l]                                                # (H*D, F) bf16
        N, Fdim = x.shape
        D = head_dim

        # Per-head attention; heads stay as lane slices and concat(heads) @ Wo is
        # folded as sum_h head_h @ Wo[h*D:(h+1)*D, :] (concat-free).
        attn_out = jnp.zeros((N, Fdim), jnp.float32)
        for h in range(num_heads):
            sl = slice(h * D, (h + 1) * D)
            s = jnp.dot(_bf16(q[:, sl]), _bf16(k[:, sl]).T,
                        preferred_element_type=jnp.float32)
            s = s - jnp.max(s, axis=-1, keepdims=True)
            p = jnp.exp(s)
            p = p * pl.reciprocal(jnp.sum(p, axis=-1, keepdims=True), approx=True)
            oh = jnp.dot(_bf16(p), _bf16(v[:, sl]), preferred_element_type=jnp.float32)
            attn_out = attn_out + jnp.dot(_bf16(oh), wo[sl, :],
                                          preferred_element_type=jnp.float32)

        x2 = x + attn_out + bo_ref[l]                                 # residual (Dropout = id)
        nx2 = _bf16(_layernorm(x2, ln2g_ref[l], ln2b_ref[l]))
        h1 = _gelu(jnp.dot(nx2, fw1_ref[l], preferred_element_type=jnp.float32) + fb1_ref[l])
        return x2 + jnp.dot(_bf16(h1), fw2_ref[l],
                            preferred_element_type=jnp.float32) + fb2_ref[l]

    # Whole stack in VMEM: same in-loop ordering as the PyTorch reference
    # (face updated first, full attends to the already-updated face).
    for l in range(num_blocks):
        face = block(face, full, l)
        full = block(full, face, l)

    of_ref[0] = _bf16(face)
    ou_ref[0] = _bf16(full)


def cross_attention_stack(sp, face_spatial, full_spatial, cfg):
    B, N, Fdim = face_spatial.shape
    L, H, D = cfg["num_blocks"], cfg["num_heads"], cfg["head_dim"]
    inner = H * D

    def w(shape):
        # constant block index -> weights stay VMEM-resident across grid steps
        return pl.BlockSpec(shape, lambda b: tuple(0 for _ in shape))

    kernel = functools.partial(_stack_kernel, num_blocks=L, num_heads=H, head_dim=D)
    return pl.pallas_call(
        kernel,
        out_shape=(jax.ShapeDtypeStruct((B, N, Fdim), jnp.bfloat16),
                   jax.ShapeDtypeStruct((B, N, Fdim), jnp.bfloat16)),
        grid=(B,),
        in_specs=[
            pl.BlockSpec((1, N, Fdim), lambda b: (b, 0, 0)),
            pl.BlockSpec((1, N, Fdim), lambda b: (b, 0, 0)),
            w((L, 1, Fdim)), w((L, 1, Fdim)),
            w((L, Fdim, inner)), w((L, Fdim, inner)), w((L, Fdim, inner)),
            w((L, inner, Fdim)), w((L, 1, Fdim)),
            w((L, 1, Fdim)), w((L, 1, Fdim)),
            w((L, Fdim, 4 * Fdim)), w((L, 1, 4 * Fdim)),
            w((L, 4 * Fdim, Fdim)), w((L, 1, Fdim)),
        ],
        out_specs=(pl.BlockSpec((1, N, Fdim), lambda b: (b, 0, 0)),
                   pl.BlockSpec((1, N, Fdim), lambda b: (b, 0, 0))),
        compiler_params=pltpu.CompilerParams(
            dimension_semantics=("parallel",), vmem_limit_bytes=VMEM_LIMIT),
    )(face_spatial, full_spatial,
      sp["ln1_g"], sp["ln1_b"], sp["wq"], sp["wk"], sp["wv"], sp["wo"], sp["bo"],
      sp["ln2_g"], sp["ln2_b"], sp["ffn_w1"], sp["ffn_b1"], sp["ffn_w2"], sp["ffn_b2"])


# ----------------------------- fusion + prediction head kernel -----------------------------

def _head_kernel(af_ref, afl_ref, fg_ref, fug_ref,
                 fw1_ref, fb1_ref, l1g_ref, l1b_ref,
                 fw2_ref, fb2_ref, l2g_ref, l2b_ref,
                 pw1_ref, pb1_ref, pw2_ref, pb2_ref, o_ref):
    mf = jnp.mean(af_ref[...].astype(jnp.float32), axis=1)           # (B, F) token mean
    mfl = jnp.mean(afl_ref[...].astype(jnp.float32), axis=1)
    fg = fg_ref[...]                                                  # (B, F)
    fug = fug_ref[...]
    Fdim = fg.shape[-1]
    w1 = fw1_ref[...]                                                 # (4F, 2F) bf16

    # concat([mf, mfl, fg, fug]) @ W1 as 4 partial matmuls (128-row-aligned slices)
    h = (jnp.dot(_bf16(mf), w1[0 * Fdim:1 * Fdim, :], preferred_element_type=jnp.float32)
         + jnp.dot(_bf16(mfl), w1[1 * Fdim:2 * Fdim, :], preferred_element_type=jnp.float32)
         + jnp.dot(_bf16(fg), w1[2 * Fdim:3 * Fdim, :], preferred_element_type=jnp.float32)
         + jnp.dot(_bf16(fug), w1[3 * Fdim:4 * Fdim, :], preferred_element_type=jnp.float32)
         + fb1_ref[...])
    h = _gelu(_layernorm(h, l1g_ref[...], l1b_ref[...]))
    h = jnp.dot(_bf16(h), fw2_ref[...], preferred_element_type=jnp.float32) + fb2_ref[...]
    fused = _gelu(_layernorm(h, l2g_ref[...], l2b_ref[...]))

    p1 = _gelu(jnp.dot(_bf16(fused), pw1_ref[...], preferred_element_type=jnp.float32)
               + pb1_ref[...])
    preds = jnp.dot(_bf16(p1), pw2_ref[...], preferred_element_type=jnp.float32) + pb2_ref[...]

    # column 0 = raw age, column 1 = softplus(uncertainty); stable softplus in f32
    sp_ = jnp.maximum(preds, 0.0) + jnp.log(1.0 + jnp.exp(-jnp.abs(preds)))
    col = jax.lax.broadcasted_iota(jnp.int32, preds.shape, 1)
    o_ref[...] = jnp.where(col == 0, preds, sp_)


def fusion_head(hp, att_face, att_full, face_g, full_g, cfg):
    B, N, Fdim = att_face.shape

    def w(shape):
        return pl.BlockSpec(shape, lambda i: tuple(0 for _ in shape))

    return pl.pallas_call(
        _head_kernel,
        out_shape=jax.ShapeDtypeStruct((B, 2), jnp.float32),
        grid=(1,),
        in_specs=[
            w((B, N, Fdim)), w((B, N, Fdim)), w((B, Fdim)), w((B, Fdim)),
            w((4 * Fdim, 2 * Fdim)), w((1, 2 * Fdim)), w((1, 2 * Fdim)), w((1, 2 * Fdim)),
            w((2 * Fdim, Fdim)), w((1, Fdim)), w((1, Fdim)), w((1, Fdim)),
            w((Fdim, Fdim // 2)), w((1, Fdim // 2)),
            w((Fdim // 2, 2)), w((1, 2)),
        ],
        out_specs=pl.BlockSpec((B, 2), lambda i: (0, 0)),
        compiler_params=pltpu.CompilerParams(
            dimension_semantics=("arbitrary",), vmem_limit_bytes=VMEM_LIMIT),
    )(att_face, att_full, face_g, full_g,
      hp["fw1"], hp["fb1"], hp["l1g"], hp["l1b"],
      hp["fw2"], hp["fb2"], hp["l2g"], hp["l2b"],
      hp["pw1"], hp["pb1"], hp["pw2"], hp["pb2"])


# ----------------------------- parameter init (PyTorch-like) -----------------------------

def xavier_uniform(key, fan_in, fan_out):
    bound = math.sqrt(6.0 / (fan_in + fan_out))
    return jax.random.uniform(key, (fan_in, fan_out), jnp.float32, -bound, bound)


def bn_params(c):
    return {"gamma": jnp.ones((c,), jnp.float32),
            "beta": jnp.zeros((c,), jnp.float32),
            "mean": jnp.zeros((c,), jnp.float32),
            "var": jnp.ones((c,), jnp.float32)}


def fold_bn(w, b, gamma, beta, mean, var, eps=1e-5):
    """Fold eval-mode BatchNorm into the preceding 1x1-conv (matmul) weights."""
    scale = gamma / jnp.sqrt(var + eps)
    return w * scale[None, :], b * scale + (beta - mean * scale)


def init_feature_extractor(key, cfg):
    F, CB, CM = cfg["feature_dim"], cfg["c_back"], cfg["c_mid"]
    ks = jax.random.split(key, 5)
    return {
        "stem_w": xavier_uniform(ks[0], 3, CB), "stem_b": jnp.zeros((CB,)),
        "ref_w1": xavier_uniform(ks[1], CB, CM), "ref_b1": jnp.zeros((CM,)),
        "ref_bn1": bn_params(CM),
        "ref_w2": xavier_uniform(ks[2], CM, F), "ref_b2": jnp.zeros((F,)),
        "ref_bn2": bn_params(F),
        "sa_w1": xavier_uniform(ks[3], F, F // 16), "sa_b1": jnp.zeros((F // 16,)),
        "sa_bn1": bn_params(F // 16),
        "sa_w2": xavier_uniform(ks[4], F // 16, F), "sa_b2": jnp.zeros((F,)),
    }


def init_cross_attn_block(key, cfg):
    F = cfg["feature_dim"]
    inner = cfg["num_heads"] * cfg["head_dim"]
    ks = jax.random.split(key, 6)
    return {
        "ln1_g": jnp.ones((F,)), "ln1_b": jnp.zeros((F,)),
        "ln2_g": jnp.ones((F,)), "ln2_b": jnp.zeros((F,)),
        "wq": xavier_uniform(ks[0], F, inner),
        "wk": xavier_uniform(ks[1], F, inner),
        "wv": xavier_uniform(ks[2], F, inner),
        "wo": xavier_uniform(ks[3], inner, F), "bo": jnp.zeros((F,)),
        "ffn_w1": xavier_uniform(ks[4], F, 4 * F), "ffn_b1": jnp.zeros((4 * F,)),
        "ffn_w2": xavier_uniform(ks[5], 4 * F, F), "ffn_b2": jnp.zeros((F,)),
    }


def init_age_estimator(key, cfg):
    F = cfg["feature_dim"]
    keys = jax.random.split(key, 6 + cfg["num_blocks"] + 2)
    return {
        "face_encoder": init_feature_extractor(keys[0], cfg),
        "full_encoder": init_feature_extractor(keys[1], cfg),
        "blocks": [init_cross_attn_block(keys[2 + i], cfg)
                   for i in range(cfg["num_blocks"])],
        "fusion_w1": xavier_uniform(keys[-6], 4 * F, 2 * F), "fusion_b1": jnp.zeros((2 * F,)),
        "fusion_ln1_g": jnp.ones((2 * F,)), "fusion_ln1_b": jnp.zeros((2 * F,)),
        "fusion_w2": xavier_uniform(keys[-5], 2 * F, F), "fusion_b2": jnp.zeros((F,)),
        "fusion_ln2_g": jnp.ones((F,)), "fusion_ln2_b": jnp.zeros((F,)),
        "pred_w1": xavier_uniform(keys[-4], F, F // 2), "pred_b1": jnp.zeros((F // 2,)),
        "pred_w2": xavier_uniform(keys[-3], F // 2, 2), "pred_b2": jnp.zeros((2,)),
    }


# ----------------------------- one-time inference prep (outside jit) -----------------------------

def prepare_inference_params(params, cfg):
    """Fold BN, fold attention scale into Wq, cast matmul weights to bf16,
    reshape biases to (1, N), and stack face/full encoders and per-block
    weights onto leading axes.  Called once, outside the hot path."""

    def row(v):
        return v.reshape(1, -1).astype(jnp.float32)

    def prep_encoder(p):
        w1, b1 = fold_bn(p["ref_w1"], p["ref_b1"], **p["ref_bn1"])
        w2, b2 = fold_bn(p["ref_w2"], p["ref_b2"], **p["ref_bn2"])
        a1, ab1 = fold_bn(p["sa_w1"], p["sa_b1"], **p["sa_bn1"])
        return {
            "stem_w": p["stem_w"].astype(jnp.bfloat16), "stem_b": row(p["stem_b"]),
            "rw1": w1.astype(jnp.bfloat16), "rb1": row(b1),
            "rw2": w2.astype(jnp.bfloat16), "rb2": row(b2),
            "aw1": a1.astype(jnp.bfloat16), "ab1": row(ab1),
            "aw2": p["sa_w2"].astype(jnp.bfloat16), "ab2": row(p["sa_b2"]),
        }

    fe = prep_encoder(params["face_encoder"])
    ue = prep_encoder(params["full_encoder"])
    encoders = {k: jnp.stack([fe[k], ue[k]]) for k in fe}             # leading axis = {face, full}

    scale = cfg["head_dim"] ** (-0.5)

    def prep_block(b):
        return {
            "ln1_g": row(b["ln1_g"]), "ln1_b": row(b["ln1_b"]),
            "ln2_g": row(b["ln2_g"]), "ln2_b": row(b["ln2_b"]),
            "wq": (b["wq"] * scale).astype(jnp.bfloat16),             # scale folded in
            "wk": b["wk"].astype(jnp.bfloat16), "wv": b["wv"].astype(jnp.bfloat16),
            "wo": b["wo"].astype(jnp.bfloat16), "bo": row(b["bo"]),
            "ffn_w1": b["ffn_w1"].astype(jnp.bfloat16), "ffn_b1": row(b["ffn_b1"]),
            "ffn_w2": b["ffn_w2"].astype(jnp.bfloat16), "ffn_b2": row(b["ffn_b2"]),
        }

    pbs = [prep_block(b) for b in params["blocks"]]
    blocks = {k: jnp.stack([pb[k] for pb in pbs]) for k in pbs[0]}    # leading axis = block index

    head = {
        "fw1": params["fusion_w1"].astype(jnp.bfloat16), "fb1": row(params["fusion_b1"]),
        "l1g": row(params["fusion_ln1_g"]), "l1b": row(params["fusion_ln1_b"]),
        "fw2": params["fusion_w2"].astype(jnp.bfloat16), "fb2": row(params["fusion_b2"]),
        "l2g": row(params["fusion_ln2_g"]), "l2b": row(params["fusion_ln2_b"]),
        "pw1": params["pred_w1"].astype(jnp.bfloat16), "pb1": row(params["pred_b1"]),
        "pw2": params["pred_w2"].astype(jnp.bfloat16), "pb2": row(params["pred_b2"]),
    }
    return {"encoders": encoders, "blocks": blocks, "head": head}


# ----------------------------- forward pass -----------------------------

def age_estimator_fwd(prep, face_image, full_image, cfg):
    spatial, glob = encoders_fwd(prep["encoders"], face_image, full_image, cfg)
    face_spatial, full_spatial = spatial[0], spatial[1]               # (B, S, F) bf16
    face_global, full_global = glob[0], glob[1]                       # (B, F) f32

    att_face, att_full = cross_attention_stack(prep["blocks"], face_spatial,
                                               full_spatial, cfg)     # (B, N, F) bf16

    preds = fusion_head(prep["head"], att_face, att_full,
                        face_global, full_global, cfg)                 # (B, 2)
    age_pred = preds[:, 0]
    uncertainty = preds[:, 1]                                          # softplus applied in-kernel
    return age_pred, uncertainty


# ----------------------------- main -----------------------------

if __name__ == "__main__":
    # Small, module-consistent, lane-dense config: feature_dim=128 (stand-in for
    # 512), 2 cross-attention blocks (for 6), 2 heads x head_dim 64 (for 8x64,
    # inner=128), backbone channels 512->256->128 (for 2048->1024->512),
    # 32x32 inputs, stride-8 stub backbone -> 4x4 spatial = 16 tokens.
    cfg = dict(feature_dim=128, num_blocks=2, num_heads=2, head_dim=64,
               c_back=512, c_mid=256, stride=8)

    key = jax.random.PRNGKey(0)
    pkey, fkey, ikey = jax.random.split(key, 3)
    params = init_age_estimator(pkey, cfg)
    prep = prepare_inference_params(params, cfg)     # BN fold + scale fold + bf16 cast, once

    face_image = jax.random.normal(fkey, (2, 3, 32, 32), jnp.float32)
    full_image = jax.random.normal(ikey, (2, 3, 32, 32), jnp.float32)

    fwd = jax.jit(functools.partial(age_estimator_fwd, cfg=cfg))
    age_pred, uncertainty = fwd(prep, face_image, full_image)
    jax.block_until_ready((age_pred, uncertainty))

    assert age_pred.shape == (2,) and uncertainty.shape == (2,)
    assert bool(jnp.all(jnp.isfinite(age_pred))) and bool(jnp.all(jnp.isfinite(uncertainty)))
    assert bool(jnp.all(uncertainty >= 0.0))
    print("KERNEL_OK")
</pallas_src>

<mosaic_0001>
module attributes {stable_mosaic.version = 11 : i64} {
  func.func @_encoder_kernel(%arg0: i32, %arg1: memref<1x2x16x3xbf16, #tpu.memory_space<vmem>>, %arg2: memref<1x3x512xbf16, #tpu.memory_space<vmem>>, %arg3: memref<1x1x512xf32, #tpu.memory_space<vmem>>, %arg4: memref<1x512x256xbf16, #tpu.memory_space<vmem>>, %arg5: memref<1x1x256xf32, #tpu.memory_space<vmem>>, %arg6: memref<1x256x128xbf16, #tpu.memory_space<vmem>>, %arg7: memref<1x1x128xf32, #tpu.memory_space<vmem>>, %arg8: memref<1x128x8xbf16, #tpu.memory_space<vmem>>, %arg9: memref<1x1x8xf32, #tpu.memory_space<vmem>>, %arg10: memref<1x8x128xbf16, #tpu.memory_space<vmem>>, %arg11: memref<1x1x128xf32, #tpu.memory_space<vmem>>, %arg12: memref<1x2x16x128xbf16, #tpu.memory_space<vmem>>, %arg13: memref<1x2x128xf32, #tpu.memory_space<vmem>>) attributes {dimension_semantics = [#tpu.dimension_semantics<parallel>], iteration_bounds = array<i64: 2>, scalar_prefetch = 0 : i64, scratch_operands = 0 : i64, tpu.core_type = #tpu.core_type<tc>, window_params = [{transform_indices = @transform_0, window_bounds = array<i64: 1, 2, 16, 3>}, {transform_indices = @transform_1, window_bounds = array<i64: 1, 3, 512>}, {transform_indices = @transform_2, window_bounds = array<i64: 1, 1, 512>}, {transform_indices = @transform_3, window_bounds = array<i64: 1, 512, 256>}, {transform_indices = @transform_4, window_bounds = array<i64: 1, 1, 256>}, {transform_indices = @transform_5, window_bounds = array<i64: 1, 256, 128>}, {transform_indices = @transform_6, window_bounds = array<i64: 1, 1, 128>}, {transform_indices = @transform_7, window_bounds = array<i64: 1, 128, 8>}, {transform_indices = @transform_8, window_bounds = array<i64: 1, 1, 8>}, {transform_indices = @transform_9, window_bounds = array<i64: 1, 8, 128>}, {transform_indices = @transform_10, window_bounds = array<i64: 1, 1, 128>}, {transform_indices = @transform_11, window_bounds = array<i64: 1, 2, 16, 128>}, {transform_indices = @transform_12, window_bounds = array<i64: 1, 2, 128>}]} {
    %c0 = arith.constant 0 : index
    %c0_0 = arith.constant 0 : index
    %c0_1 = arith.constant 0 : index
    %c0_2 = arith.constant 0 : index
    %0 = vector.load %arg1[%c0, %c0_0, %c0_1, %c0_2] : memref<1x2x16x3xbf16, #tpu.memory_space<vmem>>, vector<1x2x16x3xbf16>
    %1 = vector.shape_cast %0 : vector<1x2x16x3xbf16> to vector<2x16x3xbf16>
    %2 = vector.shape_cast %1 : vector<2x16x3xbf16> to vector<32x3xbf16>
    %c0_3 = arith.constant 0 : index
    %c0_4 = arith.constant 0 : index
    %c0_5 = arith.constant 0 : index
    %3 = vector.load %arg2[%c0_3, %c0_4, %c0_5] : memref<1x3x512xbf16, #tpu.memory_space<vmem>>, vector<1x3x512xbf16>
    %4 = vector.shape_cast %3 : vector<1x3x512xbf16> to vector<3x512xbf16>
    %cst = arith.constant dense<0.000000e+00> : vector<32x512xf32>
    %5 = tpu.matmul %2, %4, %cst {dimension_numbers = #tpu.dot_dimension_numbers<[1], [0], [0], [1], [0, 0, 1, 1], [], []>} : vector<32x3xbf16>, vector<3x512xbf16>, vector<32x512xf32> -> vector<32x512xf32>
    %c0_6 = arith.constant 0 : index
    %c0_7 = arith.constant 0 : index
    %c0_8 = arith.constant 0 : index
    %6 = vector.load %arg3[%c0_6, %c0_7, %c0_8] : memref<1x1x512xf32, #tpu.memory_space<vmem>>, vector<1x1x512xf32>
    %7 = vector.shape_cast %6 : vector<1x1x512xf32> to vector<1x512xf32>
    %8 = vector.broadcast %7 : vector<1x512xf32> to vector<32x512xf32>
    %9 = arith.addf %5, %8 : vector<32x512xf32>
    %cst_9 = arith.constant 0.000000e+00 : f32
    %10 = vector.broadcast %cst_9 : f32 to vector<32x512xf32>
    %11 = arith.maximumf %9, %10 : vector<32x512xf32>
    %12 = arith.truncf %11 : vector<32x512xf32> to vector<32x512xbf16>
    %c0_10 = arith.constant 0 : index
    %c0_11 = arith.constant 0 : index
    %c0_12 = arith.constant 0 : index
    %13 = vector.load %arg4[%c0_10, %c0_11, %c0_12] : memref<1x512x256xbf16, #tpu.memory_space<vmem>>, vector<1x512x256xbf16>
    %14 = vector.shape_cast %13 : vector<1x512x256xbf16> to vector<512x256xbf16>
    %cst_13 = arith.constant dense<0.000000e+00> : vector<32x256xf32>
    %15 = tpu.matmul %12, %14, %cst_13 {dimension_numbers = #tpu.dot_dimension_numbers<[1], [0], [0], [1], [0, 0, 1, 1], [], []>} : vector<32x512xbf16>, vector<512x256xbf16>, vector<32x256xf32> -> vector<32x256xf32>
    %c0_14 = arith.constant 0 : index
    %c0_15 = arith.constant 0 : index
    %c0_16 = arith.constant 0 : index
    %16 = vector.load %arg5[%c0_14, %c0_15, %c0_16] : memref<1x1x256xf32, #tpu.memory_space<vmem>>, vector<1x1x256xf32>
    %17 = vector.shape_cast %16 : vector<1x1x256xf32> to vector<1x256xf32>
    %18 = vector.broadcast %17 : vector<1x256xf32> to vector<32x256xf32>
    %19 = arith.addf %15, %18 : vector<32x256xf32>
    %cst_17 = arith.constant 0.000000e+00 : f32
    %20 = vector.broadcast %cst_17 : f32 to vector<32x256xf32>
    %21 = arith.maximumf %19, %20 : vector<32x256xf32>
    %22 = arith.truncf %21 : vector<32x256xf32> to vector<32x256xbf16>
    %c0_18 = arith.constant 0 : index
    %c0_19 = arith.constant 0 : index
    %c0_20 = arith.constant 0 : index
    %23 = vector.load %arg6[%c0_18, %c0_19, %c0_20] : memref<1x256x128xbf16, #tpu.memory_space<vmem>>, vector<1x256x128xbf16>
    %24 = vector.shape_cast %23 : vector<1x256x128xbf16> to vector<256x128xbf16>
    %cst_21 = arith.constant dense<0.000000e+00> : vector<32x128xf32>
    %25 = tpu.matmul %22, %24, %cst_21 {dimension_numbers = #tpu.dot_dimension_numbers<[1], [0], [0], [1], [0, 0, 1, 1], [], []>} : vector<32x256xbf16>, vector<256x128xbf16>, vector<32x128xf32> -> vector<32x128xf32>
    %c0_22 = arith.constant 0 : index
    %c0_23 = arith.constant 0 : index
    %c0_24 = arith.constant 0 : index
    %26 = vector.load %arg7[%c0_22, %c0_23, %c0_24] : memref<1x1x128xf32, #tpu.memory_space<vmem>>, vector<1x1x128xf32>
    %27 = vector.shape_cast %26 : vector<1x1x128xf32> to vector<1x128xf32>
    %28 = vector.broadcast %27 : vector<1x128xf32> to vector<32x128xf32>
    %29 = arith.addf %25, %28 : vector<32x128xf32>
    %cst_25 = arith.constant 0.000000e+00 : f32
    %30 = vector.broadcast %cst_25 : f32 to vector<32x128xf32>
    %31 = arith.maximumf %29, %30 : vector<32x128xf32>
    %32 = arith.truncf %31 : vector<32x128xf32> to vector<32x128xbf16>
    %c0_26 = arith.constant 0 : index
    %c0_27 = arith.constant 0 : index
    %c0_28 = arith.constant 0 : index
    %33 = vector.load %arg8[%c0_26, %c0_27, %c0_28] : memref<1x128x8xbf16, #tpu.memory_space<vmem>>, vector<1x128x8xbf16>
    %34 = vector.shape_cast %33 : vector<1x128x8xbf16> to vector<128x8xbf16>
    %cst_29 = arith.constant dense<0.000000e+00> : vector<32x8xf32>
    %35 = tpu.matmul %32, %34, %cst_29 {dimension_numbers = #tpu.dot_dimension_numbers<[1], [0], [0], [1], [0, 0, 1, 1], [], []>} : vector<32x128xbf16>, vector<128x8xbf16>, vector<32x8xf32> -> vector<32x8xf32>
    %c0_30 = arith.constant 0 : index
    %c0_31 = arith.constant 0 : index
    %c0_32 = arith.constant 0 : index
    %36 = vector.load %arg9[%c0_30, %c0_31, %c0_32] : memref<1x1x8xf32, #tpu.memory_space<vmem>>, vector<1x1x8xf32>
    %37 = vector.shape_cast %36 : vector<1x1x8xf32> to vector<1x8xf32>
    %38 = vector.broadcast %37 : vector<1x8xf32> to vector<32x8xf32>
    %39 = arith.addf %35, %38 : vector<32x8xf32>
    %cst_33 = arith.constant 0.000000e+00 : f32
    %40 = vector.broadcast %cst_33 : f32 to vector<32x8xf32>
    %41 = arith.maximumf %39, %40 : vector<32x8xf32>
    %42 = arith.truncf %41 : vector<32x8xf32> to vector<32x8xbf16>
    %c0_34 = arith.constant 0 : index
    %c0_35 = arith.constant 0 : index
    %c0_36 = arith.constant 0 : index
    %43 = vector.load %arg10[%c0_34, %c0_35, %c0_36] : memref<1x8x128xbf16, #tpu.memory_space<vmem>>, vector<1x8x128xbf16>
    %44 = vector.shape_cast %43 : vector<1x8x128xbf16> to vector<8x128xbf16>
    %cst_37 = arith.constant dense<0.000000e+00> : vector<32x128xf32>
    %45 = tpu.matmul %42, %44, %cst_37 {dimension_numbers = #tpu.dot_dimension_numbers<[1], [0], [0], [1], [0, 0, 1, 1], [], []>} : vector<32x8xbf16>, vector<8x128xbf16>, vector<32x128xf32> -> vector<32x128xf32>
    %c0_38 = arith.constant 0 : index
    %c0_39 = arith.constant 0 : index
    %c0_40 = arith.constant 0 : index
    %46 = vector.load %arg11[%c0_38, %c0_39, %c0_40] : memref<1x1x128xf32, #tpu.memory_space<vmem>>, vector<1x1x128xf32>
    %47 = vector.shape_cast %46 : vector<1x1x128xf32> to vector<1x128xf32>
    %48 = vector.broadcast %47 : vector<1x128xf32> to vector<32x128xf32>
    %49 = arith.addf %45, %48 : vector<32x128xf32>
    %50 = arith.negf %49 : vector<32x128xf32>
    %51 = math.exp %50 : vector<32x128xf32>
    %cst_41 = arith.constant 1.000000e+00 : f32
    %52 = vector.broadcast %cst_41 : f32 to vector<32x128xf32>
    %53 = arith.addf %52, %51 : vector<32x128xf32>
    %54 = arith.divf %52, %53 : vector<32x128xf32>
    %55 = arith.mulf %31, %54 : vector<32x128xf32>
    %56 = vector.shape_cast %55 : vector<32x128xf32> to vector<2x16x128xf32>
    %57 = arith.truncf %56 : vector<2x16x128xf32> to vector<2x16x128xbf16>
    %c0_42 = arith.constant 0 : index
    %c0_43 = arith.constant 0 : index
    %c0_44 = arith.constant 0 : index
    %c0_45 = arith.constant 0 : index
    %58 = vector.load %arg12[%c0_42, %c0_43, %c0_44, %c0_45] : memref<1x2x16x128xbf16, #tpu.memory_space<vmem>>, vector<1x2x16x128xbf16>
    %59 = vector.shape_cast %58 : vector<1x2x16x128xbf16> to vector<2x16x128xbf16>
    %60 = vector.shape_cast %57 : vector<2x16x128xbf16> to vector<1x2x16x128xbf16>
    tpu.vector_store %arg12[%c0_42, %c0_43, %c0_44, %c0_45], %60 {strides = array<i32>} : memref<1x2x16x128xbf16, #tpu.memory_space<vmem>>, vector<1x2x16x128xbf16>,
    %cst_46 = arith.constant dense<0.000000e+00> : vector<2x128xf32>
    %61 = vector.multi_reduction <add>, %56, %cst_46 [1] : vector<2x16x128xf32> to vector<2x128xf32>
    %cst_47 = arith.constant 1.600000e+01 : f32
    %62 = vector.broadcast %cst_47 : f32 to vector<2x128xf32>
    %63 = arith.divf %61, %62 : vector<2x128xf32>
    %c0_48 = arith.constant 0 : index
    %c0_49 = arith.constant 0 : index
    %c0_50 = arith.constant 0 : index
    %64 = vector.load %arg13[%c0_48, %c0_49, %c0_50] : memref<1x2x128xf32, #tpu.memory_space<vmem>>, vector<1x2x128xf32>
    %65 = vector.shape_cast %64 : vector<1x2x128xf32> to vector<2x128xf32>
    %66 = vector.shape_cast %63 : vector<2x128xf32> to vector<1x2x128xf32>
    tpu.vector_store %arg13[%c0_48, %c0_49, %c0_50], %66 {strides = array<i32>} : memref<1x2x128xf32, #tpu.memory_space<vmem>>, vector<1x2x128xf32>,
    return
  }
  func.func @transform_0(%arg0: i32) -> (i32, i32, i32, i32) {
    %c0_i32 = arith.constant 0 : i32
    %c0_i32_0 = arith.constant 0 : i32
    %c0_i32_1 = arith.constant 0 : i32
    %c0_i32_2 = arith.constant 0 : i32
    return %arg0, %c0_i32, %c0_i32_0, %c0_i32_1 : i32, i32, i32, i32
  }
  func.func @transform_1(%arg0: i32) -> (i32, i32, i32) {
    %c0_i32 = arith.constant 0 : i32
    %c0_i32_0 = arith.constant 0 : i32
    %c0_i32_1 = arith.constant 0 : i32
    return %arg0, %c0_i32, %c0_i32_0 : i32, i32, i32
  }
  func.func @transform_2(%arg0: i32) -> (i32, i32, i32) {
    %c0_i32 = arith.constant 0 : i32
    %c0_i32_0 = arith.constant 0 : i32
    %c0_i32_1 = arith.constant 0 : i32
    return %arg0, %c0_i32, %c0_i32_0 : i32, i32, i32
  }
  func.func @transform_3(%arg0: i32) -> (i32, i32, i32) {
    %c0_i32 = arith.constant 0 : i32
    %c0_i32_0 = arith.constant 0 : i32
    %c0_i32_1 = arith.constant 0 : i32
    return %arg0, %c0_i32, %c0_i32_0 : i32, i32, i32
  }
  func.func @transform_4(%arg0: i32) -> (i32, i32, i32) {
    %c0_i32 = arith.constant 0 : i32
    %c0_i32_0 = arith.constant 0 : i32
    %c0_i32_1 = arith.constant 0 : i32
    return %arg0, %c0_i32, %c0_i32_0 : i32, i32, i32
  }
  func.func @transform_5(%arg0: i32) -> (i32, i32, i32) {
    %c0_i32 = arith.constant 0 : i32
    %c0_i32_0 = arith.constant 0 : i32
    %c0_i32_1 = arith.constant 0 : i32
    return %arg0, %c0_i32, %c0_i32_0 : i32, i32, i32
  }
  func.func @transform_6(%arg0: i32) -> (i32, i32, i32) {
    %c0_i32 = arith.constant 0 : i32
    %c0_i32_0 = arith.constant 0 : i32
    %c0_i32_1 = arith.constant 0 : i32
    return %arg0, %c0_i32, %c0_i32_0 : i32, i32, i32
  }
  func.func @transform_7(%arg0: i32) -> (i32, i32, i32) {
    %c0_i32 = arith.constant 0 : i32
    %c0_i32_0 = arith.constant 0 : i32
    %c0_i32_1 = arith.constant 0 : i32
    return %arg0, %c0_i32, %c0_i32_0 : i32, i32, i32
  }
  func.func @transform_8(%arg0: i32) -> (i32, i32, i32) {
    %c0_i32 = arith.constant 0 : i32
    %c0_i32_0 = arith.constant 0 : i32
    %c0_i32_1 = arith.constant 0 : i32
    return %arg0, %c0_i32, %c0_i32_0 : i32, i32, i32
  }
  func.func @transform_9(%arg0: i32) -> (i32, i32, i32) {
    %c0_i32 = arith.constant 0 : i32
    %c0_i32_0 = arith.constant 0 : i32
    %c0_i32_1 = arith.constant 0 : i32
    return %arg0, %c0_i32, %c0_i32_0 : i32, i32, i32
  }
  func.func @transform_10(%arg0: i32) -> (i32, i32, i32) {
    %c0_i32 = arith.constant 0 : i32
    %c0_i32_0 = arith.constant 0 : i32
    %c0_i32_1 = arith.constant 0 : i32
    return %arg0, %c0_i32, %c0_i32_0 : i32, i32, i32
  }
  func.func @transform_11(%arg0: i32) -> (i32, i32, i32, i32) {
    %c0_i32 = arith.constant 0 : i32
    %c0_i32_0 = arith.constant 0 : i32
    %c0_i32_1 = arith.constant 0 : i32
    %c0_i32_2 = arith.constant 0 : i32
    return %arg0, %c0_i32, %c0_i32_0, %c0_i32_1 : i32, i32, i32, i32
  }
  func.func @transform_12(%arg0: i32) -> (i32, i32, i32) {
    %c0_i32 = arith.constant 0 : i32
    %c0_i32_0 = arith.constant 0 : i32
    %c0_i32_1 = arith.constant 0 : i32
    return %arg0, %c0_i32, %c0_i32_0 : i32, i32, i32
  }
}

module attributes {stable_mosaic.version = 11 : i64} {
  func.func @_head_kernel(%arg0: i32, %arg1: memref<2x16x128xbf16, #tpu.memory_space<vmem>>, %arg2: memref<2x16x128xbf16, #tpu.memory_space<vmem>>, %arg3: memref<2x128xf32, #tpu.memory_space<vmem>>, %arg4: memref<2x128xf32, #tpu.memory_space<vmem>>, %arg5: memref<512x256xbf16, #tpu.memory_space<vmem>>, %arg6: memref<1x256xf32, #tpu.memory_space<vmem>>, %arg7: memref<1x256xf32, #tpu.memory_space<vmem>>, %arg8: memref<1x256xf32, #tpu.memory_space<vmem>>, %arg9: memref<256x128xbf16, #tpu.memory_space<vmem>>, %arg10: memref<1x128xf32, #tpu.memory_space<vmem>>, %arg11: memref<1x128xf32, #tpu.memory_space<vmem>>, %arg12: memref<1x128xf32, #tpu.memory_space<vmem>>, %arg13: memref<128x64xbf16, #tpu.memory_space<vmem>>, %arg14: memref<1x64xf32, #tpu.memory_space<vmem>>, %arg15: memref<64x2xbf16, #tpu.memory_space<vmem>>, %arg16: memref<1x2xf32, #tpu.memory_space<vmem>>, %arg17: memref<2x2xf32, #tpu.memory_space<vmem>>) attributes {dimension_semantics = [#tpu.dimension_semantics<arbitrary>], iteration_bounds = array<i64: 1>, scalar_prefetch = 0 : i64, scratch_operands = 0 : i64, tpu.core_type = #tpu.core_type<tc>, window_params = [{pipeline_mode = #tpu.pipeline_mode<synchronous>, transform_indices = @transform_0, window_bounds = array<i64: 2, 16, 128>}, {pipeline_mode = #tpu.pipeline_mode<synchronous>, transform_indices = @transform_1, window_bounds = array<i64: 2, 16, 128>}, {pipeline_mode = #tpu.pipeline_mode<synchronous>, transform_indices = @transform_2, window_bounds = array<i64: 2, 128>}, {pipeline_mode = #tpu.pipeline_mode<synchronous>, transform_indices = @transform_3, window_bounds = array<i64: 2, 128>}, {pipeline_mode = #tpu.pipeline_mode<synchronous>, transform_indices = @transform_4, window_bounds = array<i64: 512, 256>}, {pipeline_mode = #tpu.pipeline_mode<synchronous>, transform_indices = @transform_5, window_bounds = array<i64: 1, 256>}, {pipeline_mode = #tpu.pipeline_mode<synchronous>, transform_indices = @transform_6, window_bounds = array<i64: 1, 256>}, {pipeline_mode = #tpu.pipeline_mode<synchronous>, transform_indices = @transform_7, window_bounds = array<i64: 1, 256>}, {pipeline_mode = #tpu.pipeline_mode<synchronous>, transform_indices = @transform_8, window_bounds = array<i64: 256, 128>}, {pipeline_mode = #tpu.pipeline_mode<synchronous>, transform_indices = @transform_9, window_bounds = array<i64: 1, 128>}, {pipeline_mode = #tpu.pipeline_mode<synchronous>, transform_indices = @transform_10, window_bounds = array<i64: 1, 128>}, {pipeline_mode = #tpu.pipeline_mode<synchronous>, transform_indices = @transform_11, window_bounds = array<i64: 1, 128>}, {pipeline_mode = #tpu.pipeline_mode<synchronous>, transform_indices = @transform_12, window_bounds = array<i64: 128, 64>}, {pipeline_mode = #tpu.pipeline_mode<synchronous>, transform_indices = @transform_13, window_bounds = array<i64: 1, 64>}, {pipeline_mode = #tpu.pipeline_mode<synchronous>, transform_indices = @transform_14, window_bounds = array<i64: 64, 2>}, {pipeline_mode = #tpu.pipeline_mode<synchronous>, transform_indices = @transform_15, window_bounds = array<i64: 1, 2>}, {pipeline_mode = #tpu.pipeline_mode<synchronous>, transform_indices = @transform_16, window_bounds = array<i64: 2, 2>}]} {
    %c0 = arith.constant 0 : index
    %c0_0 = arith.constant 0 : index
    %c0_1 = arith.constant 0 : index
    %0 = vector.load %arg1[%c0, %c0_0, %c0_1] : memref<2x16x128xbf16, #tpu.memory_space<vmem>>, vector<2x16x128xbf16>
    %1 = arith.extf %0 : vector<2x16x128xbf16> to vector<2x16x128xf32>
    %cst = arith.constant dense<0.000000e+00> : vector<2x128xf32>
    %2 = vector.multi_reduction <add>, %1, %cst [1] : vector<2x16x128xf32> to vector<2x128xf32>
    %cst_2 = arith.constant 1.600000e+01 : f32
    %3 = vector.broadcast %cst_2 : f32 to vector<2x128xf32>
    %4 = arith.divf %2, %3 : vector<2x128xf32>
    %c0_3 = arith.constant 0 : index
    %c0_4 = arith.constant 0 : index
    %c0_5 = arith.constant 0 : index
    %5 = vector.load %arg2[%c0_3, %c0_4, %c0_5] : memref<2x16x128xbf16, #tpu.memory_space<vmem>>, vector<2x16x128xbf16>
    %6 = arith.extf %5 : vector<2x16x128xbf16> to vector<2x16x128xf32>
    %cst_6 = arith.constant dense<0.000000e+00> : vector<2x128xf32>
    %7 = vector.multi_reduction <add>, %6, %cst_6 [1] : vector<2x16x128xf32> to vector<2x128xf32>
    %cst_7 = arith.constant 1.600000e+01 : f32
    %8 = vector.broadcast %cst_7 : f32 to vector<2x128xf32>
    %9 = arith.divf %7, %8 : vector<2x128xf32>
    %c0_8 = arith.constant 0 : index
    %c0_9 = arith.constant 0 : index
    %10 = vector.load %arg3[%c0_8, %c0_9] : memref<2x128xf32, #tpu.memory_space<vmem>>, vector<2x128xf32>
    %c0_10 = arith.constant 0 : index
    %c0_11 = arith.constant 0 : index
    %11 = vector.load %arg4[%c0_10, %c0_11] : memref<2x128xf32, #tpu.memory_space<vmem>>, vector<2x128xf32>
    %c0_12 = arith.constant 0 : index
    %c0_13 = arith.constant 0 : index
    %12 = vector.load %arg5[%c0_12, %c0_13] : memref<512x256xbf16, #tpu.memory_space<vmem>>, vector<512x256xbf16>
    %13 = arith.truncf %4 : vector<2x128xf32> to vector<2x128xbf16>
    %14 = vector.extract_strided_slice %12 {offsets = [0, 0], sizes = [128, 256], strides = [1, 1]} : vector<512x256xbf16> to vector<128x256xbf16>
    %cst_14 = arith.constant dense<0.000000e+00> : vector<2x256xf32>
    %15 = tpu.matmul %13, %14, %cst_14 {dimension_numbers = #tpu.dot_dimension_numbers<[1], [0], [0], [1], [0, 0, 1, 1], [], []>} : vector<2x128xbf16>, vector<128x256xbf16>, vector<2x256xf32> -> vector<2x256xf32>
    %16 = arith.truncf %9 : vector<2x128xf32> to vector<2x128xbf16>
    %17 = vector.extract_strided_slice %12 {offsets = [128, 0], sizes = [128, 256], strides = [1, 1]} : vector<512x256xbf16> to vector<128x256xbf16>
    %cst_15 = arith.constant dense<0.000000e+00> : vector<2x256xf32>
    %18 = tpu.matmul %16, %17, %cst_15 {dimension_numbers = #tpu.dot_dimension_numbers<[1], [0], [0], [1], [0, 0, 1, 1], [], []>} : vector<2x128xbf16>, vector<128x256xbf16>, vector<2x256xf32> -> vector<2x256xf32>
    %19 = arith.addf %15, %18 : vector<2x256xf32>
    %20 = arith.truncf %10 : vector<2x128xf32> to vector<2x128xbf16>
    %21 = vector.extract_strided_slice %12 {offsets = [256, 0], sizes = [128, 256], strides = [1, 1]} : vector<512x256xbf16> to vector<128x256xbf16>
    %cst_16 = arith.constant dense<0.000000e+00> : vector<2x256xf32>
    %22 = tpu.matmul %20, %21, %cst_16 {dimension_numbers = #tpu.dot_dimension_numbers<[1], [0], [0], [1], [0, 0, 1, 1], [], []>} : vector<2x128xbf16>, vector<128x256xbf16>, vector<2x256xf32> -> vector<2x256xf32>
    %23 = arith.addf %19, %22 : vector<2x256xf32>
    %24 = arith.truncf %11 : vector<2x128xf32> to vector<2x128xbf16>
    %25 = vector.extract_strided_slice %12 {offsets = [384, 0], sizes = [128, 256], strides = [1, 1]} : vector<512x256xbf16> to vector<128x256xbf16>
    %cst_17 = arith.constant dense<0.000000e+00> : vector<2x256xf32>
    %26 = tpu.matmul %24, %25, %cst_17 {dimension_numbers = #tpu.dot_dimension_numbers<[1], [0], [0], [1], [0, 0, 1, 1], [], []>} : vector<2x128xbf16>, vector<128x256xbf16>, vector<2x256xf32> -> vector<2x256xf32>
    %27 = arith.addf %23, %26 : vector<2x256xf32>
    %c0_18 = arith.constant 0 : index
    %c0_19 = arith.constant 0 : index
    %28 = vector.load %arg6[%c0_18, %c0_19] : memref<1x256xf32, #tpu.memory_space<vmem>>, vector<1x256xf32>
    %29 = vector.broadcast %28 : vector<1x256xf32> to vector<2x256xf32>
    %30 = arith.addf %27, %29 : vector<2x256xf32>
    %c0_20 = arith.constant 0 : index
    %c0_21 = arith.constant 0 : index
    %31 = vector.load %arg7[%c0_20, %c0_21] : memref<1x256xf32, #tpu.memory_space<vmem>>, vector<1x256xf32>
    %c0_22 = arith.constant 0 : index
    %c0_23 = arith.constant 0 : index
    %32 = vector.load %arg8[%c0_22, %c0_23] : memref<1x256xf32, #tpu.memory_space<vmem>>, vector<1x256xf32>
    %cst_24 = arith.constant dense<0.000000e+00> : vector<2xf32>
    %33 = vector.multi_reduction <add>, %30, %cst_24 [1] : vector<2x256xf32> to vector<2xf32>
    %34 = vector.shape_cast %33 : vector<2xf32> to vector<2x1xf32>
    %cst_25 = arith.constant 2.560000e+02 : f32
    %35 = vector.broadcast %cst_25 : f32 to vector<2x1xf32>
    %36 = arith.divf %34, %35 : vector<2x1xf32>
    %37 = vector.broadcast %36 : vector<2x1xf32> to vector<2x256xf32>
    %38 = arith.subf %30, %37 : vector<2x256xf32>
    %39 = arith.mulf %38, %38 : vector<2x256xf32>
    %cst_26 = arith.constant dense<0.000000e+00> : vector<2xf32>
    %40 = vector.multi_reduction <add>, %39, %cst_26 [1] : vector<2x256xf32> to vector<2xf32>
    %41 = vector.shape_cast %40 : vector<2xf32> to vector<2x1xf32>
    %cst_27 = arith.constant 2.560000e+02 : f32
    %42 = vector.broadcast %cst_27 : f32 to vector<2x1xf32>
    %43 = arith.divf %41, %42 : vector<2x1xf32>
    %44 = vector.broadcast %36 : vector<2x1xf32> to vector<2x256xf32>
    %45 = arith.subf %30, %44 : vector<2x256xf32>
    %cst_28 = arith.constant 9.99999974E-6 : f32
    %46 = vector.broadcast %cst_28 : f32 to vector<2x1xf32>
    %47 = arith.addf %43, %46 : vector<2x1xf32>
    %48 = math.rsqrt %47 : vector<2x1xf32>
    %49 = vector.broadcast %48 : vector<2x1xf32> to vector<2x256xf32>
    %50 = arith.mulf %45, %49 : vector<2x256xf32>
    %51 = vector.broadcast %31 : vector<1x256xf32> to vector<2x256xf32>
    %52 = arith.mulf %50, %51 : vector<2x256xf32>
    %53 = vector.broadcast %32 : vector<1x256xf32> to vector<2x256xf32>
    %54 = arith.addf %52, %53 : vector<2x256xf32>
    %55 = arith.mulf %54, %54 : vector<2x256xf32>
    %56 = arith.mulf %54, %55 : vector<2x256xf32>
    %cst_29 = arith.constant 4.471500e-02 : f32
    %57 = vector.broadcast %cst_29 : f32 to vector<2x256xf32>
    %58 = arith.mulf %57, %56 : vector<2x256xf32>
    %59 = arith.addf %54, %58 : vector<2x256xf32>
    %cst_30 = arith.constant 0.797884583 : f32
    %60 = vector.broadcast %cst_30 : f32 to vector<2x256xf32>
    %61 = arith.mulf %60, %59 : vector<2x256xf32>
    %62 = math.tanh %61 : vector<2x256xf32>
    %cst_31 = arith.constant 1.000000e+00 : f32
    %63 = vector.broadcast %cst_31 : f32 to vector<2x256xf32>
    %64 = arith.addf %63, %62 : vector<2x256xf32>
    %cst_32 = arith.constant 5.000000e-01 : f32
    %65 = vector.broadcast %cst_32 : f32 to vector<2x256xf32>
    %66 = arith.mulf %65, %64 : vector<2x256xf32>
    %67 = arith.mulf %54, %66 : vector<2x256xf32>
    %68 = arith.truncf %67 : vector<2x256xf32> to vector<2x256xbf16>
    %c0_33 = arith.constant 0 : index
    %c0_34 = arith.constant 0 : index
    %69 = vector.load %arg9[%c0_33, %c0_34] : memref<256x128xbf16, #tpu.memory_space<vmem>>, vector<256x128xbf16>
    %cst_35 = arith.constant dense<0.000000e+00> : vector<2x128xf32>
    %70 = tpu.matmul %68, %69, %cst_35 {dimension_numbers = #tpu.dot_dimension_numbers<[1], [0], [0], [1], [0, 0, 1, 1], [], []>} : vector<2x256xbf16>, vector<256x128xbf16>, vector<2x128xf32> -> vector<2x128xf32>
    %c0_36 = arith.constant 0 : index
    %c0_37 = arith.constant 0 : index
    %71 = vector.load %arg10[%c0_36, %c0_37] : memref<1x128xf32, #tpu.memory_space<vmem>>, vector<1x128xf32>
    %72 = vector.broadcast %71 : vector<1x128xf32> to vector<2x128xf32>
    %73 = arith.addf %70, %72 : vector<2x128xf32>
    %c0_38 = arith.constant 0 : index
    %c0_39 = arith.constant 0 : index
    %74 = vector.load %arg11[%c0_38, %c0_39] : memref<1x128xf32, #tpu.memory_space<vmem>>, vector<1x128xf32>
    %c0_40 = arith.constant 0 : index
    %c0_41 = arith.constant 0 : index
    %75 = vector.load %arg12[%c0_40, %c0_41] : memref<1x128xf32, #tpu.memory_space<vmem>>, vector<1x128xf32>
    %cst_42 = arith.constant dense<0.000000e+00> : vector<2xf32>
    %76 = vector.multi_reduction <add>, %73, %cst_42 [1] : vector<2x128xf32> to vector<2xf32>
    %77 = vector.shape_cast %76 : vector<2xf32> to vector<2x1xf32>
    %cst_43 = arith.constant 1.280000e+02 : f32
    %78 = vector.broadcast %cst_43 : f32 to vector<2x1xf32>
    %79 = arith.divf %77, %78 : vector<2x1xf32>
    %80 = vector.broadcast %79 : vector<2x1xf32> to vector<2x128xf32>
    %81 = arith.subf %73, %80 : vector<2x128xf32>
    %82 = arith.mulf %81, %81 : vector<2x128xf32>
    %cst_44 = arith.constant dense<0.000000e+00> : vector<2xf32>
    %83 = vector.multi_reduction <add>, %82, %cst_44 [1] : vector<2x128xf32> to vector<2xf32>
    %84 = vector.shape_cast %83 : vector<2xf32> to vector<2x1xf32>
    %cst_45 = arith.constant 1.280000e+02 : f32
    %85 = vector.broadcast %cst_45 : f32 to vector<2x1xf32>
    %86 = arith.divf %84, %85 : vector<2x1xf32>
    %87 = vector.broadcast %79 : vector<2x1xf32> to vector<2x128xf32>
    %88 = arith.subf %73, %87 : vector<2x128xf32>
    %cst_46 = arith.constant 9.99999974E-6 : f32
    %89 = vector.broadcast %cst_46 : f32 to vector<2x1xf32>
    %90 = arith.addf %86, %89 : vector<2x1xf32>
    %91 = math.rsqrt %90 : vector<2x1xf32>
    %92 = vector.broadcast %91 : vector<2x1xf32> to vector<2x128xf32>
    %93 = arith.mulf %88, %92 : vector<2x128xf32>
    %94 = vector.broadcast %74 : vector<1x128xf32> to vector<2x128xf32>
    %95 = arith.mulf %93, %94 : vector<2x128xf32>
    %96 = vector.broadcast %75 : vector<1x128xf32> to vector<2x128xf32>
    %97 = arith.addf %95, %96 : vector<2x128xf32>
    %98 = arith.mulf %97, %97 : vector<2x128xf32>
    %99 = arith.mulf %97, %98 : vector<2x128xf32>
    %cst_47 = arith.constant 4.471500e-02 : f32
    %100 = vector.broadcast %cst_47 : f32 to vector<2x128xf32>
    %101 = arith.mulf %100, %99 : vector<2x128xf32>
    %102 = arith.addf %97, %101 : vector<2x128xf32>
    %cst_48 = arith.constant 0.797884583 : f32
    %103 = vector.broadcast %cst_48 : f32 to vector<2x128xf32>
    %104 = arith.mulf %103, %102 : vector<2x128xf32>
    %105 = math.tanh %104 : vector<2x128xf32>
    %cst_49 = arith.constant 1.000000e+00 : f32
    %106 = vector.broadcast %cst_49 : f32 to vector<2x128xf32>
    %107 = arith.addf %106, %105 : vector<2x128xf32>
    %cst_50 = arith.constant 5.000000e-01 : f32
    %108 = vector.broadcast %cst_50 : f32 to vector<2x128xf32>
    %109 = arith.mulf %108, %107 : vector<2x128xf32>
    %110 = arith.mulf %97, %109 : vector<2x128xf32>
    %111 = arith.truncf %110 : vector<2x128xf32> to vector<2x128xbf16>
    %c0_51 = arith.constant 0 : index
    %c0_52 = arith.constant 0 : index
    %112 = vector.load %arg13[%c0_51, %c0_52] : memref<128x64xbf16, #tpu.memory_space<vmem>>, vector<128x64xbf16>
    %cst_53 = arith.constant dense<0.000000e+00> : vector<2x64xf32>
    %113 = tpu.matmul %111, %112, %cst_53 {dimension_numbers = #tpu.dot_dimension_numbers<[1], [0], [0], [1], [0, 0, 1, 1], [], []>} : vector<2x128xbf16>, vector<128x64xbf16>, vector<2x64xf32> -> vector<2x64xf32>
    %c0_54 = arith.constant 0 : index
    %c0_55 = arith.constant 0 : index
    %114 = vector.load %arg14[%c0_54, %c0_55] : memref<1x64xf32, #tpu.memory_space<vmem>>, vector<1x64xf32>
    %115 = vector.broadcast %114 : vector<1x64xf32> to vector<2x64xf32>
    %116 = arith.addf %113, %115 : vector<2x64xf32>
    %117 = arith.mulf %116, %116 : vector<2x64xf32>
    %118 = arith.mulf %116, %117 : vector<2x64xf32>
    %cst_56 = arith.constant 4.471500e-02 : f32
    %119 = vector.broadcast %cst_56 : f32 to vector<2x64xf32>
    %120 = arith.mulf %119, %118 : vector<2x64xf32>
    %121 = arith.addf %116, %120 : vector<2x64xf32>
    %cst_57 = arith.constant 0.797884583 : f32
    %122 = vector.broadcast %cst_57 : f32 to vector<2x64xf32>
    %123 = arith.mulf %122, %121 : vector<2x64xf32>
    %124 = math.tanh %123 : vector<2x64xf32>
    %cst_58 = arith.constant 1.000000e+00 : f32
    %125 = vector.broadcast %cst_58 : f32 to vector<2x64xf32>
    %126 = arith.addf %125, %124 : vector<2x64xf32>
    %cst_59 = arith.constant 5.000000e-01 : f32
    %127 = vector.broadcast %cst_59 : f32 to vector<2x64xf32>
    %128 = arith.mulf %127, %126 : vector<2x64xf32>
    %129 = arith.mulf %116, %128 : vector<2x64xf32>
    %130 = arith.truncf %129 : vector<2x64xf32> to vector<2x64xbf16>
    %c0_60 = arith.constant 0 : index
    %c0_61 = arith.constant 0 : index
    %131 = vector.load %arg15[%c0_60, %c0_61] : memref<64x2xbf16, #tpu.memory_space<vmem>>, vector<64x2xbf16>
    %cst_62 = arith.constant dense<0.000000e+00> : vector<2x2xf32>
    %132 = tpu.matmul %130, %131, %cst_62 {dimension_numbers = #tpu.dot_dimension_numbers<[1], [0], [0], [1], [0, 0, 1, 1], [], []>} : vector<2x64xbf16>, vector<64x2xbf16>, vector<2x2xf32> -> vector<2x2xf32>
    %c0_63 = arith.constant 0 : index
    %c0_64 = arith.constant 0 : index
    %133 = vector.load %arg16[%c0_63, %c0_64] : memref<1x2xf32, #tpu.memory_space<vmem>>, vector<1x2xf32>
    %134 = vector.broadcast %133 : vector<1x2xf32> to vector<2x2xf32>
    %135 = arith.addf %132, %134 : vector<2x2xf32>
    %cst_65 = arith.constant 0.000000e+00 : f32
    %136 = vector.broadcast %cst_65 : f32 to vector<2x2xf32>
    %137 = arith.maximumf %135, %136 : vector<2x2xf32>
    %138 = math.absf %135 : vector<2x2xf32>
    %cst_66 = arith.constant 0.000000e+00 : f32
    %139 = vector.broadcast %cst_66 : f32 to vector<2x2xf32>
    %140 = arith.subf %139, %138 : vector<2x2xf32>
    %141 = math.exp %140 : vector<2x2xf32>
    %cst_67 = arith.constant 1.000000e+00 : f32
    %142 = vector.broadcast %cst_67 : f32 to vector<2x2xf32>
    %143 = arith.addf %142, %141 : vector<2x2xf32>
    %144 = math.log %143 : vector<2x2xf32>
    %145 = arith.addf %137, %144 : vector<2x2xf32>
    %146 = tpu.iota {dimensions = array<i32: 1>} : vector<2x2xi32>
    %c0_i32 = arith.constant 0 : i32
    %147 = vector.broadcast %c0_i32 : i32 to vector<2x2xi32>
    %148 = arith.cmpi eq, %146, %147 : vector<2x2xi32>
    %149 = arith.select %148, %135, %145 : vector<2x2xi1>, vector<2x2xf32>
    %c0_68 = arith.constant 0 : index
    %c0_69 = arith.constant 0 : index
    %150 = vector.load %arg17[%c0_68, %c0_69] : memref<2x2xf32, #tpu.memory_space<vmem>>, vector<2x2xf32>
    tpu.vector_store %arg17[%c0_68, %c0_69], %149 {strides = array<i32>} : memref<2x2xf32, #tpu.memory_space<vmem>>, vector<2x2xf32>,
    return
  }
  func.func @transform_0(%arg0: i32) -> (i32, i32, i32) {
    %c0_i32 = arith.constant 0 : i32
    %c0_i32_0 = arith.constant 0 : i32
    %c0_i32_1 = arith.constant 0 : i32
    %c0_i32_2 = arith.constant 0 : i32
    return %c0_i32, %c0_i32_0, %c0_i32_1 : i32, i32, i32
  }
  func.func @transform_1(%arg0: i32) -> (i32, i32, i32) {
    %c0_i32 = arith.constant 0 : i32
    %c0_i32_0 = arith.constant 0 : i32
    %c0_i32_1 = arith.constant 0 : i32
    %c0_i32_2 = arith.constant 0 : i32
    return %c0_i32, %c0_i32_0, %c0_i32_1 : i32, i32, i32
  }
  func.func @transform_2(%arg0: i32) -> (i32, i32) {
    %c0_i32 = arith.constant 0 : i32
    %c0_i32_0 = arith.constant 0 : i32
    %c0_i32_1 = arith.constant 0 : i32
    return %c0_i32, %c0_i32_0 : i32, i32
  }
  func.func @transform_3(%arg0: i32) -> (i32, i32) {
    %c0_i32 = arith.constant 0 : i32
    %c0_i32_0 = arith.constant 0 : i32
    %c0_i32_1 = arith.constant 0 : i32
    return %c0_i32, %c0_i32_0 : i32, i32
  }
  func.func @transform_4(%arg0: i32) -> (i32, i32) {
    %c0_i32 = arith.constant 0 : i32
    %c0_i32_0 = arith.constant 0 : i32
    %c0_i32_1 = arith.constant 0 : i32
    return %c0_i32, %c0_i32_0 : i32, i32
  }
  func.func @transform_5(%arg0: i32) -> (i32, i32) {
    %c0_i32 = arith.constant 0 : i32
    %c0_i32_0 = arith.constant 0 : i32
    %c0_i32_1 = arith.constant 0 : i32
    return %c0_i32, %c0_i32_0 : i32, i32
  }
  func.func @transform_6(%arg0: i32) -> (i32, i32) {
    %c0_i32 = arith.constant 0 : i32
    %c0_i32_0 = arith.constant 0 : i32
    %c0_i32_1 = arith.constant 0 : i32
    return %c0_i32, %c0_i32_0 : i32, i32
  }
  func.func @transform_7(%arg0: i32) -> (i32, i32) {
    %c0_i32 = arith.constant 0 : i32
    %c0_i32_0 = arith.constant 0 : i32
    %c0_i32_1 = arith.constant 0 : i32
    return %c0_i32, %c0_i32_0 : i32, i32
  }
  func.func @transform_8(%arg0: i32) -> (i32, i32) {
    %c0_i32 = arith.constant 0 : i32
    %c0_i32_0 = arith.constant 0 : i32
    %c0_i32_1 = arith.constant 0 : i32
    return %c0_i32, %c0_i32_0 : i32, i32
  }
  func.func @transform_9(%arg0: i32) -> (i32, i32) {
    %c0_i32 = arith.constant 0 : i32
    %c0_i32_0 = arith.constant 0 : i32
    %c0_i32_1 = arith.constant 0 : i32
    return %c0_i32, %c0_i32_0 : i32, i32
  }
  func.func @transform_10(%arg0: i32) -> (i32, i32) {
    %c0_i32 = arith.constant 0 : i32
    %c0_i32_0 = arith.constant 0 : i32
    %c0_i32_1 = arith.constant 0 : i32
    return %c0_i32, %c0_i32_0 : i32, i32
  }
  func.func @transform_11(%arg0: i32) -> (i32, i32) {
    %c0_i32 = arith.constant 0 : i32
    %c0_i32_0 = arith.constant 0 : i32
    %c0_i32_1 = arith.constant 0 : i32
    return %c0_i32, %c0_i32_0 : i32, i32
  }
  func.func @transform_12(%arg0: i32) -> (i32, i32) {
    %c0_i32 = arith.constant 0 : i32
    %c0_i32_0 = arith.constant 0 : i32
    %c0_i32_1 = arith.constant 0 : i32
    return %c0_i32, %c0_i32_0 : i32, i32
  }
  func.func @transform_13(%arg0: i32) -> (i32, i32) {
    %c0_i32 = arith.constant 0 : i32
    %c0_i32_0 = arith.constant 0 : i32
    %c0_i32_1 = arith.constant 0 : i32
    return %c0_i32, %c0_i32_0 : i32, i32
  }
  func.func @transform_14(%arg0: i32) -> (i32, i32) {
    %c0_i32 = arith.constant 0 : i32
    %c0_i32_0 = arith.constant 0 : i32
    %c0_i32_1 = arith.constant 0 : i32
    return %c0_i32, %c0_i32_0 : i32, i32
  }
  func.func @transform_15(%arg0: i32) -> (i32, i32) {
    %c0_i32 = arith.constant 0 : i32
    %c0_i32_0 = arith.constant 0 : i32
    %c0_i32_1 = arith.constant 0 : i32
    return %c0_i32, %c0_i32_0 : i32, i32
  }
  func.func @transform_16(%arg0: i32) -> (i32, i32) {
    %c0_i32 = arith.constant 0 : i32
    %c0_i32_0 = arith.constant 0 : i32
    %c0_i32_1 = arith.constant 0 : i32
    return %c0_i32, %c0_i32_0 : i32, i32
  }
}

module attributes {stable_mosaic.version = 11 : i64} {
  func.func @_stack_kernel(%arg0: i32, %arg1: memref<1x16x128xbf16, #tpu.memory_space<vmem>>, %arg2: memref<1x16x128xbf16, #tpu.memory_space<vmem>>, %arg3: memref<2x1x128xf32, #tpu.memory_space<vmem>>, %arg4: memref<2x1x128xf32, #tpu.memory_space<vmem>>, %arg5: memref<2x128x128xbf16, #tpu.memory_space<vmem>>, %arg6: memref<2x128x128xbf16, #tpu.memory_space<vmem>>, %arg7: memref<2x128x128xbf16, #tpu.memory_space<vmem>>, %arg8: memref<2x128x128xbf16, #tpu.memory_space<vmem>>, %arg9: memref<2x1x128xf32, #tpu.memory_space<vmem>>, %arg10: memref<2x1x128xf32, #tpu.memory_space<vmem>>, %arg11: memref<2x1x128xf32, #tpu.memory_space<vmem>>, %arg12: memref<2x128x512xbf16, #tpu.memory_space<vmem>>, %arg13: memref<2x1x512xf32, #tpu.memory_space<vmem>>, %arg14: memref<2x512x128xbf16, #tpu.memory_space<vmem>>, %arg15: memref<2x1x128xf32, #tpu.memory_space<vmem>>, %arg16: memref<1x16x128xbf16, #tpu.memory_space<vmem>>, %arg17: memref<1x16x128xbf16, #tpu.memory_space<vmem>>) attributes {dimension_semantics = [#tpu.dimension_semantics<parallel>], iteration_bounds = array<i64: 2>, scalar_prefetch = 0 : i64, scratch_operands = 0 : i64, tpu.core_type = #tpu.core_type<tc>, window_params = [{transform_indices = @transform_0, window_bounds = array<i64: 1, 16, 128>}, {transform_indices = @transform_1, window_bounds = array<i64: 1, 16, 128>}, {pipeline_mode = #tpu.pipeline_mode<synchronous>, transform_indices = @transform_2, window_bounds = array<i64: 2, 1, 128>}, {pipeline_mode = #tpu.pipeline_mode<synchronous>, transform_indices = @transform_3, window_bounds = array<i64: 2, 1, 128>}, {pipeline_mode = #tpu.pipeline_mode<synchronous>, transform_indices = @transform_4, window_bounds = array<i64: 2, 128, 128>}, {pipeline_mode = #tpu.pipeline_mode<synchronous>, transform_indices = @transform_5, window_bounds = array<i64: 2, 128, 128>}, {pipeline_mode = #tpu.pipeline_mode<synchronous>, transform_indices = @transform_6, window_bounds = array<i64: 2, 128, 128>}, {pipeline_mode = #tpu.pipeline_mode<synchronous>, transform_indices = @transform_7, window_bounds = array<i64: 2, 128, 128>}, {pipeline_mode = #tpu.pipeline_mode<synchronous>, transform_indices = @transform_8, window_bounds = array<i64: 2, 1, 128>}, {pipeline_mode = #tpu.pipeline_mode<synchronous>, transform_indices = @transform_9, window_bounds = array<i64: 2, 1, 128>}, {pipeline_mode = #tpu.pipeline_mode<synchronous>, transform_indices = @transform_10, window_bounds = array<i64: 2, 1, 128>}, {pipeline_mode = #tpu.pipeline_mode<synchronous>, transform_indices = @transform_11, window_bounds = array<i64: 2, 128, 512>}, {pipeline_mode = #tpu.pipeline_mode<synchronous>, transform_indices = @transform_12, window_bounds = array<i64: 2, 1, 512>}, {pipeline_mode = #tpu.pipeline_mode<synchronous>, transform_indices = @transform_13, window_bounds = array<i64: 2, 512, 128>}, {pipeline_mode = #tpu.pipeline_mode<synchronous>, transform_indices = @transform_14, window_bounds = array<i64: 2, 1, 128>}, {transform_indices = @transform_15, window_bounds = array<i64: 1, 16, 128>}, {transform_indices = @transform_16, window_bounds = array<i64: 1, 16, 128>}]} {
    %c0 = arith.constant 0 : index
    %c0_0 = arith.constant 0 : index
    %c0_1 = arith.constant 0 : index
    %0 = vector.load %arg1[%c0, %c0_0, %c0_1] : memref<1x16x128xbf16, #tpu.memory_space<vmem>>, vector<1x16x128xbf16>
    %1 = vector.shape_cast %0 : vector<1x16x128xbf16> to vector<16x128xbf16>
    %2 = arith.extf %1 : vector<16x128xbf16> to vector<16x128xf32>
    %c0_2 = arith.constant 0 : index
    %c0_3 = arith.constant 0 : index
    %c0_4 = arith.constant 0 : index
    %3 = vector.load %arg2[%c0_2, %c0_3, %c0_4] : memref<1x16x128xbf16, #tpu.memory_space<vmem>>, vector<1x16x128xbf16>
    %4 = vector.shape_cast %3 : vector<1x16x128xbf16> to vector<16x128xbf16>
    %5 = arith.extf %4 : vector<16x128xbf16> to vector<16x128xf32>
    %c0_5 = arith.constant 0 : index
    %c0_6 = arith.constant 0 : index
    %c0_7 = arith.constant 0 : index
    %6 = vector.load %arg3[%c0_5, %c0_6, %c0_7] : memref<2x1x128xf32, #tpu.memory_space<vmem>>, vector<1x1x128xf32>
    %7 = vector.shape_cast %6 : vector<1x1x128xf32> to vector<1x128xf32>
    %c0_8 = arith.constant 0 : index
    %c0_9 = arith.constant 0 : index
    %c0_10 = arith.constant 0 : index
    %8 = vector.load %arg4[%c0_8, %c0_9, %c0_10] : memref<2x1x128xf32, #tpu.memory_space<vmem>>, vector<1x1x128xf32>
    %9 = vector.shape_cast %8 : vector<1x1x128xf32> to vector<1x128xf32>
    %cst = arith.constant dense<0.000000e+00> : vector<16xf32>
    %10 = vector.multi_reduction <add>, %2, %cst [1] : vector<16x128xf32> to vector<16xf32>
    %11 = vector.shape_cast %10 : vector<16xf32> to vector<16x1xf32>
    %cst_11 = arith.constant 1.280000e+02 : f32
    %12 = vector.broadcast %cst_11 : f32 to vector<16x1xf32>
    %13 = arith.divf %11, %12 : vector<16x1xf32>
    %14 = vector.broadcast %13 : vector<16x1xf32> to vector<16x128xf32>
    %15 = arith.subf %2, %14 : vector<16x128xf32>
    %16 = arith.mulf %15, %15 : vector<16x128xf32>
    %cst_12 = arith.constant dense<0.000000e+00> : vector<16xf32>
    %17 = vector.multi_reduction <add>, %16, %cst_12 [1] : vector<16x128xf32> to vector<16xf32>
    %18 = vector.shape_cast %17 : vector<16xf32> to vector<16x1xf32>
    %cst_13 = arith.constant 1.280000e+02 : f32
    %19 = vector.broadcast %cst_13 : f32 to vector<16x1xf32>
    %20 = arith.divf %18, %19 : vector<16x1xf32>
    %21 = vector.broadcast %13 : vector<16x1xf32> to vector<16x128xf32>
    %22 = arith.subf %2, %21 : vector<16x128xf32>
    %cst_14 = arith.constant 9.99999974E-6 : f32
    %23 = vector.broadcast %cst_14 : f32 to vector<16x1xf32>
    %24 = arith.addf %20, %23 : vector<16x1xf32>
    %25 = math.rsqrt %24 : vector<16x1xf32>
    %26 = vector.broadcast %25 : vector<16x1xf32> to vector<16x128xf32>
    %27 = arith.mulf %22, %26 : vector<16x128xf32>
    %28 = vector.broadcast %7 : vector<1x128xf32> to vector<16x128xf32>
    %29 = arith.mulf %27, %28 : vector<16x128xf32>
    %30 = vector.broadcast %9 : vector<1x128xf32> to vector<16x128xf32>
    %31 = arith.addf %29, %30 : vector<16x128xf32>
    %32 = arith.truncf %31 : vector<16x128xf32> to vector<16x128xbf16>
    %cst_15 = arith.constant dense<0.000000e+00> : vector<16xf32>
    %33 = vector.multi_reduction <add>, %5, %cst_15 [1] : vector<16x128xf32> to vector<16xf32>
    %34 = vector.shape_cast %33 : vector<16xf32> to vector<16x1xf32>
    %cst_16 = arith.constant 1.280000e+02 : f32
    %35 = vector.broadcast %cst_16 : f32 to vector<16x1xf32>
    %36 = arith.divf %34, %35 : vector<16x1xf32>
    %37 = vector.broadcast %36 : vector<16x1xf32> to vector<16x128xf32>
    %38 = arith.subf %5, %37 : vector<16x128xf32>
    %39 = arith.mulf %38, %38 : vector<16x128xf32>
    %cst_17 = arith.constant dense<0.000000e+00> : vector<16xf32>
    %40 = vector.multi_reduction <add>, %39, %cst_17 [1] : vector<16x128xf32> to vector<16xf32>
    %41 = vector.shape_cast %40 : vector<16xf32> to vector<16x1xf32>
    %cst_18 = arith.constant 1.280000e+02 : f32
    %42 = vector.broadcast %cst_18 : f32 to vector<16x1xf32>
    %43 = arith.divf %41, %42 : vector<16x1xf32>
    %44 = vector.broadcast %36 : vector<16x1xf32> to vector<16x128xf32>
    %45 = arith.subf %5, %44 : vector<16x128xf32>
    %cst_19 = arith.constant 9.99999974E-6 : f32
    %46 = vector.broadcast %cst_19 : f32 to vector<16x1xf32>
    %47 = arith.addf %43, %46 : vector<16x1xf32>
    %48 = math.rsqrt %47 : vector<16x1xf32>
    %49 = vector.broadcast %48 : vector<16x1xf32> to vector<16x128xf32>
    %50 = arith.mulf %45, %49 : vector<16x128xf32>
    %51 = vector.broadcast %7 : vector<1x128xf32> to vector<16x128xf32>
    %52 = arith.mulf %50, %51 : vector<16x128xf32>
    %53 = vector.broadcast %9 : vector<1x128xf32> to vector<16x128xf32>
    %54 = arith.addf %52, %53 : vector<16x128xf32>
    %55 = arith.truncf %54 : vector<16x128xf32> to vector<16x128xbf16>
    %c0_20 = arith.constant 0 : index
    %c0_21 = arith.constant 0 : index
    %c0_22 = arith.constant 0 : index
    %56 = vector.load %arg5[%c0_20, %c0_21, %c0_22] : memref<2x128x128xbf16, #tpu.memory_space<vmem>>, vector<1x128x128xbf16>
    %57 = vector.shape_cast %56 : vector<1x128x128xbf16> to vector<128x128xbf16>
    %cst_23 = arith.constant dense<0.000000e+00> : vector<16x128xf32>
    %58 = tpu.matmul %32, %57, %cst_23 {dimension_numbers = #tpu.dot_dimension_numbers<[1], [0], [0], [1], [0, 0, 1, 1], [], []>} : vector<16x128xbf16>, vector<128x128xbf16>, vector<16x128xf32> -> vector<16x128xf32>
    %c0_24 = arith.constant 0 : index
    %c0_25 = arith.constant 0 : index
    %c0_26 = arith.constant 0 : index
    %59 = vector.load %arg6[%c0_24, %c0_25, %c0_26] : memref<2x128x128xbf16, #tpu.memory_space<vmem>>, vector<1x128x128xbf16>
    %60 = vector.shape_cast %59 : vector<1x128x128xbf16> to vector<128x128xbf16>
    %cst_27 = arith.constant dense<0.000000e+00> : vector<16x128xf32>
    %61 = tpu.matmul %55, %60, %cst_27 {dimension_numbers = #tpu.dot_dimension_numbers<[1], [0], [0], [1], [0, 0, 1, 1], [], []>} : vector<16x128xbf16>, vector<128x128xbf16>, vector<16x128xf32> -> vector<16x128xf32>
    %c0_28 = arith.constant 0 : index
    %c0_29 = arith.constant 0 : index
    %c0_30 = arith.constant 0 : index
    %62 = vector.load %arg7[%c0_28, %c0_29, %c0_30] : memref<2x128x128xbf16, #tpu.memory_space<vmem>>, vector<1x128x128xbf16>
    %63 = vector.shape_cast %62 : vector<1x128x128xbf16> to vector<128x128xbf16>
    %cst_31 = arith.constant dense<0.000000e+00> : vector<16x128xf32>
    %64 = tpu.matmul %55, %63, %cst_31 {dimension_numbers = #tpu.dot_dimension_numbers<[1], [0], [0], [1], [0, 0, 1, 1], [], []>} : vector<16x128xbf16>, vector<128x128xbf16>, vector<16x128xf32> -> vector<16x128xf32>
    %c0_32 = arith.constant 0 : index
    %c0_33 = arith.constant 0 : index
    %c0_34 = arith.constant 0 : index
    %65 = vector.load %arg8[%c0_32, %c0_33, %c0_34] : memref<2x128x128xbf16, #tpu.memory_space<vmem>>, vector<1x128x128xbf16>
    %66 = vector.shape_cast %65 : vector<1x128x128xbf16> to vector<128x128xbf16>
    %cst_35 = arith.constant 0.000000e+00 : f32
    %67 = vector.broadcast %cst_35 : f32 to vector<16x128xf32>
    %68 = vector.extract_strided_slice %58 {offsets = [0, 0], sizes = [16, 64], strides = [1, 1]} : vector<16x128xf32> to vector<16x64xf32>
    %69 = arith.truncf %68 : vector<16x64xf32> to vector<16x64xbf16>
    %70 = vector.extract_strided_slice %61 {offsets = [0, 0], sizes = [16, 64], strides = [1, 1]} : vector<16x128xf32> to vector<16x64xf32>
    %71 = arith.truncf %70 : vector<16x64xf32> to vector<16x64xbf16>
    %72 = tpu.transpose %71, [1, 0] : vector<16x64xbf16> -> vector<64x16xbf16>
    %cst_36 = arith.constant dense<0.000000e+00> : vector<16x16xf32>
    %73 = tpu.matmul %69, %72, %cst_36 {dimension_numbers = #tpu.dot_dimension_numbers<[1], [0], [0], [1], [0, 0, 1, 1], [], []>} : vector<16x64xbf16>, vector<64x16xbf16>, vector<16x16xf32> -> vector<16x16xf32>
    %cst_37 = arith.constant dense<0xFF800000> : vector<16xf32>
    %74 = vector.multi_reduction <maximumf>, %73, %cst_37 [1] : vector<16x16xf32> to vector<16xf32>
    %75 = vector.shape_cast %74 : vector<16xf32> to vector<16x1xf32>
    %76 = vector.broadcast %75 : vector<16x1xf32> to vector<16x16xf32>
    %77 = arith.subf %73, %76 : vector<16x16xf32>
    %78 = math.exp %77 : vector<16x16xf32>
    %cst_38 = arith.constant dense<0.000000e+00> : vector<16xf32>
    %79 = vector.multi_reduction <add>, %78, %cst_38 [1] : vector<16x16xf32> to vector<16xf32>
    %80 = vector.shape_cast %79 : vector<16xf32> to vector<16x1xf32>
    %81 = tpu.reciprocal %80 {approx = true} : vector<16x1xf32> -> vector<16x1xf32>
    %82 = vector.broadcast %81 : vector<16x1xf32> to vector<16x16xf32>
    %83 = arith.mulf %78, %82 : vector<16x16xf32>
    %84 = arith.truncf %83 : vector<16x16xf32> to vector<16x16xbf16>
    %85 = vector.extract_strided_slice %64 {offsets = [0, 0], sizes = [16, 64], strides = [1, 1]} : vector<16x128xf32> to vector<16x64xf32>
    %86 = arith.truncf %85 : vector<16x64xf32> to vector<16x64xbf16>
    %cst_39 = arith.constant dense<0.000000e+00> : vector<16x64xf32>
    %87 = tpu.matmul %84, %86, %cst_39 {dimension_numbers = #tpu.dot_dimension_numbers<[1], [0], [0], [1], [0, 0, 1, 1], [], []>} : vector<16x16xbf16>, vector<16x64xbf16>, vector<16x64xf32> -> vector<16x64xf32>
    %88 = arith.truncf %87 : vector<16x64xf32> to vector<16x64xbf16>
    %89 = vector.extract_strided_slice %66 {offsets = [0, 0], sizes = [64, 128], strides = [1, 1]} : vector<128x128xbf16> to vector<64x128xbf16>
    %cst_40 = arith.constant dense<0.000000e+00> : vector<16x128xf32>
    %90 = tpu.matmul %88, %89, %cst_40 {dimension_numbers = #tpu.dot_dimension_numbers<[1], [0], [0], [1], [0, 0, 1, 1], [], []>} : vector<16x64xbf16>, vector<64x128xbf16>, vector<16x128xf32> -> vector<16x128xf32>
    %91 = arith.addf %67, %90 : vector<16x128xf32>
    %92 = vector.extract_strided_slice %58 {offsets = [0, 64], sizes = [16, 64], strides = [1, 1]} : vector<16x128xf32> to vector<16x64xf32>
    %93 = arith.truncf %92 : vector<16x64xf32> to vector<16x64xbf16>
    %94 = vector.extract_strided_slice %61 {offsets = [0, 64], sizes = [16, 64], strides = [1, 1]} : vector<16x128xf32> to vector<16x64xf32>
    %95 = arith.truncf %94 : vector<16x64xf32> to vector<16x64xbf16>
    %96 = tpu.transpose %95, [1, 0] : vector<16x64xbf16> -> vector<64x16xbf16>
    %cst_41 = arith.constant dense<0.000000e+00> : vector<16x16xf32>
    %97 = tpu.matmul %93, %96, %cst_41 {dimension_numbers = #tpu.dot_dimension_numbers<[1], [0], [0], [1], [0, 0, 1, 1], [], []>} : vector<16x64xbf16>, vector<64x16xbf16>, vector<16x16xf32> -> vector<16x16xf32>
    %cst_42 = arith.constant dense<0xFF800000> : vector<16xf32>
    %98 = vector.multi_reduction <maximumf>, %97, %cst_42 [1] : vector<16x16xf32> to vector<16xf32>
    %99 = vector.shape_cast %98 : vector<16xf32> to vector<16x1xf32>
    %100 = vector.broadcast %99 : vector<16x1xf32> to vector<16x16xf32>
    %101 = arith.subf %97, %100 : vector<16x16xf32>
    %102 = math.exp %101 : vector<16x16xf32>
    %cst_43 = arith.constant dense<0.000000e+00> : vector<16xf32>
    %103 = vector.multi_reduction <add>, %102, %cst_43 [1] : vector<16x16xf32> to vector<16xf32>
    %104 = vector.shape_cast %103 : vector<16xf32> to vector<16x1xf32>
    %105 = tpu.reciprocal %104 {approx = true} : vector<16x1xf32> -> vector<16x1xf32>
    %106 = vector.broadcast %105 : vector<16x1xf32> to vector<16x16xf32>
    %107 = arith.mulf %102, %106 : vector<16x16xf32>
    %108 = arith.truncf %107 : vector<16x16xf32> to vector<16x16xbf16>
    %109 = vector.extract_strided_slice %64 {offsets = [0, 64], sizes = [16, 64], strides = [1, 1]} : vector<16x128xf32> to vector<16x64xf32>
    %110 = arith.truncf %109 : vector<16x64xf32> to vector<16x64xbf16>
    %cst_44 = arith.constant dense<0.000000e+00> : vector<16x64xf32>
    %111 = tpu.matmul %108, %110, %cst_44 {dimension_numbers = #tpu.dot_dimension_numbers<[1], [0], [0], [1], [0, 0, 1, 1], [], []>} : vector<16x16xbf16>, vector<16x64xbf16>, vector<16x64xf32> -> vector<16x64xf32>
    %112 = arith.truncf %111 : vector<16x64xf32> to vector<16x64xbf16>
    %113 = vector.extract_strided_slice %66 {offsets = [64, 0], sizes = [64, 128], strides = [1, 1]} : vector<128x128xbf16> to vector<64x128xbf16>
    %cst_45 = arith.constant dense<0.000000e+00> : vector<16x128xf32>
    %114 = tpu.matmul %112, %113, %cst_45 {dimension_numbers = #tpu.dot_dimension_numbers<[1], [0], [0], [1], [0, 0, 1, 1], [], []>} : vector<16x64xbf16>, vector<64x128xbf16>, vector<16x128xf32> -> vector<16x128xf32>
    %115 = arith.addf %91, %114 : vector<16x128xf32>
    %116 = arith.addf %2, %115 : vector<16x128xf32>
    %c0_46 = arith.constant 0 : index
    %c0_47 = arith.constant 0 : index
    %c0_48 = arith.constant 0 : index
    %117 = vector.load %arg9[%c0_46, %c0_47, %c0_48] : memref<2x1x128xf32, #tpu.memory_space<vmem>>, vector<1x1x128xf32>
    %118 = vector.shape_cast %117 : vector<1x1x128xf32> to vector<1x128xf32>
    %119 = vector.broadcast %118 : vector<1x128xf32> to vector<16x128xf32>
    %120 = arith.addf %116, %119 : vector<16x128xf32>
    %c0_49 = arith.constant 0 : index
    %c0_50 = arith.constant 0 : index
    %c0_51 = arith.constant 0 : index
    %121 = vector.load %arg10[%c0_49, %c0_50, %c0_51] : memref<2x1x128xf32, #tpu.memory_space<vmem>>, vector<1x1x128xf32>
    %122 = vector.shape_cast %121 : vector<1x1x128xf32> to vector<1x128xf32>
    %c0_52 = arith.constant 0 : index
    %c0_53 = arith.constant 0 : index
    %c0_54 = arith.constant 0 : index
    %123 = vector.load %arg11[%c0_52, %c0_53, %c0_54] : memref<2x1x128xf32, #tpu.memory_space<vmem>>, vector<1x1x128xf32>
    %124 = vector.shape_cast %123 : vector<1x1x128xf32> to vector<1x128xf32>
    %cst_55 = arith.constant dense<0.000000e+00> : vector<16xf32>
    %125 = vector.multi_reduction <add>, %120, %cst_55 [1] : vector<16x128xf32> to vector<16xf32>
    %126 = vector.shape_cast %125 : vector<16xf32> to vector<16x1xf32>
    %cst_56 = arith.constant 1.280000e+02 : f32
    %127 = vector.broadcast %cst_56 : f32 to vector<16x1xf32>
    %128 = arith.divf %126, %127 : vector<16x1xf32>
    %129 = vector.broadcast %128 : vector<16x1xf32> to vector<16x128xf32>
    %130 = arith.subf %120, %129 : vector<16x128xf32>
    %131 = arith.mulf %130, %130 : vector<16x128xf32>
    %cst_57 = arith.constant dense<0.000000e+00> : vector<16xf32>
    %132 = vector.multi_reduction <add>, %131, %cst_57 [1] : vector<16x128xf32> to vector<16xf32>
    %133 = vector.shape_cast %132 : vector<16xf32> to vector<16x1xf32>
    %cst_58 = arith.constant 1.280000e+02 : f32
    %134 = vector.broadcast %cst_58 : f32 to vector<16x1xf32>
    %135 = arith.divf %133, %134 : vector<16x1xf32>
    %136 = vector.broadcast %128 : vector<16x1xf32> to vector<16x128xf32>
    %137 = arith.subf %120, %136 : vector<16x128xf32>
    %cst_59 = arith.constant 9.99999974E-6 : f32
    %138 = vector.broadcast %cst_59 : f32 to vector<16x1xf32>
    %139 = arith.addf %135, %138 : vector<16x1xf32>
    %140 = math.rsqrt %139 : vector<16x1xf32>
    %141 = vector.broadcast %140 : vector<16x1xf32> to vector<16x128xf32>
    %142 = arith.mulf %137, %141 : vector<16x128xf32>
    %143 = vector.broadcast %122 : vector<1x128xf32> to vector<16x128xf32>
    %144 = arith.mulf %142, %143 : vector<16x128xf32>
    %145 = vector.broadcast %124 : vector<1x128xf32> to vector<16x128xf32>
    %146 = arith.addf %144, %145 : vector<16x128xf32>
    %147 = arith.truncf %146 : vector<16x128xf32> to vector<16x128xbf16>
    %c0_60 = arith.constant 0 : index
    %c0_61 = arith.constant 0 : index
    %c0_62 = arith.constant 0 : index
    %148 = vector.load %arg12[%c0_60, %c0_61, %c0_62] : memref<2x128x512xbf16, #tpu.memory_space<vmem>>, vector<1x128x512xbf16>
    %149 = vector.shape_cast %148 : vector<1x128x512xbf16> to vector<128x512xbf16>
    %cst_63 = arith.constant dense<0.000000e+00> : vector<16x512xf32>
    %150 = tpu.matmul %147, %149, %cst_63 {dimension_numbers = #tpu.dot_dimension_numbers<[1], [0], [0], [1], [0, 0, 1, 1], [], []>} : vector<16x128xbf16>, vector<128x512xbf16>, vector<16x512xf32> -> vector<16x512xf32>
    %c0_64 = arith.constant 0 : index
    %c0_65 = arith.constant 0 : index
    %c0_66 = arith.constant 0 : index
    %151 = vector.load %arg13[%c0_64, %c0_65, %c0_66] : memref<2x1x512xf32, #tpu.memory_space<vmem>>, vector<1x1x512xf32>
    %152 = vector.shape_cast %151 : vector<1x1x512xf32> to vector<1x512xf32>
    %153 = vector.broadcast %152 : vector<1x512xf32> to vector<16x512xf32>
    %154 = arith.addf %150, %153 : vector<16x512xf32>
    %155 = arith.mulf %154, %154 : vector<16x512xf32>
    %156 = arith.mulf %154, %155 : vector<16x512xf32>
    %cst_67 = arith.constant 4.471500e-02 : f32
    %157 = vector.broadcast %cst_67 : f32 to vector<16x512xf32>
    %158 = arith.mulf %157, %156 : vector<16x512xf32>
    %159 = arith.addf %154, %158 : vector<16x512xf32>
    %cst_68 = arith.constant 0.797884583 : f32
    %160 = vector.broadcast %cst_68 : f32 to vector<16x512xf32>
    %161 = arith.mulf %160, %159 : vector<16x512xf32>
    %162 = math.tanh %161 : vector<16x512xf32>
    %cst_69 = arith.constant 1.000000e+00 : f32
    %163 = vector.broadcast %cst_69 : f32 to vector<16x512xf32>
    %164 = arith.addf %163, %162 : vector<16x512xf32>
    %cst_70 = arith.constant 5.000000e-01 : f32
    %165 = vector.broadcast %cst_70 : f32 to vector<16x512xf32>
    %166 = arith.mulf %165, %164 : vector<16x512xf32>
    %167 = arith.mulf %154, %166 : vector<16x512xf32>
    %168 = arith.truncf %167 : vector<16x512xf32> to vector<16x512xbf16>
    %c0_71 = arith.constant 0 : index
    %c0_72 = arith.constant 0 : index
    %c0_73 = arith.constant 0 : index
    %169 = vector.load %arg14[%c0_71, %c0_72, %c0_73] : memref<2x512x128xbf16, #tpu.memory_space<vmem>>, vector<1x512x128xbf16>
    %170 = vector.shape_cast %169 : vector<1x512x128xbf16> to vector<512x128xbf16>
    %cst_74 = arith.constant dense<0.000000e+00> : vector<16x128xf32>
    %171 = tpu.matmul %168, %170, %cst_74 {dimension_numbers = #tpu.dot_dimension_numbers<[1], [0], [0], [1], [0, 0, 1, 1], [], []>} : vector<16x512xbf16>, vector<512x128xbf16>, vector<16x128xf32> -> vector<16x128xf32>
    %172 = arith.addf %120, %171 : vector<16x128xf32>
    %c0_75 = arith.constant 0 : index
    %c0_76 = arith.constant 0 : index
    %c0_77 = arith.constant 0 : index
    %173 = vector.load %arg15[%c0_75, %c0_76, %c0_77] : memref<2x1x128xf32, #tpu.memory_space<vmem>>, vector<1x1x128xf32>
    %174 = vector.shape_cast %173 : vector<1x1x128xf32> to vector<1x128xf32>
    %175 = vector.broadcast %174 : vector<1x128xf32> to vector<16x128xf32>
    %176 = arith.addf %172, %175 : vector<16x128xf32>
    %c0_78 = arith.constant 0 : index
    %c0_79 = arith.constant 0 : index
    %c0_80 = arith.constant 0 : index
    %177 = vector.load %arg3[%c0_78, %c0_79, %c0_80] : memref<2x1x128xf32, #tpu.memory_space<vmem>>, vector<1x1x128xf32>
    %178 = vector.shape_cast %177 : vector<1x1x128xf32> to vector<1x128xf32>
    %c0_81 = arith.constant 0 : index
    %c0_82 = arith.constant 0 : index
    %c0_83 = arith.constant 0 : index
    %179 = vector.load %arg4[%c0_81, %c0_82, %c0_83] : memref<2x1x128xf32, #tpu.memory_space<vmem>>, vector<1x1x128xf32>
    %180 = vector.shape_cast %179 : vector<1x1x128xf32> to vector<1x128xf32>
    %cst_84 = arith.constant dense<0.000000e+00> : vector<16xf32>
    %181 = vector.multi_reduction <add>, %5, %cst_84 [1] : vector<16x128xf32> to vector<16xf32>
    %182 = vector.shape_cast %181 : vector<16xf32> to vector<16x1xf32>
    %cst_85 = arith.constant 1.280000e+02 : f32
    %183 = vector.broadcast %cst_85 : f32 to vector<16x1xf32>
    %184 = arith.divf %182, %183 : vector<16x1xf32>
    %185 = vector.broadcast %184 : vector<16x1xf32> to vector<16x128xf32>
    %186 = arith.subf %5, %185 : vector<16x128xf32>
    %187 = arith.mulf %186, %186 : vector<16x128xf32>
    %cst_86 = arith.constant dense<0.000000e+00> : vector<16xf32>
    %188 = vector.multi_reduction <add>, %187, %cst_86 [1] : vector<16x128xf32> to vector<16xf32>
    %189 = vector.shape_cast %188 : vector<16xf32> to vector<16x1xf32>
    %cst_87 = arith.constant 1.280000e+02 : f32
    %190 = vector.broadcast %cst_87 : f32 to vector<16x1xf32>
    %191 = arith.divf %189, %190 : vector<16x1xf32>
    %192 = vector.broadcast %184 : vector<16x1xf32> to vector<16x128xf32>
    %193 = arith.subf %5, %192 : vector<16x128xf32>
    %cst_88 = arith.constant 9.99999974E-6 : f32
    %194 = vector.broadcast %cst_88 : f32 to vector<16x1xf32>
    %195 = arith.addf %191, %194 : vector<16x1xf32>
    %196 = math.rsqrt %195 : vector<16x1xf32>
    %197 = vector.broadcast %196 : vector<16x1xf32> to vector<16x128xf32>
    %198 = arith.mulf %193, %197 : vector<16x128xf32>
    %199 = vector.broadcast %178 : vector<1x128xf32> to vector<16x128xf32>
    %200 = arith.mulf %198, %199 : vector<16x128xf32>
    %201 = vector.broadcast %180 : vector<1x128xf32> to vector<16x128xf32>
    %202 = arith.addf %200, %201 : vector<16x128xf32>
    %203 = arith.truncf %202 : vector<16x128xf32> to vector<16x128xbf16>
    %cst_89 = arith.constant dense<0.000000e+00> : vector<16xf32>
    %204 = vector.multi_reduction <add>, %176, %cst_89 [1] : vector<16x128xf32> to vector<16xf32>
    %205 = vector.shape_cast %204 : vector<16xf32> to vector<16x1xf32>
    %cst_90 = arith.constant 1.280000e+02 : f32
    %206 = vector.broadcast %cst_90 : f32 to vector<16x1xf32>
    %207 = arith.divf %205, %206 : vector<16x1xf32>
    %208 = vector.broadcast %207 : vector<16x1xf32> to vector<16x128xf32>
    %209 = arith.subf %176, %208 : vector<16x128xf32>
    %210 = arith.mulf %209, %209 : vector<16x128xf32>
    %cst_91 = arith.constant dense<0.000000e+00> : vector<16xf32>
    %211 = vector.multi_reduction <add>, %210, %cst_91 [1] : vector<16x128xf32> to vector<16xf32>
    %212 = vector.shape_cast %211 : vector<16xf32> to vector<16x1xf32>
    %cst_92 = arith.constant 1.280000e+02 : f32
    %213 = vector.broadcast %cst_92 : f32 to vector<16x1xf32>
    %214 = arith.divf %212, %213 : vector<16x1xf32>
    %215 = vector.broadcast %207 : vector<16x1xf32> to vector<16x128xf32>
    %216 = arith.subf %176, %215 : vector<16x128xf32>
    %cst_93 = arith.constant 9.99999974E-6 : f32
    %217 = vector.broadcast %cst_93 : f32 to vector<16x1xf32>
    %218 = arith.addf %214, %217 : vector<16x1xf32>
    %219 = math.rsqrt %218 : vector<16x1xf32>
    %220 = vector.broadcast %219 : vector<16x1xf32> to vector<16x128xf32>
    %221 = arith.mulf %216, %220 : vector<16x128xf32>
    %222 = vector.broadcast %178 : vector<1x128xf32> to vector<16x128xf32>
    %223 = arith.mulf %221, %222 : vector<16x128xf32>
    %224 = vector.broadcast %180 : vector<1x128xf32> to vector<16x128xf32>
    %225 = arith.addf %223, %224 : vector<16x128xf32>
    %226 = arith.truncf %225 : vector<16x128xf32> to vector<16x128xbf16>
    %c0_94 = arith.constant 0 : index
    %c0_95 = arith.constant 0 : index
    %c0_96 = arith.constant 0 : index
    %227 = vector.load %arg5[%c0_94, %c0_95, %c0_96] : memref<2x128x128xbf16, #tpu.memory_space<vmem>>, vector<1x128x128xbf16>
    %228 = vector.shape_cast %227 : vector<1x128x128xbf16> to vector<128x128xbf16>
    %cst_97 = arith.constant dense<0.000000e+00> : vector<16x128xf32>
    %229 = tpu.matmul %203, %228, %cst_97 {dimension_numbers = #tpu.dot_dimension_numbers<[1], [0], [0], [1], [0, 0, 1, 1], [], []>} : vector<16x128xbf16>, vector<128x128xbf16>, vector<16x128xf32> -> vector<16x128xf32>
    %c0_98 = arith.constant 0 : index
    %c0_99 = arith.constant 0 : index
    %c0_100 = arith.constant 0 : index
    %230 = vector.load %arg6[%c0_98, %c0_99, %c0_100] : memref<2x128x128xbf16, #tpu.memory_space<vmem>>, vector<1x128x128xbf16>
    %231 = vector.shape_cast %230 : vector<1x128x128xbf16> to vector<128x128xbf16>
    %cst_101 = arith.constant dense<0.000000e+00> : vector<16x128xf32>
    %232 = tpu.matmul %226, %231, %cst_101 {dimension_numbers = #tpu.dot_dimension_numbers<[1], [0], [0], [1], [0, 0, 1, 1], [], []>} : vector<16x128xbf16>, vector<128x128xbf16>, vector<16x128xf32> -> vector<16x128xf32>
    %c0_102 = arith.constant 0 : index
    %c0_103 = arith.constant 0 : index
    %c0_104 = arith.constant 0 : index
    %233 = vector.load %arg7[%c0_102, %c0_103, %c0_104] : memref<2x128x128xbf16, #tpu.memory_space<vmem>>, vector<1x128x128xbf16>
    %234 = vector.shape_cast %233 : vector<1x128x128xbf16> to vector<128x128xbf16>
    %cst_105 = arith.constant dense<0.000000e+00> : vector<16x128xf32>
    %235 = tpu.matmul %226, %234, %cst_105 {dimension_numbers = #tpu.dot_dimension_numbers<[1], [0], [0], [1], [0, 0, 1, 1], [], []>} : vector<16x128xbf16>, vector<128x128xbf16>, vector<16x128xf32> -> vector<16x128xf32>
    %c0_106 = arith.constant 0 : index
    %c0_107 = arith.constant 0 : index
    %c0_108 = arith.constant 0 : index
    %236 = vector.load %arg8[%c0_106, %c0_107, %c0_108] : memref<2x128x128xbf16, #tpu.memory_space<vmem>>, vector<1x128x128xbf16>
    %237 = vector.shape_cast %236 : vector<1x128x128xbf16> to vector<128x128xbf16>
    %cst_109 = arith.constant 0.000000e+00 : f32
    %238 = vector.broadcast %cst_109 : f32 to vector<16x128xf32>
    %239 = vector.extract_strided_slice %229 {offsets = [0, 0], sizes = [16, 64], strides = [1, 1]} : vector<16x128xf32> to vector<16x64xf32>
    %240 = arith.truncf %239 : vector<16x64xf32> to vector<16x64xbf16>
    %241 = vector.extract_strided_slice %232 {offsets = [0, 0], sizes = [16, 64], strides = [1, 1]} : vector<16x128xf32> to vector<16x64xf32>
    %242 = arith.truncf %241 : vector<16x64xf32> to vector<16x64xbf16>
    %243 = tpu.transpose %242, [1, 0] : vector<16x64xbf16> -> vector<64x16xbf16>
    %cst_110 = arith.constant dense<0.000000e+00> : vector<16x16xf32>
    %244 = tpu.matmul %240, %243, %cst_110 {dimension_numbers = #tpu.dot_dimension_numbers<[1], [0], [0], [1], [0, 0, 1, 1], [], []>} : vector<16x64xbf16>, vector<64x16xbf16>, vector<16x16xf32> -> vector<16x16xf32>
    %cst_111 = arith.constant dense<0xFF800000> : vector<16xf32>
    %245 = vector.multi_reduction <maximumf>, %244, %cst_111 [1] : vector<16x16xf32> to vector<16xf32>
    %246 = vector.shape_cast %245 : vector<16xf32> to vector<16x1xf32>
    %247 = vector.broadcast %246 : vector<16x1xf32> to vector<16x16xf32>
    %248 = arith.subf %244, %247 : vector<16x16xf32>
    %249 = math.exp %248 : vector<16x16xf32>
    %cst_112 = arith.constant dense<0.000000e+00> : vector<16xf32>
    %250 = vector.multi_reduction <add>, %249, %cst_112 [1] : vector<16x16xf32> to vector<16xf32>
    %251 = vector.shape_cast %250 : vector<16xf32> to vector<16x1xf32>
    %252 = tpu.reciprocal %251 {approx = true} : vector<16x1xf32> -> vector<16x1xf32>
    %253 = vector.broadcast %252 : vector<16x1xf32> to vector<16x16xf32>
    %254 = arith.mulf %249, %253 : vector<16x16xf32>
    %255 = arith.truncf %254 : vector<16x16xf32> to vector<16x16xbf16>
    %256 = vector.extract_strided_slice %235 {offsets = [0, 0], sizes = [16, 64], strides = [1, 1]} : vector<16x128xf32> to vector<16x64xf32>
    %257 = arith.truncf %256 : vector<16x64xf32> to vector<16x64xbf16>
    %cst_113 = arith.constant dense<0.000000e+00> : vector<16x64xf32>
    %258 = tpu.matmul %255, %257, %cst_113 {dimension_numbers = #tpu.dot_dimension_numbers<[1], [0], [0], [1], [0, 0, 1, 1], [], []>} : vector<16x16xbf16>, vector<16x64xbf16>, vector<16x64xf32> -> vector<16x64xf32>
    %259 = arith.truncf %258 : vector<16x64xf32> to vector<16x64xbf16>
    %260 = vector.extract_strided_slice %237 {offsets = [0, 0], sizes = [64, 128], strides = [1, 1]} : vector<128x128xbf16> to vector<64x128xbf16>
    %cst_114 = arith.constant dense<0.000000e+00> : vector<16x128xf32>
    %261 = tpu.matmul %259, %260, %cst_114 {dimension_numbers = #tpu.dot_dimension_numbers<[1], [0], [0], [1], [0, 0, 1, 1], [], []>} : vector<16x64xbf16>, vector<64x128xbf16>, vector<16x128xf32> -> vector<16x128xf32>
    %262 = arith.addf %238, %261 : vector<16x128xf32>
    %263 = vector.extract_strided_slice %229 {offsets = [0, 64], sizes = [16, 64], strides = [1, 1]} : vector<16x128xf32> to vector<16x64xf32>
    %264 = arith.truncf %263 : vector<16x64xf32> to vector<16x64xbf16>
    %265 = vector.extract_strided_slice %232 {offsets = [0, 64], sizes = [16, 64], strides = [1, 1]} : vector<16x128xf32> to vector<16x64xf32>
    %266 = arith.truncf %265 : vector<16x64xf32> to vector<16x64xbf16>
    %267 = tpu.transpose %266, [1, 0] : vector<16x64xbf16> -> vector<64x16xbf16>
    %cst_115 = arith.constant dense<0.000000e+00> : vector<16x16xf32>
    %268 = tpu.matmul %264, %267, %cst_115 {dimension_numbers = #tpu.dot_dimension_numbers<[1], [0], [0], [1], [0, 0, 1, 1], [], []>} : vector<16x64xbf16>, vector<64x16xbf16>, vector<16x16xf32> -> vector<16x16xf32>
    %cst_116 = arith.constant dense<0xFF800000> : vector<16xf32>
    %269 = vector.multi_reduction <maximumf>, %268, %cst_116 [1] : vector<16x16xf32> to vector<16xf32>
    %270 = vector.shape_cast %269 : vector<16xf32> to vector<16x1xf32>
    %271 = vector.broadcast %270 : vector<16x1xf32> to vector<16x16xf32>
    %272 = arith.subf %268, %271 : vector<16x16xf32>
    %273 = math.exp %272 : vector<16x16xf32>
    %cst_117 = arith.constant dense<0.000000e+00> : vector<16xf32>
    %274 = vector.multi_reduction <add>, %273, %cst_117 [1] : vector<16x16xf32> to vector<16xf32>
    %275 = vector.shape_cast %274 : vector<16xf32> to vector<16x1xf32>
    %276 = tpu.reciprocal %275 {approx = true} : vector<16x1xf32> -> vector<16x1xf32>
    %277 = vector.broadcast %276 : vector<16x1xf32> to vector<16x16xf32>
    %278 = arith.mulf %273, %277 : vector<16x16xf32>
    %279 = arith.truncf %278 : vector<16x16xf32> to vector<16x16xbf16>
    %280 = vector.extract_strided_slice %235 {offsets = [0, 64], sizes = [16, 64], strides = [1, 1]} : vector<16x128xf32> to vector<16x64xf32>
    %281 = arith.truncf %280 : vector<16x64xf32> to vector<16x64xbf16>
    %cst_118 = arith.constant dense<0.000000e+00> : vector<16x64xf32>
    %282 = tpu.matmul %279, %281, %cst_118 {dimension_numbers = #tpu.dot_dimension_numbers<[1], [0], [0], [1], [0, 0, 1, 1], [], []>} : vector<16x16xbf16>, vector<16x64xbf16>, vector<16x64xf32> -> vector<16x64xf32>
    %283 = arith.truncf %282 : vector<16x64xf32> to vector<16x64xbf16>
    %284 = vector.extract_strided_slice %237 {offsets = [64, 0], sizes = [64, 128], strides = [1, 1]} : vector<128x128xbf16> to vector<64x128xbf16>
    %cst_119 = arith.constant dense<0.000000e+00> : vector<16x128xf32>
    %285 = tpu.matmul %283, %284, %cst_119 {dimension_numbers = #tpu.dot_dimension_numbers<[1], [0], [0], [1], [0, 0, 1, 1], [], []>} : vector<16x64xbf16>, vector<64x128xbf16>, vector<16x128xf32> -> vector<16x128xf32>
    %286 = arith.addf %262, %285 : vector<16x128xf32>
    %287 = arith.addf %5, %286 : vector<16x128xf32>
    %c0_120 = arith.constant 0 : index
    %c0_121 = arith.constant 0 : index
    %c0_122 = arith.constant 0 : index
    %288 = vector.load %arg9[%c0_120, %c0_121, %c0_122] : memref<2x1x128xf32, #tpu.memory_space<vmem>>, vector<1x1x128xf32>
    %289 = vector.shape_cast %288 : vector<1x1x128xf32> to vector<1x128xf32>
    %290 = vector.broadcast %289 : vector<1x128xf32> to vector<16x128xf32>
    %291 = arith.addf %287, %290 : vector<16x128xf32>
    %c0_123 = arith.constant 0 : index
    %c0_124 = arith.constant 0 : index
    %c0_125 = arith.constant 0 : index
    %292 = vector.load %arg10[%c0_123, %c0_124, %c0_125] : memref<2x1x128xf32, #tpu.memory_space<vmem>>, vector<1x1x128xf32>
    %293 = vector.shape_cast %292 : vector<1x1x128xf32> to vector<1x128xf32>
    %c0_126 = arith.constant 0 : index
    %c0_127 = arith.constant 0 : index
    %c0_128 = arith.constant 0 : index
    %294 = vector.load %arg11[%c0_126, %c0_127, %c0_128] : memref<2x1x128xf32, #tpu.memory_space<vmem>>, vector<1x1x128xf32>
    %295 = vector.shape_cast %294 : vector<1x1x128xf32> to vector<1x128xf32>
    %cst_129 = arith.constant dense<0.000000e+00> : vector<16xf32>
    %296 = vector.multi_reduction <add>, %291, %cst_129 [1] : vector<16x128xf32> to vector<16xf32>
    %297 = vector.shape_cast %296 : vector<16xf32> to vector<16x1xf32>
    %cst_130 = arith.constant 1.280000e+02 : f32
    %298 = vector.broadcast %cst_130 : f32 to vector<16x1xf32>
    %299 = arith.divf %297, %298 : vector<16x1xf32>
    %300 = vector.broadcast %299 : vector<16x1xf32> to vector<16x128xf32>
    %301 = arith.subf %291, %300 : vector<16x128xf32>
    %302 = arith.mulf %301, %301 : vector<16x128xf32>
    %cst_131 = arith.constant dense<0.000000e+00> : vector<16xf32>
    %303 = vector.multi_reduction <add>, %302, %cst_131 [1] : vector<16x128xf32> to vector<16xf32>
    %304 = vector.shape_cast %303 : vector<16xf32> to vector<16x1xf32>
    %cst_132 = arith.constant 1.280000e+02 : f32
    %305 = vector.broadcast %cst_132 : f32 to vector<16x1xf32>
    %306 = arith.divf %304, %305 : vector<16x1xf32>
    %307 = vector.broadcast %299 : vector<16x1xf32> to vector<16x128xf32>
    %308 = arith.subf %291, %307 : vector<16x128xf32>
    %cst_133 = arith.constant 9.99999974E-6 : f32
    %309 = vector.broadcast %cst_133 : f32 to vector<16x1xf32>
    %310 = arith.addf %306, %309 : vector<16x1xf32>
    %311 = math.rsqrt %310 : vector<16x1xf32>
    %312 = vector.broadcast %311 : vector<16x1xf32> to vector<16x128xf32>
    %313 = arith.mulf %308, %312 : vector<16x128xf32>
    %314 = vector.broadcast %293 : vector<1x128xf32> to vector<16x128xf32>
    %315 = arith.mulf %313, %314 : vector<16x128xf32>
    %316 = vector.broadcast %295 : vector<1x128xf32> to vector<16x128xf32>
    %317 = arith.addf %315, %316 : vector<16x128xf32>
    %318 = arith.truncf %317 : vector<16x128xf32> to vector<16x128xbf16>
    %c0_134 = arith.constant 0 : index
    %c0_135 = arith.constant 0 : index
    %c0_136 = arith.constant 0 : index
    %319 = vector.load %arg12[%c0_134, %c0_135, %c0_136] : memref<2x128x512xbf16, #tpu.memory_space<vmem>>, vector<1x128x512xbf16>
    %320 = vector.shape_cast %319 : vector<1x128x512xbf16> to vector<128x512xbf16>
    %cst_137 = arith.constant dense<0.000000e+00> : vector<16x512xf32>
    %321 = tpu.matmul %318, %320, %cst_137 {dimension_numbers = #tpu.dot_dimension_numbers<[1], [0], [0], [1], [0, 0, 1, 1], [], []>} : vector<16x128xbf16>, vector<128x512xbf16>, vector<16x512xf32> -> vector<16x512xf32>
    %c0_138 = arith.constant 0 : index
    %c0_139 = arith.constant 0 : index
    %c0_140 = arith.constant 0 : index
    %322 = vector.load %arg13[%c0_138, %c0_139, %c0_140] : memref<2x1x512xf32, #tpu.memory_space<vmem>>, vector<1x1x512xf32>
    %323 = vector.shape_cast %322 : vector<1x1x512xf32> to vector<1x512xf32>
    %324 = vector.broadcast %323 : vector<1x512xf32> to vector<16x512xf32>
    %325 = arith.addf %321, %324 : vector<16x512xf32>
    %326 = arith.mulf %325, %325 : vector<16x512xf32>
    %327 = arith.mulf %325, %326 : vector<16x512xf32>
    %cst_141 = arith.constant 4.471500e-02 : f32
    %328 = vector.broadcast %cst_141 : f32 to vector<16x512xf32>
    %329 = arith.mulf %328, %327 : vector<16x512xf32>
    %330 = arith.addf %325, %329 : vector<16x512xf32>
    %cst_142 = arith.constant 0.797884583 : f32
    %331 = vector.broadcast %cst_142 : f32 to vector<16x512xf32>
    %332 = arith.mulf %331, %330 : vector<16x512xf32>
    %333 = math.tanh %332 : vector<16x512xf32>
    %cst_143 = arith.constant 1.000000e+00 : f32
    %334 = vector.broadcast %cst_143 : f32 to vector<16x512xf32>
    %335 = arith.addf %334, %333 : vector<16x512xf32>
    %cst_144 = arith.constant 5.000000e-01 : f32
    %336 = vector.broadcast %cst_144 : f32 to vector<16x512xf32>
    %337 = arith.mulf %336, %335 : vector<16x512xf32>
    %338 = arith.mulf %325, %337 : vector<16x512xf32>
    %339 = arith.truncf %338 : vector<16x512xf32> to vector<16x512xbf16>
    %c0_145 = arith.constant 0 : index
    %c0_146 = arith.constant 0 : index
    %c0_147 = arith.constant 0 : index
    %340 = vector.load %arg14[%c0_145, %c0_146, %c0_147] : memref<2x512x128xbf16, #tpu.memory_space<vmem>>, vector<1x512x128xbf16>
    %341 = vector.shape_cast %340 : vector<1x512x128xbf16> to vector<512x128xbf16>
    %cst_148 = arith.constant dense<0.000000e+00> : vector<16x128xf32>
    %342 = tpu.matmul %339, %341, %cst_148 {dimension_numbers = #tpu.dot_dimension_numbers<[1], [0], [0], [1], [0, 0, 1, 1], [], []>} : vector<16x512xbf16>, vector<512x128xbf16>, vector<16x128xf32> -> vector<16x128xf32>
    %343 = arith.addf %291, %342 : vector<16x128xf32>
    %c0_149 = arith.constant 0 : index
    %c0_150 = arith.constant 0 : index
    %c0_151 = arith.constant 0 : index
    %344 = vector.load %arg15[%c0_149, %c0_150, %c0_151] : memref<2x1x128xf32, #tpu.memory_space<vmem>>, vector<1x1x128xf32>
    %345 = vector.shape_cast %344 : vector<1x1x128xf32> to vector<1x128xf32>
    %346 = vector.broadcast %345 : vector<1x128xf32> to vector<16x128xf32>
    %347 = arith.addf %343, %346 : vector<16x128xf32>
    %c1 = arith.constant 1 : index
    %c0_152 = arith.constant 0 : index
    %c0_153 = arith.constant 0 : index
    %348 = vector.load %arg3[%c1, %c0_152, %c0_153] : memref<2x1x128xf32, #tpu.memory_space<vmem>>, vector<1x1x128xf32>
    %349 = vector.shape_cast %348 : vector<1x1x128xf32> to vector<1x128xf32>
    %c1_154 = arith.constant 1 : index
    %c0_155 = arith.constant 0 : index
    %c0_156 = arith.constant 0 : index
    %350 = vector.load %arg4[%c1_154, %c0_155, %c0_156] : memref<2x1x128xf32, #tpu.memory_space<vmem>>, vector<1x1x128xf32>
    %351 = vector.shape_cast %350 : vector<1x1x128xf32> to vector<1x128xf32>
    %cst_157 = arith.constant dense<0.000000e+00> : vector<16xf32>
    %352 = vector.multi_reduction <add>, %176, %cst_157 [1] : vector<16x128xf32> to vector<16xf32>
    %353 = vector.shape_cast %352 : vector<16xf32> to vector<16x1xf32>
    %cst_158 = arith.constant 1.280000e+02 : f32
    %354 = vector.broadcast %cst_158 : f32 to vector<16x1xf32>
    %355 = arith.divf %353, %354 : vector<16x1xf32>
    %356 = vector.broadcast %355 : vector<16x1xf32> to vector<16x128xf32>
    %357 = arith.subf %176, %356 : vector<16x128xf32>
    %358 = arith.mulf %357, %357 : vector<16x128xf32>
    %cst_159 = arith.constant dense<0.000000e+00> : vector<16xf32>
    %359 = vector.multi_reduction <add>, %358, %cst_159 [1] : vector<16x128xf32> to vector<16xf32>
    %360 = vector.shape_cast %359 : vector<16xf32> to vector<16x1xf32>
    %cst_160 = arith.constant 1.280000e+02 : f32
    %361 = vector.broadcast %cst_160 : f32 to vector<16x1xf32>
    %362 = arith.divf %360, %361 : vector<16x1xf32>
    %363 = vector.broadcast %355 : vector<16x1xf32> to vector<16x128xf32>
    %364 = arith.subf %176, %363 : vector<16x128xf32>
    %cst_161 = arith.constant 9.99999974E-6 : f32
    %365 = vector.broadcast %cst_161 : f32 to vector<16x1xf32>
    %366 = arith.addf %362, %365 : vector<16x1xf32>
    %367 = math.rsqrt %366 : vector<16x1xf32>
    %368 = vector.broadcast %367 : vector<16x1xf32> to vector<16x128xf32>
    %369 = arith.mulf %364, %368 : vector<16x128xf32>
    %370 = vector.broadcast %349 : vector<1x128xf32> to vector<16x128xf32>
    %371 = arith.mulf %369, %370 : vector<16x128xf32>
    %372 = vector.broadcast %351 : vector<1x128xf32> to vector<16x128xf32>
    %373 = arith.addf %371, %372 : vector<16x128xf32>
    %374 = arith.truncf %373 : vector<16x128xf32> to vector<16x128xbf16>
    %cst_162 = arith.constant dense<0.000000e+00> : vector<16xf32>
    %375 = vector.multi_reduction <add>, %347, %cst_162 [1] : vector<16x128xf32> to vector<16xf32>
    %376 = vector.shape_cast %375 : vector<16xf32> to vector<16x1xf32>
    %cst_163 = arith.constant 1.280000e+02 : f32
    %377 = vector.broadcast %cst_163 : f32 to vector<16x1xf32>
    %378 = arith.divf %376, %377 : vector<16x1xf32>
    %379 = vector.broadcast %378 : vector<16x1xf32> to vector<16x128xf32>
    %380 = arith.subf %347, %379 : vector<16x128xf32>
    %381 = arith.mulf %380, %380 : vector<16x128xf32>
    %cst_164 = arith.constant dense<0.000000e+00> : vector<16xf32>
    %382 = vector.multi_reduction <add>, %381, %cst_164 [1] : vector<16x128xf32> to vector<16xf32>
    %383 = vector.shape_cast %382 : vector<16xf32> to vector<16x1xf32>
    %cst_165 = arith.constant 1.280000e+02 : f32
    %384 = vector.broadcast %cst_165 : f32 to vector<16x1xf32>
    %385 = arith.divf %383, %384 : vector<16x1xf32>
    %386 = vector.broadcast %378 : vector<16x1xf32> to vector<16x128xf32>
    %387 = arith.subf %347, %386 : vector<16x128xf32>
    %cst_166 = arith.constant 9.99999974E-6 : f32
    %388 = vector.broadcast %cst_166 : f32 to vector<16x1xf32>
    %389 = arith.addf %385, %388 : vector<16x1xf32>
    %390 = math.rsqrt %389 : vector<16x1xf32>
    %391 = vector.broadcast %390 : vector<16x1xf32> to vector<16x128xf32>
    %392 = arith.mulf %387, %391 : vector<16x128xf32>
    %393 = vector.broadcast %349 : vector<1x128xf32> to vector<16x128xf32>
    %394 = arith.mulf %392, %393 : vector<16x128xf32>
    %395 = vector.broadcast %351 : vector<1x128xf32> to vector<16x128xf32>
    %396 = arith.addf %394, %395 : vector<16x128xf32>
    %397 = arith.truncf %396 : vector<16x128xf32> to vector<16x128xbf16>
    %c1_167 = arith.constant 1 : index
    %c0_168 = arith.constant 0 : index
    %c0_169 = arith.constant 0 : index
    %398 = vector.load %arg5[%c1_167, %c0_168, %c0_169] : memref<2x128x128xbf16, #tpu.memory_space<vmem>>, vector<1x128x128xbf16>
    %399 = vector.shape_cast %398 : vector<1x128x128xbf16> to vector<128x128xbf16>
    %cst_170 = arith.constant dense<0.000000e+00> : vector<16x128xf32>
    %400 = tpu.matmul %374, %399, %cst_170 {dimension_numbers = #tpu.dot_dimension_numbers<[1], [0], [0], [1], [0, 0, 1, 1], [], []>} : vector<16x128xbf16>, vector<128x128xbf16>, vector<16x128xf32> -> vector<16x128xf32>
    %c1_171 = arith.constant 1 : index
    %c0_172 = arith.constant 0 : index
    %c0_173 = arith.constant 0 : index
    %401 = vector.load %arg6[%c1_171, %c0_172, %c0_173] : memref<2x128x128xbf16, #tpu.memory_space<vmem>>, vector<1x128x128xbf16>
    %402 = vector.shape_cast %401 : vector<1x128x128xbf16> to vector<128x128xbf16>
    %cst_174 = arith.constant dense<0.000000e+00> : vector<16x128xf32>
    %403 = tpu.matmul %397, %402, %cst_174 {dimension_numbers = #tpu.dot_dimension_numbers<[1], [0], [0], [1], [0, 0, 1, 1], [], []>} : vector<16x128xbf16>, vector<128x128xbf16>, vector<16x128xf32> -> vector<16x128xf32>
    %c1_175 = arith.constant 1 : index
    %c0_176 = arith.constant 0 : index
    %c0_177 = arith.constant 0 : index
    %404 = vector.load %arg7[%c1_175, %c0_176, %c0_177] : memref<2x128x128xbf16, #tpu.memory_space<vmem>>, vector<1x128x128xbf16>
    %405 = vector.shape_cast %404 : vector<1x128x128xbf16> to vector<128x128xbf16>
    %cst_178 = arith.constant dense<0.000000e+00> : vector<16x128xf32>
    %406 = tpu.matmul %397, %405, %cst_178 {dimension_numbers = #tpu.dot_dimension_numbers<[1], [0], [0], [1], [0, 0, 1, 1], [], []>} : vector<16x128xbf16>, vector<128x128xbf16>, vector<16x128xf32> -> vector<16x128xf32>
    %c1_179 = arith.constant 1 : index
    %c0_180 = arith.constant 0 : index
    %c0_181 = arith.constant 0 : index
    %407 = vector.load %arg8[%c1_179, %c0_180, %c0_181] : memref<2x128x128xbf16, #tpu.memory_space<vmem>>, vector<1x128x128xbf16>
    %408 = vector.shape_cast %407 : vector<1x128x128xbf16> to vector<128x128xbf16>
    %cst_182 = arith.constant 0.000000e+00 : f32
    %409 = vector.broadcast %cst_182 : f32 to vector<16x128xf32>
    %410 = vector.extract_strided_slice %400 {offsets = [0, 0], sizes = [16, 64], strides = [1, 1]} : vector<16x128xf32> to vector<16x64xf32>
    %411 = arith.truncf %410 : vector<16x64xf32> to vector<16x64xbf16>
    %412 = vector.extract_strided_slice %403 {offsets = [0, 0], sizes = [16, 64], strides = [1, 1]} : vector<16x128xf32> to vector<16x64xf32>
    %413 = arith.truncf %412 : vector<16x64xf32> to vector<16x64xbf16>
    %414 = tpu.transpose %413, [1, 0] : vector<16x64xbf16> -> vector<64x16xbf16>
    %cst_183 = arith.constant dense<0.000000e+00> : vector<16x16xf32>
    %415 = tpu.matmul %411, %414, %cst_183 {dimension_numbers = #tpu.dot_dimension_numbers<[1], [0], [0], [1], [0, 0, 1, 1], [], []>} : vector<16x64xbf16>, vector<64x16xbf16>, vector<16x16xf32> -> vector<16x16xf32>
    %cst_184 = arith.constant dense<0xFF800000> : vector<16xf32>
    %416 = vector.multi_reduction <maximumf>, %415, %cst_184 [1] : vector<16x16xf32> to vector<16xf32>
    %417 = vector.shape_cast %416 : vector<16xf32> to vector<16x1xf32>
    %418 = vector.broadcast %417 : vector<16x1xf32> to vector<16x16xf32>
    %419 = arith.subf %415, %418 : vector<16x16xf32>
    %420 = math.exp %419 : vector<16x16xf32>
    %cst_185 = arith.constant dense<0.000000e+00> : vector<16xf32>
    %421 = vector.multi_reduction <add>, %420, %cst_185 [1] : vector<16x16xf32> to vector<16xf32>
    %422 = vector.shape_cast %421 : vector<16xf32> to vector<16x1xf32>
    %423 = tpu.reciprocal %422 {approx = true} : vector<16x1xf32> -> vector<16x1xf32>
    %424 = vector.broadcast %423 : vector<16x1xf32> to vector<16x16xf32>
    %425 = arith.mulf %420, %424 : vector<16x16xf32>
    %426 = arith.truncf %425 : vector<16x16xf32> to vector<16x16xbf16>
    %427 = vector.extract_strided_slice %406 {offsets = [0, 0], sizes = [16, 64], strides = [1, 1]} : vector<16x128xf32> to vector<16x64xf32>
    %428 = arith.truncf %427 : vector<16x64xf32> to vector<16x64xbf16>
    %cst_186 = arith.constant dense<0.000000e+00> : vector<16x64xf32>
    %429 = tpu.matmul %426, %428, %cst_186 {dimension_numbers = #tpu.dot_dimension_numbers<[1], [0], [0], [1], [0, 0, 1, 1], [], []>} : vector<16x16xbf16>, vector<16x64xbf16>, vector<16x64xf32> -> vector<16x64xf32>
    %430 = arith.truncf %429 : vector<16x64xf32> to vector<16x64xbf16>
    %431 = vector.extract_strided_slice %408 {offsets = [0, 0], sizes = [64, 128], strides = [1, 1]} : vector<128x128xbf16> to vector<64x128xbf16>
    %cst_187 = arith.constant dense<0.000000e+00> : vector<16x128xf32>
    %432 = tpu.matmul %430, %431, %cst_187 {dimension_numbers = #tpu.dot_dimension_numbers<[1], [0], [0], [1], [0, 0, 1, 1], [], []>} : vector<16x64xbf16>, vector<64x128xbf16>, vector<16x128xf32> -> vector<16x128xf32>
    %433 = arith.addf %409, %432 : vector<16x128xf32>
    %434 = vector.extract_strided_slice %400 {offsets = [0, 64], sizes = [16, 64], strides = [1, 1]} : vector<16x128xf32> to vector<16x64xf32>
    %435 = arith.truncf %434 : vector<16x64xf32> to vector<16x64xbf16>
    %436 = vector.extract_strided_slice %403 {offsets = [0, 64], sizes = [16, 64], strides = [1, 1]} : vector<16x128xf32> to vector<16x64xf32>
    %437 = arith.truncf %436 : vector<16x64xf32> to vector<16x64xbf16>
    %438 = tpu.transpose %437, [1, 0] : vector<16x64xbf16> -> vector<64x16xbf16>
    %cst_188 = arith.constant dense<0.000000e+00> : vector<16x16xf32>
    %439 = tpu.matmul %435, %438, %cst_188 {dimension_numbers = #tpu.dot_dimension_numbers<[1], [0], [0], [1], [0, 0, 1, 1], [], []>} : vector<16x64xbf16>, vector<64x16xbf16>, vector<16x16xf32> -> vector<16x16xf32>
    %cst_189 = arith.constant dense<0xFF800000> : vector<16xf32>
    %440 = vector.multi_reduction <maximumf>, %439, %cst_189 [1] : vector<16x16xf32> to vector<16xf32>
    %441 = vector.shape_cast %440 : vector<16xf32> to vector<16x1xf32>
    %442 = vector.broadcast %441 : vector<16x1xf32> to vector<16x16xf32>
    %443 = arith.subf %439, %442 : vector<16x16xf32>
    %444 = math.exp %443 : vector<16x16xf32>
    %cst_190 = arith.constant dense<0.000000e+00> : vector<16xf32>
    %445 = vector.multi_reduction <add>, %444, %cst_190 [1] : vector<16x16xf32> to vector<16xf32>
    %446 = vector.shape_cast %445 : vector<16xf32> to vector<16x1xf32>
    %447 = tpu.reciprocal %446 {approx = true} : vector<16x1xf32> -> vector<16x1xf32>
    %448 = vector.broadcast %447 : vector<16x1xf32> to vector<16x16xf32>
    %449 = arith.mulf %444, %448 : vector<16x16xf32>
    %450 = arith.truncf %449 : vector<16x16xf32> to vector<16x16xbf16>
    %451 = vector.extract_strided_slice %406 {offsets = [0, 64], sizes = [16, 64], strides = [1, 1]} : vector<16x128xf32> to vector<16x64xf32>
    %452 = arith.truncf %451 : vector<16x64xf32> to vector<16x64xbf16>
    %cst_191 = arith.constant dense<0.000000e+00> : vector<16x64xf32>
    %453 = tpu.matmul %450, %452, %cst_191 {dimension_numbers = #tpu.dot_dimension_numbers<[1], [0], [0], [1], [0, 0, 1, 1], [], []>} : vector<16x16xbf16>, vector<16x64xbf16>, vector<16x64xf32> -> vector<16x64xf32>
    %454 = arith.truncf %453 : vector<16x64xf32> to vector<16x64xbf16>
    %455 = vector.extract_strided_slice %408 {offsets = [64, 0], sizes = [64, 128], strides = [1, 1]} : vector<128x128xbf16> to vector<64x128xbf16>
    %cst_192 = arith.constant dense<0.000000e+00> : vector<16x128xf32>
    %456 = tpu.matmul %454, %455, %cst_192 {dimension_numbers = #tpu.dot_dimension_numbers<[1], [0], [0], [1], [0, 0, 1, 1], [], []>} : vector<16x64xbf16>, vector<64x128xbf16>, vector<16x128xf32> -> vector<16x128xf32>
    %457 = arith.addf %433, %456 : vector<16x128xf32>
    %458 = arith.addf %176, %457 : vector<16x128xf32>
    %c1_193 = arith.constant 1 : index
    %c0_194 = arith.constant 0 : index
    %c0_195 = arith.constant 0 : index
    %459 = vector.load %arg9[%c1_193, %c0_194, %c0_195] : memref<2x1x128xf32, #tpu.memory_space<vmem>>, vector<1x1x128xf32>
    %460 = vector.shape_cast %459 : vector<1x1x128xf32> to vector<1x128xf32>
    %461 = vector.broadcast %460 : vector<1x128xf32> to vector<16x128xf32>
    %462 = arith.addf %458, %461 : vector<16x128xf32>
    %c1_196 = arith.constant 1 : index
    %c0_197 = arith.constant 0 : index
    %c0_198 = arith.constant 0 : index
    %463 = vector.load %arg10[%c1_196, %c0_197, %c0_198] : memref<2x1x128xf32, #tpu.memory_space<vmem>>, vector<1x1x128xf32>
    %464 = vector.shape_cast %463 : vector<1x1x128xf32> to vector<1x128xf32>
    %c1_199 = arith.constant 1 : index
    %c0_200 = arith.constant 0 : index
    %c0_201 = arith.constant 0 : index
    %465 = vector.load %arg11[%c1_199, %c0_200, %c0_201] : memref<2x1x128xf32, #tpu.memory_space<vmem>>, vector<1x1x128xf32>
    %466 = vector.shape_cast %465 : vector<1x1x128xf32> to vector<1x128xf32>
    %cst_202 = arith.constant dense<0.000000e+00> : vector<16xf32>
    %467 = vector.multi_reduction <add>, %462, %cst_202 [1] : vector<16x128xf32> to vector<16xf32>
    %468 = vector.shape_cast %467 : vector<16xf32> to vector<16x1xf32>
    %cst_203 = arith.constant 1.280000e+02 : f32
    %469 = vector.broadcast %cst_203 : f32 to vector<16x1xf32>
    %470 = arith.divf %468, %469 : vector<16x1xf32>
    %471 = vector.broadcast %470 : vector<16x1xf32> to vector<16x128xf32>
    %472 = arith.subf %462, %471 : vector<16x128xf32>
    %473 = arith.mulf %472, %472 : vector<16x128xf32>
    %cst_204 = arith.constant dense<0.000000e+00> : vector<16xf32>
    %474 = vector.multi_reduction <add>, %473, %cst_204 [1] : vector<16x128xf32> to vector<16xf32>
    %475 = vector.shape_cast %474 : vector<16xf32> to vector<16x1xf32>
    %cst_205 = arith.constant 1.280000e+02 : f32
    %476 = vector.broadcast %cst_205 : f32 to vector<16x1xf32>
    %477 = arith.divf %475, %476 : vector<16x1xf32>
    %478 = vector.broadcast %470 : vector<16x1xf32> to vector<16x128xf32>
    %479 = arith.subf %462, %478 : vector<16x128xf32>
    %cst_206 = arith.constant 9.99999974E-6 : f32
    %480 = vector.broadcast %cst_206 : f32 to vector<16x1xf32>
    %481 = arith.addf %477, %480 : vector<16x1xf32>
    %482 = math.rsqrt %481 : vector<16x1xf32>
    %483 = vector.broadcast %482 : vector<16x1xf32> to vector<16x128xf32>
    %484 = arith.mulf %479, %483 : vector<16x128xf32>
    %485 = vector.broadcast %464 : vector<1x128xf32> to vector<16x128xf32>
    %486 = arith.mulf %484, %485 : vector<16x128xf32>
    %487 = vector.broadcast %466 : vector<1x128xf32> to vector<16x128xf32>
    %488 = arith.addf %486, %487 : vector<16x128xf32>
    %489 = arith.truncf %488 : vector<16x128xf32> to vector<16x128xbf16>
    %c1_207 = arith.constant 1 : index
    %c0_208 = arith.constant 0 : index
    %c0_209 = arith.constant 0 : index
    %490 = vector.load %arg12[%c1_207, %c0_208, %c0_209] : memref<2x128x512xbf16, #tpu.memory_space<vmem>>, vector<1x128x512xbf16>
    %491 = vector.shape_cast %490 : vector<1x128x512xbf16> to vector<128x512xbf16>
    %cst_210 = arith.constant dense<0.000000e+00> : vector<16x512xf32>
    %492 = tpu.matmul %489, %491, %cst_210 {dimension_numbers = #tpu.dot_dimension_numbers<[1], [0], [0], [1], [0, 0, 1, 1], [], []>} : vector<16x128xbf16>, vector<128x512xbf16>, vector<16x512xf32> -> vector<16x512xf32>
    %c1_211 = arith.constant 1 : index
    %c0_212 = arith.constant 0 : index
    %c0_213 = arith.constant 0 : index
    %493 = vector.load %arg13[%c1_211, %c0_212, %c0_213] : memref<2x1x512xf32, #tpu.memory_space<vmem>>, vector<1x1x512xf32>
    %494 = vector.shape_cast %493 : vector<1x1x512xf32> to vector<1x512xf32>
    %495 = vector.broadcast %494 : vector<1x512xf32> to vector<16x512xf32>
    %496 = arith.addf %492, %495 : vector<16x512xf32>
    %497 = arith.mulf %496, %496 : vector<16x512xf32>
    %498 = arith.mulf %496, %497 : vector<16x512xf32>
    %cst_214 = arith.constant 4.471500e-02 : f32
    %499 = vector.broadcast %cst_214 : f32 to vector<16x512xf32>
    %500 = arith.mulf %499, %498 : vector<16x512xf32>
    %501 = arith.addf %496, %500 : vector<16x512xf32>
    %cst_215 = arith.constant 0.797884583 : f32
    %502 = vector.broadcast %cst_215 : f32 to vector<16x512xf32>
    %503 = arith.mulf %502, %501 : vector<16x512xf32>
    %504 = math.tanh %503 : vector<16x512xf32>
    %cst_216 = arith.constant 1.000000e+00 : f32
    %505 = vector.broadcast %cst_216 : f32 to vector<16x512xf32>
    %506 = arith.addf %505, %504 : vector<16x512xf32>
    %cst_217 = arith.constant 5.000000e-01 : f32
    %507 = vector.broadcast %cst_217 : f32 to vector<16x512xf32>
    %508 = arith.mulf %507, %506 : vector<16x512xf32>
    %509 = arith.mulf %496, %508 : vector<16x512xf32>
    %510 = arith.truncf %509 : vector<16x512xf32> to vector<16x512xbf16>
    %c1_218 = arith.constant 1 : index
    %c0_219 = arith.constant 0 : index
    %c0_220 = arith.constant 0 : index
    %511 = vector.load %arg14[%c1_218, %c0_219, %c0_220] : memref<2x512x128xbf16, #tpu.memory_space<vmem>>, vector<1x512x128xbf16>
    %512 = vector.shape_cast %511 : vector<1x512x128xbf16> to vector<512x128xbf16>
    %cst_221 = arith.constant dense<0.000000e+00> : vector<16x128xf32>
    %513 = tpu.matmul %510, %512, %cst_221 {dimension_numbers = #tpu.dot_dimension_numbers<[1], [0], [0], [1], [0, 0, 1, 1], [], []>} : vector<16x512xbf16>, vector<512x128xbf16>, vector<16x128xf32> -> vector<16x128xf32>
    %514 = arith.addf %462, %513 : vector<16x128xf32>
    %c1_222 = arith.constant 1 : index
    %c0_223 = arith.constant 0 : index
    %c0_224 = arith.constant 0 : index
    %515 = vector.load %arg15[%c1_222, %c0_223, %c0_224] : memref<2x1x128xf32, #tpu.memory_space<vmem>>, vector<1x1x128xf32>
    %516 = vector.shape_cast %515 : vector<1x1x128xf32> to vector<1x128xf32>
    %517 = vector.broadcast %516 : vector<1x128xf32> to vector<16x128xf32>
    %518 = arith.addf %514, %517 : vector<16x128xf32>
    %c1_225 = arith.constant 1 : index
    %c0_226 = arith.constant 0 : index
    %c0_227 = arith.constant 0 : index
    %519 = vector.load %arg3[%c1_225, %c0_226, %c0_227] : memref<2x1x128xf32, #tpu.memory_space<vmem>>, vector<1x1x128xf32>
    %520 = vector.shape_cast %519 : vector<1x1x128xf32> to vector<1x128xf32>
    %c1_228 = arith.constant 1 : index
    %c0_229 = arith.constant 0 : index
    %c0_230 = arith.constant 0 : index
    %521 = vector.load %arg4[%c1_228, %c0_229, %c0_230] : memref<2x1x128xf32, #tpu.memory_space<vmem>>, vector<1x1x128xf32>
    %522 = vector.shape_cast %521 : vector<1x1x128xf32> to vector<1x128xf32>
    %cst_231 = arith.constant dense<0.000000e+00> : vector<16xf32>
    %523 = vector.multi_reduction <add>, %347, %cst_231 [1] : vector<16x128xf32> to vector<16xf32>
    %524 = vector.shape_cast %523 : vector<16xf32> to vector<16x1xf32>
    %cst_232 = arith.constant 1.280000e+02 : f32
    %525 = vector.broadcast %cst_232 : f32 to vector<16x1xf32>
    %526 = arith.divf %524, %525 : vector<16x1xf32>
    %527 = vector.broadcast %526 : vector<16x1xf32> to vector<16x128xf32>
    %528 = arith.subf %347, %527 : vector<16x128xf32>
    %529 = arith.mulf %528, %528 : vector<16x128xf32>
    %cst_233 = arith.constant dense<0.000000e+00> : vector<16xf32>
    %530 = vector.multi_reduction <add>, %529, %cst_233 [1] : vector<16x128xf32> to vector<16xf32>
    %531 = vector.shape_cast %530 : vector<16xf32> to vector<16x1xf32>
    %cst_234 = arith.constant 1.280000e+02 : f32
    %532 = vector.broadcast %cst_234 : f32 to vector<16x1xf32>
    %533 = arith.divf %531, %532 : vector<16x1xf32>
    %534 = vector.broadcast %526 : vector<16x1xf32> to vector<16x128xf32>
    %535 = arith.subf %347, %534 : vector<16x128xf32>
    %cst_235 = arith.constant 9.99999974E-6 : f32
    %536 = vector.broadcast %cst_235 : f32 to vector<16x1xf32>
    %537 = arith.addf %533, %536 : vector<16x1xf32>
    %538 = math.rsqrt %537 : vector<16x1xf32>
    %539 = vector.broadcast %538 : vector<16x1xf32> to vector<16x128xf32>
    %540 = arith.mulf %535, %539 : vector<16x128xf32>
    %541 = vector.broadcast %520 : vector<1x128xf32> to vector<16x128xf32>
    %542 = arith.mulf %540, %541 : vector<16x128xf32>
    %543 = vector.broadcast %522 : vector<1x128xf32> to vector<16x128xf32>
    %544 = arith.addf %542, %543 : vector<16x128xf32>
    %545 = arith.truncf %544 : vector<16x128xf32> to vector<16x128xbf16>
    %cst_236 = arith.constant dense<0.000000e+00> : vector<16xf32>
    %546 = vector.multi_reduction <add>, %518, %cst_236 [1] : vector<16x128xf32> to vector<16xf32>
    %547 = vector.shape_cast %546 : vector<16xf32> to vector<16x1xf32>
    %cst_237 = arith.constant 1.280000e+02 : f32
    %548 = vector.broadcast %cst_237 : f32 to vector<16x1xf32>
    %549 = arith.divf %547, %548 : vector<16x1xf32>
    %550 = vector.broadcast %549 : vector<16x1xf32> to vector<16x128xf32>
    %551 = arith.subf %518, %550 : vector<16x128xf32>
    %552 = arith.mulf %551, %551 : vector<16x128xf32>
    %cst_238 = arith.constant dense<0.000000e+00> : vector<16xf32>
    %553 = vector.multi_reduction <add>, %552, %cst_238 [1] : vector<16x128xf32> to vector<16xf32>
    %554 = vector.shape_cast %553 : vector<16xf32> to vector<16x1xf32>
    %cst_239 = arith.constant 1.280000e+02 : f32
    %555 = vector.broadcast %cst_239 : f32 to vector<16x1xf32>
    %556 = arith.divf %554, %555 : vector<16x1xf32>
    %557 = vector.broadcast %549 : vector<16x1xf32> to vector<16x128xf32>
    %558 = arith.subf %518, %557 : vector<16x128xf32>
    %cst_240 = arith.constant 9.99999974E-6 : f32
    %559 = vector.broadcast %cst_240 : f32 to vector<16x1xf32>
    %560 = arith.addf %556, %559 : vector<16x1xf32>
    %561 = math.rsqrt %560 : vector<16x1xf32>
    %562 = vector.broadcast %561 : vector<16x1xf32> to vector<16x128xf32>
    %563 = arith.mulf %558, %562 : vector<16x128xf32>
    %564 = vector.broadcast %520 : vector<1x128xf32> to vector<16x128xf32>
    %565 = arith.mulf %563, %564 : vector<16x128xf32>
    %566 = vector.broadcast %522 : vector<1x128xf32> to vector<16x128xf32>
    %567 = arith.addf %565, %566 : vector<16x128xf32>
    %568 = arith.truncf %567 : vector<16x128xf32> to vector<16x128xbf16>
    %c1_241 = arith.constant 1 : index
    %c0_242 = arith.constant 0 : index
    %c0_243 = arith.constant 0 : index
    %569 = vector.load %arg5[%c1_241, %c0_242, %c0_243] : memref<2x128x128xbf16, #tpu.memory_space<vmem>>, vector<1x128x128xbf16>
    %570 = vector.shape_cast %569 : vector<1x128x128xbf16> to vector<128x128xbf16>
    %cst_244 = arith.constant dense<0.000000e+00> : vector<16x128xf32>
    %571 = tpu.matmul %545, %570, %cst_244 {dimension_numbers = #tpu.dot_dimension_numbers<[1], [0], [0], [1], [0, 0, 1, 1], [], []>} : vector<16x128xbf16>, vector<128x128xbf16>, vector<16x128xf32> -> vector<16x128xf32>
    %c1_245 = arith.constant 1 : index
    %c0_246 = arith.constant 0 : index
    %c0_247 = arith.constant 0 : index
    %572 = vector.load %arg6[%c1_245, %c0_246, %c0_247] : memref<2x128x128xbf16, #tpu.memory_space<vmem>>, vector<1x128x128xbf16>
    %573 = vector.shape_cast %572 : vector<1x128x128xbf16> to vector<128x128xbf16>
    %cst_248 = arith.constant dense<0.000000e+00> : vector<16x128xf32>
    %574 = tpu.matmul %568, %573, %cst_248 {dimension_numbers = #tpu.dot_dimension_numbers<[1], [0], [0], [1], [0, 0, 1, 1], [], []>} : vector<16x128xbf16>, vector<128x128xbf16>, vector<16x128xf32> -> vector<16x128xf32>
    %c1_249 = arith.constant 1 : index
    %c0_250 = arith.constant 0 : index
    %c0_251 = arith.constant 0 : index
    %575 = vector.load %arg7[%c1_249, %c0_250, %c0_251] : memref<2x128x128xbf16, #tpu.memory_space<vmem>>, vector<1x128x128xbf16>
    %576 = vector.shape_cast %575 : vector<1x128x128xbf16> to vector<128x128xbf16>
    %cst_252 = arith.constant dense<0.000000e+00> : vector<16x128xf32>
    %577 = tpu.matmul %568, %576, %cst_252 {dimension_numbers = #tpu.dot_dimension_numbers<[1], [0], [0], [1], [0, 0, 1, 1], [], []>} : vector<16x128xbf16>, vector<128x128xbf16>, vector<16x128xf32> -> vector<16x128xf32>
    %c1_253 = arith.constant 1 : index
    %c0_254 = arith.constant 0 : index
    %c0_255 = arith.constant 0 : index
    %578 = vector.load %arg8[%c1_253, %c0_254, %c0_255] : memref<2x128x128xbf16, #tpu.memory_space<vmem>>, vector<1x128x128xbf16>
    %579 = vector.shape_cast %578 : vector<1x128x128xbf16> to vector<128x128xbf16>
    %cst_256 = arith.constant 0.000000e+00 : f32
    %580 = vector.broadcast %cst_256 : f32 to vector<16x128xf32>
    %581 = vector.extract_strided_slice %571 {offsets = [0, 0], sizes = [16, 64], strides = [1, 1]} : vector<16x128xf32> to vector<16x64xf32>
    %582 = arith.truncf %581 : vector<16x64xf32> to vector<16x64xbf16>
    %583 = vector.extract_strided_slice %574 {offsets = [0, 0], sizes = [16, 64], strides = [1, 1]} : vector<16x128xf32> to vector<16x64xf32>
    %584 = arith.truncf %583 : vector<16x64xf32> to vector<16x64xbf16>
    %585 = tpu.transpose %584, [1, 0] : vector<16x64xbf16> -> vector<64x16xbf16>
    %cst_257 = arith.constant dense<0.000000e+00> : vector<16x16xf32>
    %586 = tpu.matmul %582, %585, %cst_257 {dimension_numbers = #tpu.dot_dimension_numbers<[1], [0], [0], [1], [0, 0, 1, 1], [], []>} : vector<16x64xbf16>, vector<64x16xbf16>, vector<16x16xf32> -> vector<16x16xf32>
    %cst_258 = arith.constant dense<0xFF800000> : vector<16xf32>
    %587 = vector.multi_reduction <maximumf>, %586, %cst_258 [1] : vector<16x16xf32> to vector<16xf32>
    %588 = vector.shape_cast %587 : vector<16xf32> to vector<16x1xf32>
    %589 = vector.broadcast %588 : vector<16x1xf32> to vector<16x16xf32>
    %590 = arith.subf %586, %589 : vector<16x16xf32>
    %591 = math.exp %590 : vector<16x16xf32>
    %cst_259 = arith.constant dense<0.000000e+00> : vector<16xf32>
    %592 = vector.multi_reduction <add>, %591, %cst_259 [1] : vector<16x16xf32> to vector<16xf32>
    %593 = vector.shape_cast %592 : vector<16xf32> to vector<16x1xf32>
    %594 = tpu.reciprocal %593 {approx = true} : vector<16x1xf32> -> vector<16x1xf32>
    %595 = vector.broadcast %594 : vector<16x1xf32> to vector<16x16xf32>
    %596 = arith.mulf %591, %595 : vector<16x16xf32>
    %597 = arith.truncf %596 : vector<16x16xf32> to vector<16x16xbf16>
    %598 = vector.extract_strided_slice %577 {offsets = [0, 0], sizes = [16, 64], strides = [1, 1]} : vector<16x128xf32> to vector<16x64xf32>
    %599 = arith.truncf %598 : vector<16x64xf32> to vector<16x64xbf16>
    %cst_260 = arith.constant dense<0.000000e+00> : vector<16x64xf32>
    %600 = tpu.matmul %597, %599, %cst_260 {dimension_numbers = #tpu.dot_dimension_numbers<[1], [0], [0], [1], [0, 0, 1, 1], [], []>} : vector<16x16xbf16>, vector<16x64xbf16>, vector<16x64xf32> -> vector<16x64xf32>
    %601 = arith.truncf %600 : vector<16x64xf32> to vector<16x64xbf16>
    %602 = vector.extract_strided_slice %579 {offsets = [0, 0], sizes = [64, 128], strides = [1, 1]} : vector<128x128xbf16> to vector<64x128xbf16>
    %cst_261 = arith.constant dense<0.000000e+00> : vector<16x128xf32>
    %603 = tpu.matmul %601, %602, %cst_261 {dimension_numbers = #tpu.dot_dimension_numbers<[1], [0], [0], [1], [0, 0, 1, 1], [], []>} : vector<16x64xbf16>, vector<64x128xbf16>, vector<16x128xf32> -> vector<16x128xf32>
    %604 = arith.addf %580, %603 : vector<16x128xf32>
    %605 = vector.extract_strided_slice %571 {offsets = [0, 64], sizes = [16, 64], strides = [1, 1]} : vector<16x128xf32> to vector<16x64xf32>
    %606 = arith.truncf %605 : vector<16x64xf32> to vector<16x64xbf16>
    %607 = vector.extract_strided_slice %574 {offsets = [0, 64], sizes = [16, 64], strides = [1, 1]} : vector<16x128xf32> to vector<16x64xf32>
    %608 = arith.truncf %607 : vector<16x64xf32> to vector<16x64xbf16>
    %609 = tpu.transpose %608, [1, 0] : vector<16x64xbf16> -> vector<64x16xbf16>
    %cst_262 = arith.constant dense<0.000000e+00> : vector<16x16xf32>
    %610 = tpu.matmul %606, %609, %cst_262 {dimension_numbers = #tpu.dot_dimension_numbers<[1], [0], [0], [1], [0, 0, 1, 1], [], []>} : vector<16x64xbf16>, vector<64x16xbf16>, vector<16x16xf32> -> vector<16x16xf32>
    %cst_263 = arith.constant dense<0xFF800000> : vector<16xf32>
    %611 = vector.multi_reduction <maximumf>, %610, %cst_263 [1] : vector<16x16xf32> to vector<16xf32>
    %612 = vector.shape_cast %611 : vector<16xf32> to vector<16x1xf32>
    %613 = vector.broadcast %612 : vector<16x1xf32> to vector<16x16xf32>
    %614 = arith.subf %610, %613 : vector<16x16xf32>
    %615 = math.exp %614 : vector<16x16xf32>
    %cst_264 = arith.constant dense<0.000000e+00> : vector<16xf32>
    %616 = vector.multi_reduction <add>, %615, %cst_264 [1] : vector<16x16xf32> to vector<16xf32>
    %617 = vector.shape_cast %616 : vector<16xf32> to vector<16x1xf32>
    %618 = tpu.reciprocal %617 {approx = true} : vector<16x1xf32> -> vector<16x1xf32>
    %619 = vector.broadcast %618 : vector<16x1xf32> to vector<16x16xf32>
    %620 = arith.mulf %615, %619 : vector<16x16xf32>
    %621 = arith.truncf %620 : vector<16x16xf32> to vector<16x16xbf16>
    %622 = vector.extract_strided_slice %577 {offsets = [0, 64], sizes = [16, 64], strides = [1, 1]} : vector<16x128xf32> to vector<16x64xf32>
    %623 = arith.truncf %622 : vector<16x64xf32> to vector<16x64xbf16>
    %cst_265 = arith.constant dense<0.000000e+00> : vector<16x64xf32>
    %624 = tpu.matmul %621, %623, %cst_265 {dimension_numbers = #tpu.dot_dimension_numbers<[1], [0], [0], [1], [0, 0, 1, 1], [], []>} : vector<16x16xbf16>, vector<16x64xbf16>, vector<16x64xf32> -> vector<16x64xf32>
    %625 = arith.truncf %624 : vector<16x64xf32> to vector<16x64xbf16>
    %626 = vector.extract_strided_slice %579 {offsets = [64, 0], sizes = [64, 128], strides = [1, 1]} : vector<128x128xbf16> to vector<64x128xbf16>
    %cst_266 = arith.constant dense<0.000000e+00> : vector<16x128xf32>
    %627 = tpu.matmul %625, %626, %cst_266 {dimension_numbers = #tpu.dot_dimension_numbers<[1], [0], [0], [1], [0, 0, 1, 1], [], []>} : vector<16x64xbf16>, vector<64x128xbf16>, vector<16x128xf32> -> vector<16x128xf32>
    %628 = arith.addf %604, %627 : vector<16x128xf32>
    %629 = arith.addf %347, %628 : vector<16x128xf32>
    %c1_267 = arith.constant 1 : index
    %c0_268 = arith.constant 0 : index
    %c0_269 = arith.constant 0 : index
    %630 = vector.load %arg9[%c1_267, %c0_268, %c0_269] : memref<2x1x128xf32, #tpu.memory_space<vmem>>, vector<1x1x128xf32>
    %631 = vector.shape_cast %630 : vector<1x1x128xf32> to vector<1x128xf32>
    %632 = vector.broadcast %631 : vector<1x128xf32> to vector<16x128xf32>
    %633 = arith.addf %629, %632 : vector<16x128xf32>
    %c1_270 = arith.constant 1 : index
    %c0_271 = arith.constant 0 : index
    %c0_272 = arith.constant 0 : index
    %634 = vector.load %arg10[%c1_270, %c0_271, %c0_272] : memref<2x1x128xf32, #tpu.memory_space<vmem>>, vector<1x1x128xf32>
    %635 = vector.shape_cast %634 : vector<1x1x128xf32> to vector<1x128xf32>
    %c1_273 = arith.constant 1 : index
    %c0_274 = arith.constant 0 : index
    %c0_275 = arith.constant 0 : index
    %636 = vector.load %arg11[%c1_273, %c0_274, %c0_275] : memref<2x1x128xf32, #tpu.memory_space<vmem>>, vector<1x1x128xf32>
    %637 = vector.shape_cast %636 : vector<1x1x128xf32> to vector<1x128xf32>
    %cst_276 = arith.constant dense<0.000000e+00> : vector<16xf32>
    %638 = vector.multi_reduction <add>, %633, %cst_276 [1] : vector<16x128xf32> to vector<16xf32>
    %639 = vector.shape_cast %638 : vector<16xf32> to vector<16x1xf32>
    %cst_277 = arith.constant 1.280000e+02 : f32
    %640 = vector.broadcast %cst_277 : f32 to vector<16x1xf32>
    %641 = arith.divf %639, %640 : vector<16x1xf32>
    %642 = vector.broadcast %641 : vector<16x1xf32> to vector<16x128xf32>
    %643 = arith.subf %633, %642 : vector<16x128xf32>
    %644 = arith.mulf %643, %643 : vector<16x128xf32>
    %cst_278 = arith.constant dense<0.000000e+00> : vector<16xf32>
    %645 = vector.multi_reduction <add>, %644, %cst_278 [1] : vector<16x128xf32> to vector<16xf32>
    %646 = vector.shape_cast %645 : vector<16xf32> to vector<16x1xf32>
    %cst_279 = arith.constant 1.280000e+02 : f32
    %647 = vector.broadcast %cst_279 : f32 to vector<16x1xf32>
    %648 = arith.divf %646, %647 : vector<16x1xf32>
    %649 = vector.broadcast %641 : vector<16x1xf32> to vector<16x128xf32>
    %650 = arith.subf %633, %649 : vector<16x128xf32>
    %cst_280 = arith.constant 9.99999974E-6 : f32
    %651 = vector.broadcast %cst_280 : f32 to vector<16x1xf32>
    %652 = arith.addf %648, %651 : vector<16x1xf32>
    %653 = math.rsqrt %652 : vector<16x1xf32>
    %654 = vector.broadcast %653 : vector<16x1xf32> to vector<16x128xf32>
    %655 = arith.mulf %650, %654 : vector<16x128xf32>
    %656 = vector.broadcast %635 : vector<1x128xf32> to vector<16x128xf32>
    %657 = arith.mulf %655, %656 : vector<16x128xf32>
    %658 = vector.broadcast %637 : vector<1x128xf32> to vector<16x128xf32>
    %659 = arith.addf %657, %658 : vector<16x128xf32>
    %660 = arith.truncf %659 : vector<16x128xf32> to vector<16x128xbf16>
    %c1_281 = arith.constant 1 : index
    %c0_282 = arith.constant 0 : index
    %c0_283 = arith.constant 0 : index
    %661 = vector.load %arg12[%c1_281, %c0_282, %c0_283] : memref<2x128x512xbf16, #tpu.memory_space<vmem>>, vector<1x128x512xbf16>
    %662 = vector.shape_cast %661 : vector<1x128x512xbf16> to vector<128x512xbf16>
    %cst_284 = arith.constant dense<0.000000e+00> : vector<16x512xf32>
    %663 = tpu.matmul %660, %662, %cst_284 {dimension_numbers = #tpu.dot_dimension_numbers<[1], [0], [0], [1], [0, 0, 1, 1], [], []>} : vector<16x128xbf16>, vector<128x512xbf16>, vector<16x512xf32> -> vector<16x512xf32>
    %c1_285 = arith.constant 1 : index
    %c0_286 = arith.constant 0 : index
    %c0_287 = arith.constant 0 : index
    %664 = vector.load %arg13[%c1_285, %c0_286, %c0_287] : memref<2x1x512xf32, #tpu.memory_space<vmem>>, vector<1x1x512xf32>
    %665 = vector.shape_cast %664 : vector<1x1x512xf32> to vector<1x512xf32>
    %666 = vector.broadcast %665 : vector<1x512xf32> to vector<16x512xf32>
    %667 = arith.addf %663, %666 : vector<16x512xf32>
    %668 = arith.mulf %667, %667 : vector<16x512xf32>
    %669 = arith.mulf %667, %668 : vector<16x512xf32>
    %cst_288 = arith.constant 4.471500e-02 : f32
    %670 = vector.broadcast %cst_288 : f32 to vector<16x512xf32>
    %671 = arith.mulf %670, %669 : vector<16x512xf32>
    %672 = arith.addf %667, %671 : vector<16x512xf32>
    %cst_289 = arith.constant 0.797884583 : f32
    %673 = vector.broadcast %cst_289 : f32 to vector<16x512xf32>
    %674 = arith.mulf %673, %672 : vector<16x512xf32>
    %675 = math.tanh %674 : vector<16x512xf32>
    %cst_290 = arith.constant 1.000000e+00 : f32
    %676 = vector.broadcast %cst_290 : f32 to vector<16x512xf32>
    %677 = arith.addf %676, %675 : vector<16x512xf32>
    %cst_291 = arith.constant 5.000000e-01 : f32
    %678 = vector.broadcast %cst_291 : f32 to vector<16x512xf32>
    %679 = arith.mulf %678, %677 : vector<16x512xf32>
    %680 = arith.mulf %667, %679 : vector<16x512xf32>
    %681 = arith.truncf %680 : vector<16x512xf32> to vector<16x512xbf16>
    %c1_292 = arith.constant 1 : index
    %c0_293 = arith.constant 0 : index
    %c0_294 = arith.constant 0 : index
    %682 = vector.load %arg14[%c1_292, %c0_293, %c0_294] : memref<2x512x128xbf16, #tpu.memory_space<vmem>>, vector<1x512x128xbf16>
    %683 = vector.shape_cast %682 : vector<1x512x128xbf16> to vector<512x128xbf16>
    %cst_295 = arith.constant dense<0.000000e+00> : vector<16x128xf32>
    %684 = tpu.matmul %681, %683, %cst_295 {dimension_numbers = #tpu.dot_dimension_numbers<[1], [0], [0], [1], [0, 0, 1, 1], [], []>} : vector<16x512xbf16>, vector<512x128xbf16>, vector<16x128xf32> -> vector<16x128xf32>
    %685 = arith.addf %633, %684 : vector<16x128xf32>
    %c1_296 = arith.constant 1 : index
    %c0_297 = arith.constant 0 : index
    %c0_298 = arith.constant 0 : index
    %686 = vector.load %arg15[%c1_296, %c0_297, %c0_298] : memref<2x1x128xf32, #tpu.memory_space<vmem>>, vector<1x1x128xf32>
    %687 = vector.shape_cast %686 : vector<1x1x128xf32> to vector<1x128xf32>
    %688 = vector.broadcast %687 : vector<1x128xf32> to vector<16x128xf32>
    %689 = arith.addf %685, %688 : vector<16x128xf32>
    %690 = arith.truncf %518 : vector<16x128xf32> to vector<16x128xbf16>
    %c0_299 = arith.constant 0 : index
    %c0_300 = arith.constant 0 : index
    %c0_301 = arith.constant 0 : index
    %691 = vector.load %arg16[%c0_299, %c0_300, %c0_301] : memref<1x16x128xbf16, #tpu.memory_space<vmem>>, vector<1x16x128xbf16>
    %692 = vector.shape_cast %691 : vector<1x16x128xbf16> to vector<16x128xbf16>
    %693 = vector.shape_cast %690 : vector<16x128xbf16> to vector<1x16x128xbf16>
    tpu.vector_store %arg16[%c0_299, %c0_300, %c0_301], %693 {strides = array<i32>} : memref<1x16x128xbf16, #tpu.memory_space<vmem>>, vector<1x16x128xbf16>,
    %694 = arith.truncf %689 : vector<16x128xf32> to vector<16x128xbf16>
    %c0_302 = arith.constant 0 : index
    %c0_303 = arith.constant 0 : index
    %c0_304 = arith.constant 0 : index
    %695 = vector.load %arg17[%c0_302, %c0_303, %c0_304] : memref<1x16x128xbf16, #tpu.memory_space<vmem>>, vector<1x16x128xbf16>
    %696 = vector.shape_cast %695 : vector<1x16x128xbf16> to vector<16x128xbf16>
    %697 = vector.shape_cast %694 : vector<16x128xbf16> to vector<1x16x128xbf16>
    tpu.vector_store %arg17[%c0_302, %c0_303, %c0_304], %697 {strides = array<i32>} : memref<1x16x128xbf16, #tpu.memory_space<vmem>>, vector<1x16x128xbf16>,
    return
  }
  func.func @transform_0(%arg0: i32) -> (i32, i32, i32) {
    %c0_i32 = arith.constant 0 : i32
    %c0_i32_0 = arith.constant 0 : i32
    %c0_i32_1 = arith.constant 0 : i32
    return %arg0, %c0_i32, %c0_i32_0 : i32, i32, i32
  }
  func.func @transform_1(%arg0: i32) -> (i32, i32, i32) {
    %c0_i32 = arith.constant 0 : i32
    %c0_i32_0 = arith.constant 0 : i32
    %c0_i32_1 = arith.constant 0 : i32
    return %arg0, %c0_i32, %c0_i32_0 : i32, i32, i32
  }
  func.func @transform_2(%arg0: i32) -> (i32, i32, i32) {
    %c0_i32 = arith.constant 0 : i32
    %c0_i32_0 = arith.constant 0 : i32
    %c0_i32_1 = arith.constant 0 : i32
    %c0_i32_2 = arith.constant 0 : i32
    return %c0_i32, %c0_i32_0, %c0_i32_1 : i32, i32, i32
  }
  func.func @transform_3(%arg0: i32) -> (i32, i32, i32) {
    %c0_i32 = arith.constant 0 : i32
    %c0_i32_0 = arith.constant 0 : i32
    %c0_i32_1 = arith.constant 0 : i32
    %c0_i32_2 = arith.constant 0 : i32
    return %c0_i32, %c0_i32_0, %c0_i32_1 : i32, i32, i32
  }
  func.func @transform_4(%arg0: i32) -> (i32, i32, i32) {
    %c0_i32 = arith.constant 0 : i32
    %c0_i32_0 = arith.constant 0 : i32
    %c0_i32_1 = arith.constant 0 : i32
    %c0_i32_2 = arith.constant 0 : i32
    return %c0_i32, %c0_i32_0, %c0_i32_1 : i32, i32, i32
  }
  func.func @transform_5(%arg0: i32) -> (i32, i32, i32) {
    %c0_i32 = arith.constant 0 : i32
    %c0_i32_0 = arith.constant 0 : i32
    %c0_i32_1 = arith.constant 0 : i32
    %c0_i32_2 = arith.constant 0 : i32
    return %c0_i32, %c0_i32_0, %c0_i32_1 : i32, i32, i32
  }
  func.func @transform_6(%arg0: i32) -> (i32, i32, i32) {
    %c0_i32 = arith.constant 0 : i32
    %c0_i32_0 = arith.constant 0 : i32
    %c0_i32_1 = arith.constant 0 : i32
    %c0_i32_2 = arith.constant 0 : i32
    return %c0_i32, %c0_i32_0, %c0_i32_1 : i32, i32, i32
  }
  func.func @transform_7(%arg0: i32) -> (i32, i32, i32) {
    %c0_i32 = arith.constant 0 : i32
    %c0_i32_0 = arith.constant 0 : i32
    %c0_i32_1 = arith.constant 0 : i32
    %c0_i32_2 = arith.constant 0 : i32
    return %c0_i32, %c0_i32_0, %c0_i32_1 : i32, i32, i32
  }
  func.func @transform_8(%arg0: i32) -> (i32, i32, i32) {
    %c0_i32 = arith.constant 0 : i32
    %c0_i32_0 = arith.constant 0 : i32
    %c0_i32_1 = arith.constant 0 : i32
    %c0_i32_2 = arith.constant 0 : i32
    return %c0_i32, %c0_i32_0, %c0_i32_1 : i32, i32, i32
  }
  func.func @transform_9(%arg0: i32) -> (i32, i32, i32) {
    %c0_i32 = arith.constant 0 : i32
    %c0_i32_0 = arith.constant 0 : i32
    %c0_i32_1 = arith.constant 0 : i32
    %c0_i32_2 = arith.constant 0 : i32
    return %c0_i32, %c0_i32_0, %c0_i32_1 : i32, i32, i32
  }
  func.func @transform_10(%arg0: i32) -> (i32, i32, i32) {
    %c0_i32 = arith.constant 0 : i32
    %c0_i32_0 = arith.constant 0 : i32
    %c0_i32_1 = arith.constant 0 : i32
    %c0_i32_2 = arith.constant 0 : i32
    return %c0_i32, %c0_i32_0, %c0_i32_1 : i32, i32, i32
  }
  func.func @transform_11(%arg0: i32) -> (i32, i32, i32) {
    %c0_i32 = arith.constant 0 : i32
    %c0_i32_0 = arith.constant 0 : i32
    %c0_i32_1 = arith.constant 0 : i32
    %c0_i32_2 = arith.constant 0 : i32
    return %c0_i32, %c0_i32_0, %c0_i32_1 : i32, i32, i32
  }
  func.func @transform_12(%arg0: i32) -> (i32, i32, i32) {
    %c0_i32 = arith.constant 0 : i32
    %c0_i32_0 = arith.constant 0 : i32
    %c0_i32_1 = arith.constant 0 : i32
    %c0_i32_2 = arith.constant 0 : i32
    return %c0_i32, %c0_i32_0, %c0_i32_1 : i32, i32, i32
  }
  func.func @transform_13(%arg0: i32) -> (i32, i32, i32) {
    %c0_i32 = arith.constant 0 : i32
    %c0_i32_0 = arith.constant 0 : i32
    %c0_i32_1 = arith.constant 0 : i32
    %c0_i32_2 = arith.constant 0 : i32
    return %c0_i32, %c0_i32_0, %c0_i32_1 : i32, i32, i32
  }
  func.func @transform_14(%arg0: i32) -> (i32, i32, i32) {
    %c0_i32 = arith.constant 0 : i32
    %c0_i32_0 = arith.constant 0 : i32
    %c0_i32_1 = arith.constant 0 : i32
    %c0_i32_2 = arith.constant 0 : i32
    return %c0_i32, %c0_i32_0, %c0_i32_1 : i32, i32, i32
  }
  func.func @transform_15(%arg0: i32) -> (i32, i32, i32) {
    %c0_i32 = arith.constant 0 : i32
    %c0_i32_0 = arith.constant 0 : i32
    %c0_i32_1 = arith.constant 0 : i32
    return %arg0, %c0_i32, %c0_i32_0 : i32, i32, i32
  }
  func.func @transform_16(%arg0: i32) -> (i32, i32, i32) {
    %c0_i32 = arith.constant 0 : i32
    %c0_i32_0 = arith.constant 0 : i32
    %c0_i32_1 = arith.constant 0 : i32
    return %arg0, %c0_i32, %c0_i32_0 : i32, i32, i32
  }
}

</mosaic_0001>

<llo_original>
// kernel: age_estimator_fwd.5
$region0: #{age_estimator_fwd.5}
  #allocation0 [shape = 'u32[]', space=smem, size = 0x4, offset = 0x4, fixed_abs, tag = 'smem constant byte address 0x4 - core index']
  #allocation1 [shape = 'u32[144,128]{1,0:T(1,128)}', space=vmem, size = 0x12000, scoped, tag = 'internal scratch']
  %s0 = inlined_call_operand.vmem [shape: bf16[2,16,128], index: 0, kind: input, shape index: {}]
  %s1 = inlined_call_operand.vmem [shape: bf16[2,16,128], index: 1, kind: input, shape index: {}]
  %s2 = inlined_call_operand.vmem [shape: f32[2,128], index: 2, kind: input, shape index: {}]
  %s3 = inlined_call_operand.vmem [shape: f32[2,128], index: 3, kind: input, shape index: {}]
  %s4 = inlined_call_operand.vmem [shape: bf16[512,256], index: 4, kind: input, shape index: {}]
  %s5 = inlined_call_operand.vmem [shape: f32[1,256], index: 5, kind: input, shape index: {}]
  %s6 = inlined_call_operand.vmem [shape: f32[1,256], index: 6, kind: input, shape index: {}]
  %s7 = inlined_call_operand.vmem [shape: f32[1,256], index: 7, kind: input, shape index: {}]
  %s8 = inlined_call_operand.vmem [shape: bf16[256,128], index: 8, kind: input, shape index: {}]
  %s9 = inlined_call_operand.vmem [shape: f32[1,128], index: 9, kind: input, shape index: {}]
  %s10 = inlined_call_operand.vmem [shape: f32[1,128], index: 10, kind: input, shape index: {}]
  %s11 = inlined_call_operand.vmem [shape: f32[1,128], index: 11, kind: input, shape index: {}]
  %s12 = inlined_call_operand.vmem [shape: bf16[128,64], index: 12, kind: input, shape index: {}]
  %s13 = inlined_call_operand.vmem [shape: f32[1,64], index: 13, kind: input, shape index: {}]
  %s14 = inlined_call_operand.vmem [shape: bf16[64,2], index: 14, kind: input, shape index: {}]
  %s15 = inlined_call_operand.vmem [shape: f32[1,2], index: 15, kind: input, shape index: {}]
  %s16 = inlined_call_operand.vmem [shape: f32[2,2], index: 16, kind: output, shape index: {}]
  %s17 = sld [smem:[#allocation0]]
  $region74: #{age_estimator_fwd.5} parent=0
    _
  %s19 = ssub.s32 1, %s17
  %s20 = scalar_select 0, %s19, %s17
  // Predicated region
  $region2: #{age_estimator_fwd.5} parent=0 // pred_check
    _
  $region3: #{age_estimator_fwd.5} parent=0 // pred_check_branch
    %22 = sbr.rel (0) target = $region5
  $region4: #{age_estimator_fwd.5} parent=0 // pred_region
    _
  $region5: #{age_estimator_fwd.5} parent=0 // pred_fallthru
    _
  // Predicated region
  $region6: #{age_estimator_fwd.5} parent=0 // pred_check
    _
  $region7: #{age_estimator_fwd.5} parent=0 // pred_check_branch
    %24 = sbr.rel (0) target = $region9
  $region8: #{age_estimator_fwd.5} parent=0 // pred_region
    _
  $region9: #{age_estimator_fwd.5} parent=0 // pred_fallthru
    _
  // Predicated region
  $region10: #{age_estimator_fwd.5} parent=0 // pred_check
    _
  $region11: #{age_estimator_fwd.5} parent=0 // pred_check_branch
    %26 = sbr.rel (0) target = $region13
  $region12: #{age_estimator_fwd.5} parent=0 // pred_region
    _
  $region13: #{age_estimator_fwd.5} parent=0 // pred_fallthru
    _
  // Predicated region
  $region14: #{age_estimator_fwd.5} parent=0 // pred_check
    _
  $region15: #{age_estimator_fwd.5} parent=0 // pred_check_branch
    %28 = sbr.rel (0) target = $region17
  $region16: #{age_estimator_fwd.5} parent=0 // pred_region
    _
  $region17: #{age_estimator_fwd.5} parent=0 // pred_fallthru
    _
  // Predicated region
  $region18: #{age_estimator_fwd.5} parent=0 // pred_check
    _
  $region19: #{age_estimator_fwd.5} parent=0 // pred_check_branch
    %30 = sbr.rel (0) target = $region21
  $region20: #{age_estimator_fwd.5} parent=0 // pred_region
    _
  $region21: #{age_estimator_fwd.5} parent=0 // pred_fallthru
    _
  // Predicated region
  $region22: #{age_estimator_fwd.5} parent=0 // pred_check
    _
  $region23: #{age_estimator_fwd.5} parent=0 // pred_check_branch
    %32 = sbr.rel (0) target = $region25
  $region24: #{age_estimator_fwd.5} parent=0 // pred_region
    _
  $region25: #{age_estimator_fwd.5} parent=0 // pred_fallthru
    _
  // Predicated region
  $region26: #{age_estimator_fwd.5} parent=0 // pred_check
    _
  $region27: #{age_estimator_fwd.5} parent=0 // pred_check_branch
    %34 = sbr.rel (0) target = $region29
  $region28: #{age_estimator_fwd.5} parent=0 // pred_region
    _
  $region29: #{age_estimator_fwd.5} parent=0 // pred_fallthru
    _
  // Predicated region
  $region30: #{age_estimator_fwd.5} parent=0 // pred_check
    _
  $region31: #{age_estimator_fwd.5} parent=0 // pred_check_branch
    %36 = sbr.rel (0) target = $region33
  $region32: #{age_estimator_fwd.5} parent=0 // pred_region
    _
  $region33: #{age_estimator_fwd.5} parent=0 // pred_fallthru
    _
  // Predicated region
  $region34: #{age_estimator_fwd.5} parent=0 // pred_check
    _
  $region35: #{age_estimator_fwd.5} parent=0 // pred_check_branch
    %38 = sbr.rel (0) target = $region37
  $region36: #{age_estimator_fwd.5} parent=0 // pred_region
    _
  $region37: #{age_estimator_fwd.5} parent=0 // pred_fallthru
    _
  // Predicated region
  $region38: #{age_estimator_fwd.5} parent=0 // pred_check
    _
  $region39: #{age_estimator_fwd.5} parent=0 // pred_check_branch
    %40 = sbr.rel (0) target = $region41
  $region40: #{age_estimator_fwd.5} parent=0 // pred_region
    _
  $region41: #{age_estimator_fwd.5} parent=0 // pred_fallthru
    _
  // Predicated region
  $region42: #{age_estimator_fwd.5} parent=0 // pred_check
    _
  $region43: #{age_estimator_fwd.5} parent=0 // pred_check_branch
    %42 = sbr.rel (0) target = $region45
  $region44: #{age_estimator_fwd.5} parent=0 // pred_region
    _
  $region45: #{age_estimator_fwd.5} parent=0 // pred_fallthru
    _
  // Predicated region
  $region46: #{age_estimator_fwd.5} parent=0 // pred_check
    _
  $region47: #{age_estimator_fwd.5} parent=0 // pred_check_branch
    %44 = sbr.rel (0) target = $region49
  $region48: #{age_estimator_fwd.5} parent=0 // pred_region
    _
  $region49: #{age_estimator_fwd.5} parent=0 // pred_fallthru
    _
  // Predicated region
  $region50: #{age_estimator_fwd.5} parent=0 // pred_check
    _
  $region51: #{age_estimator_fwd.5} parent=0 // pred_check_branch
    %46 = sbr.rel (0) target = $region53
  $region52: #{age_estimator_fwd.5} parent=0 // pred_region
    _
  $region53: #{age_estimator_fwd.5} parent=0 // pred_fallthru
    _
  // Predicated region
  $region54: #{age_estimator_fwd.5} parent=0 // pred_check
    _
  $region55: #{age_estimator_fwd.5} parent=0 // pred_check_branch
    %48 = sbr.rel (0) target = $region57
  $region56: #{age_estimator_fwd.5} parent=0 // pred_region
    _
  $region57: #{age_estimator_fwd.5} parent=0 // pred_fallthru
    _
  // Predicated region
  $region58: #{age_estimator_fwd.5} parent=0 // pred_check
    _
  $region59: #{age_estimator_fwd.5} parent=0 // pred_check_branch
    %50 = sbr.rel (0) target = $region61
  $region60: #{age_estimator_fwd.5} parent=0 // pred_region
    _
  $region61: #{age_estimator_fwd.5} parent=0 // pred_fallthru
    _
  // Predicated region
  $region62: #{age_estimator_fwd.5} parent=0 // pred_check
    _
  $region63: #{age_estimator_fwd.5} parent=0 // pred_check_branch
    %52 = sbr.rel (0) target = $region65
  $region64: #{age_estimator_fwd.5} parent=0 // pred_region
    _
  $region65: #{age_estimator_fwd.5} parent=0 // pred_fallthru
    _
  %v54 = vld [vmem:[%s0] sm:$0xf]
  %v55 = vld [vmem:[%s0 + $0x4] sm:$0xf]
  %v56 = vld [vmem:[%s0 + $0x8] sm:$0xf]
  %v57 = vld [vmem:[%s0 + $0xc] sm:$0xf]
  %v58 = vunpack.c.l.bf16 %v54
  %v59 = vunpack.c.l.bf16 %v55
  %v60 = vunpack.c.l.bf16 %v56
  %v61 = vunpack.c.l.bf16 %v57
  %v62 = vadd.f32 %v58, %v59
  %v63 = vrot.slane %v62, 4
  %v64 = vadd.f32 %v62, %v63
  %v65 = vrot.slane %v64, 2
  %v66 = vadd.f32 %v64, %v65
  %v67 = vrot.slane %v66, 1
  %v68 = vadd.f32 %v66, %v67
  %v69 = vadd.f32 %v60, %v61
  %v70 = vrot.slane %v69, 4
  %v71 = vadd.f32 %v69, %v70
  %v72 = vrot.slane %v71, 2
  %v73 = vadd.f32 %v71, %v72
  %v74 = vrot.slane %v73, 1
  %v75 = vadd.f32 %v73, %v74
  %v76 = vrcp.pop 16.0
  %v77 = vmul.f32 %v68, %v76
  %v78 = vmul.f32 %v75, %v76
  %v79 = vld [vmem:[%s1] sm:$0xf]
  %v80 = vld [vmem:[%s1 + $0x4] sm:$0xf]
  %v81 = vld [vmem:[%s1 + $0x8] sm:$0xf]
  %v82 = vld [vmem:[%s1 + $0xc] sm:$0xf]
  %v83 = vunpack.c.l.bf16 %v79
  %v84 = vunpack.c.l.bf16 %v80
  %v85 = vunpack.c.l.bf16 %v81
  %v86 = vunpack.c.l.bf16 %v82
  %v87 = vadd.f32 %v83, %v84
  %v88 = vrot.slane %v87, 4
  %v89 = vadd.f32 %v87, %v88
  %v90 = vrot.slane %v89, 2
  %v91 = vadd.f32 %v89, %v90
  %v92 = vrot.slane %v91, 1
  %v93 = vadd.f32 %v91, %v92
  %v94 = vadd.f32 %v85, %v86
  %v95 = vrot.slane %v94, 4
  %v96 = vadd.f32 %v94, %v95
  %v97 = vrot.slane %v96, 2
  %v98 = vadd.f32 %v96, %v97
  %v99 = vrot.slane %v98, 1
  %v100 = vadd.f32 %v98, %v99
  %v101 = vmul.f32 %v93, %v76
  %v102 = vmul.f32 %v100, %v76
  %v103 = vld [vmem:[%s2] sm:$0x3]
  %v104 = vld [vmem:[%s3] sm:$0x3]
  %v105 = vld [vmem:[%s4] sm:$0xff]
  %v106 = vld [vmem:[%s4 + $0x8] sm:$0xff]
  %v107 = vld [vmem:[%s4 + $0x10] sm:$0xff]
  %v108 = vld [vmem:[%s4 + $0x18] sm:$0xff]
  %v109 = vld [vmem:[%s4 + $0x20] sm:$0xff]
  %v110 = vld [vmem:[%s4 + $0x28] sm:$0xff]
  %v111 = vld [vmem:[%s4 + $0x30] sm:$0xff]
  %v112 = vld [vmem:[%s4 + $0x38] sm:$0xff]
  %v113 = vld [vmem:[%s4 + $0x40] sm:$0xff]
  %v114 = vld [vmem:[%s4 + $0x48] sm:$0xff]
  %v115 = vld [vmem:[%s4 + $0x50] sm:$0xff]
  %v116 = vld [vmem:[%s4 + $0x58] sm:$0xff]
  %v117 = vld [vmem:[%s4 + $0x60] sm:$0xff]
  %v118 = vld [vmem:[%s4 + $0x68] sm:$0xff]
  %v119 = vld [vmem:[%s4 + $0x70] sm:$0xff]
  %v120 = vld [vmem:[%s4 + $0x78] sm:$0xff]
  %v121 = vld [vmem:[%s4 + $0x80] sm:$0xff]
  %v122 = vld [vmem:[%s4 + $0x88] sm:$0xff]
  %v123 = vld [vmem:[%s4 + $0x90] sm:$0xff]
  %v124 = vld [vmem:[%s4 + $0x98] sm:$0xff]
  %v125 = vld [vmem:[%s4 + $0xa0] sm:$0xff]
  %v126 = vld [vmem:[%s4 + $0xa8] sm:$0xff]
  %v127 = vld [vmem:[%s4 + $0xb0] sm:$0xff]
  %v128 = vld [vmem:[%s4 + $0xb8] sm:$0xff]
  %v129 = vld [vmem:[%s4 + $0xc0] sm:$0xff]
  %v130 = vld [vmem:[%s4 + $0xc8] sm:$0xff]
  %v131 = vld [vmem:[%s4 + $0xd0] sm:$0xff]
  %v132 = vld [vmem:[%s4 + $0xd8] sm:$0xff]
  %v133 = vld [vmem:[%s4 + $0xe0] sm:$0xff]
  %v134 = vld [vmem:[%s4 + $0xe8] sm:$0xff]
  %v135 = vld [vmem:[%s4 + $0xf0] sm:$0xff]
  %v136 = vld [vmem:[%s4 + $0xf8] sm:$0xff]
  %v137 = vld [vmem:[%s4 + $0x100] sm:$0xff]
  %v138 = vld [vmem:[%s4 + $0x108] sm:$0xff]
  %v139 = vld [vmem:[%s4 + $0x110] sm:$0xff]
  %v140 = vld [vmem:[%s4 + $0x118] sm:$0xff]
  %v141 = vld [vmem:[%s4 + $0x120] sm:$0xff]
  %v142 = vld [vmem:[%s4 + $0x128] sm:$0xff]
  %v143 = vld [vmem:[%s4 + $0x130] sm:$0xff]
  %v144 = vld [vmem:[%s4 + $0x138] sm:$0xff]
  %v145 = vld [vmem:[%s4 + $0x140] sm:$0xff]
  %v146 = vld [vmem:[%s4 + $0x148] sm:$0xff]
  %v147 = vld [vmem:[%s4 + $0x150] sm:$0xff]
  %v148 = vld [vmem:[%s4 + $0x158] sm:$0xff]
  %v149 = vld [vmem:[%s4 + $0x160] sm:$0xff]
  %v150 = vld [vmem:[%s4 + $0x168] sm:$0xff]
  %v151 = vld [vmem:[%s4 + $0x170] sm:$0xff]
  %v152 = vld [vmem:[%s4 + $0x178] sm:$0xff]
  %v153 = vld [vmem:[%s4 + $0x180] sm:$0xff]
  %v154 = vld [vmem:[%s4 + $0x188] sm:$0xff]
  %v155 = vld [vmem:[%s4 + $0x190] sm:$0xff]
  %v156 = vld [vmem:[%s4 + $0x198] sm:$0xff]
  %v157 = vld [vmem:[%s4 + $0x1a0] sm:$0xff]
  %v158 = vld [vmem:[%s4 + $0x1a8] sm:$0xff]
  %v159 = vld [vmem:[%s4 + $0x1b0] sm:$0xff]
  %v160 = vld [vmem:[%s4 + $0x1b8] sm:$0xff]
  %v161 = vld [vmem:[%s4 + $0x1c0] sm:$0xff]
  %v162 = vld [vmem:[%s4 + $0x1c8] sm:$0xff]
  %v163 = vld [vmem:[%s4 + $0x1d0] sm:$0xff]
  %v164 = vld [vmem:[%s4 + $0x1d8] sm:$0xff]
  %v165 = vld [vmem:[%s4 + $0x1e0] sm:$0xff]
  %v166 = vld [vmem:[%s4 + $0x1e8] sm:$0xff]
  %v167 = vld [vmem:[%s4 + $0x1f0] sm:$0xff]
  %v168 = vld [vmem:[%s4 + $0x1f8] sm:$0xff]
  %v169 = vpack.c.bf16 %v77, %v77
  %v170 = vpack.c.bf16 %v78, %v78
  %v171 = vpack.c.bf16 %v101, %v101
  %v172 = vpack.c.bf16 %v102, %v102
  %v175 = vunpack.c.l.b16 %v171
  %v176 = vunpack.c.l.b16 %v172
  %vm177 = vcmask 1041409
  %v178 = vsel %vm177, %v176, %v175
  %v179 = vpack.c.b16 %v178, %v178
  %v197 = vunpack.c.l.b16 %v121
  %v198 = vunpack.c.h.b16 %v121
  %v199 = vunpack.c.l.b16 %v122
  %v200 = vunpack.c.h.b16 %v122
  %v201 = vunpack.c.l.b16 %v123
  %v202 = vunpack.c.h.b16 %v123
  %v203 = vunpack.c.l.b16 %v124
  %v204 = vunpack.c.h.b16 %v124
  %v205 = vunpack.c.l.b16 %v125
  %v206 = vunpack.c.h.b16 %v125
  %v207 = vunpack.c.l.b16 %v126
  %v208 = vunpack.c.h.b16 %v126
  %v209 = vunpack.c.l.b16 %v127
  %v210 = vunpack.c.h.b16 %v127
  %v211 = vunpack.c.l.b16 %v128
  %v212 = vunpack.c.h.b16 %v128
  %v213 = vunpack.c.l.b16 %v129
  %v214 = vunpack.c.h.b16 %v129
  %v215 = vunpack.c.l.b16 %v130
  %v216 = vunpack.c.h.b16 %v130
  %v217 = vunpack.c.l.b16 %v131
  %v218 = vunpack.c.h.b16 %v131
  %v219 = vunpack.c.l.b16 %v132
  %v220 = vunpack.c.h.b16 %v132
  %v221 = vunpack.c.l.b16 %v133
  %v222 = vunpack.c.h.b16 %v133
  %v223 = vunpack.c.l.b16 %v134
  %v224 = vunpack.c.h.b16 %v134
  %v225 = vunpack.c.l.b16 %v135
  %v226 = vunpack.c.h.b16 %v135
  %v227 = vunpack.c.l.b16 %v136
  %v228 = vunpack.c.h.b16 %v136
  %v229 = vpack.c.b16 %v199, %v197
  %v230 = vpack.c.b16 %v200, %v198
  %v231 = vpack.c.b16 %v203, %v201
  %v232 = vpack.c.b16 %v204, %v202
  %v233 = vpack.c.b16 %v207, %v205
  %v234 = vpack.c.b16 %v208, %v206
  %v235 = vpack.c.b16 %v211, %v209
  %v236 = vpack.c.b16 %v212, %v210
  %v237 = vpack.c.b16 %v215, %v213
  %v238 = vpack.c.b16 %v216, %v214
  %v239 = vpack.c.b16 %v219, %v217
  %v240 = vpack.c.b16 %v220, %v218
  %v241 = vpack.c.b16 %v223, %v221
  %v242 = vpack.c.b16 %v224, %v222
  %v243 = vpack.c.b16 %v227, %v225
  %v244 = vpack.c.b16 %v228, %v226
  %261 = vmatprep.subr.bf16.mxu0 %v244
  %262 = vmatpush1.bf16.msra.mxu0 %v243
  %263 = vmatprep.subr.bf16.mxu0 %v242
  %264 = vmatpush1.bf16.msra.mxu0 %v241
  %265 = vmatprep.subr.bf16.mxu0 %v240
  %266 = vmatpush1.bf16.msra.mxu0 %v239
  %267 = vmatprep.subr.bf16.mxu0 %v238
  %268 = vmatpush1.bf16.msra.mxu0 %v237
  %269 = vmatprep.subr.bf16.mxu0 %v236
  %270 = vmatpush1.bf16.msra.mxu0 %v235
  %271 = vmatprep.subr.bf16.mxu0 %v234
  %272 = vmatpush1.bf16.msra.mxu0 %v233
  %273 = vmatprep.subr.bf16.mxu0 %v232
  %274 = vmatpush1.bf16.msra.mxu0 %v231
  %275 = vmatprep.subr.bf16.mxu0 %v230
  %276 = vmatpush1.bf16.msra.mxu0 %v229
  %277 = vmatprep.subr.bf16.mxu0 0
  %278 = vmatpush2.bf16.msra.mxu0 0
  %279 = vmatprep.subr.bf16.mxu0 0
  %280 = vmatpush2.bf16.msra.mxu0 0
  %281 = vmatprep.subr.bf16.mxu0 0
  %282 = vmatpush2.bf16.msra.mxu0 0
  %283 = vmatprep.subr.bf16.mxu0 0
  %284 = vmatpush2.bf16.msra.mxu0 0
  %285 = vmatprep.subr.bf16.mxu0 0
  %286 = vmatpush2.bf16.msra.mxu0 0
  %287 = vmatprep.subr.bf16.mxu0 0
  %288 = vmatpush2.bf16.msra.mxu0 0
  %289 = vmatprep.subr.bf16.mxu0 0
  %290 = vmatpush2.bf16.msra.mxu0 0
  %291 = vmatprep.subr.bf16.mxu0 0
  %292 = vmatpush2.bf16.msra.mxu0 0
  %293 = vmatprep.mubr.bf16.mxu0 0
  %294 = vmatmul.mubr.bf16.gmra.mxu0 %v179
  %v295 = vpop.f32.mrf.mxu0
  %v296 = vadd.f32 0.0, %v295
  %v297 = vpop.f32.mrf.mxu0
  %v298 = vadd.f32 0.0, %v297
  %v299 = vpop.f32.mrf.mxu0
  %v300 = vpop.f32.mrf.mxu0
  %301 = vdwg.mxu0
  %v304 = vunpack.c.l.b16 %v169
  %v305 = vunpack.c.l.b16 %v170
  %v306 = vsel %vm177, %v305, %v304
  %v307 = vpack.c.b16 %v306, %v306
  %v325 = vunpack.c.l.b16 %v105
  %v326 = vunpack.c.h.b16 %v105
  %v327 = vunpack.c.l.b16 %v106
  %v328 = vunpack.c.h.b16 %v106
  %v329 = vunpack.c.l.b16 %v107
  %v330 = vunpack.c.h.b16 %v107
  %v331 = vunpack.c.l.b16 %v108
  %v332 = vunpack.c.h.b16 %v108
  %v333 = vunpack.c.l.b16 %v109
  %v334 = vunpack.c.h.b16 %v109
  %v335 = vunpack.c.l.b16 %v110
  %v336 = vunpack.c.h.b16 %v110
  %v337 = vunpack.c.l.b16 %v111
  %v338 = vunpack.c.h.b16 %v111
  %v339 = vunpack.c.l.b16 %v112
  %v340 = vunpack.c.h.b16 %v112
  %v341 = vunpack.c.l.b16 %v113
  %v342 = vunpack.c.h.b16 %v113
  %v343 = vunpack.c.l.b16 %v114
  %v344 = vunpack.c.h.b16 %v114
  %v345 = vunpack.c.l.b16 %v115
  %v346 = vunpack.c.h.b16 %v115
  %v347 = vunpack.c.l.b16 %v116
  %v348 = vunpack.c.h.b16 %v116
  %v349 = vunpack.c.l.b16 %v117
  %v350 = vunpack.c.h.b16 %v117
  %v351 = vunpack.c.l.b16 %v118
  %v352 = vunpack.c.h.b16 %v118
  %v353 = vunpack.c.l.b16 %v119
  %v354 = vunpack.c.h.b16 %v119
  %v355 = vunpack.c.l.b16 %v120
  %v356 = vunpack.c.h.b16 %v120
  %v357 = vpack.c.b16 %v327, %v325
  %v358 = vpack.c.b16 %v328, %v326
  %v359 = vpack.c.b16 %v331, %v329
  %v360 = vpack.c.b16 %v332, %v330
  %v361 = vpack.c.b16 %v335, %v333
  %v362 = vpack.c.b16 %v336, %v334
  %v363 = vpack.c.b16 %v339, %v337
  %v364 = vpack.c.b16 %v340, %v338
  %v365 = vpack.c.b16 %v343, %v341
  %v366 = vpack.c.b16 %v344, %v342
  %v367 = vpack.c.b16 %v347, %v345
  %v368 = vpack.c.b16 %v348, %v346
  %v369 = vpack.c.b16 %v351, %v349
  %v370 = vpack.c.b16 %v352, %v350
  %v371 = vpack.c.b16 %v355, %v353
  %v372 = vpack.c.b16 %v356, %v354
  %389 = vmatprep.subr.bf16.mxu0 %v372
  %390 = vmatpush1.bf16.msra.mxu0 %v371
  %391 = vmatprep.subr.bf16.mxu0 %v370
  %392 = vmatpush1.bf16.msra.mxu0 %v369
  %393 = vmatprep.subr.bf16.mxu0 %v368
  %394 = vmatpush1.bf16.msra.mxu0 %v367
  %395 = vmatprep.subr.bf16.mxu0 %v366
  %396 = vmatpush1.bf16.msra.mxu0 %v365
  %397 = vmatprep.subr.bf16.mxu0 %v364
  %398 = vmatpush1.bf16.msra.mxu0 %v363
  %399 = vmatprep.subr.bf16.mxu0 %v362
  %400 = vmatpush1.bf16.msra.mxu0 %v361
  %401 = vmatprep.subr.bf16.mxu0 %v360
  %402 = vmatpush1.bf16.msra.mxu0 %v359
  %403 = vmatprep.subr.bf16.mxu0 %v358
  %404 = vmatpush1.bf16.msra.mxu0 %v357
  %405 = vmatprep.subr.bf16.mxu0 0
  %406 = vmatpush2.bf16.msra.mxu0 0
  %407 = vmatprep.subr.bf16.mxu0 0
  %408 = vmatpush2.bf16.msra.mxu0 0
  %409 = vmatprep.subr.bf16.mxu0 0
  %410 = vmatpush2.bf16.msra.mxu0 0
  %411 = vmatprep.subr.bf16.mxu0 0
  %412 = vmatpush2.bf16.msra.mxu0 0
  %413 = vmatprep.subr.bf16.mxu0 0
  %414 = vmatpush2.bf16.msra.mxu0 0
  %415 = vmatprep.subr.bf16.mxu0 0
  %416 = vmatpush2.bf16.msra.mxu0 0
  %417 = vmatprep.subr.bf16.mxu0 0
  %418 = vmatpush2.bf16.msra.mxu0 0
  %419 = vmatprep.subr.bf16.mxu0 0
  %420 = vmatpush2.bf16.msra.mxu0 0
  %421 = vmatprep.mubr.bf16.mxu0 0
  %422 = vmatmul.mubr.bf16.gmra.mxu0 %v307
  %v423 = vpop.f32.mrf.mxu0
  %v424 = vadd.f32 %v296, %v423
  %v425 = vpop.f32.mrf.mxu0
  %v426 = vadd.f32 %v298, %v425
  %v427 = vpop.f32.mrf.mxu0
  %v428 = vpop.f32.mrf.mxu0
  %429 = vdwg.mxu0
  %v430 = vpack.c.bf16 %v103, %v103
  %v447 = vunpack.c.l.b16 %v137
  %v448 = vunpack.c.h.b16 %v137
  %v449 = vunpack.c.l.b16 %v138
  %v450 = vunpack.c.h.b16 %v138
  %v451 = vunpack.c.l.b16 %v139
  %v452 = vunpack.c.h.b16 %v139
  %v453 = vunpack.c.l.b16 %v140
  %v454 = vunpack.c.h.b16 %v140
  %v455 = vunpack.c.l.b16 %v141
  %v456 = vunpack.c.h.b16 %v141
  %v457 = vunpack.c.l.b16 %v142
  %v458 = vunpack.c.h.b16 %v142
  %v459 = vunpack.c.l.b16 %v143
  %v460 = vunpack.c.h.b16 %v143
  %v461 = vunpack.c.l.b16 %v144
  %v462 = vunpack.c.h.b16 %v144
  %v463 = vunpack.c.l.b16 %v145
  %v464 = vunpack.c.h.b16 %v145
  %v465 = vunpack.c.l.b16 %v146
  %v466 = vunpack.c.h.b16 %v146
  %v467 = vunpack.c.l.b16 %v147
  %v468 = vunpack.c.h.b16 %v147
  %v469 = vunpack.c.l.b16 %v148
  %v470 = vunpack.c.h.b16 %v148
  %v471 = vunpack.c.l.b16 %v149
  %v472 = vunpack.c.h.b16 %v149
  %v473 = vunpack.c.l.b16 %v150
  %v474 = vunpack.c.h.b16 %v150
  %v475 = vunpack.c.l.b16 %v151
  %v476 = vunpack.c.h.b16 %v151
  %v477 = vunpack.c.l.b16 %v152
  %v478 = vunpack.c.h.b16 %v152
  %v479 = vpack.c.b16 %v449, %v447
  %v480 = vpack.c.b16 %v450, %v448
  %v481 = vpack.c.b16 %v453, %v451
  %v482 = vpack.c.b16 %v454, %v452
  %v483 = vpack.c.b16 %v457, %v455
  %v484 = vpack.c.b16 %v458, %v456
  %v485 = vpack.c.b16 %v461, %v459
  %v486 = vpack.c.b16 %v462, %v460
  %v487 = vpack.c.b16 %v465, %v463
  %v488 = vpack.c.b16 %v466, %v464
  %v489 = vpack.c.b16 %v469, %v467
  %v490 = vpack.c.b16 %v470, %v468
  %v491 = vpack.c.b16 %v473, %v471
  %v492 = vpack.c.b16 %v474, %v472
  %v493 = vpack.c.b16 %v477, %v475
  %v494 = vpack.c.b16 %v478, %v476
  %511 = vmatprep.subr.bf16.mxu0 %v494
  %512 = vmatpush1.bf16.msra.mxu0 %v493
  %513 = vmatprep.subr.bf16.mxu0 %v492
  %514 = vmatpush1.bf16.msra.mxu0 %v491
  %515 = vmatprep.subr.bf16.mxu0 %v490
  %516 = vmatpush1.bf16.msra.mxu0 %v489
  %517 = vmatprep.subr.bf16.mxu0 %v488
  %518 = vmatpush1.bf16.msra.mxu0 %v487
  %519 = vmatprep.subr.bf16.mxu0 %v486
  %520 = vmatpush1.bf16.msra.mxu0 %v485
  %521 = vmatprep.subr.bf16.mxu0 %v484
  %522 = vmatpush1.bf16.msra.mxu0 %v483
  %523 = vmatprep.subr.bf16.mxu0 %v482
  %524 = vmatpush1.bf16.msra.mxu0 %v481
  %525 = vmatprep.subr.bf16.mxu0 %v480
  %526 = vmatpush1.bf16.msra.mxu0 %v479
  %527 = vmatprep.subr.bf16.mxu0 0
  %528 = vmatpush2.bf16.msra.mxu0 0
  %529 = vmatprep.subr.bf16.mxu0 0
  %530 = vmatpush2.bf16.msra.mxu0 0
  %531 = vmatprep.subr.bf16.mxu0 0
  %532 = vmatpush2.bf16.msra.mxu0 0
  %533 = vmatprep.subr.bf16.mxu0 0
  %534 = vmatpush2.bf16.msra.mxu0 0
  %535 = vmatprep.subr.bf16.mxu0 0
  %536 = vmatpush2.bf16.msra.mxu0 0
  %537 = vmatprep.subr.bf16.mxu0 0
  %538 = vmatpush2.bf16.msra.mxu0 0
  %539 = vmatprep.subr.bf16.mxu0 0
  %540 = vmatpush2.bf16.msra.mxu0 0
  %541 = vmatprep.subr.bf16.mxu0 0
  %542 = vmatpush2.bf16.msra.mxu0 0
  %543 = vmatprep.mubr.bf16.mxu0 0
  %544 = vmatmul.mubr.bf16.gmra.mxu0 %v430
  %v545 = vpop.f32.mrf.mxu0
  %v546 = vadd.f32 0.0, %v545
  %v547 = vpop.f32.mrf.mxu0
  %v548 = vadd.f32 0.0, %v547
  %v549 = vpop.f32.mrf.mxu0
  %v550 = vpop.f32.mrf.mxu0
  %551 = vdwg.mxu0
  %v552 = vadd.f32 %v424, %v546
  %v553 = vadd.f32 %v426, %v548
  %v554 = vpack.c.bf16 %v104, %v104
  %v571 = vunpack.c.l.b16 %v153
  %v572 = vunpack.c.h.b16 %v153
  %v573 = vunpack.c.l.b16 %v154
  %v574 = vunpack.c.h.b16 %v154
  %v575 = vunpack.c.l.b16 %v155
  %v576 = vunpack.c.h.b16 %v155
  %v577 = vunpack.c.l.b16 %v156
  %v578 = vunpack.c.h.b16 %v156
  %v579 = vunpack.c.l.b16 %v157
  %v580 = vunpack.c.h.b16 %v157
  %v581 = vunpack.c.l.b16 %v158
  %v582 = vunpack.c.h.b16 %v158
  %v583 = vunpack.c.l.b16 %v159
  %v584 = vunpack.c.h.b16 %v159
  %v585 = vunpack.c.l.b16 %v160
  %v586 = vunpack.c.h.b16 %v160
  %v587 = vunpack.c.l.b16 %v161
  %v588 = vunpack.c.h.b16 %v161
  %v589 = vunpack.c.l.b16 %v162
  %v590 = vunpack.c.h.b16 %v162
  %v591 = vunpack.c.l.b16 %v163
  %v592 = vunpack.c.h.b16 %v163
  %v593 = vunpack.c.l.b16 %v164
  %v594 = vunpack.c.h.b16 %v164
  %v595 = vunpack.c.l.b16 %v165
  %v596 = vunpack.c.h.b16 %v165
  %v597 = vunpack.c.l.b16 %v166
  %v598 = vunpack.c.h.b16 %v166
  %v599 = vunpack.c.l.b16 %v167
  %v600 = vunpack.c.h.b16 %v167
  %v601 = vunpack.c.l.b16 %v168
  %v602 = vunpack.c.h.b16 %v168
  %v603 = vpack.c.b16 %v573, %v571
  %v604 = vpack.c.b16 %v574, %v572
  %v605 = vpack.c.b16 %v577, %v575
  %v606 = vpack.c.b16 %v578, %v576
  %v607 = vpack.c.b16 %v581, %v579
  %v608 = vpack.c.b16 %v582, %v580
  %v609 = vpack.c.b16 %v585, %v583
  %v610 = vpack.c.b16 %v586, %v584
  %v611 = vpack.c.b16 %v589, %v587
  %v612 = vpack.c.b16 %v590, %v588
  %v613 = vpack.c.b16 %v593, %v591
  %v614 = vpack.c.b16 %v594, %v592
  %v615 = vpack.c.b16 %v597, %v595
  %v616 = vpack.c.b16 %v598, %v596
  %v617 = vpack.c.b16 %v601, %v599
  %v618 = vpack.c.b16 %v602, %v600
  %635 = vmatprep.subr.bf16.mxu0 %v618
  %636 = vmatpush1.bf16.msra.mxu0 %v617
  %637 = vmatprep.subr.bf16.mxu0 %v616
  %638 = vmatpush1.bf16.msra.mxu0 %v615
  %639 = vmatprep.subr.bf16.mxu0 %v614
  %640 = vmatpush1.bf16.msra.mxu0 %v613
  %641 = vmatprep.subr.bf16.mxu0 %v612
  %642 = vmatpush1.bf16.msra.mxu0 %v611
  %643 = vmatprep.subr.bf16.mxu0 %v610
  %644 = vmatpush1.bf16.msra.mxu0 %v609
  %645 = vmatprep.subr.bf16.mxu0 %v608
  %646 = vmatpush1.bf16.msra.mxu0 %v607
  %647 = vmatprep.subr.bf16.mxu0 %v606
  %648 = vmatpush1.bf16.msra.mxu0 %v605
  %649 = vmatprep.subr.bf16.mxu0 %v604
  %650 = vmatpush1.bf16.msra.mxu0 %v603
  %651 = vmatprep.subr.bf16.mxu0 0
  %652 = vmatpush2.bf16.msra.mxu0 0
  %653 = vmatprep.subr.bf16.mxu0 0
  %654 = vmatpush2.bf16.msra.mxu0 0
  %655 = vmatprep.subr.bf16.mxu0 0
  %656 = vmatpush2.bf16.msra.mxu0 0
  %657 = vmatprep.subr.bf16.mxu0 0
  %658 = vmatpush2.bf16.msra.mxu0 0
  %659 = vmatprep.subr.bf16.mxu0 0
  %660 = vmatpush2.bf16.msra.mxu0 0
  %661 = vmatprep.subr.bf16.mxu0 0
  %662 = vmatpush2.bf16.msra.mxu0 0
  %663 = vmatprep.subr.bf16.mxu0 0
  %664 = vmatpush2.bf16.msra.mxu0 0
  %665 = vmatprep.subr.bf16.mxu0 0
  %666 = vmatpush2.bf16.msra.mxu0 0
  %667 = vmatprep.mubr.bf16.mxu0 0
  %668 = vmatmul.mubr.bf16.gmra.mxu0 %v554
  %v669 = vpop.f32.mrf.mxu0
  %v670 = vadd.f32 0.0, %v669
  %v671 = vpop.f32.mrf.mxu0
  %v672 = vadd.f32 0.0, %v671
  %v673 = vpop.f32.mrf.mxu0
  %v674 = vpop.f32.mrf.mxu0
  %675 = vdwg.mxu0
  %v676 = vadd.f32 %v552, %v670
  %v677 = vadd.f32 %v553, %v672
  %v678 = vld [vmem:[%s5] sm:$0x3]
  %v680 = vlaneseq
  %v681 = vshrl.u32 %v680, 7
  %v682 = vsub.s32 0, %v681
  %v683 = vrot.slane %v678, %v682
  %v684 = vlaneseq
  %v685 = vshrl.u32 %v684, 7
  %v686 = vsub.s32 1, %v685
  %v687 = vrot.slane %v678, %v686
  %v690 = vadd.f32 %v676, %v683
  %v691 = vadd.f32 %v677, %v687
  %v692 = vld [vmem:[%s6] sm:$0x3]
  %v693 = vld [vmem:[%s7] sm:$0x3]
  %vm694 = vcmask 1041408
  %v695 = vsel %vm694, %v690, 0.0
  %v696 = vsel %vm694, %v691, 0.0
  %v697 = vadd.f32 %v695, %v696
  %698 = vadd.xlane.f32.xlu0 %v697
  %v699 = vpop.xlane.xlu0 %698
  %v700 = vrcp.pop 256.0
  %v701 = vmul.f32 %v699, %v700
  %v702 = vsub.f32 %v690, %v701
  %v703 = vsub.f32 %v691, %v701
  %v704 = vmul.f32 %v702, %v702
  %v705 = vmul.f32 %v703, %v703
  %v706 = vsel %vm694, %v704, 0.0
  %v707 = vsel %vm694, %v705, 0.0
  %v708 = vadd.f32 %v706, %v707
  %709 = vadd.xlane.f32.xlu0 %v708
  %v710 = vpop.xlane.xlu0 %709
  %v711 = vmul.f32 %v710, %v700
  %v712 = vadd.f32 %v711, 1e-05
  %v713 = vrsqrt.pop %v712
  %v714 = vmul.f32 %v702, %v713
  %v715 = vmul.f32 %v703, %v713
  %v717 = vlaneseq
  %v718 = vshrl.u32 %v717, 7
  %v719 = vsub.s32 0, %v718
  %v720 = vrot.slane %v692, %v719
  %v721 = vlaneseq
  %v722 = vshrl.u32 %v721, 7
  %v723 = vsub.s32 1, %v722
  %v724 = vrot.slane %v692, %v723
  %v727 = vmul.f32 %v714, %v720
  %v728 = vmul.f32 %v715, %v724
  %v730 = vlaneseq
  %v731 = vshrl.u32 %v730, 7
  %v732 = vsub.s32 0, %v731
  %v733 = vrot.slane %v693, %v732
  %v734 = vlaneseq
  %v735 = vshrl.u32 %v734, 7
  %v736 = vsub.s32 1, %v735
  %v737 = vrot.slane %v693, %v736
  %v740 = vadd.f32 %v727, %v733
  %v741 = vadd.f32 %v728, %v737
  %v742 = vmul.f32 %v740, %v740
  %v743 = vmul.f32 %v741, %v741
  %v744 = vmul.f32 %v740, %v742
  %v745 = vmul.f32 %v741, %v743
  %v746 = vmul.f32 %v744, 0.044715
  %v747 = vmul.f32 %v745, 0.044715
  %v748 = vadd.f32 %v740, %v746
  %v749 = vadd.f32 %v741, %v747
  %v750 = vmul.f32 %v748, 0.7978846
  %v751 = vmul.f32 %v749, 0.7978846
  %v752 = vtanh.pop %v750
  %v753 = vtanh.pop %v751
  %v754 = vadd.f32 %v752, 1.0
  %v755 = vadd.f32 %v753, 1.0
  %v756 = vmul.f32 %v754, 0.5
  %v757 = vmul.f32 %v755, 0.5
  %v758 = vmul.f32 %v740, %v756
  %v759 = vmul.f32 %v741, %v757
  %v760 = vpack.c.bf16 %v758, %v758
  %v761 = vpack.c.bf16 %v759, %v759
  %v762 = vld [vmem:[%s8] sm:$0xf]
  %v763 = vld [vmem:[%s8 + $0x4] sm:$0xf]
  %v764 = vld [vmem:[%s8 + $0x8] sm:$0xf]
  %v765 = vld [vmem:[%s8 + $0xc] sm:$0xf]
  %v766 = vld [vmem:[%s8 + $0x10] sm:$0xf]
  %v767 = vld [vmem:[%s8 + $0x14] sm:$0xf]
  %v768 = vld [vmem:[%s8 + $0x18] sm:$0xf]
  %v769 = vld [vmem:[%s8 + $0x1c] sm:$0xf]
  %v770 = vld [vmem:[%s8 + $0x20] sm:$0xf]
  %v771 = vld [vmem:[%s8 + $0x24] sm:$0xf]
  %v772 = vld [vmem:[%s8 + $0x28] sm:$0xf]
  %v773 = vld [vmem:[%s8 + $0x2c] sm:$0xf]
  %v774 = vld [vmem:[%s8 + $0x30] sm:$0xf]
  %v775 = vld [vmem:[%s8 + $0x34] sm:$0xf]
  %v776 = vld [vmem:[%s8 + $0x38] sm:$0xf]
  %v777 = vld [vmem:[%s8 + $0x3c] sm:$0xf]
  %v778 = vld [vmem:[%s8 + $0x40] sm:$0xf]
  %v779 = vld [vmem:[%s8 + $0x44] sm:$0xf]
  %v780 = vld [vmem:[%s8 + $0x48] sm:$0xf]
  %v781 = vld [vmem:[%s8 + $0x4c] sm:$0xf]
  %v782 = vld [vmem:[%s8 + $0x50] sm:$0xf]
  %v783 = vld [vmem:[%s8 + $0x54] sm:$0xf]
  %v784 = vld [vmem:[%s8 + $0x58] sm:$0xf]
  %v785 = vld [vmem:[%s8 + $0x5c] sm:$0xf]
  %v786 = vld [vmem:[%s8 + $0x60] sm:$0xf]
  %v787 = vld [vmem:[%s8 + $0x64] sm:$0xf]
  %v788 = vld [vmem:[%s8 + $0x68] sm:$0xf]
  %v789 = vld [vmem:[%s8 + $0x6c] sm:$0xf]
  %v790 = vld [vmem:[%s8 + $0x70] sm:$0xf]
  %v791 = vld [vmem:[%s8 + $0x74] sm:$0xf]
  %v792 = vld [vmem:[%s8 + $0x78] sm:$0xf]
  %v793 = vld [vmem:[%s8 + $0x7c] sm:$0xf]
  %v794 = vld [vmem:[%s9] sm:$0x1]
  %v796 = vlaneseq
  %v797 = vshrl.u32 %v796, 7
  %v798 = vsub.s32 0, %v797
  %v799 = vrot.slane %v794, %v798
  %v833 = vunpack.c.l.b16 %v762
  %v834 = vunpack.c.l.b16 %v763
  %v835 = vunpack.c.l.b16 %v764
  %v836 = vunpack.c.l.b16 %v765
  %v837 = vunpack.c.l.b16 %v766
  %v838 = vunpack.c.l.b16 %v767
  %v839 = vunpack.c.l.b16 %v768
  %v840 = vunpack.c.l.b16 %v769
  %v841 = vunpack.c.l.b16 %v770
  %v842 = vunpack.c.l.b16 %v771
  %v843 = vunpack.c.l.b16 %v772
  %v844 = vunpack.c.l.b16 %v773
  %v845 = vunpack.c.l.b16 %v774
  %v846 = vunpack.c.l.b16 %v775
  %v847 = vunpack.c.l.b16 %v776
  %v848 = vunpack.c.l.b16 %v777
  %v849 = vunpack.c.l.b16 %v778
  %v850 = vunpack.c.l.b16 %v779
  %v851 = vunpack.c.l.b16 %v780
  %v852 = vunpack.c.l.b16 %v781
  %v853 = vunpack.c.l.b16 %v782
  %v854 = vunpack.c.l.b16 %v783
  %v855 = vunpack.c.l.b16 %v784
  %v856 = vunpack.c.l.b16 %v785
  %v857 = vunpack.c.l.b16 %v786
  %v858 = vunpack.c.l.b16 %v787
  %v859 = vunpack.c.l.b16 %v788
  %v860 = vunpack.c.l.b16 %v789
  %v861 = vunpack.c.l.b16 %v790
  %v862 = vunpack.c.l.b16 %v791
  %v863 = vunpack.c.l.b16 %v792
  %v864 = vunpack.c.l.b16 %v793
  %v865 = vpack.c.b16 %v834, %v833
  %v866 = vpack.c.b16 %v836, %v835
  %v867 = vpack.c.b16 %v838, %v837
  %v868 = vpack.c.b16 %v840, %v839
  %v869 = vpack.c.b16 %v842, %v841
  %v870 = vpack.c.b16 %v844, %v843
  %v871 = vpack.c.b16 %v846, %v845
  %v872 = vpack.c.b16 %v848, %v847
  %v873 = vpack.c.b16 %v850, %v849
  %v874 = vpack.c.b16 %v852, %v851
  %v875 = vpack.c.b16 %v854, %v853
  %v876 = vpack.c.b16 %v856, %v855
  %v877 = vpack.c.b16 %v858, %v857
  %v878 = vpack.c.b16 %v860, %v859
  %v879 = vpack.c.b16 %v862, %v861
  %v880 = vpack.c.b16 %v864, %v863
  %897 = vmatprep.subr.bf16.mxu0 0
  %898 = vmatpush1.bf16.msra.mxu0 %v872
  %899 = vmatprep.subr.bf16.mxu0 0
  %900 = vmatpush1.bf16.msra.mxu0 %v871
  %901 = vmatprep.subr.bf16.mxu0 0
  %902 = vmatpush1.bf16.msra.mxu0 %v870
  %903 = vmatprep.subr.bf16.mxu0 0
  %904 = vmatpush1.bf16.msra.mxu0 %v869
  %905 = vmatprep.subr.bf16.mxu0 0
  %906 = vmatpush1.bf16.msra.mxu0 %v868
  %907 = vmatprep.subr.bf16.mxu0 0
  %908 = vmatpush1.bf16.msra.mxu0 %v867
  %909 = vmatprep.subr.bf16.mxu0 0
  %910 = vmatpush1.bf16.msra.mxu0 %v866
  %911 = vmatprep.subr.bf16.mxu0 0
  %912 = vmatpush1.bf16.msra.mxu0 %v865
  %913 = vmatprep.subr.bf16.mxu0 0
  %914 = vmatpush2.bf16.msra.mxu0 %v880
  %915 = vmatprep.subr.bf16.mxu0 0
  %916 = vmatpush2.bf16.msra.mxu0 %v879
  %917 = vmatprep.subr.bf16.mxu0 0
  %918 = vmatpush2.bf16.msra.mxu0 %v878
  %919 = vmatprep.subr.bf16.mxu0 0
  %920 = vmatpush2.bf16.msra.mxu0 %v877
  %921 = vmatprep.subr.bf16.mxu0 0
  %922 = vmatpush2.bf16.msra.mxu0 %v876
  %923 = vmatprep.subr.bf16.mxu0 0
  %924 = vmatpush2.bf16.msra.mxu0 %v875
  %925 = vmatprep.subr.bf16.mxu0 0
  %926 = vmatpush2.bf16.msra.mxu0 %v874
  %927 = vmatprep.subr.bf16.mxu0 0
  %928 = vmatpush2.bf16.msra.mxu0 %v873
  %929 = vmatprep.mubr.bf16.mxu0 %v761
  %930 = vmatmul.mubr.bf16.gmra.mxu0 %v760
  %v931 = vpop.f32.mrf.mxu0
  %v932 = vadd.f32 %v799, %v931
  %v933 = vpop.f32.mrf.mxu0
  %v934 = vpop.f32.mrf.mxu0
  %v935 = vpop.f32.mrf.mxu0
  %936 = vdwg.mxu0
  %v937 = vld [vmem:[%s10] sm:$0x1]
  %v938 = vld [vmem:[%s11] sm:$0x1]
  %v939 = vsel %vm694, %v932, 0.0
  %940 = vadd.xlane.f32.xlu0 %v939
  %v941 = vpop.xlane.xlu0 %940
  %v942 = vrcp.pop 128.0
  %v943 = vmul.f32 %v941, %v942
  %v944 = vsub.f32 %v932, %v943
  %v945 = vmul.f32 %v944, %v944
  %v946 = vsel %vm694, %v945, 0.0
  %947 = vadd.xlane.f32.xlu0 %v946
  %v948 = vpop.xlane.xlu0 %947
  %v949 = vmul.f32 %v948, %v942
  %v950 = vadd.f32 %v949, 1e-05
  %v951 = vrsqrt.pop %v950
  %v952 = vmul.f32 %v944, %v951
  %v954 = vlaneseq
  %v955 = vshrl.u32 %v954, 7
  %v956 = vsub.s32 0, %v955
  %v957 = vrot.slane %v937, %v956
  %v959 = vmul.f32 %v952, %v957
  %v961 = vlaneseq
  %v962 = vshrl.u32 %v961, 7
  %v963 = vsub.s32 0, %v962
  %v964 = vrot.slane %v938, %v963
  %v966 = vadd.f32 %v959, %v964
  %v967 = vmul.f32 %v966, %v966
  %v968 = vmul.f32 %v966, %v967
  %v969 = vmul.f32 %v968, 0.044715
  %v970 = vadd.f32 %v966, %v969
  %v971 = vmul.f32 %v970, 0.7978846
  %v972 = vtanh.pop %v971
  %v973 = vadd.f32 %v972, 1.0
  %v974 = vmul.f32 %v973, 0.5
  %v975 = vmul.f32 %v966, %v974
  %v976 = vpack.c.bf16 %v975, %v975
  %v977 = vld [vmem:[%s12] sm:$0xf]
  %v978 = vld [vmem:[%s12 + $0x4] sm:$0xf]
  %v979 = vld [vmem:[%s12 + $0x8] sm:$0xf]
  %v980 = vld [vmem:[%s12 + $0xc] sm:$0xf]
  %v981 = vld [vmem:[%s12 + $0x10] sm:$0xf]
  %v982 = vld [vmem:[%s12 + $0x14] sm:$0xf]
  %v983 = vld [vmem:[%s12 + $0x18] sm:$0xf]
  %v984 = vld [vmem:[%s12 + $0x1c] sm:$0xf]
  %v985 = vld [vmem:[%s12 + $0x20] sm:$0xf]
  %v986 = vld [vmem:[%s12 + $0x24] sm:$0xf]
  %v987 = vld [vmem:[%s12 + $0x28] sm:$0xf]
  %v988 = vld [vmem:[%s12 + $0x2c] sm:$0xf]
  %v989 = vld [vmem:[%s12 + $0x30] sm:$0xf]
  %v990 = vld [vmem:[%s12 + $0x34] sm:$0xf]
  %v991 = vld [vmem:[%s12 + $0x38] sm:$0xf]
  %v992 = vld [vmem:[%s12 + $0x3c] sm:$0xf]
  %v993 = vld [vmem:[%s13] sm:$0x1]
  %v995 = vlaneseq
  %v996 = vshrl.u32 %v995, 7
  %v997 = vsub.s32 0, %v996
  %v998 = vrot.slane %v993, %v997
  %v1016 = vunpack.c.l.b16 %v977
  %v1017 = vunpack.c.l.b16 %v978
  %v1018 = vunpack.c.l.b16 %v979
  %v1019 = vunpack.c.l.b16 %v980
  %v1020 = vunpack.c.l.b16 %v981
  %v1021 = vunpack.c.l.b16 %v982
  %v1022 = vunpack.c.l.b16 %v983
  %v1023 = vunpack.c.l.b16 %v984
  %v1024 = vunpack.c.l.b16 %v985
  %v1025 = vunpack.c.l.b16 %v986
  %v1026 = vunpack.c.l.b16 %v987
  %v1027 = vunpack.c.l.b16 %v988
  %v1028 = vunpack.c.l.b16 %v989
  %v1029 = vunpack.c.l.b16 %v990
  %v1030 = vunpack.c.l.b16 %v991
  %v1031 = vunpack.c.l.b16 %v992
  %v1032 = vpack.c.b16 %v1017, %v1016
  %v1033 = vpack.c.b16 %v1019, %v1018
  %v1034 = vpack.c.b16 %v1021, %v1020
  %v1035 = vpack.c.b16 %v1023, %v1022
  %v1036 = vpack.c.b16 %v1025, %v1024
  %v1037 = vpack.c.b16 %v1027, %v1026
  %v1038 = vpack.c.b16 %v1029, %v1028
  %v1039 = vpack.c.b16 %v1031, %v1030
  %1048 = vmatprep.subr.bf16.mxu0 0
  %1049 = vmatpush1.bf16.msra.mxu0 %v1039
  %1050 = vmatprep.subr.bf16.mxu0 0
  %1051 = vmatpush1.bf16.msra.mxu0 %v1038
  %1052 = vmatprep.subr.bf16.mxu0 0
  %1053 = vmatpush1.bf16.msra.mxu0 %v1037
  %1054 = vmatprep.subr.bf16.mxu0 0
  %1055 = vmatpush1.bf16.msra.mxu0 %v1036
  %1056 = vmatprep.subr.bf16.mxu0 0
  %1057 = vmatpush1.bf16.msra.mxu0 %v1035
  %1058 = vmatprep.subr.bf16.mxu0 0
  %1059 = vmatpush1.bf16.msra.mxu0 %v1034
  %1060 = vmatprep.subr.bf16.mxu0 0
  %1061 = vmatpush1.bf16.msra.mxu0 %v1033
  %1062 = vmatprep.subr.bf16.mxu0 0
  %1063 = vmatpush1.bf16.msra.mxu0 %v1032
  %1064 = vmatprep.subr.bf16.mxu0 0
  %1065 = vmatpush2.bf16.msra.mxu0 0
  %1066 = vmatprep.subr.bf16.mxu0 0
  %1067 = vmatpush2.bf16.msra.mxu0 0
  %1068 = vmatprep.subr.bf16.mxu0 0
  %1069 = vmatpush2.bf16.msra.mxu0 0
  %1070 = vmatprep.subr.bf16.mxu0 0
  %1071 = vmatpush2.bf16.msra.mxu0 0
  %1072 = vmatprep.subr.bf16.mxu0 0
  %1073 = vmatpush2.bf16.msra.mxu0 0
  %1074 = vmatprep.subr.bf16.mxu0 0
  %1075 = vmatpush2.bf16.msra.mxu0 0
  %1076 = vmatprep.subr.bf16.mxu0 0
  %1077 = vmatpush2.bf16.msra.mxu0 0
  %1078 = vmatprep.subr.bf16.mxu0 0
  %1079 = vmatpush2.bf16.msra.mxu0 0
  %1080 = vmatprep.mubr.bf16.mxu0 0
  %1081 = vmatmul.mubr.bf16.gmra.mxu0 %v976
  %v1082 = vpop.f32.mrf.mxu0
  %v1083 = vadd.f32 %v998, %v1082
  %v1084 = vpop.f32.mrf.mxu0
  %v1085 = vpop.f32.mrf.mxu0
  %v1086 = vpop.f32.mrf.mxu0
  %1087 = vdwg.mxu0
  %v1088 = vmul.f32 %v1083, %v1083
  %v1089 = vmul.f32 %v1083, %v1088
  %v1090 = vmul.f32 %v1089, 0.044715
  %v1091 = vadd.f32 %v1083, %v1090
  %v1092 = vmul.f32 %v1091, 0.7978846
  %v1093 = vtanh.pop %v1092
  %v1094 = vadd.f32 %v1093, 1.0
  %v1095 = vmul.f32 %v1094, 0.5
  %v1096 = vmul.f32 %v1083, %v1095
  %v1097 = vpack.c.bf16 %v1096, %v1096
  %v1098 = vld [vmem:[%s14] sm:$0xf]
  %v1099 = vld [vmem:[%s14 + $0x4] sm:$0xf]
  %v1100 = vld [vmem:[%s14 + $0x8] sm:$0xf]
  %v1101 = vld [vmem:[%s14 + $0xc] sm:$0xf]
  %v1102 = vld [vmem:[%s14 + $0x10] sm:$0xf]
  %v1103 = vld [vmem:[%s14 + $0x14] sm:$0xf]
  %v1104 = vld [vmem:[%s14 + $0x18] sm:$0xf]
  %v1105 = vld [vmem:[%s14 + $0x1c] sm:$0xf]
  %v1106 = vld [vmem:[%s15] sm:$0x1]
  %v1108 = vlaneseq
  %v1109 = vshrl.u32 %v1108, 7
  %v1110 = vsub.s32 0, %v1109
  %v1111 = vrot.slane %v1106, %v1110
  %v1121 = vunpack.c.l.b16 %v1098
  %v1122 = vunpack.c.l.b16 %v1099
  %v1123 = vunpack.c.l.b16 %v1100
  %v1124 = vunpack.c.l.b16 %v1101
  %v1125 = vunpack.c.l.b16 %v1102
  %v1126 = vunpack.c.l.b16 %v1103
  %v1127 = vunpack.c.l.b16 %v1104
  %v1128 = vunpack.c.l.b16 %v1105
  %v1129 = vpack.c.b16 %v1122, %v1121
  %v1130 = vpack.c.b16 %v1124, %v1123
  %v1131 = vpack.c.b16 %v1126, %v1125
  %v1132 = vpack.c.b16 %v1128, %v1127
  %vm1137 = vcmask 523264
  %v1139 = vsel %vm1137, %v1097, 0
  %1141 = vmatprep.subr.bf16.mxu0 0
  %1142 = vmatpush1.bf16.msra.mxu0 0
  %1143 = vmatprep.subr.bf16.mxu0 0
  %1144 = vmatpush1.bf16.msra.mxu0 0
  %1145 = vmatprep.subr.bf16.mxu0 0
  %1146 = vmatpush1.bf16.msra.mxu0 0
  %1147 = vmatprep.subr.bf16.mxu0 0
  %1148 = vmatpush1.bf16.msra.mxu0 0
  %1149 = vmatprep.subr.bf16.mxu0 0
  %1150 = vmatpush1.bf16.msra.mxu0 %v1132
  %1151 = vmatprep.subr.bf16.mxu0 0
  %1152 = vmatpush1.bf16.msra.mxu0 %v1131
  %1153 = vmatprep.subr.bf16.mxu0 0
  %1154 = vmatpush1.bf16.msra.mxu0 %v1130
  %1155 = vmatprep.subr.bf16.mxu0 0
  %1156 = vmatpush1.bf16.msra.mxu0 %v1129
  %1157 = vmatprep.subr.bf16.mxu0 0
  %1158 = vmatpush2.bf16.msra.mxu0 0
  %1159 = vmatprep.subr.bf16.mxu0 0
  %1160 = vmatpush2.bf16.msra.mxu0 0
  %1161 = vmatprep.subr.bf16.mxu0 0
  %1162 = vmatpush2.bf16.msra.mxu0 0
  %1163 = vmatprep.subr.bf16.mxu0 0
  %1164 = vmatpush2.bf16.msra.mxu0 0
  %1165 = vmatprep.subr.bf16.mxu0 0
  %1166 = vmatpush2.bf16.msra.mxu0 0
  %1167 = vmatprep.subr.bf16.mxu0 0
  %1168 = vmatpush2.bf16.msra.mxu0 0
  %1169 = vmatprep.subr.bf16.mxu0 0
  %1170 = vmatpush2.bf16.msra.mxu0 0
  %1171 = vmatprep.subr.bf16.mxu0 0
  %1172 = vmatpush2.bf16.msra.mxu0 0
  %1173 = vmatprep.mubr.bf16.mxu0 0
  %1174 = vmatmul.mubr.bf16.gmra.mxu0 %v1139
  %v1175 = vpop.f32.mrf.mxu0
  %v1176 = vadd.f32 %v1111, %v1175
  %v1177 = vpop.f32.mrf.mxu0
  %v1178 = vpop.f32.mrf.mxu0
  %v1179 = vpop.f32.mrf.mxu0
  %1180 = vdwg.mxu0
  %v1181 = vmax.f32 %v1176, 0.0
  %v1182 = vand.u32 2147483647, %v1176
  %v1183 = vsub.f32 0.0, %v1182
  %v1184 = vmul.f32 %v1183, 1.442695
  %v1185 = vpow.pop %v1184
  %v1186 = vadd.f32 %v1185, 1.0
  %v1187 = vlog2.pop %v1186
  %v1188 = vmul.f32 %v1187, 0.6931472
  %v1189 = vadd.f32 %v1181, %v1188
  %v1190 = vlaneseq
  %v1191 = vand.u32 %v1190, 127
  %vm1192 = vcmp.eq.s32.totalorder %v1191, 0
  %v1193 = vsel %vm1192, %v1176, %v1189
  %vm1194 = vcmask 9216
  %1195 = vst.msk [vmem:[%s16] sm:$0x3] %vm1194, %v1193
  // Predicated region
  $region66: #{age_estimator_fwd.5} parent=0 // pred_check
    _
  $region67: #{age_estimator_fwd.5} parent=0 // pred_check_branch
    %1197 = sbr.rel (0) target = $region69
  $region68: #{age_estimator_fwd.5} parent=0 // pred_region
    _
  $region69: #{age_estimator_fwd.5} parent=0 // pred_fallthru
    _
  // Predicated region
  $region70: #{age_estimator_fwd.5} parent=0 // pred_check
    _
  $region71: #{age_estimator_fwd.5} parent=0 // pred_check_branch
    %1199 = sbr.rel (0) target = $region73
  $region72: #{age_estimator_fwd.5} parent=0 // pred_region
    _
  $region73: #{age_estimator_fwd.5} parent=0 // pred_fallthru
    _

// kernel: age_estimator_fwd.3
$region0: #{age_estimator_fwd.3}
  #allocation0 [shape = 'u32[]', space=smem, size = 0x4, offset = 0x4, fixed_abs, tag = 'smem constant byte address 0x4 - core index']
  #allocation1 [shape = 'u32[144,128]{1,0:T(1,128)}', space=vmem, size = 0x12000, scoped, tag = 'internal scratch']
  %s0 = inlined_call_operand.vmem [shape: bf16[2,2,16,3], index: 0, kind: input, shape index: {}]
  %s1 = inlined_call_operand.vmem [shape: bf16[2,3,512], index: 1, kind: input, shape index: {}]
  %s2 = inlined_call_operand.vmem [shape: f32[2,1,512], index: 2, kind: input, shape index: {}]
  %s3 = inlined_call_operand.vmem [shape: bf16[2,512,256], index: 3, kind: input, shape index: {}]
  %s4 = inlined_call_operand.vmem [shape: f32[2,1,256], index: 4, kind: input, shape index: {}]
  %s5 = inlined_call_operand.vmem [shape: bf16[2,256,128], index: 5, kind: input, shape index: {}]
  %s6 = inlined_call_operand.vmem [shape: f32[2,1,128], index: 6, kind: input, shape index: {}]
  %s7 = inlined_call_operand.vmem [shape: bf16[2,128,8], index: 7, kind: input, shape index: {}]
  %s8 = inlined_call_operand.vmem [shape: f32[2,1,8], index: 8, kind: input, shape index: {}]
  %s9 = inlined_call_operand.vmem [shape: bf16[2,8,128], index: 9, kind: input, shape index: {}]
  %s10 = inlined_call_operand.vmem [shape: f32[2,1,128], index: 10, kind: input, shape index: {}]
  %s11 = inlined_call_operand.vmem [shape: bf16[2,2,16,128], index: 11, kind: output, shape index: {0}]
  %s12 = inlined_call_operand.vmem [shape: f32[2,2,128], index: 12, kind: output, shape index: {1}]
  %13 = xla_tuple %s11, %s12
  %s14 = sld [smem:[#allocation0]]
  $region85: #{age_estimator_fwd.3} parent=0
    _
  %s16 = ssub.s32 1, %s14
  %s17 = scalar_select 0, %s16, %s14
  loop: start=0, step=1, limit=4
  $region2: #{age_estimator_fwd.3} parent=0 // loop_pre_header
    _
  $region3: #{age_estimator_fwd.3} parent=0 // loop_header
    %s19 = sphi 0, %s23
    %p20 = scmp.ge.s32.totalorder %s19, 4
    %s29 = sphi 0, %s31
    %s32 = sphi 0, %s29
    %s33 = sphi 0, %s32
    %s49 = sphi 0, %s33
    %s55 = sphi 0, %s57
    %s58 = sphi 0, %s55
    %s59 = sphi 0, %s58
    %s75 = sphi 0, %s59
    %s81 = sphi 0, %s83
    %s84 = sphi 0, %s81
    %s85 = sphi 0, %s84
    %s101 = sphi 0, %s85
    %s107 = sphi 0, %s109
    %s110 = sphi 0, %s107
    %s111 = sphi 0, %s110
    %s127 = sphi 0, %s111
    %s133 = sphi 0, %s135
    %s136 = sphi 0, %s133
    %s137 = sphi 0, %s136
    %s153 = sphi 0, %s137
    %s159 = sphi 0, %s161
    %s162 = sphi 0, %s159
    %s163 = sphi 0, %s162
    %s179 = sphi 0, %s163
    %s185 = sphi 0, %s187
    %s188 = sphi 0, %s185
    %s189 = sphi 0, %s188
    %s205 = sphi 0, %s189
    %s211 = sphi 0, %s213
    %s214 = sphi 0, %s211
    %s215 = sphi 0, %s214
    %s231 = sphi 0, %s215
    %s237 = sphi 0, %s239
    %s240 = sphi 0, %s237
    %s241 = sphi 0, %s240
    %s257 = sphi 0, %s241
    %s263 = sphi 0, %s265
    %s266 = sphi 0, %s263
    %s267 = sphi 0, %s266
    %s283 = sphi 0, %s267
    %s289 = sphi 0, %s291
    %s292 = sphi 0, %s289
    %s293 = sphi 0, %s292
    %s309 = sphi 0, %s293
    %s315 = sphi 0, %s317
    %s318 = sphi 0, %s315
    %s319 = sphi 0, %s318
    %s335 = sphi 0, %s319
    %s341 = sphi 0, %s343
    %s344 = sphi 0, %s341
    %s345 = sphi 0, %s344
    %s361 = sphi 0, %s345
  $region4: #{age_estimator_fwd.3} parent=0 // loop_header_branch
    %22 = sbr.rel (%p20) target = $region8
  $region5: #{age_estimator_fwd.3} parent=0 // loop_body
    %s24 = ssub.s32 %s19, 1
    %s25 = ssub.s32 %s19, 2
    %s26 = sadd.s32 %s19, 1
    %s27 = ssub.s32 %s19, %s26
    %p28 = scmp.eq.s32.totalorder %s27, 0
    %s30 = sadd.s32 %s29, 1
    %s31 = scalar_select %p28, %s29, %s30
    %p34 = pneg %p28
    %p35 = scmp.eq.s32.totalorder %s19, 1
    %p36 = por %p34, %p35
    %p37 = scmp.ne.s32.totalorder %s29, %s32
    %p38 = scmp.eq.s32.totalorder %s19, 0
    %p39 = por %p37, %p38
    %p40 = scmp.ne.s32.totalorder %s29, %s32
    %p41 = scmp.eq.s32.totalorder %s24, 1
    %p42 = por %p40, %p41
    %p43 = scmp.ne.s32.totalorder %s32, %s33
    %p44 = scmp.eq.s32.totalorder %s24, 0
    %p45 = por %p43, %p44
    %p46 = scmp.ne.s32.totalorder %s32, %s33
    %p47 = scmp.eq.s32.totalorder %s25, 1
    %p48 = por %p46, %p47
    %p50 = scmp.ne.s32.totalorder %s33, %s49
    %p51 = scmp.eq.s32.totalorder %s25, 0
    %p52 = por %p50, %p51
    %s53 = ssub.s32 %s19, %s26
    %p54 = scmp.eq.s32.totalorder %s53, 0
    %s56 = sadd.s32 %s55, 1
    %s57 = scalar_select %p54, %s55, %s56
    %p60 = pneg %p54
    %p61 = scmp.eq.s32.totalorder %s19, 1
    %p62 = por %p60, %p61
    %p63 = scmp.ne.s32.totalorder %s55, %s58
    %p64 = scmp.eq.s32.totalorder %s19, 0
    %p65 = por %p63, %p64
    %p66 = scmp.ne.s32.totalorder %s55, %s58
    %p67 = scmp.eq.s32.totalorder %s24, 1
    %p68 = por %p66, %p67
    %p69 = scmp.ne.s32.totalorder %s58, %s59
    %p70 = scmp.eq.s32.totalorder %s24, 0
    %p71 = por %p69, %p70
    %p72 = scmp.ne.s32.totalorder %s58, %s59
    %p73 = scmp.eq.s32.totalorder %s25, 1
    %p74 = por %p72, %p73
    %p76 = scmp.ne.s32.totalorder %s59, %s75
    %p77 = scmp.eq.s32.totalorder %s25, 0
    %p78 = por %p76, %p77
    %s79 = ssub.s32 %s19, %s26
    %p80 = scmp.eq.s32.totalorder %s79, 0
    %s82 = sadd.s32 %s81, 1
    %s83 = scalar_select %p80, %s81, %s82
    %p86 = pneg %p80
    %p87 = scmp.eq.s32.totalorder %s19, 1
    %p88 = por %p86, %p87
    %p89 = scmp.ne.s32.totalorder %s81, %s84
    %p90 = scmp.eq.s32.totalorder %s19, 0
    %p91 = por %p89, %p90
    %p92 = scmp.ne.s32.totalorder %s81, %s84
    %p93 = scmp.eq.s32.totalorder %s24, 1
    %p94 = por %p92, %p93
    %p95 = scmp.ne.s32.totalorder %s84, %s85
    %p96 = scmp.eq.s32.totalorder %s24, 0
    %p97 = por %p95, %p96
    %p98 = scmp.ne.s32.totalorder %s84, %s85
    %p99 = scmp.eq.s32.totalorder %s25, 1
    %p100 = por %p98, %p99
    %p102 = scmp.ne.s32.totalorder %s85, %s101
    %p103 = scmp.eq.s32.totalorder %s25, 0
    %p104 = por %p102, %p103
    %s105 = ssub.s32 %s19, %s26
    %p106 = scmp.eq.s32.totalorder %s105, 0
    %s108 = sadd.s32 %s107, 1
    %s109 = scalar_select %p106, %s107, %s108
    %p112 = pneg %p106
    %p113 = scmp.eq.s32.totalorder %s19, 1
    %p114 = por %p112, %p113
    %p115 = scmp.ne.s32.totalorder %s107, %s110
    %p116 = scmp.eq.s32.totalorder %s19, 0
    %p117 = por %p115, %p116
    %p118 = scmp.ne.s32.totalorder %s107, %s110
    %p119 = scmp.eq.s32.totalorder %s24, 1
    %p120 = por %p118, %p119
    %p121 = scmp.ne.s32.totalorder %s110, %s111
    %p122 = scmp.eq.s32.totalorder %s24, 0
    %p123 = por %p121, %p122
    %p124 = scmp.ne.s32.totalorder %s110, %s111
    %p125 = scmp.eq.s32.totalorder %s25, 1
    %p126 = por %p124, %p125
    %p128 = scmp.ne.s32.totalorder %s111, %s127
    %p129 = scmp.eq.s32.totalorder %s25, 0
    %p130 = por %p128, %p129
    %s131 = ssub.s32 %s19, %s26
    %p132 = scmp.eq.s32.totalorder %s131, 0
    %s134 = sadd.s32 %s133, 1
    %s135 = scalar_select %p132, %s133, %s134
    %p138 = pneg %p132
    %p139 = scmp.eq.s32.totalorder %s19, 1
    %p140 = por %p138, %p139
    %p141 = scmp.ne.s32.totalorder %s133, %s136
    %p142 = scmp.eq.s32.totalorder %s19, 0
    %p143 = por %p141, %p142
    %p144 = scmp.ne.s32.totalorder %s133, %s136
    %p145 = scmp.eq.s32.totalorder %s24, 1
    %p146 = por %p144, %p145
    %p147 = scmp.ne.s32.totalorder %s136, %s137
    %p148 = scmp.eq.s32.totalorder %s24, 0
    %p149 = por %p147, %p148
    %p150 = scmp.ne.s32.totalorder %s136, %s137
    %p151 = scmp.eq.s32.totalorder %s25, 1
    %p152 = por %p150, %p151
    %p154 = scmp.ne.s32.totalorder %s137, %s153
    %p155 = scmp.eq.s32.totalorder %s25, 0
    %p156 = por %p154, %p155
    %s157 = ssub.s32 %s19, %s26
    %p158 = scmp.eq.s32.totalorder %s157, 0
    %s160 = sadd.s32 %s159, 1
    %s161 = scalar_select %p158, %s159, %s160
    %p164 = pneg %p158
    %p165 = scmp.eq.s32.totalorder %s19, 1
    %p166 = por %p164, %p165
    %p167 = scmp.ne.s32.totalorder %s159, %s162
    %p168 = scmp.eq.s32.totalorder %s19, 0
    %p169 = por %p167, %p168
    %p170 = scmp.ne.s32.totalorder %s159, %s162
    %p171 = scmp.eq.s32.totalorder %s24, 1
    %p172 = por %p170, %p171
    %p173 = scmp.ne.s32.totalorder %s162, %s163
    %p174 = scmp.eq.s32.totalorder %s24, 0
    %p175 = por %p173, %p174
    %p176 = scmp.ne.s32.totalorder %s162, %s163
    %p177 = scmp.eq.s32.totalorder %s25, 1
    %p178 = por %p176, %p177
    %p180 = scmp.ne.s32.totalorder %s163, %s179
    %p181 = scmp.eq.s32.totalorder %s25, 0
    %p182 = por %p180, %p181
    %s183 = ssub.s32 %s19, %s26
    %p184 = scmp.eq.s32.totalorder %s183, 0
    %s186 = sadd.s32 %s185, 1
    %s187 = scalar_select %p184, %s185, %s186
    %p190 = pneg %p184
    %p191 = scmp.eq.s32.totalorder %s19, 1
    %p192 = por %p190, %p191
    %p193 = scmp.ne.s32.totalorder %s185, %s188
    %p194 = scmp.eq.s32.totalorder %s19, 0
    %p195 = por %p193, %p194
    %p196 = scmp.ne.s32.totalorder %s185, %s188
    %p197 = scmp.eq.s32.totalorder %s24, 1
    %p198 = por %p196, %p197
    %p199 = scmp.ne.s32.totalorder %s188, %s189
    %p200 = scmp.eq.s32.totalorder %s24, 0
    %p201 = por %p199, %p200
    %p202 = scmp.ne.s32.totalorder %s188, %s189
    %p203 = scmp.eq.s32.totalorder %s25, 1
    %p204 = por %p202, %p203
    %p206 = scmp.ne.s32.totalorder %s189, %s205
    %p207 = scmp.eq.s32.totalorder %s25, 0
    %p208 = por %p206, %p207
    %s209 = ssub.s32 %s19, %s26
    %p210 = scmp.eq.s32.totalorder %s209, 0
    %s212 = sadd.s32 %s211, 1
    %s213 = scalar_select %p210, %s211, %s212
    %p216 = pneg %p210
    %p217 = scmp.eq.s32.totalorder %s19, 1
    %p218 = por %p216, %p217
    %p219 = scmp.ne.s32.totalorder %s211, %s214
    %p220 = scmp.eq.s32.totalorder %s19, 0
    %p221 = por %p219, %p220
    %p222 = scmp.ne.s32.totalorder %s211, %s214
    %p223 = scmp.eq.s32.totalorder %s24, 1
    %p224 = por %p222, %p223
    %p225 = scmp.ne.s32.totalorder %s214, %s215
    %p226 = scmp.eq.s32.totalorder %s24, 0
    %p227 = por %p225, %p226
    %p228 = scmp.ne.s32.totalorder %s214, %s215
    %p229 = scmp.eq.s32.totalorder %s25, 1
    %p230 = por %p228, %p229
    %p232 = scmp.ne.s32.totalorder %s215, %s231
    %p233 = scmp.eq.s32.totalorder %s25, 0
    %p234 = por %p232, %p233
    %s235 = ssub.s32 %s19, %s26
    %p236 = scmp.eq.s32.totalorder %s235, 0
    %s238 = sadd.s32 %s237, 1
    %s239 = scalar_select %p236, %s237, %s238
    %p242 = pneg %p236
    %p243 = scmp.eq.s32.totalorder %s19, 1
    %p244 = por %p242, %p243
    %p245 = scmp.ne.s32.totalorder %s237, %s240
    %p246 = scmp.eq.s32.totalorder %s19, 0
    %p247 = por %p245, %p246
    %p248 = scmp.ne.s32.totalorder %s237, %s240
    %p249 = scmp.eq.s32.totalorder %s24, 1
    %p250 = por %p248, %p249
    %p251 = scmp.ne.s32.totalorder %s240, %s241
    %p252 = scmp.eq.s32.totalorder %s24, 0
    %p253 = por %p251, %p252
    %p254 = scmp.ne.s32.totalorder %s240, %s241
    %p255 = scmp.eq.s32.totalorder %s25, 1
    %p256 = por %p254, %p255
    %p258 = scmp.ne.s32.totalorder %s241, %s257
    %p259 = scmp.eq.s32.totalorder %s25, 0
    %p260 = por %p258, %p259
    %s261 = ssub.s32 %s19, %s26
    %p262 = scmp.eq.s32.totalorder %s261, 0
    %s264 = sadd.s32 %s263, 1
    %s265 = scalar_select %p262, %s263, %s264
    %p268 = pneg %p262
    %p269 = scmp.eq.s32.totalorder %s19, 1
    %p270 = por %p268, %p269
    %p271 = scmp.ne.s32.totalorder %s263, %s266
    %p272 = scmp.eq.s32.totalorder %s19, 0
    %p273 = por %p271, %p272
    %p274 = scmp.ne.s32.totalorder %s263, %s266
    %p275 = scmp.eq.s32.totalorder %s24, 1
    %p276 = por %p274, %p275
    %p277 = scmp.ne.s32.totalorder %s266, %s267
    %p278 = scmp.eq.s32.totalorder %s24, 0
    %p279 = por %p277, %p278
    %p280 = scmp.ne.s32.totalorder %s266, %s267
    %p281 = scmp.eq.s32.totalorder %s25, 1
    %p282 = por %p280, %p281
    %p284 = scmp.ne.s32.totalorder %s267, %s283
    %p285 = scmp.eq.s32.totalorder %s25, 0
    %p286 = por %p284, %p285
    %s287 = ssub.s32 %s19, %s26
    %p288 = scmp.eq.s32.totalorder %s287, 0
    %s290 = sadd.s32 %s289, 1
    %s291 = scalar_select %p288, %s289, %s290
    %p294 = pneg %p288
    %p295 = scmp.eq.s32.totalorder %s19, 1
    %p296 = por %p294, %p295
    %p297 = scmp.ne.s32.totalorder %s289, %s292
    %p298 = scmp.eq.s32.totalorder %s19, 0
    %p299 = por %p297, %p298
    %p300 = scmp.ne.s32.totalorder %s289, %s292
    %p301 = scmp.eq.s32.totalorder %s24, 1
    %p302 = por %p300, %p301
    %p303 = scmp.ne.s32.totalorder %s292, %s293
    %p304 = scmp.eq.s32.totalorder %s24, 0
    %p305 = por %p303, %p304
    %p306 = scmp.ne.s32.totalorder %s292, %s293
    %p307 = scmp.eq.s32.totalorder %s25, 1
    %p308 = por %p306, %p307
    %p310 = scmp.ne.s32.totalorder %s293, %s309
    %p311 = scmp.eq.s32.totalorder %s25, 0
    %p312 = por %p310, %p311
    %s313 = ssub.s32 %s19, %s26
    %p314 = scmp.eq.s32.totalorder %s313, 0
    %s316 = sadd.s32 %s315, 1
    %s317 = scalar_select %p314, %s315, %s316
    %p320 = pneg %p314
    %p321 = scmp.eq.s32.totalorder %s19, 1
    %p322 = por %p320, %p321
    %p323 = scmp.ne.s32.totalorder %s315, %s318
    %p324 = scmp.eq.s32.totalorder %s19, 0
    %p325 = por %p323, %p324
    %p326 = scmp.ne.s32.totalorder %s315, %s318
    %p327 = scmp.eq.s32.totalorder %s24, 1
    %p328 = por %p326, %p327
    %p329 = scmp.ne.s32.totalorder %s318, %s319
    %p330 = scmp.eq.s32.totalorder %s24, 0
    %p331 = por %p329, %p330
    %p332 = scmp.ne.s32.totalorder %s318, %s319
    %p333 = scmp.eq.s32.totalorder %s25, 1
    %p334 = por %p332, %p333
    %p336 = scmp.ne.s32.totalorder %s319, %s335
    %p337 = scmp.eq.s32.totalorder %s25, 0
    %p338 = por %p336, %p337
    %s339 = ssub.s32 %s19, %s26
    %p340 = scmp.eq.s32.totalorder %s339, 0
    %s342 = sadd.s32 %s341, 1
    %s343 = scalar_select %p340, %s341, %s342
    %p346 = pneg %p340
    %p347 = scmp.eq.s32.totalorder %s19, 1
    %p348 = por %p346, %p347
    %p349 = scmp.ne.s32.totalorder %s341, %s344
    %p350 = scmp.eq.s32.totalorder %s19, 0
    %p351 = por %p349, %p350
    %p352 = scmp.ne.s32.totalorder %s341, %s344
    %p353 = scmp.eq.s32.totalorder %s24, 1
    %p354 = por %p352, %p353
    %p355 = scmp.ne.s32.totalorder %s344, %s345
    %p356 = scmp.eq.s32.totalorder %s24, 0
    %p357 = por %p355, %p356
    %p358 = scmp.ne.s32.totalorder %s344, %s345
    %p359 = scmp.eq.s32.totalorder %s25, 1
    %p360 = por %p358, %p359
    %p362 = scmp.ne.s32.totalorder %s345, %s361
    %p363 = scmp.eq.s32.totalorder %s25, 0
    %p364 = por %p362, %p363
    %p365 = scmp.le.s32.totalorder 1, %s19
    %p366 = scmp.lt.s32.totalorder %s19, 3
    %p367 = pnand %p365, %p366
    %p368 = pneg %p367
    // Predicated region
    $region9: #{age_estimator_fwd.3} parent=5 // pred_check
      _
    $region10: #{age_estimator_fwd.3} parent=5 // pred_check_branch
      %370 = sbr.rel (%p367) target = $region12
    $region11: #{age_estimator_fwd.3} parent=5 // pred_region
      %s371 = ssub.s32 %s19, 1
    $region12: #{age_estimator_fwd.3} parent=5 // pred_fallthru
      _
    %p372 = scmp.lt.s32.totalorder %s19, 2
    // Predicated region
    $region13: #{age_estimator_fwd.3} parent=5 // pred_check
      %p373 = pneg %p372
    $region14: #{age_estimator_fwd.3} parent=5 // pred_check_branch
      %375 = sbr.rel (%p373) target = $region16
    $region15: #{age_estimator_fwd.3} parent=5 // pred_region
      // Predicated region
      $region17: #{age_estimator_fwd.3} parent=15 // pred_check
        %p376 = pneg %p39
      $region18: #{age_estimator_fwd.3} parent=15 // pred_check_branch
        %378 = sbr.rel (%p376) target = $region20
      $region19: #{age_estimator_fwd.3} parent=15 // pred_region
        %p379 = scmp.lt.s32.totalorder %s19, 1
        %s380 = scalar_select %p379, %s19, 1
        %s381 = smul.addr %s380, 4
        %s382 = smul.addr %s381, 4
        %s383 = scalar_lea.vmem %s0, %s382
      $region20: #{age_estimator_fwd.3} parent=15 // pred_fallthru
        _
      // Predicated region
      $region21: #{age_estimator_fwd.3} parent=15 // pred_check
        %p384 = pneg %p65
      $region22: #{age_estimator_fwd.3} parent=15 // pred_check_branch
        %386 = sbr.rel (%p384) target = $region24
      $region23: #{age_estimator_fwd.3} parent=15 // pred_region
        %p387 = scmp.lt.s32.totalorder %s19, 1
        %s388 = scalar_select %p387, %s19, 1
        %s389 = smul.addr %s388, 4
        %s390 = smul.addr %s389, 2
        %s391 = scalar_lea.vmem %s1, %s390
      $region24: #{age_estimator_fwd.3} parent=15 // pred_fallthru
        _
      // Predicated region
      $region25: #{age_estimator_fwd.3} parent=15 // pred_check
        %p392 = pneg %p91
      $region26: #{age_estimator_fwd.3} parent=15 // pred_check_branch
        %394 = sbr.rel (%p392) target = $region28
      $region27: #{age_estimator_fwd.3} parent=15 // pred_region
        %p395 = scmp.lt.s32.totalorder %s19, 1
        %s396 = scalar_select %p395, %s19, 1
        %s397 = smul.addr %s396, 4
        %s398 = scalar_lea.vmem %s2, %s397
      $region28: #{age_estimator_fwd.3} parent=15 // pred_fallthru
        _
      // Predicated region
      $region29: #{age_estimator_fwd.3} parent=15 // pred_check
        %p399 = pneg %p117
      $region30: #{age_estimator_fwd.3} parent=15 // pred_check_branch
        %401 = sbr.rel (%p399) target = $region32
      $region31: #{age_estimator_fwd.3} parent=15 // pred_region
        %p402 = scmp.lt.s32.totalorder %s19, 1
        %s403 = scalar_select %p402, %s19, 1
        %s404 = smul.addr %s403, 128
        %s405 = smul.addr %s404, 4
        %s406 = scalar_lea.vmem %s3, %s405
      $region32: #{age_estimator_fwd.3} parent=15 // pred_fallthru
        _
      // Predicated region
      $region33: #{age_estimator_fwd.3} parent=15 // pred_check
        %p407 = pneg %p143
      $region34: #{age_estimator_fwd.3} parent=15 // pred_check_branch
        %409 = sbr.rel (%p407) target = $region36
      $region35: #{age_estimator_fwd.3} parent=15 // pred_region
        %p410 = scmp.lt.s32.totalorder %s19, 1
        %s411 = scalar_select %p410, %s19, 1
        %s412 = smul.addr %s411, 2
        %s413 = scalar_lea.vmem %s4, %s412
      $region36: #{age_estimator_fwd.3} parent=15 // pred_fallthru
        _
      // Predicated region
      $region37: #{age_estimator_fwd.3} parent=15 // pred_check
        %p414 = pneg %p169
      $region38: #{age_estimator_fwd.3} parent=15 // pred_check_branch
        %416 = sbr.rel (%p414) target = $region40
      $region39: #{age_estimator_fwd.3} parent=15 // pred_region
        %p417 = scmp.lt.s32.totalorder %s19, 1
        %s418 = scalar_select %p417, %s19, 1
        %s419 = smul.addr %s418, 32
        %s420 = smul.addr %s419, 4
        %s421 = scalar_lea.vmem %s5, %s420
      $region40: #{age_estimator_fwd.3} parent=15 // pred_fallthru
        _
      // Predicated region
      $region41: #{age_estimator_fwd.3} parent=15 // pred_check
        %p422 = pneg %p195
      $region42: #{age_estimator_fwd.3} parent=15 // pred_check_branch
        %424 = sbr.rel (%p422) target = $region44
      $region43: #{age_estimator_fwd.3} parent=15 // pred_region
        %p425 = scmp.lt.s32.totalorder %s19, 1
        %s426 = scalar_select %p425, %s19, 1
        %s427 = scalar_lea.vmem %s6, %s426
      $region44: #{age_estimator_fwd.3} parent=15 // pred_fallthru
        _
      // Predicated region
      $region45: #{age_estimator_fwd.3} parent=15 // pred_check
        %p428 = pneg %p221
      $region46: #{age_estimator_fwd.3} parent=15 // pred_check_branch
        %430 = sbr.rel (%p428) target = $region48
      $region47: #{age_estimator_fwd.3} parent=15 // pred_region
        %p431 = scmp.lt.s32.totalorder %s19, 1
        %s432 = scalar_select %p431, %s19, 1
        %s433 = smul.addr %s432, 16
        %s434 = smul.addr %s433, 4
        %s435 = scalar_lea.vmem %s7, %s434
      $region48: #{age_estimator_fwd.3} parent=15 // pred_fallthru
        _
      // Predicated region
      $region49: #{age_estimator_fwd.3} parent=15 // pred_check
        %p436 = pneg %p247
      $region50: #{age_estimator_fwd.3} parent=15 // pred_check_branch
        %438 = sbr.rel (%p436) target = $region52
      $region51: #{age_estimator_fwd.3} parent=15 // pred_region
        %p439 = scmp.lt.s32.totalorder %s19, 1
        %s440 = scalar_select %p439, %s19, 1
        %s441 = scalar_lea.vmem %s8, %s440
      $region52: #{age_estimator_fwd.3} parent=15 // pred_fallthru
        _
      // Predicated region
      $region53: #{age_estimator_fwd.3} parent=15 // pred_check
        %p442 = pneg %p273
      $region54: #{age_estimator_fwd.3} parent=15 // pred_check_branch
        %444 = sbr.rel (%p442) target = $region56
      $region55: #{age_estimator_fwd.3} parent=15 // pred_region
        %p445 = scmp.lt.s32.totalorder %s19, 1
        %s446 = scalar_select %p445, %s19, 1
        %s447 = smul.addr %s446, 4
        %s448 = scalar_lea.vmem %s9, %s447
      $region56: #{age_estimator_fwd.3} parent=15 // pred_fallthru
        _
      // Predicated region
      $region57: #{age_estimator_fwd.3} parent=15 // pred_check
        %p449 = pneg %p299
      $region58: #{age_estimator_fwd.3} parent=15 // pred_check_branch
        %451 = sbr.rel (%p449) target = $region60
      $region59: #{age_estimator_fwd.3} parent=15 // pred_region
        %p452 = scmp.lt.s32.totalorder %s19, 1
        %s453 = scalar_select %p452, %s19, 1
        %s454 = scalar_lea.vmem %s10, %s453
      $region60: #{age_estimator_fwd.3} parent=15 // pred_fallthru
        _
    $region16: #{age_estimator_fwd.3} parent=5 // pred_fallthru
      _
    %p455 = scmp.le.s32.totalorder 1, %s19
    %p456 = scmp.lt.s32.totalorder %s19, 3
    %p457 = pnand %p455, %p456
    %p458 = pneg %p457
    // Predicated region
    $region61: #{age_estimator_fwd.3} parent=5 // pred_check
      _
    $region62: #{age_estimator_fwd.3} parent=5 // pred_check_branch
      %460 = sbr.rel (%p457) target = $region64
    $region63: #{age_estimator_fwd.3} parent=5 // pred_region
      %s461 = ssub.s32 %s19, 1
      %p462 = scmp.lt.s32.totalorder %s24, 1
      %s463 = scalar_select %p462, %s24, 1
      %s464 = smul.addr %s463, 4
      %s465 = smul.addr %s464, 4
      %s466 = scalar_lea.vmem %s0, %s465
      %p467 = pneg %p45
      %p468 = pneg %p42
      %p469 = scmp.lt.s32.totalorder %s24, 1
      %s470 = scalar_select %p469, %s24, 1
      %s471 = smul.addr %s470, 4
      %s472 = smul.addr %s471, 2
      %s473 = scalar_lea.vmem %s1, %s472
      %p474 = pneg %p71
      %p475 = pneg %p68
      %p476 = scmp.lt.s32.totalorder %s24, 1
      %s477 = scalar_select %p476, %s24, 1
      %s478 = smul.addr %s477, 4
      %s479 = scalar_lea.vmem %s2, %s478
      %p480 = pneg %p97
      %p481 = pneg %p94
      %p482 = scmp.lt.s32.totalorder %s24, 1
      %s483 = scalar_select %p482, %s24, 1
      %s484 = smul.addr %s483, 128
      %s485 = smul.addr %s484, 4
      %s486 = scalar_lea.vmem %s3, %s485
      %p487 = pneg %p123
      %p488 = pneg %p120
      %p489 = scmp.lt.s32.totalorder %s24, 1
      %s490 = scalar_select %p489, %s24, 1
      %s491 = smul.addr %s490, 2
      %s492 = scalar_lea.vmem %s4, %s491
      %p493 = pneg %p149
      %p494 = pneg %p146
      %p495 = scmp.lt.s32.totalorder %s24, 1
      %s496 = scalar_select %p495, %s24, 1
      %s497 = smul.addr %s496, 32
      %s498 = smul.addr %s497, 4
      %s499 = scalar_lea.vmem %s5, %s498
      %p500 = pneg %p175
      %p501 = pneg %p172
      %p502 = scmp.lt.s32.totalorder %s24, 1
      %s503 = scalar_select %p502, %s24, 1
      %s504 = scalar_lea.vmem %s6, %s503
      %p505 = pneg %p201
      %p506 = pneg %p198
      %p507 = scmp.lt.s32.totalorder %s24, 1
      %s508 = scalar_select %p507, %s24, 1
      %s509 = smul.addr %s508, 16
      %s510 = smul.addr %s509, 4
      %s511 = scalar_lea.vmem %s7, %s510
      %p512 = pneg %p227
      %p513 = pneg %p224
      %p514 = scmp.lt.s32.totalorder %s24, 1
      %s515 = scalar_select %p514, %s24, 1
      %s516 = scalar_lea.vmem %s8, %s515
      %p517 = pneg %p253
      %p518 = pneg %p250
      %p519 = scmp.lt.s32.totalorder %s24, 1
      %s520 = scalar_select %p519, %s24, 1
      %s521 = smul.addr %s520, 4
      %s522 = scalar_lea.vmem %s9, %s521
      %p523 = pneg %p279
      %p524 = pneg %p276
      %p525 = scmp.lt.s32.totalorder %s24, 1
      %s526 = scalar_select %p525, %s24, 1
      %s527 = scalar_lea.vmem %s10, %s526
      %p528 = pneg %p305
      %p529 = pneg %p302
      %p530 = pneg %p331
      %p531 = pneg %p328
      %p532 = scmp.lt.s32.totalorder %s24, 1
      %s533 = scalar_select %p532, %s24, 1
      %s534 = smul.addr %s533, 4
      %s535 = smul.addr %s534, 4
      %s536 = scalar_lea.vmem %s11, %s535
      %p537 = pneg %p357
      %p538 = pneg %p354
      %p539 = scmp.lt.s32.totalorder %s24, 1
      %s540 = scalar_select %p539, %s24, 1
      %s541 = smul.addr %s540, 2
      %s542 = scalar_lea.vmem %s12, %s541
      %p543 = scmp.lt.s32.totalorder %s24, 1
      %s544 = scalar_select %p543, %s24, 1
      %s545 = smul.addr %s544, 4
      %s546 = smul.addr %s545, 4
      %s547 = scalar_lea.vmem %s0, %s546
      %p548 = scmp.lt.s32.totalorder %s24, 1
      %s549 = scalar_select %p548, %s24, 1
      %s550 = smul.addr %s549, 4
      %s551 = smul.addr %s550, 2
      %s552 = scalar_lea.vmem %s1, %s551
      %p553 = scmp.lt.s32.totalorder %s24, 1
      %s554 = scalar_select %p553, %s24, 1
      %s555 = smul.addr %s554, 4
      %s556 = scalar_lea.vmem %s2, %s555
      %p557 = scmp.lt.s32.totalorder %s24, 1
      %s558 = scalar_select %p557, %s24, 1
      %s559 = smul.addr %s558, 128
      %s560 = smul.addr %s559, 4
      %s561 = scalar_lea.vmem %s3, %s560
      %p562 = scmp.lt.s32.totalorder %s24, 1
      %s563 = scalar_select %p562, %s24, 1
      %s564 = smul.addr %s563, 2
      %s565 = scalar_lea.vmem %s4, %s564
      %p566 = scmp.lt.s32.totalorder %s24, 1
      %s567 = scalar_select %p566, %s24, 1
      %s568 = smul.addr %s567, 32
      %s569 = smul.addr %s568, 4
      %s570 = scalar_lea.vmem %s5, %s569
      %p571 = scmp.lt.s32.totalorder %s24, 1
      %s572 = scalar_select %p571, %s24, 1
      %s573 = scalar_lea.vmem %s6, %s572
      %p574 = scmp.lt.s32.totalorder %s24, 1
      %s575 = scalar_select %p574, %s24, 1
      %s576 = smul.addr %s575, 16
      %s577 = smul.addr %s576, 4
      %s578 = scalar_lea.vmem %s7, %s577
      %p579 = scmp.lt.s32.totalorder %s24, 1
      %s580 = scalar_select %p579, %s24, 1
      %s581 = scalar_lea.vmem %s8, %s580
      %p582 = scmp.lt.s32.totalorder %s24, 1
      %s583 = scalar_select %p582, %s24, 1
      %s584 = smul.addr %s583, 4
      %s585 = scalar_lea.vmem %s9, %s584
      %p586 = scmp.lt.s32.totalorder %s24, 1
      %s587 = scalar_select %p586, %s24, 1
      %s588 = scalar_lea.vmem %s10, %s587
      %p589 = scmp.lt.s32.totalorder %s24, 1
      %s590 = scalar_select %p589, %s24, 1
      %s591 = smul.addr %s590, 4
      %s592 = smul.addr %s591, 4
      %s593 = scalar_lea.vmem %s11, %s592
      %p594 = scmp.lt.s32.totalorder %s24, 1
      %s595 = scalar_select %p594, %s24, 1
      %s596 = smul.addr %s595, 2
      %s597 = scalar_lea.vmem %s12, %s596
      %v599 = vld [vmem:[%s547] sm:$0xf]
      %v600 = vld [vmem:[%s547 + $0x4] sm:$0xf]
      %v601 = vld [vmem:[%s547 + $0x8] sm:$0xf]
      %v602 = vld [vmem:[%s547 + $0xc] sm:$0xf]
      %v603 = vld [vmem:[%s552] sm:$0xff]
      %v604 = vld [vmem:[%s556] sm:$0xf]
      %v606 = vlaneseq
      %v607 = vshrl.u32 %v606, 7
      %v608 = vsub.s32 0, %v607
      %v609 = vrot.slane %v604, %v608
      %v610 = vlaneseq
      %v611 = vshrl.u32 %v610, 7
      %v612 = vsub.s32 1, %v611
      %v613 = vrot.slane %v604, %v612
      %v614 = vlaneseq
      %v615 = vshrl.u32 %v614, 7
      %v616 = vsub.s32 2, %v615
      %v617 = vrot.slane %v604, %v616
      %v618 = vlaneseq
      %v619 = vshrl.u32 %v618, 7
      %v620 = vsub.s32 3, %v619
      %v621 = vrot.slane %v604, %v620
      %v630 = vunpack.c.l.b16 %v599
      %v631 = vunpack.c.l.b16 %v600
      %v632 = vunpack.c.l.b16 %v601
      %v633 = vunpack.c.l.b16 %v602
      %v634 = vpack.c.b16 %v631, %v630
      %v635 = vpack.c.b16 %v633, %v632
      %v637 = vcombine.high %v603, %v603
      %v639 = vunpack.c.l.s4 1983009808
      %v640 = vunpack.c.0.s8 %v639
      %v641 = vlaneseq
      %v642 = vshrl.u32 %v641, 7
      %v643 = vsub.s32 %v640, %v642
      %v644 = vrot.slane %v603, %v643
      %v646 = vunpack.c.l.s4 1983009808
      %v647 = vunpack.c.0.s8 %v646
      %v648 = vlaneseq
      %v649 = vshrl.u32 %v648, 7
      %v650 = vsub.s32 %v647, %v649
      %v651 = vrot.slane %v637, %v650
      %v652 = vcombine.high %v644, %v644
      %v653 = vcombine.high %v651, %v651
      %vm654 = vcmask 23552
      %v656 = vsel %vm654, %v634, 0
      %v659 = vsel %vm654, %v635, 0
      %vm661 = vcmask 1040384
      %vm662 = vcmask 1041408
      %v663 = vsel %vm661, 4294967295, 65535
      %v664 = vsel %vm662, %v663, 0
      %v666 = vand.u32 %v644, %v664
      %v669 = vand.u32 %v652, %v664
      %v672 = vand.u32 %v651, %v664
      %v675 = vand.u32 %v653, %v664
      %677 = vmatprep.subr.bf16.mxu0 0
      %678 = vmatpush1.bf16.msra.mxu0 0
      %679 = vmatprep.subr.bf16.mxu0 0
      %680 = vmatpush1.bf16.msra.mxu0 0
      %681 = vmatprep.subr.bf16.mxu0 0
      %682 = vmatpush1.bf16.msra.mxu0 0
      %683 = vmatprep.subr.bf16.mxu0 0
      %684 = vmatpush1.bf16.msra.mxu0 0
      %685 = vmatprep.subr.bf16.mxu0 0
      %686 = vmatpush1.bf16.msra.mxu0 0
      %687 = vmatprep.subr.bf16.mxu0 0
      %688 = vmatpush1.bf16.msra.mxu0 0
      %689 = vmatprep.subr.bf16.mxu0 0
      %690 = vmatpush1.bf16.msra.mxu0 0
      %691 = vmatprep.subr.bf16.mxu0 %v669
      %692 = vmatpush1.bf16.msra.mxu0 %v666
      %693 = vmatprep.subr.bf16.mxu0 0
      %694 = vmatpush2.bf16.msra.mxu0 0
      %695 = vmatprep.subr.bf16.mxu0 0
      %696 = vmatpush2.bf16.msra.mxu0 0
      %697 = vmatprep.subr.bf16.mxu0 0
      %698 = vmatpush2.bf16.msra.mxu0 0
      %699 = vmatprep.subr.bf16.mxu0 0
      %700 = vmatpush2.bf16.msra.mxu0 0
      %701 = vmatprep.subr.bf16.mxu0 0
      %702 = vmatpush2.bf16.msra.mxu0 0
      %703 = vmatprep.subr.bf16.mxu0 0
      %704 = vmatpush2.bf16.msra.mxu0 0
      %705 = vmatprep.subr.bf16.mxu0 0
      %706 = vmatpush2.bf16.msra.mxu0 0
      %707 = vmatprep.subr.bf16.mxu0 0
      %708 = vmatpush2.bf16.msra.mxu0 0
      %709 = vmatprep.mubr.bf16.mxu0 0
      %710 = vmatmul.mubr.bf16.gmra.mxu0 %v656
      %v711 = vpop.f32.mrf.mxu0
      %v712 = vadd.f32 %v609, %v711
      %v713 = vpop.f32.mrf.mxu0
      %v714 = vadd.f32 %v613, %v713
      %v715 = vpop.f32.mrf.mxu0
      %v716 = vadd.f32 %v609, %v715
      %v717 = vpop.f32.mrf.mxu0
      %v718 = vadd.f32 %v613, %v717
      %719 = vmatprep.mubr.bf16.mxu0 0
      %720 = vmatmul.mubr.bf16.gmra.mxu0 %v659
      %v721 = vpop.f32.mrf.mxu0
      %v722 = vadd.f32 %v609, %v721
      %v723 = vpop.f32.mrf.mxu0
      %v724 = vadd.f32 %v613, %v723
      %v725 = vpop.f32.mrf.mxu0
      %v726 = vadd.f32 %v609, %v725
      %v727 = vpop.f32.mrf.mxu0
      %v728 = vadd.f32 %v613, %v727
      %729 = vdwg.mxu0
      %730 = vmatprep.subr.bf16.mxu0 0
      %731 = vmatpush1.bf16.msra.mxu0 0
      %732 = vmatprep.subr.bf16.mxu0 0
      %733 = vmatpush1.bf16.msra.mxu0 0
      %734 = vmatprep.subr.bf16.mxu0 0
      %735 = vmatpush1.bf16.msra.mxu0 0
      %736 = vmatprep.subr.bf16.mxu0 0
      %737 = vmatpush1.bf16.msra.mxu0 0
      %738 = vmatprep.subr.bf16.mxu0 0
      %739 = vmatpush1.bf16.msra.mxu0 0
      %740 = vmatprep.subr.bf16.mxu0 0
      %741 = vmatpush1.bf16.msra.mxu0 0
      %742 = vmatprep.subr.bf16.mxu0 0
      %743 = vmatpush1.bf16.msra.mxu0 0
      %744 = vmatprep.subr.bf16.mxu0 %v675
      %745 = vmatpush1.bf16.msra.mxu0 %v672
      %746 = vmatprep.subr.bf16.mxu0 0
      %747 = vmatpush2.bf16.msra.mxu0 0
      %748 = vmatprep.subr.bf16.mxu0 0
      %749 = vmatpush2.bf16.msra.mxu0 0
      %750 = vmatprep.subr.bf16.mxu0 0
      %751 = vmatpush2.bf16.msra.mxu0 0
      %752 = vmatprep.subr.bf16.mxu0 0
      %753 = vmatpush2.bf16.msra.mxu0 0
      %754 = vmatprep.subr.bf16.mxu0 0
      %755 = vmatpush2.bf16.msra.mxu0 0
      %756 = vmatprep.subr.bf16.mxu0 0
      %757 = vmatpush2.bf16.msra.mxu0 0
      %758 = vmatprep.subr.bf16.mxu0 0
      %759 = vmatpush2.bf16.msra.mxu0 0
      %760 = vmatprep.subr.bf16.mxu0 0
      %761 = vmatpush2.bf16.msra.mxu0 0
      %762 = vmatprep.mubr.bf16.mxu0 0
      %763 = vmatmul.mubr.bf16.gmra.mxu0 %v656
      %v764 = vpop.f32.mrf.mxu0
      %v765 = vadd.f32 %v617, %v764
      %v766 = vpop.f32.mrf.mxu0
      %v767 = vadd.f32 %v621, %v766
      %v768 = vpop.f32.mrf.mxu0
      %v769 = vadd.f32 %v617, %v768
      %v770 = vpop.f32.mrf.mxu0
      %v771 = vadd.f32 %v621, %v770
      %772 = vmatprep.mubr.bf16.mxu0 0
      %773 = vmatmul.mubr.bf16.gmra.mxu0 %v659
      %v774 = vpop.f32.mrf.mxu0
      %v775 = vadd.f32 %v617, %v774
      %v776 = vpop.f32.mrf.mxu0
      %v777 = vadd.f32 %v621, %v776
      %v778 = vpop.f32.mrf.mxu0
      %v779 = vadd.f32 %v617, %v778
      %v780 = vpop.f32.mrf.mxu0
      %v781 = vadd.f32 %v621, %v780
      %782 = vdwg.mxu0
      %v783 = vmax.f32 %v712, 0.0
      %v784 = vmax.f32 %v714, 0.0
      %v785 = vmax.f32 %v765, 0.0
      %v786 = vmax.f32 %v767, 0.0
      %v787 = vmax.f32 %v716, 0.0
      %v788 = vmax.f32 %v718, 0.0
      %v789 = vmax.f32 %v769, 0.0
      %v790 = vmax.f32 %v771, 0.0
      %v791 = vmax.f32 %v722, 0.0
      %v792 = vmax.f32 %v724, 0.0
      %v793 = vmax.f32 %v775, 0.0
      %v794 = vmax.f32 %v777, 0.0
      %v795 = vmax.f32 %v726, 0.0
      %v796 = vmax.f32 %v728, 0.0
      %v797 = vmax.f32 %v779, 0.0
      %v798 = vmax.f32 %v781, 0.0
      %v799 = vpack.c.bf16 %v787, %v783
      %v800 = vpack.c.bf16 %v788, %v784
      %v801 = vpack.c.bf16 %v789, %v785
      %v802 = vpack.c.bf16 %v790, %v786
      %v803 = vpack.c.bf16 %v795, %v791
      %v804 = vpack.c.bf16 %v796, %v792
      %v805 = vpack.c.bf16 %v797, %v793
      %v806 = vpack.c.bf16 %v798, %v794
      %v807 = vld [vmem:[%s561] sm:$0xff]
      %v808 = vld [vmem:[%s561 + $0x8] sm:$0xff]
      %v809 = vld [vmem:[%s561 + $0x10] sm:$0xff]
      %v810 = vld [vmem:[%s561 + $0x18] sm:$0xff]
      %v811 = vld [vmem:[%s561 + $0x20] sm:$0xff]
      %v812 = vld [vmem:[%s561 + $0x28] sm:$0xff]
      %v813 = vld [vmem:[%s561 + $0x30] sm:$0xff]
      %v814 = vld [vmem:[%s561 + $0x38] sm:$0xff]
      %v815 = vld [vmem:[%s561 + $0x40] sm:$0xff]
      %v816 = vld [vmem:[%s561 + $0x48] sm:$0xff]
      %v817 = vld [vmem:[%s561 + $0x50] sm:$0xff]
      %v818 = vld [vmem:[%s561 + $0x58] sm:$0xff]
      %v819 = vld [vmem:[%s561 + $0x60] sm:$0xff]
      %v820 = vld [vmem:[%s561 + $0x68] sm:$0xff]
      %v821 = vld [vmem:[%s561 + $0x70] sm:$0xff]
      %v822 = vld [vmem:[%s561 + $0x78] sm:$0xff]
      %v823 = vld [vmem:[%s561 + $0x80] sm:$0xff]
      %v824 = vld [vmem:[%s561 + $0x88] sm:$0xff]
      %v825 = vld [vmem:[%s561 + $0x90] sm:$0xff]
      %v826 = vld [vmem:[%s561 + $0x98] sm:$0xff]
      %v827 = vld [vmem:[%s561 + $0xa0] sm:$0xff]
      %v828 = vld [vmem:[%s561 + $0xa8] sm:$0xff]
      %v829 = vld [vmem:[%s561 + $0xb0] sm:$0xff]
      %v830 = vld [vmem:[%s561 + $0xb8] sm:$0xff]
      %v831 = vld [vmem:[%s561 + $0xc0] sm:$0xff]
      %v832 = vld [vmem:[%s561 + $0xc8] sm:$0xff]
      %v833 = vld [vmem:[%s561 + $0xd0] sm:$0xff]
      %v834 = vld [vmem:[%s561 + $0xd8] sm:$0xff]
      %v835 = vld [vmem:[%s561 + $0xe0] sm:$0xff]
      %v836 = vld [vmem:[%s561 + $0xe8] sm:$0xff]
      %v837 = vld [vmem:[%s561 + $0xf0] sm:$0xff]
      %v838 = vld [vmem:[%s561 + $0xf8] sm:$0xff]
      %v839 = vld [vmem:[%s561 + $0x100] sm:$0xff]
      %v840 = vld [vmem:[%s561 + $0x108] sm:$0xff]
      %v841 = vld [vmem:[%s561 + $0x110] sm:$0xff]
      %v842 = vld [vmem:[%s561 + $0x118] sm:$0xff]
      %v843 = vld [vmem:[%s561 + $0x120] sm:$0xff]
      %v844 = vld [vmem:[%s561 + $0x128] sm:$0xff]
      %v845 = vld [vmem:[%s561 + $0x130] sm:$0xff]
      %v846 = vld [vmem:[%s561 + $0x138] sm:$0xff]
      %v847 = vld [vmem:[%s561 + $0x140] sm:$0xff]
      %v848 = vld [vmem:[%s561 + $0x148] sm:$0xff]
      %v849 = vld [vmem:[%s561 + $0x150] sm:$0xff]
      %v850 = vld [vmem:[%s561 + $0x158] sm:$0xff]
      %v851 = vld [vmem:[%s561 + $0x160] sm:$0xff]
      %v852 = vld [vmem:[%s561 + $0x168] sm:$0xff]
      %v853 = vld [vmem:[%s561 + $0x170] sm:$0xff]
      %v854 = vld [vmem:[%s561 + $0x178] sm:$0xff]
      %v855 = vld [vmem:[%s561 + $0x180] sm:$0xff]
      %v856 = vld [vmem:[%s561 + $0x188] sm:$0xff]
      %v857 = vld [vmem:[%s561 + $0x190] sm:$0xff]
      %v858 = vld [vmem:[%s561 + $0x198] sm:$0xff]
      %v859 = vld [vmem:[%s561 + $0x1a0] sm:$0xff]
      %v860 = vld [vmem:[%s561 + $0x1a8] sm:$0xff]
      %v861 = vld [vmem:[%s561 + $0x1b0] sm:$0xff]
      %v862 = vld [vmem:[%s561 + $0x1b8] sm:$0xff]
      %v863 = vld [vmem:[%s561 + $0x1c0] sm:$0xff]
      %v864 = vld [vmem:[%s561 + $0x1c8] sm:$0xff]
      %v865 = vld [vmem:[%s561 + $0x1d0] sm:$0xff]
      %v866 = vld [vmem:[%s561 + $0x1d8] sm:$0xff]
      %v867 = vld [vmem:[%s561 + $0x1e0] sm:$0xff]
      %v868 = vld [vmem:[%s561 + $0x1e8] sm:$0xff]
      %v869 = vld [vmem:[%s561 + $0x1f0] sm:$0xff]
      %v870 = vld [vmem:[%s561 + $0x1f8] sm:$0xff]
      %v871 = vld [vmem:[%s565] sm:$0x3]
      %v873 = vlaneseq
      %v874 = vshrl.u32 %v873, 7
      %v875 = vsub.s32 0, %v874
      %v876 = vrot.slane %v871, %v875
      %v877 = vlaneseq
      %v878 = vshrl.u32 %v877, 7
      %v879 = vsub.s32 1, %v878
      %v880 = vrot.slane %v871, %v879
      %v947 = vunpack.c.l.b16 %v807
      %v948 = vunpack.c.h.b16 %v807
      %v949 = vunpack.c.l.b16 %v808
      %v950 = vunpack.c.h.b16 %v808
      %v951 = vunpack.c.l.b16 %v809
      %v952 = vunpack.c.h.b16 %v809
      %v953 = vunpack.c.l.b16 %v810
      %v954 = vunpack.c.h.b16 %v810
      %v955 = vunpack.c.l.b16 %v811
      %v956 = vunpack.c.h.b16 %v811
      %v957 = vunpack.c.l.b16 %v812
      %v958 = vunpack.c.h.b16 %v812
      %v959 = vunpack.c.l.b16 %v813
      %v960 = vunpack.c.h.b16 %v813
      %v961 = vunpack.c.l.b16 %v814
      %v962 = vunpack.c.h.b16 %v814
      %v963 = vunpack.c.l.b16 %v815
      %v964 = vunpack.c.h.b16 %v815
      %v965 = vunpack.c.l.b16 %v816
      %v966 = vunpack.c.h.b16 %v816
      %v967 = vunpack.c.l.b16 %v817
      %v968 = vunpack.c.h.b16 %v817
      %v969 = vunpack.c.l.b16 %v818
      %v970 = vunpack.c.h.b16 %v818
      %v971 = vunpack.c.l.b16 %v819
      %v972 = vunpack.c.h.b16 %v819
      %v973 = vunpack.c.l.b16 %v820
      %v974 = vunpack.c.h.b16 %v820
      %v975 = vunpack.c.l.b16 %v821
      %v976 = vunpack.c.h.b16 %v821
      %v977 = vunpack.c.l.b16 %v822
      %v978 = vunpack.c.h.b16 %v822
      %v979 = vunpack.c.l.b16 %v823
      %v980 = vunpack.c.h.b16 %v823
      %v981 = vunpack.c.l.b16 %v824
      %v982 = vunpack.c.h.b16 %v824
      %v983 = vunpack.c.l.b16 %v825
      %v984 = vunpack.c.h.b16 %v825
      %v985 = vunpack.c.l.b16 %v826
      %v986 = vunpack.c.h.b16 %v826
      %v987 = vunpack.c.l.b16 %v827
      %v988 = vunpack.c.h.b16 %v827
      %v989 = vunpack.c.l.b16 %v828
      %v990 = vunpack.c.h.b16 %v828
      %v991 = vunpack.c.l.b16 %v829
      %v992 = vunpack.c.h.b16 %v829
      %v993 = vunpack.c.l.b16 %v830
      %v994 = vunpack.c.h.b16 %v830
      %v995 = vunpack.c.l.b16 %v831
      %v996 = vunpack.c.h.b16 %v831
      %v997 = vunpack.c.l.b16 %v832
      %v998 = vunpack.c.h.b16 %v832
      %v999 = vunpack.c.l.b16 %v833
      %v1000 = vunpack.c.h.b16 %v833
      %v1001 = vunpack.c.l.b16 %v834
      %v1002 = vunpack.c.h.b16 %v834
      %v1003 = vunpack.c.l.b16 %v835
      %v1004 = vunpack.c.h.b16 %v835
      %v1005 = vunpack.c.l.b16 %v836
      %v1006 = vunpack.c.h.b16 %v836
      %v1007 = vunpack.c.l.b16 %v837
      %v1008 = vunpack.c.h.b16 %v837
      %v1009 = vunpack.c.l.b16 %v838
      %v1010 = vunpack.c.h.b16 %v838
      %v1011 = vunpack.c.l.b16 %v839
      %v1012 = vunpack.c.h.b16 %v839
      %v1013 = vunpack.c.l.b16 %v840
      %v1014 = vunpack.c.h.b16 %v840
      %v1015 = vunpack.c.l.b16 %v841
      %v1016 = vunpack.c.h.b16 %v841
      %v1017 = vunpack.c.l.b16 %v842
      %v1018 = vunpack.c.h.b16 %v842
      %v1019 = vunpack.c.l.b16 %v843
      %v1020 = vunpack.c.h.b16 %v843
      %v1021 = vunpack.c.l.b16 %v844
      %v1022 = vunpack.c.h.b16 %v844
      %v1023 = vunpack.c.l.b16 %v845
      %v1024 = vunpack.c.h.b16 %v845
      %v1025 = vunpack.c.l.b16 %v846
      %v1026 = vunpack.c.h.b16 %v846
      %v1027 = vunpack.c.l.b16 %v847
      %v1028 = vunpack.c.h.b16 %v847
      %v1029 = vunpack.c.l.b16 %v848
      %v1030 = vunpack.c.h.b16 %v848
      %v1031 = vunpack.c.l.b16 %v849
      %v1032 = vunpack.c.h.b16 %v849
      %v1033 = vunpack.c.l.b16 %v850
      %v1034 = vunpack.c.h.b16 %v850
      %v1035 = vunpack.c.l.b16 %v851
      %v1036 = vunpack.c.h.b16 %v851
      %v1037 = vunpack.c.l.b16 %v852
      %v1038 = vunpack.c.h.b16 %v852
      %v1039 = vunpack.c.l.b16 %v853
      %v1040 = vunpack.c.h.b16 %v853
      %v1041 = vunpack.c.l.b16 %v854
      %v1042 = vunpack.c.h.b16 %v854
      %v1043 = vunpack.c.l.b16 %v855
      %v1044 = vunpack.c.h.b16 %v855
      %v1045 = vunpack.c.l.b16 %v856
      %v1046 = vunpack.c.h.b16 %v856
      %v1047 = vunpack.c.l.b16 %v857
      %v1048 = vunpack.c.h.b16 %v857
      %v1049 = vunpack.c.l.b16 %v858
      %v1050 = vunpack.c.h.b16 %v858
      %v1051 = vunpack.c.l.b16 %v859
      %v1052 = vunpack.c.h.b16 %v859
      %v1053 = vunpack.c.l.b16 %v860
      %v1054 = vunpack.c.h.b16 %v860
      %v1055 = vunpack.c.l.b16 %v861
      %v1056 = vunpack.c.h.b16 %v861
      %v1057 = vunpack.c.l.b16 %v862
      %v1058 = vunpack.c.h.b16 %v862
      %v1059 = vunpack.c.l.b16 %v863
      %v1060 = vunpack.c.h.b16 %v863
      %v1061 = vunpack.c.l.b16 %v864
      %v1062 = vunpack.c.h.b16 %v864
      %v1063 = vunpack.c.l.b16 %v865
      %v1064 = vunpack.c.h.b16 %v865
      %v1065 = vunpack.c.l.b16 %v866
      %v1066 = vunpack.c.h.b16 %v866
      %v1067 = vunpack.c.l.b16 %v867
      %v1068 = vunpack.c.h.b16 %v867
      %v1069 = vunpack.c.l.b16 %v868
      %v1070 = vunpack.c.h.b16 %v868
      %v1071 = vunpack.c.l.b16 %v869
      %v1072 = vunpack.c.h.b16 %v869
      %v1073 = vunpack.c.l.b16 %v870
      %v1074 = vunpack.c.h.b16 %v870
      %v1075 = vpack.c.b16 %v949, %v947
      %v1076 = vpack.c.b16 %v950, %v948
      %v1077 = vpack.c.b16 %v953, %v951
      %v1078 = vpack.c.b16 %v954, %v952
      %v1079 = vpack.c.b16 %v957, %v955
      %v1080 = vpack.c.b16 %v958, %v956
      %v1081 = vpack.c.b16 %v961, %v959
      %v1082 = vpack.c.b16 %v962, %v960
      %v1083 = vpack.c.b16 %v965, %v963
      %v1084 = vpack.c.b16 %v966, %v964
      %v1085 = vpack.c.b16 %v969, %v967
      %v1086 = vpack.c.b16 %v970, %v968
      %v1087 = vpack.c.b16 %v973, %v971
      %v1088 = vpack.c.b16 %v974, %v972
      %v1089 = vpack.c.b16 %v977, %v975
      %v1090 = vpack.c.b16 %v978, %v976
      %v1091 = vpack.c.b16 %v981, %v979
      %v1092 = vpack.c.b16 %v982, %v980
      %v1093 = vpack.c.b16 %v985, %v983
      %v1094 = vpack.c.b16 %v986, %v984
      %v1095 = vpack.c.b16 %v989, %v987
      %v1096 = vpack.c.b16 %v990, %v988
      %v1097 = vpack.c.b16 %v993, %v991
      %v1098 = vpack.c.b16 %v994, %v992
      %v1099 = vpack.c.b16 %v997, %v995
      %v1100 = vpack.c.b16 %v998, %v996
      %v1101 = vpack.c.b16 %v1001, %v999
      %v1102 = vpack.c.b16 %v1002, %v1000
      %v1103 = vpack.c.b16 %v1005, %v1003
      %v1104 = vpack.c.b16 %v1006, %v1004
      %v1105 = vpack.c.b16 %v1009, %v1007
      %v1106 = vpack.c.b16 %v1010, %v1008
      %v1107 = vpack.c.b16 %v1013, %v1011
      %v1108 = vpack.c.b16 %v1014, %v1012
      %v1109 = vpack.c.b16 %v1017, %v1015
      %v1110 = vpack.c.b16 %v1018, %v1016
      %v1111 = vpack.c.b16 %v1021, %v1019
      %v1112 = vpack.c.b16 %v1022, %v1020
      %v1113 = vpack.c.b16 %v1025, %v1023
      %v1114 = vpack.c.b16 %v1026, %v1024
      %v1115 = vpack.c.b16 %v1029, %v1027
      %v1116 = vpack.c.b16 %v1030, %v1028
      %v1117 = vpack.c.b16 %v1033, %v1031
      %v1118 = vpack.c.b16 %v1034, %v1032
      %v1119 = vpack.c.b16 %v1037, %v1035
      %v1120 = vpack.c.b16 %v1038, %v1036
      %v1121 = vpack.c.b16 %v1041, %v1039
      %v1122 = vpack.c.b16 %v1042, %v1040
      %v1123 = vpack.c.b16 %v1045, %v1043
      %v1124 = vpack.c.b16 %v1046, %v1044
      %v1125 = vpack.c.b16 %v1049, %v1047
      %v1126 = vpack.c.b16 %v1050, %v1048
      %v1127 = vpack.c.b16 %v1053, %v1051
      %v1128 = vpack.c.b16 %v1054, %v1052
      %v1129 = vpack.c.b16 %v1057, %v1055
      %v1130 = vpack.c.b16 %v1058, %v1056
      %v1131 = vpack.c.b16 %v1061, %v1059
      %v1132 = vpack.c.b16 %v1062, %v1060
      %v1133 = vpack.c.b16 %v1065, %v1063
      %v1134 = vpack.c.b16 %v1066, %v1064
      %v1135 = vpack.c.b16 %v1069, %v1067
      %v1136 = vpack.c.b16 %v1070, %v1068
      %v1137 = vpack.c.b16 %v1073, %v1071
      %v1138 = vpack.c.b16 %v1074, %v1072
      %1203 = vmatprep.subr.bf16.mxu0 %v1090
      %1204 = vmatpush1.bf16.msra.mxu0 %v1089
      %1205 = vmatprep.subr.bf16.mxu0 %v1088
      %1206 = vmatpush1.bf16.msra.mxu0 %v1087
      %1207 = vmatprep.subr.bf16.mxu0 %v1086
      %1208 = vmatpush1.bf16.msra.mxu0 %v1085
      %1209 = vmatprep.subr.bf16.mxu0 %v1084
      %1210 = vmatpush1.bf16.msra.mxu0 %v1083
      %1211 = vmatprep.subr.bf16.mxu0 %v1082
      %1212 = vmatpush1.bf16.msra.mxu0 %v1081
      %1213 = vmatprep.subr.bf16.mxu0 %v1080
      %1214 = vmatpush1.bf16.msra.mxu0 %v1079
      %1215 = vmatprep.subr.bf16.mxu0 %v1078
      %1216 = vmatpush1.bf16.msra.mxu0 %v1077
      %1217 = vmatprep.subr.bf16.mxu0 %v1076
      %1218 = vmatpush1.bf16.msra.mxu0 %v1075
      %1219 = vmatprep.subr.bf16.mxu0 %v1106
      %1220 = vmatpush2.bf16.msra.mxu0 %v1105
      %1221 = vmatprep.subr.bf16.mxu0 %v1104
      %1222 = vmatpush2.bf16.msra.mxu0 %v1103
      %1223 = vmatprep.subr.bf16.mxu0 %v1102
      %1224 = vmatpush2.bf16.msra.mxu0 %v1101
      %1225 = vmatprep.subr.bf16.mxu0 %v1100
      %1226 = vmatpush2.bf16.msra.mxu0 %v1099
      %1227 = vmatprep.subr.bf16.mxu0 %v1098
      %1228 = vmatpush2.bf16.msra.mxu0 %v1097
      %1229 = vmatprep.subr.bf16.mxu0 %v1096
      %1230 = vmatpush2.bf16.msra.mxu0 %v1095
      %1231 = vmatprep.subr.bf16.mxu0 %v1094
      %1232 = vmatpush2.bf16.msra.mxu0 %v1093
      %1233 = vmatprep.subr.bf16.mxu0 %v1092
      %1234 = vmatpush2.bf16.msra.mxu0 %v1091
      %1235 = vmatprep.mubr.bf16.mxu0 %v800
      %1236 = vmatmul.mubr.bf16.gmra.mxu0 %v799
      %v1237 = vpop.f32.mrf.mxu0
      %v1238 = vadd.f32 %v876, %v1237
      %v1239 = vpop.f32.mrf.mxu0
      %v1240 = vadd.f32 %v880, %v1239
      %v1241 = vpop.f32.mrf.mxu0
      %v1242 = vadd.f32 %v876, %v1241
      %v1243 = vpop.f32.mrf.mxu0
      %v1244 = vadd.f32 %v880, %v1243
      %1245 = vmatprep.mubr.bf16.mxu0 %v804
      %1246 = vmatmul.mubr.bf16.gmra.mxu0 %v803
      %v1247 = vpop.f32.mrf.mxu0
      %v1248 = vadd.f32 %v876, %v1247
      %v1249 = vpop.f32.mrf.mxu0
      %v1250 = vadd.f32 %v880, %v1249
      %v1251 = vpop.f32.mrf.mxu0
      %v1252 = vadd.f32 %v876, %v1251
      %v1253 = vpop.f32.mrf.mxu0
      %v1254 = vadd.f32 %v880, %v1253
      %1255 = vdwg.mxu0
      %1256 = vmatprep.subr.bf16.mxu0 %v1122
      %1257 = vmatpush1.bf16.msra.mxu0 %v1121
      %1258 = vmatprep.subr.bf16.mxu0 %v1120
      %1259 = vmatpush1.bf16.msra.mxu0 %v1119
      %1260 = vmatprep.subr.bf16.mxu0 %v1118
      %1261 = vmatpush1.bf16.msra.mxu0 %v1117
      %1262 = vmatprep.subr.bf16.mxu0 %v1116
      %1263 = vmatpush1.bf16.msra.mxu0 %v1115
      %1264 = vmatprep.subr.bf16.mxu0 %v1114
      %1265 = vmatpush1.bf16.msra.mxu0 %v1113
      %1266 = vmatprep.subr.bf16.mxu0 %v1112
      %1267 = vmatpush1.bf16.msra.mxu0 %v1111
      %1268 = vmatprep.subr.bf16.mxu0 %v1110
      %1269 = vmatpush1.bf16.msra.mxu0 %v1109
      %1270 = vmatprep.subr.bf16.mxu0 %v1108
      %1271 = vmatpush1.bf16.msra.mxu0 %v1107
      %1272 = vmatprep.subr.bf16.mxu0 %v1138
      %1273 = vmatpush2.bf16.msra.mxu0 %v1137
      %1274 = vmatprep.subr.bf16.mxu0 %v1136
      %1275 = vmatpush2.bf16.msra.mxu0 %v1135
      %1276 = vmatprep.subr.bf16.mxu0 %v1134
      %1277 = vmatpush2.bf16.msra.mxu0 %v1133
      %1278 = vmatprep.subr.bf16.mxu0 %v1132
      %1279 = vmatpush2.bf16.msra.mxu0 %v1131
      %1280 = vmatprep.subr.bf16.mxu0 %v1130
      %1281 = vmatpush2.bf16.msra.mxu0 %v1129
      %1282 = vmatprep.subr.bf16.mxu0 %v1128
      %1283 = vmatpush2.bf16.msra.mxu0 %v1127
      %1284 = vmatprep.subr.bf16.mxu0 %v1126
      %1285 = vmatpush2.bf16.msra.mxu0 %v1125
      %1286 = vmatprep.subr.bf16.mxu0 %v1124
      %1287 = vmatpush2.bf16.msra.mxu0 %v1123
      %1288 = vmatprep.mubr.bf16.mxu0 %v802
      %1289 = vmatmul.mubr.bf16.gmra.mxu0 %v801
      %v1290 = vpop.f32.mrf.mxu0
      %v1291 = vadd.f32 %v1238, %v1290
      %v1292 = vpop.f32.mrf.mxu0
      %v1293 = vadd.f32 %v1240, %v1292
      %v1294 = vpop.f32.mrf.mxu0
      %v1295 = vadd.f32 %v1242, %v1294
      %v1296 = vpop.f32.mrf.mxu0
      %v1297 = vadd.f32 %v1244, %v1296
      %1298 = vmatprep.mubr.bf16.mxu0 %v806
      %1299 = vmatmul.mubr.bf16.gmra.mxu0 %v805
      %v1300 = vpop.f32.mrf.mxu0
      %v1301 = vadd.f32 %v1248, %v1300
      %v1302 = vpop.f32.mrf.mxu0
      %v1303 = vadd.f32 %v1250, %v1302
      %v1304 = vpop.f32.mrf.mxu0
      %v1305 = vadd.f32 %v1252, %v1304
      %v1306 = vpop.f32.mrf.mxu0
      %v1307 = vadd.f32 %v1254, %v1306
      %1308 = vdwg.mxu0
      %v1309 = vmax.f32 %v1291, 0.0
      %v1310 = vmax.f32 %v1293, 0.0
      %v1311 = vmax.f32 %v1295, 0.0
      %v1312 = vmax.f32 %v1297, 0.0
      %v1313 = vmax.f32 %v1301, 0.0
      %v1314 = vmax.f32 %v1303, 0.0
      %v1315 = vmax.f32 %v1305, 0.0
      %v1316 = vmax.f32 %v1307, 0.0
      %v1317 = vpack.c.bf16 %v1311, %v1309
      %v1318 = vpack.c.bf16 %v1312, %v1310
      %v1319 = vpack.c.bf16 %v1315, %v1313
      %v1320 = vpack.c.bf16 %v1316, %v1314
      %v1321 = vld [vmem:[%s570] sm:$0xf]
      %v1322 = vld [vmem:[%s570 + $0x4] sm:$0xf]
      %v1323 = vld [vmem:[%s570 + $0x8] sm:$0xf]
      %v1324 = vld [vmem:[%s570 + $0xc] sm:$0xf]
      %v1325 = vld [vmem:[%s570 + $0x10] sm:$0xf]
      %v1326 = vld [vmem:[%s570 + $0x14] sm:$0xf]
      %v1327 = vld [vmem:[%s570 + $0x18] sm:$0xf]
      %v1328 = vld [vmem:[%s570 + $0x1c] sm:$0xf]
      %v1329 = vld [vmem:[%s570 + $0x20] sm:$0xf]
      %v1330 = vld [vmem:[%s570 + $0x24] sm:$0xf]
      %v1331 = vld [vmem:[%s570 + $0x28] sm:$0xf]
      %v1332 = vld [vmem:[%s570 + $0x2c] sm:$0xf]
      %v1333 = vld [vmem:[%s570 + $0x30] sm:$0xf]
      %v1334 = vld [vmem:[%s570 + $0x34] sm:$0xf]
      %v1335 = vld [vmem:[%s570 + $0x38] sm:$0xf]
      %v1336 = vld [vmem:[%s570 + $0x3c] sm:$0xf]
      %v1337 = vld [vmem:[%s570 + $0x40] sm:$0xf]
      %v1338 = vld [vmem:[%s570 + $0x44] sm:$0xf]
      %v1339 = vld [vmem:[%s570 + $0x48] sm:$0xf]
      %v1340 = vld [vmem:[%s570 + $0x4c] sm:$0xf]
      %v1341 = vld [vmem:[%s570 + $0x50] sm:$0xf]
      %v1342 = vld [vmem:[%s570 + $0x54] sm:$0xf]
      %v1343 = vld [vmem:[%s570 + $0x58] sm:$0xf]
      %v1344 = vld [vmem:[%s570 + $0x5c] sm:$0xf]
      %v1345 = vld [vmem:[%s570 + $0x60] sm:$0xf]
      %v1346 = vld [vmem:[%s570 + $0x64] sm:$0xf]
      %v1347 = vld [vmem:[%s570 + $0x68] sm:$0xf]
      %v1348 = vld [vmem:[%s570 + $0x6c] sm:$0xf]
      %v1349 = vld [vmem:[%s570 + $0x70] sm:$0xf]
      %v1350 = vld [vmem:[%s570 + $0x74] sm:$0xf]
      %v1351 = vld [vmem:[%s570 + $0x78] sm:$0xf]
      %v1352 = vld [vmem:[%s570 + $0x7c] sm:$0xf]
      %v1353 = vld [vmem:[%s573] sm:$0x1]
      %v1355 = vlaneseq
      %v1356 = vshrl.u32 %v1355, 7
      %v1357 = vsub.s32 0, %v1356
      %v1358 = vrot.slane %v1353, %v1357
      %v1392 = vunpack.c.l.b16 %v1321
      %v1393 = vunpack.c.l.b16 %v1322
      %v1394 = vunpack.c.l.b16 %v1323
      %v1395 = vunpack.c.l.b16 %v1324
      %v1396 = vunpack.c.l.b16 %v1325
      %v1397 = vunpack.c.l.b16 %v1326
      %v1398 = vunpack.c.l.b16 %v1327
      %v1399 = vunpack.c.l.b16 %v1328
      %v1400 = vunpack.c.l.b16 %v1329
      %v1401 = vunpack.c.l.b16 %v1330
      %v1402 = vunpack.c.l.b16 %v1331
      %v1403 = vunpack.c.l.b16 %v1332
      %v1404 = vunpack.c.l.b16 %v1333
      %v1405 = vunpack.c.l.b16 %v1334
      %v1406 = vunpack.c.l.b16 %v1335
      %v1407 = vunpack.c.l.b16 %v1336
      %v1408 = vunpack.c.l.b16 %v1337
      %v1409 = vunpack.c.l.b16 %v1338
      %v1410 = vunpack.c.l.b16 %v1339
      %v1411 = vunpack.c.l.b16 %v1340
      %v1412 = vunpack.c.l.b16 %v1341
      %v1413 = vunpack.c.l.b16 %v1342
      %v1414 = vunpack.c.l.b16 %v1343
      %v1415 = vunpack.c.l.b16 %v1344
      %v1416 = vunpack.c.l.b16 %v1345
      %v1417 = vunpack.c.l.b16 %v1346
      %v1418 = vunpack.c.l.b16 %v1347
      %v1419 = vunpack.c.l.b16 %v1348
      %v1420 = vunpack.c.l.b16 %v1349
      %v1421 = vunpack.c.l.b16 %v1350
      %v1422 = vunpack.c.l.b16 %v1351
      %v1423 = vunpack.c.l.b16 %v1352
      %v1424 = vpack.c.b16 %v1393, %v1392
      %v1425 = vpack.c.b16 %v1395, %v1394
      %v1426 = vpack.c.b16 %v1397, %v1396
      %v1427 = vpack.c.b16 %v1399, %v1398
      %v1428 = vpack.c.b16 %v1401, %v1400
      %v1429 = vpack.c.b16 %v1403, %v1402
      %v1430 = vpack.c.b16 %v1405, %v1404
      %v1431 = vpack.c.b16 %v1407, %v1406
      %v1432 = vpack.c.b16 %v1409, %v1408
      %v1433 = vpack.c.b16 %v1411, %v1410
      %v1434 = vpack.c.b16 %v1413, %v1412
      %v1435 = vpack.c.b16 %v1415, %v1414
      %v1436 = vpack.c.b16 %v1417, %v1416
      %v1437 = vpack.c.b16 %v1419, %v1418
      %v1438 = vpack.c.b16 %v1421, %v1420
      %v1439 = vpack.c.b16 %v1423, %v1422
      %1456 = vmatprep.subr.bf16.mxu0 0
      %1457 = vmatpush1.bf16.msra.mxu0 %v1431
      %1458 = vmatprep.subr.bf16.mxu0 0
      %1459 = vmatpush1.bf16.msra.mxu0 %v1430
      %1460 = vmatprep.subr.bf16.mxu0 0
      %1461 = vmatpush1.bf16.msra.mxu0 %v1429
      %1462 = vmatprep.subr.bf16.mxu0 0
      %1463 = vmatpush1.bf16.msra.mxu0 %v1428
      %1464 = vmatprep.subr.bf16.mxu0 0
      %1465 = vmatpush1.bf16.msra.mxu0 %v1427
      %1466 = vmatprep.subr.bf16.mxu0 0
      %1467 = vmatpush1.bf16.msra.mxu0 %v1426
      %1468 = vmatprep.subr.bf16.mxu0 0
      %1469 = vmatpush1.bf16.msra.mxu0 %v1425
      %1470 = vmatprep.subr.bf16.mxu0 0
      %1471 = vmatpush1.bf16.msra.mxu0 %v1424
      %1472 = vmatprep.subr.bf16.mxu0 0
      %1473 = vmatpush2.bf16.msra.mxu0 %v1439
      %1474 = vmatprep.subr.bf16.mxu0 0
      %1475 = vmatpush2.bf16.msra.mxu0 %v1438
      %1476 = vmatprep.subr.bf16.mxu0 0
      %1477 = vmatpush2.bf16.msra.mxu0 %v1437
      %1478 = vmatprep.subr.bf16.mxu0 0
      %1479 = vmatpush2.bf16.msra.mxu0 %v1436
      %1480 = vmatprep.subr.bf16.mxu0 0
      %1481 = vmatpush2.bf16.msra.mxu0 %v1435
      %1482 = vmatprep.subr.bf16.mxu0 0
      %1483 = vmatpush2.bf16.msra.mxu0 %v1434
      %1484 = vmatprep.subr.bf16.mxu0 0
      %1485 = vmatpush2.bf16.msra.mxu0 %v1433
      %1486 = vmatprep.subr.bf16.mxu0 0
      %1487 = vmatpush2.bf16.msra.mxu0 %v1432
      %1488 = vmatprep.mubr.bf16.mxu0 %v1318
      %1489 = vmatmul.mubr.bf16.gmra.mxu0 %v1317
      %v1490 = vpop.f32.mrf.mxu0
      %v1491 = vadd.f32 %v1358, %v1490
      %v1492 = vpop.f32.mrf.mxu0
      %v1493 = vpop.f32.mrf.mxu0
      %v1494 = vadd.f32 %v1358, %v1493
      %v1495 = vpop.f32.mrf.mxu0
      %1496 = vmatprep.mubr.bf16.mxu0 %v1320
      %1497 = vmatmul.mubr.bf16.gmra.mxu0 %v1319
      %v1498 = vpop.f32.mrf.mxu0
      %v1499 = vadd.f32 %v1358, %v1498
      %v1500 = vpop.f32.mrf.mxu0
      %v1501 = vpop.f32.mrf.mxu0
      %v1502 = vadd.f32 %v1358, %v1501
      %v1503 = vpop.f32.mrf.mxu0
      %1504 = vdwg.mxu0
      %v1505 = vmax.f32 %v1491, 0.0
      %v1506 = vmax.f32 %v1494, 0.0
      %v1507 = vmax.f32 %v1499, 0.0
      %v1508 = vmax.f32 %v1502, 0.0
      %v1509 = vpack.c.bf16 %v1506, %v1505
      %v1510 = vpack.c.bf16 %v1508, %v1507
      %v1511 = vld [vmem:[%s578] sm:$0xf]
      %v1512 = vld [vmem:[%s578 + $0x4] sm:$0xf]
      %v1513 = vld [vmem:[%s578 + $0x8] sm:$0xf]
      %v1514 = vld [vmem:[%s578 + $0xc] sm:$0xf]
      %v1515 = vld [vmem:[%s578 + $0x10] sm:$0xf]
      %v1516 = vld [vmem:[%s578 + $0x14] sm:$0xf]
      %v1517 = vld [vmem:[%s578 + $0x18] sm:$0xf]
      %v1518 = vld [vmem:[%s578 + $0x1c] sm:$0xf]
      %v1519 = vld [vmem:[%s578 + $0x20] sm:$0xf]
      %v1520 = vld [vmem:[%s578 + $0x24] sm:$0xf]
      %v1521 = vld [vmem:[%s578 + $0x28] sm:$0xf]
      %v1522 = vld [vmem:[%s578 + $0x2c] sm:$0xf]
      %v1523 = vld [vmem:[%s578 + $0x30] sm:$0xf]
      %v1524 = vld [vmem:[%s578 + $0x34] sm:$0xf]
      %v1525 = vld [vmem:[%s578 + $0x38] sm:$0xf]
      %v1526 = vld [vmem:[%s578 + $0x3c] sm:$0xf]
      %v1527 = vld [vmem:[%s581] sm:$0x1]
      %v1529 = vlaneseq
      %v1530 = vshrl.u32 %v1529, 7
      %v1531 = vsub.s32 0, %v1530
      %v1532 = vrot.slane %v1527, %v1531
      %v1550 = vunpack.c.l.b16 %v1511
      %v1551 = vunpack.c.l.b16 %v1512
      %v1552 = vunpack.c.l.b16 %v1513
      %v1553 = vunpack.c.l.b16 %v1514
      %v1554 = vunpack.c.l.b16 %v1515
      %v1555 = vunpack.c.l.b16 %v1516
      %v1556 = vunpack.c.l.b16 %v1517
      %v1557 = vunpack.c.l.b16 %v1518
      %v1558 = vunpack.c.l.b16 %v1519
      %v1559 = vunpack.c.l.b16 %v1520
      %v1560 = vunpack.c.l.b16 %v1521
      %v1561 = vunpack.c.l.b16 %v1522
      %v1562 = vunpack.c.l.b16 %v1523
      %v1563 = vunpack.c.l.b16 %v1524
      %v1564 = vunpack.c.l.b16 %v1525
      %v1565 = vunpack.c.l.b16 %v1526
      %v1566 = vpack.c.b16 %v1551, %v1550
      %v1567 = vpack.c.b16 %v1553, %v1552
      %v1568 = vpack.c.b16 %v1555, %v1554
      %v1569 = vpack.c.b16 %v1557, %v1556
      %v1570 = vpack.c.b16 %v1559, %v1558
      %v1571 = vpack.c.b16 %v1561, %v1560
      %v1572 = vpack.c.b16 %v1563, %v1562
      %v1573 = vpack.c.b16 %v1565, %v1564
      %1582 = vmatprep.subr.bf16.mxu0 0
      %1583 = vmatpush1.bf16.msra.mxu0 %v1573
      %1584 = vmatprep.subr.bf16.mxu0 0
      %1585 = vmatpush1.bf16.msra.mxu0 %v1572
      %1586 = vmatprep.subr.bf16.mxu0 0
      %1587 = vmatpush1.bf16.msra.mxu0 %v1571
      %1588 = vmatprep.subr.bf16.mxu0 0
      %1589 = vmatpush1.bf16.msra.mxu0 %v1570
      %1590 = vmatprep.subr.bf16.mxu0 0
      %1591 = vmatpush1.bf16.msra.mxu0 %v1569
      %1592 = vmatprep.subr.bf16.mxu0 0
      %1593 = vmatpush1.bf16.msra.mxu0 %v1568
      %1594 = vmatprep.subr.bf16.mxu0 0
      %1595 = vmatpush1.bf16.msra.mxu0 %v1567
      %1596 = vmatprep.subr.bf16.mxu0 0
      %1597 = vmatpush1.bf16.msra.mxu0 %v1566
      %1598 = vmatprep.subr.bf16.mxu0 0
      %1599 = vmatpush2.bf16.msra.mxu0 0
      %1600 = vmatprep.subr.bf16.mxu0 0
      %1601 = vmatpush2.bf16.msra.mxu0 0
      %1602 = vmatprep.subr.bf16.mxu0 0
      %1603 = vmatpush2.bf16.msra.mxu0 0
      %1604 = vmatprep.subr.bf16.mxu0 0
      %1605 = vmatpush2.bf16.msra.mxu0 0
      %1606 = vmatprep.subr.bf16.mxu0 0
      %1607 = vmatpush2.bf16.msra.mxu0 0
      %1608 = vmatprep.subr.bf16.mxu0 0
      %1609 = vmatpush2.bf16.msra.mxu0 0
      %1610 = vmatprep.subr.bf16.mxu0 0
      %1611 = vmatpush2.bf16.msra.mxu0 0
      %1612 = vmatprep.subr.bf16.mxu0 0
      %1613 = vmatpush2.bf16.msra.mxu0 0
      %1614 = vmatprep.mubr.bf16.mxu0 0
      %1615 = vmatmul.mubr.bf16.gmra.mxu0 %v1509
      %v1616 = vpop.f32.mrf.mxu0
      %v1617 = vadd.f32 %v1532, %v1616
      %v1618 = vpop.f32.mrf.mxu0
      %v1619 = vpop.f32.mrf.mxu0
      %v1620 = vadd.f32 %v1532, %v1619
      %v1621 = vpop.f32.mrf.mxu0
      %1622 = vmatprep.mubr.bf16.mxu0 0
      %1623 = vmatmul.mubr.bf16.gmra.mxu0 %v1510
      %v1624 = vpop.f32.mrf.mxu0
      %v1625 = vadd.f32 %v1532, %v1624
      %v1626 = vpop.f32.mrf.mxu0
      %v1627 = vpop.f32.mrf.mxu0
      %v1628 = vadd.f32 %v1532, %v1627
      %v1629 = vpop.f32.mrf.mxu0
      %1630 = vdwg.mxu0
      %v1631 = vmax.f32 %v1617, 0.0
      %v1632 = vmax.f32 %v1620, 0.0
      %v1633 = vmax.f32 %v1625, 0.0
      %v1634 = vmax.f32 %v1628, 0.0
      %v1635 = vpack.c.bf16 %v1632, %v1631
      %v1636 = vpack.c.bf16 %v1634, %v1633
      %v1637 = vld [vmem:[%s585] sm:$0xf]
      %v1638 = vld [vmem:[%s588] sm:$0x1]
      %v1640 = vlaneseq
      %v1641 = vshrl.u32 %v1640, 7
      %v1642 = vsub.s32 0, %v1641
      %v1643 = vrot.slane %v1638, %v1642
      %vm1645 = vcmask 64512
      %v1647 = vsel %vm1645, %v1635, 0
      %v1650 = vsel %vm1645, %v1636, 0
      %vm1652 = vcmask 1043456
      %v1654 = vsel %vm1652, %v1637, 0
      %1656 = vmatprep.subr.bf16.mxu0 0
      %1657 = vmatpush1.bf16.msra.mxu0 0
      %1658 = vmatprep.subr.bf16.mxu0 0
      %1659 = vmatpush1.bf16.msra.mxu0 0
      %1660 = vmatprep.subr.bf16.mxu0 0
      %1661 = vmatpush1.bf16.msra.mxu0 0
      %1662 = vmatprep.subr.bf16.mxu0 0
      %1663 = vmatpush1.bf16.msra.mxu0 0
      %1664 = vmatprep.subr.bf16.mxu0 0
      %1665 = vmatpush1.bf16.msra.mxu0 0
      %1666 = vmatprep.subr.bf16.mxu0 0
      %1667 = vmatpush1.bf16.msra.mxu0 0
      %1668 = vmatprep.subr.bf16.mxu0 0
      %1669 = vmatpush1.bf16.msra.mxu0 0
      %1670 = vmatprep.subr.bf16.mxu0 0
      %1671 = vmatpush1.bf16.msra.mxu0 %v1654
      %1672 = vmatprep.subr.bf16.mxu0 0
      %1673 = vmatpush2.bf16.msra.mxu0 0
      %1674 = vmatprep.subr.bf16.mxu0 0
      %1675 = vmatpush2.bf16.msra.mxu0 0
      %1676 = vmatprep.subr.bf16.mxu0 0
      %1677 = vmatpush2.bf16.msra.mxu0 0
      %1678 = vmatprep.subr.bf16.mxu0 0
      %1679 = vmatpush2.bf16.msra.mxu0 0
      %1680 = vmatprep.subr.bf16.mxu0 0
      %1681 = vmatpush2.bf16.msra.mxu0 0
      %1682 = vmatprep.subr.bf16.mxu0 0
      %1683 = vmatpush2.bf16.msra.mxu0 0
      %1684 = vmatprep.subr.bf16.mxu0 0
      %1685 = vmatpush2.bf16.msra.mxu0 0
      %1686 = vmatprep.subr.bf16.mxu0 0
      %1687 = vmatpush2.bf16.msra.mxu0 0
      %1688 = vmatprep.mubr.bf16.mxu0 0
      %1689 = vmatmul.mubr.bf16.gmra.mxu0 %v1647
      %v1690 = vpop.f32.mrf.mxu0
      %v1691 = vadd.f32 %v1643, %v1690
      %v1692 = vpop.f32.mrf.mxu0
      %v1693 = vpop.f32.mrf.mxu0
      %v1694 = vadd.f32 %v1643, %v1693
      %v1695 = vpop.f32.mrf.mxu0
      %1696 = vmatprep.mubr.bf16.mxu0 0
      %1697 = vmatmul.mubr.bf16.gmra.mxu0 %v1650
      %v1698 = vpop.f32.mrf.mxu0
      %v1699 = vadd.f32 %v1643, %v1698
      %v1700 = vpop.f32.mrf.mxu0
      %v1701 = vpop.f32.mrf.mxu0
      %v1702 = vadd.f32 %v1643, %v1701
      %v1703 = vpop.f32.mrf.mxu0
      %1704 = vdwg.mxu0
      %v1705 = vxor.u32 %v1691, 2147483648
      %v1706 = vxor.u32 %v1694, 2147483648
      %v1707 = vxor.u32 %v1699, 2147483648
      %v1708 = vxor.u32 %v1702, 2147483648
      %v1709 = vmul.f32 %v1705, 1.442695
      %v1710 = vpow.pop %v1709
      %v1711 = vmul.f32 %v1706, 1.442695
      %v1712 = vpow.pop %v1711
      %v1713 = vmul.f32 %v1707, 1.442695
      %v1714 = vpow.pop %v1713
      %v1715 = vmul.f32 %v1708, 1.442695
      %v1716 = vpow.pop %v1715
      %v1717 = vadd.f32 %v1710, 1.0
      %v1718 = vadd.f32 %v1712, 1.0
      %v1719 = vadd.f32 %v1714, 1.0
      %v1720 = vadd.f32 %v1716, 1.0
      %v1721 = vrcp.pop %v1717
      %v1722 = vmul.f32 1.0, %v1721
      %v1723 = vrcp.pop %v1718
      %v1724 = vmul.f32 1.0, %v1723
      %v1725 = vrcp.pop %v1719
      %v1726 = vmul.f32 1.0, %v1725
      %v1727 = vrcp.pop %v1720
      %v1728 = vmul.f32 1.0, %v1727
      %v1729 = vmul.f32 %v1505, %v1722
      %v1730 = vmul.f32 %v1506, %v1724
      %v1731 = vmul.f32 %v1507, %v1726
      %v1732 = vmul.f32 %v1508, %v1728
      %v1733 = vpack.c.bf16 %v1730, %v1729
      %v1734 = vpack.c.bf16 %v1732, %v1731
      %v1737 = vunpack.c.l.b16 %v1733
      %v1738 = vunpack.c.h.b16 %v1733
      %v1739 = vunpack.c.l.b16 %v1734
      %v1740 = vunpack.c.h.b16 %v1734
      %v1741 = vpack.c.b16 %v1737, %v1737
      %v1742 = vpack.c.b16 %v1738, %v1738
      %v1743 = vpack.c.b16 %v1739, %v1739
      %v1744 = vpack.c.b16 %v1740, %v1740
      %1749 = vst [vmem:[%s593] sm:$0xf] %v1741
      %1750 = vst [vmem:[%s593 + $0x4] sm:$0xf] %v1742
      %1751 = vst [vmem:[%s593 + $0x8] sm:$0xf] %v1743
      %1752 = vst [vmem:[%s593 + $0xc] sm:$0xf] %v1744
      %v1753 = vadd.f32 %v1729, %v1730
      %v1754 = vrot.slane %v1753, 4
      %v1755 = vadd.f32 %v1753, %v1754
      %v1756 = vrot.slane %v1755, 2
      %v1757 = vadd.f32 %v1755, %v1756
      %v1758 = vrot.slane %v1757, 1
      %v1759 = vadd.f32 %v1757, %v1758
      %v1760 = vadd.f32 %v1731, %v1732
      %v1761 = vrot.slane %v1760, 4
      %v1762 = vadd.f32 %v1760, %v1761
      %v1763 = vrot.slane %v1762, 2
      %v1764 = vadd.f32 %v1762, %v1763
      %v1765 = vrot.slane %v1764, 1
      %v1766 = vadd.f32 %v1764, %v1765
      %v1767 = vrcp.pop 16.0
      %v1768 = vmul.f32 %v1759, %v1767
      %v1769 = vmul.f32 %v1766, %v1767
      %vm1772 = vcmask 1041409
      %v1773 = vsel %vm1772, %v1769, %v1768
      %1775 = vst [vmem:[%s597] sm:$0x3] %v1773
      %p1776 = scmp.lt.s32.totalorder %s24, 1
      %s1777 = scalar_select %p1776, %s24, 1
      %s1778 = smul.addr %s1777, 4
      %s1779 = smul.addr %s1778, 4
      %s1780 = scalar_lea.vmem %s11, %s1779
      %p1781 = scmp.lt.s32.totalorder %s24, 1
      %s1782 = scalar_select %p1781, %s24, 1
      %s1783 = smul.addr %s1782, 2
      %s1784 = scalar_lea.vmem %s12, %s1783
      // Predicated region
      $region65: #{age_estimator_fwd.3} parent=63 // pred_check
        %p1785 = pneg %p328
      $region66: #{age_estimator_fwd.3} parent=63 // pred_check_branch
        %1787 = sbr.rel (%p1785) target = $region68
      $region67: #{age_estimator_fwd.3} parent=63 // pred_region
        _
      $region68: #{age_estimator_fwd.3} parent=63 // pred_fallthru
        _
      // Predicated region
      $region69: #{age_estimator_fwd.3} parent=63 // pred_check
        %p1788 = pneg %p354
      $region70: #{age_estimator_fwd.3} parent=63 // pred_check_branch
        %1790 = sbr.rel (%p1788) target = $region72
      $region71: #{age_estimator_fwd.3} parent=63 // pred_region
        _
      $region72: #{age_estimator_fwd.3} parent=63 // pred_fallthru
        _
    $region64: #{age_estimator_fwd.3} parent=5 // pred_fallthru
      _
    %p1791 = scmp.le.s32.totalorder 2, %s19
    // Predicated region
    $region73: #{age_estimator_fwd.3} parent=5 // pred_check
      %p1792 = pneg %p1791
    $region74: #{age_estimator_fwd.3} parent=5 // pred_check_branch
      %1794 = sbr.rel (%p1792) target = $region76
    $region75: #{age_estimator_fwd.3} parent=5 // pred_region
      %s1795 = ssub.s32 %s19, 2
      // Predicated region
      $region77: #{age_estimator_fwd.3} parent=75 // pred_check
        %p1796 = pneg %p334
      $region78: #{age_estimator_fwd.3} parent=75 // pred_check_branch
        %1798 = sbr.rel (%p1796) target = $region80
      $region79: #{age_estimator_fwd.3} parent=75 // pred_region
        %p1799 = scmp.lt.s32.totalorder %s25, 1
        %s1800 = scalar_select %p1799, %s25, 1
        %s1801 = smul.addr %s1800, 4
        %s1802 = smul.addr %s1801, 4
        %s1803 = scalar_lea.vmem %s11, %s1802
      $region80: #{age_estimator_fwd.3} parent=75 // pred_fallthru
        _
      // Predicated region
      $region81: #{age_estimator_fwd.3} parent=75 // pred_check
        %p1804 = pneg %p360
      $region82: #{age_estimator_fwd.3} parent=75 // pred_check_branch
        %1806 = sbr.rel (%p1804) target = $region84
      $region83: #{age_estimator_fwd.3} parent=75 // pred_region
        %p1807 = scmp.lt.s32.totalorder %s25, 1
        %s1808 = scalar_select %p1807, %s25, 1
        %s1809 = smul.addr %s1808, 2
        %s1810 = scalar_lea.vmem %s12, %s1809
      $region84: #{age_estimator_fwd.3} parent=75 // pred_fallthru
        _
    $region76: #{age_estimator_fwd.3} parent=5 // pred_fallthru
      _
  $region6: #{age_estimator_fwd.3} parent=0 // loop_footer
    %s23 = sadd.s32 1, %s19
  $region7: #{age_estimator_fwd.3} parent=0 // loop_footer_branch
    %18 = sbr.rel target = $region3
  $region8: #{age_estimator_fwd.3} parent=0 // loop_exit
    _

// kernel: age_estimator_fwd.4
$region0: #{age_estimator_fwd.4}
  #allocation0 [shape = 'u32[]', space=smem, size = 0x4, offset = 0x4, fixed_abs, tag = 'smem constant byte address 0x4 - core index']
  #allocation1 [shape = 'u32[144,128]{1,0:T(1,128)}', space=vmem, size = 0x12000, scoped, tag = 'internal scratch']
  %s0 = inlined_call_operand.vmem [shape: bf16[2,16,128], index: 0, kind: input, shape index: {}]
  %s1 = inlined_call_operand.vmem [shape: bf16[2,16,128], index: 1, kind: input, shape index: {}]
  %s2 = inlined_call_operand.vmem [shape: f32[2,1,128], index: 2, kind: input, shape index: {}]
  %s3 = inlined_call_operand.vmem [shape: f32[2,1,128], index: 3, kind: input, shape index: {}]
  %s4 = inlined_call_operand.vmem [shape: bf16[2,128,128], index: 4, kind: input, shape index: {}]
  %s5 = inlined_call_operand.vmem [shape: bf16[2,128,128], index: 5, kind: input, shape index: {}]
  %s6 = inlined_call_operand.vmem [shape: bf16[2,128,128], index: 6, kind: input, shape index: {}]
  %s7 = inlined_call_operand.vmem [shape: bf16[2,128,128], index: 7, kind: input, shape index: {}]
  %s8 = inlined_call_operand.vmem [shape: f32[2,1,128], index: 8, kind: input, shape index: {}]
  %s9 = inlined_call_operand.vmem [shape: f32[2,1,128], index: 9, kind: input, shape index: {}]
  %s10 = inlined_call_operand.vmem [shape: f32[2,1,128], index: 10, kind: input, shape index: {}]
  %s11 = inlined_call_operand.vmem [shape: bf16[2,128,512], index: 11, kind: input, shape index: {}]
  %s12 = inlined_call_operand.vmem [shape: f32[2,1,512], index: 12, kind: input, shape index: {}]
  %s13 = inlined_call_operand.vmem [shape: bf16[2,512,128], index: 13, kind: input, shape index: {}]
  %s14 = inlined_call_operand.vmem [shape: f32[2,1,128], index: 14, kind: input, shape index: {}]
  %s15 = inlined_call_operand.vmem [shape: bf16[2,16,128], index: 15, kind: output, shape index: {0}]
  %s16 = inlined_call_operand.vmem [shape: bf16[2,16,128], index: 16, kind: output, shape index: {1}]
  %17 = xla_tuple %s15, %s16
  %s18 = sld [smem:[#allocation0]]
  $region101: #{age_estimator_fwd.4} parent=0
    _
  %s20 = ssub.s32 1, %s18
  %s21 = scalar_select 0, %s20, %s18
  loop: start=0, step=1, limit=4
  $region2: #{age_estimator_fwd.4} parent=0 // loop_pre_header
    _
  $region3: #{age_estimator_fwd.4} parent=0 // loop_header
    %s23 = sphi 0, %s27
    %p24 = scmp.ge.s32.totalorder %s23, 4
    %s33 = sphi 0, %s35
    %s36 = sphi 0, %s33
    %s37 = sphi 0, %s36
    %s53 = sphi 0, %s37
    %s59 = sphi 0, %s61
    %s62 = sphi 0, %s59
    %s63 = sphi 0, %s62
    %s79 = sphi 0, %s63
    %s83 = sphi 0, %s83
    %s85 = sphi 0, %s83
    %s86 = sphi 0, %s85
    %s100 = sphi 0, %s86
    %s104 = sphi 0, %s104
    %s106 = sphi 0, %s104
    %s107 = sphi 0, %s106
    %s121 = sphi 0, %s107
    %s125 = sphi 0, %s125
    %s127 = sphi 0, %s125
    %s128 = sphi 0, %s127
    %s142 = sphi 0, %s128
    %s146 = sphi 0, %s146
    %s148 = sphi 0, %s146
    %s149 = sphi 0, %s148
    %s163 = sphi 0, %s149
    %s167 = sphi 0, %s167
    %s169 = sphi 0, %s167
    %s170 = sphi 0, %s169
    %s184 = sphi 0, %s170
    %s188 = sphi 0, %s188
    %s190 = sphi 0, %s188
    %s191 = sphi 0, %s190
    %s205 = sphi 0, %s191
    %s209 = sphi 0, %s209
    %s211 = sphi 0, %s209
    %s212 = sphi 0, %s211
    %s226 = sphi 0, %s212
    %s230 = sphi 0, %s230
    %s232 = sphi 0, %s230
    %s233 = sphi 0, %s232
    %s247 = sphi 0, %s233
    %s251 = sphi 0, %s251
    %s253 = sphi 0, %s251
    %s254 = sphi 0, %s253
    %s268 = sphi 0, %s254
    %s272 = sphi 0, %s272
    %s274 = sphi 0, %s272
    %s275 = sphi 0, %s274
    %s289 = sphi 0, %s275
    %s293 = sphi 0, %s293
    %s295 = sphi 0, %s293
    %s296 = sphi 0, %s295
    %s310 = sphi 0, %s296
    %s314 = sphi 0, %s314
    %s316 = sphi 0, %s314
    %s317 = sphi 0, %s316
    %s331 = sphi 0, %s317
    %s335 = sphi 0, %s335
    %s337 = sphi 0, %s335
    %s338 = sphi 0, %s337
    %s352 = sphi 0, %s338
    %s358 = sphi 0, %s360
    %s361 = sphi 0, %s358
    %s362 = sphi 0, %s361
    %s378 = sphi 0, %s362
    %s384 = sphi 0, %s386
    %s387 = sphi 0, %s384
    %s388 = sphi 0, %s387
    %s404 = sphi 0, %s388
  $region4: #{age_estimator_fwd.4} parent=0 // loop_header_branch
    %26 = sbr.rel (%p24) target = $region8
  $region5: #{age_estimator_fwd.4} parent=0 // loop_body
    %s28 = ssub.s32 %s23, 1
    %s29 = ssub.s32 %s23, 2
    %s30 = sadd.s32 %s23, 1
    %s31 = ssub.s32 %s23, %s30
    %p32 = scmp.eq.s32.totalorder %s31, 0
    %s34 = sadd.s32 %s33, 1
    %s35 = scalar_select %p32, %s33, %s34
    %p38 = pneg %p32
    %p39 = scmp.eq.s32.totalorder %s23, 1
    %p40 = por %p38, %p39
    %p41 = scmp.ne.s32.totalorder %s33, %s36
    %p42 = scmp.eq.s32.totalorder %s23, 0
    %p43 = por %p41, %p42
    %p44 = scmp.ne.s32.totalorder %s33, %s36
    %p45 = scmp.eq.s32.totalorder %s28, 1
    %p46 = por %p44, %p45
    %p47 = scmp.ne.s32.totalorder %s36, %s37
    %p48 = scmp.eq.s32.totalorder %s28, 0
    %p49 = por %p47, %p48
    %p50 = scmp.ne.s32.totalorder %s36, %s37
    %p51 = scmp.eq.s32.totalorder %s29, 1
    %p52 = por %p50, %p51
    %p54 = scmp.ne.s32.totalorder %s37, %s53
    %p55 = scmp.eq.s32.totalorder %s29, 0
    %p56 = por %p54, %p55
    %s57 = ssub.s32 %s23, %s30
    %p58 = scmp.eq.s32.totalorder %s57, 0
    %s60 = sadd.s32 %s59, 1
    %s61 = scalar_select %p58, %s59, %s60
    %p64 = pneg %p58
    %p65 = scmp.eq.s32.totalorder %s23, 1
    %p66 = por %p64, %p65
    %p67 = scmp.ne.s32.totalorder %s59, %s62
    %p68 = scmp.eq.s32.totalorder %s23, 0
    %p69 = por %p67, %p68
    %p70 = scmp.ne.s32.totalorder %s59, %s62
    %p71 = scmp.eq.s32.totalorder %s28, 1
    %p72 = por %p70, %p71
    %p73 = scmp.ne.s32.totalorder %s62, %s63
    %p74 = scmp.eq.s32.totalorder %s28, 0
    %p75 = por %p73, %p74
    %p76 = scmp.ne.s32.totalorder %s62, %s63
    %p77 = scmp.eq.s32.totalorder %s29, 1
    %p78 = por %p76, %p77
    %p80 = scmp.ne.s32.totalorder %s63, %s79
    %p81 = scmp.eq.s32.totalorder %s29, 0
    %p82 = por %p80, %p81
    %s84 = sadd.s32 %s83, 1
    %p87 = scmp.eq.s32.totalorder %s23, 1
    %p88 = scmp.ne.s32.totalorder %s83, %s85
    %p89 = scmp.eq.s32.totalorder %s23, 0
    %p90 = por %p88, %p89
    %p91 = scmp.ne.s32.totalorder %s83, %s85
    %p92 = scmp.eq.s32.totalorder %s28, 1
    %p93 = por %p91, %p92
    %p94 = scmp.ne.s32.totalorder %s85, %s86
    %p95 = scmp.eq.s32.totalorder %s28, 0
    %p96 = por %p94, %p95
    %p97 = scmp.ne.s32.totalorder %s85, %s86
    %p98 = scmp.eq.s32.totalorder %s29, 1
    %p99 = por %p97, %p98
    %p101 = scmp.ne.s32.totalorder %s86, %s100
    %p102 = scmp.eq.s32.totalorder %s29, 0
    %p103 = por %p101, %p102
    %s105 = sadd.s32 %s104, 1
    %p108 = scmp.eq.s32.totalorder %s23, 1
    %p109 = scmp.ne.s32.totalorder %s104, %s106
    %p110 = scmp.eq.s32.totalorder %s23, 0
    %p111 = por %p109, %p110
    %p112 = scmp.ne.s32.totalorder %s104, %s106
    %p113 = scmp.eq.s32.totalorder %s28, 1
    %p114 = por %p112, %p113
    %p115 = scmp.ne.s32.totalorder %s106, %s107
    %p116 = scmp.eq.s32.totalorder %s28, 0
    %p117 = por %p115, %p116
    %p118 = scmp.ne.s32.totalorder %s106, %s107
    %p119 = scmp.eq.s32.totalorder %s29, 1
    %p120 = por %p118, %p119
    %p122 = scmp.ne.s32.totalorder %s107, %s121
    %p123 = scmp.eq.s32.totalorder %s29, 0
    %p124 = por %p122, %p123
    %s126 = sadd.s32 %s125, 1
    %p129 = scmp.eq.s32.totalorder %s23, 1
    %p130 = scmp.ne.s32.totalorder %s125, %s127
    %p131 = scmp.eq.s32.totalorder %s23, 0
    %p132 = por %p130, %p131
    %p133 = scmp.ne.s32.totalorder %s125, %s127
    %p134 = scmp.eq.s32.totalorder %s28, 1
    %p135 = por %p133, %p134
    %p136 = scmp.ne.s32.totalorder %s127, %s128
    %p137 = scmp.eq.s32.totalorder %s28, 0
    %p138 = por %p136, %p137
    %p139 = scmp.ne.s32.totalorder %s127, %s128
    %p140 = scmp.eq.s32.totalorder %s29, 1
    %p141 = por %p139, %p140
    %p143 = scmp.ne.s32.totalorder %s128, %s142
    %p144 = scmp.eq.s32.totalorder %s29, 0
    %p145 = por %p143, %p144
    %s147 = sadd.s32 %s146, 1
    %p150 = scmp.eq.s32.totalorder %s23, 1
    %p151 = scmp.ne.s32.totalorder %s146, %s148
    %p152 = scmp.eq.s32.totalorder %s23, 0
    %p153 = por %p151, %p152
    %p154 = scmp.ne.s32.totalorder %s146, %s148
    %p155 = scmp.eq.s32.totalorder %s28, 1
    %p156 = por %p154, %p155
    %p157 = scmp.ne.s32.totalorder %s148, %s149
    %p158 = scmp.eq.s32.totalorder %s28, 0
    %p159 = por %p157, %p158
    %p160 = scmp.ne.s32.totalorder %s148, %s149
    %p161 = scmp.eq.s32.totalorder %s29, 1
    %p162 = por %p160, %p161
    %p164 = scmp.ne.s32.totalorder %s149, %s163
    %p165 = scmp.eq.s32.totalorder %s29, 0
    %p166 = por %p164, %p165
    %s168 = sadd.s32 %s167, 1
    %p171 = scmp.eq.s32.totalorder %s23, 1
    %p172 = scmp.ne.s32.totalorder %s167, %s169
    %p173 = scmp.eq.s32.totalorder %s23, 0
    %p174 = por %p172, %p173
    %p175 = scmp.ne.s32.totalorder %s167, %s169
    %p176 = scmp.eq.s32.totalorder %s28, 1
    %p177 = por %p175, %p176
    %p178 = scmp.ne.s32.totalorder %s169, %s170
    %p179 = scmp.eq.s32.totalorder %s28, 0
    %p180 = por %p178, %p179
    %p181 = scmp.ne.s32.totalorder %s169, %s170
    %p182 = scmp.eq.s32.totalorder %s29, 1
    %p183 = por %p181, %p182
    %p185 = scmp.ne.s32.totalorder %s170, %s184
    %p186 = scmp.eq.s32.totalorder %s29, 0
    %p187 = por %p185, %p186
    %s189 = sadd.s32 %s188, 1
    %p192 = scmp.eq.s32.totalorder %s23, 1
    %p193 = scmp.ne.s32.totalorder %s188, %s190
    %p194 = scmp.eq.s32.totalorder %s23, 0
    %p195 = por %p193, %p194
    %p196 = scmp.ne.s32.totalorder %s188, %s190
    %p197 = scmp.eq.s32.totalorder %s28, 1
    %p198 = por %p196, %p197
    %p199 = scmp.ne.s32.totalorder %s190, %s191
    %p200 = scmp.eq.s32.totalorder %s28, 0
    %p201 = por %p199, %p200
    %p202 = scmp.ne.s32.totalorder %s190, %s191
    %p203 = scmp.eq.s32.totalorder %s29, 1
    %p204 = por %p202, %p203
    %p206 = scmp.ne.s32.totalorder %s191, %s205
    %p207 = scmp.eq.s32.totalorder %s29, 0
    %p208 = por %p206, %p207
    %s210 = sadd.s32 %s209, 1
    %p213 = scmp.eq.s32.totalorder %s23, 1
    %p214 = scmp.ne.s32.totalorder %s209, %s211
    %p215 = scmp.eq.s32.totalorder %s23, 0
    %p216 = por %p214, %p215
    %p217 = scmp.ne.s32.totalorder %s209, %s211
    %p218 = scmp.eq.s32.totalorder %s28, 1
    %p219 = por %p217, %p218
    %p220 = scmp.ne.s32.totalorder %s211, %s212
    %p221 = scmp.eq.s32.totalorder %s28, 0
    %p222 = por %p220, %p221
    %p223 = scmp.ne.s32.totalorder %s211, %s212
    %p224 = scmp.eq.s32.totalorder %s29, 1
    %p225 = por %p223, %p224
    %p227 = scmp.ne.s32.totalorder %s212, %s226
    %p228 = scmp.eq.s32.totalorder %s29, 0
    %p229 = por %p227, %p228
    %s231 = sadd.s32 %s230, 1
    %p234 = scmp.eq.s32.totalorder %s23, 1
    %p235 = scmp.ne.s32.totalorder %s230, %s232
    %p236 = scmp.eq.s32.totalorder %s23, 0
    %p237 = por %p235, %p236
    %p238 = scmp.ne.s32.totalorder %s230, %s232
    %p239 = scmp.eq.s32.totalorder %s28, 1
    %p240 = por %p238, %p239
    %p241 = scmp.ne.s32.totalorder %s232, %s233
    %p242 = scmp.eq.s32.totalorder %s28, 0
    %p243 = por %p241, %p242
    %p244 = scmp.ne.s32.totalorder %s232, %s233
    %p245 = scmp.eq.s32.totalorder %s29, 1
    %p246 = por %p244, %p245
    %p248 = scmp.ne.s32.totalorder %s233, %s247
    %p249 = scmp.eq.s32.totalorder %s29, 0
    %p250 = por %p248, %p249
    %s252 = sadd.s32 %s251, 1
    %p255 = scmp.eq.s32.totalorder %s23, 1
    %p256 = scmp.ne.s32.totalorder %s251, %s253
    %p257 = scmp.eq.s32.totalorder %s23, 0
    %p258 = por %p256, %p257
    %p259 = scmp.ne.s32.totalorder %s251, %s253
    %p260 = scmp.eq.s32.totalorder %s28, 1
    %p261 = por %p259, %p260
    %p262 = scmp.ne.s32.totalorder %s253, %s254
    %p263 = scmp.eq.s32.totalorder %s28, 0
    %p264 = por %p262, %p263
    %p265 = scmp.ne.s32.totalorder %s253, %s254
    %p266 = scmp.eq.s32.totalorder %s29, 1
    %p267 = por %p265, %p266
    %p269 = scmp.ne.s32.totalorder %s254, %s268
    %p270 = scmp.eq.s32.totalorder %s29, 0
    %p271 = por %p269, %p270
    %s273 = sadd.s32 %s272, 1
    %p276 = scmp.eq.s32.totalorder %s23, 1
    %p277 = scmp.ne.s32.totalorder %s272, %s274
    %p278 = scmp.eq.s32.totalorder %s23, 0
    %p279 = por %p277, %p278
    %p280 = scmp.ne.s32.totalorder %s272, %s274
    %p281 = scmp.eq.s32.totalorder %s28, 1
    %p282 = por %p280, %p281
    %p283 = scmp.ne.s32.totalorder %s274, %s275
    %p284 = scmp.eq.s32.totalorder %s28, 0
    %p285 = por %p283, %p284
    %p286 = scmp.ne.s32.totalorder %s274, %s275
    %p287 = scmp.eq.s32.totalorder %s29, 1
    %p288 = por %p286, %p287
    %p290 = scmp.ne.s32.totalorder %s275, %s289
    %p291 = scmp.eq.s32.totalorder %s29, 0
    %p292 = por %p290, %p291
    %s294 = sadd.s32 %s293, 1
    %p297 = scmp.eq.s32.totalorder %s23, 1
    %p298 = scmp.ne.s32.totalorder %s293, %s295
    %p299 = scmp.eq.s32.totalorder %s23, 0
    %p300 = por %p298, %p299
    %p301 = scmp.ne.s32.totalorder %s293, %s295
    %p302 = scmp.eq.s32.totalorder %s28, 1
    %p303 = por %p301, %p302
    %p304 = scmp.ne.s32.totalorder %s295, %s296
    %p305 = scmp.eq.s32.totalorder %s28, 0
    %p306 = por %p304, %p305
    %p307 = scmp.ne.s32.totalorder %s295, %s296
    %p308 = scmp.eq.s32.totalorder %s29, 1
    %p309 = por %p307, %p308
    %p311 = scmp.ne.s32.totalorder %s296, %s310
    %p312 = scmp.eq.s32.totalorder %s29, 0
    %p313 = por %p311, %p312
    %s315 = sadd.s32 %s314, 1
    %p318 = scmp.eq.s32.totalorder %s23, 1
    %p319 = scmp.ne.s32.totalorder %s314, %s316
    %p320 = scmp.eq.s32.totalorder %s23, 0
    %p321 = por %p319, %p320
    %p322 = scmp.ne.s32.totalorder %s314, %s316
    %p323 = scmp.eq.s32.totalorder %s28, 1
    %p324 = por %p322, %p323
    %p325 = scmp.ne.s32.totalorder %s316, %s317
    %p326 = scmp.eq.s32.totalorder %s28, 0
    %p327 = por %p325, %p326
    %p328 = scmp.ne.s32.totalorder %s316, %s317
    %p329 = scmp.eq.s32.totalorder %s29, 1
    %p330 = por %p328, %p329
    %p332 = scmp.ne.s32.totalorder %s317, %s331
    %p333 = scmp.eq.s32.totalorder %s29, 0
    %p334 = por %p332, %p333
    %s336 = sadd.s32 %s335, 1
    %p339 = scmp.eq.s32.totalorder %s23, 1
    %p340 = scmp.ne.s32.totalorder %s335, %s337
    %p341 = scmp.eq.s32.totalorder %s23, 0
    %p342 = por %p340, %p341
    %p343 = scmp.ne.s32.totalorder %s335, %s337
    %p344 = scmp.eq.s32.totalorder %s28, 1
    %p345 = por %p343, %p344
    %p346 = scmp.ne.s32.totalorder %s337, %s338
    %p347 = scmp.eq.s32.totalorder %s28, 0
    %p348 = por %p346, %p347
    %p349 = scmp.ne.s32.totalorder %s337, %s338
    %p350 = scmp.eq.s32.totalorder %s29, 1
    %p351 = por %p349, %p350
    %p353 = scmp.ne.s32.totalorder %s338, %s352
    %p354 = scmp.eq.s32.totalorder %s29, 0
    %p355 = por %p353, %p354
    %s356 = ssub.s32 %s23, %s30
    %p357 = scmp.eq.s32.totalorder %s356, 0
    %s359 = sadd.s32 %s358, 1
    %s360 = scalar_select %p357, %s358, %s359
    %p363 = pneg %p357
    %p364 = scmp.eq.s32.totalorder %s23, 1
    %p365 = por %p363, %p364
    %p366 = scmp.ne.s32.totalorder %s358, %s361
    %p367 = scmp.eq.s32.totalorder %s23, 0
    %p368 = por %p366, %p367
    %p369 = scmp.ne.s32.totalorder %s358, %s361
    %p370 = scmp.eq.s32.totalorder %s28, 1
    %p371 = por %p369, %p370
    %p372 = scmp.ne.s32.totalorder %s361, %s362
    %p373 = scmp.eq.s32.totalorder %s28, 0
    %p374 = por %p372, %p373
    %p375 = scmp.ne.s32.totalorder %s361, %s362
    %p376 = scmp.eq.s32.totalorder %s29, 1
    %p377 = por %p375, %p376
    %p379 = scmp.ne.s32.totalorder %s362, %s378
    %p380 = scmp.eq.s32.totalorder %s29, 0
    %p381 = por %p379, %p380
    %s382 = ssub.s32 %s23, %s30
    %p383 = scmp.eq.s32.totalorder %s382, 0
    %s385 = sadd.s32 %s384, 1
    %s386 = scalar_select %p383, %s384, %s385
    %p389 = pneg %p383
    %p390 = scmp.eq.s32.totalorder %s23, 1
    %p391 = por %p389, %p390
    %p392 = scmp.ne.s32.totalorder %s384, %s387
    %p393 = scmp.eq.s32.totalorder %s23, 0
    %p394 = por %p392, %p393
    %p395 = scmp.ne.s32.totalorder %s384, %s387
    %p396 = scmp.eq.s32.totalorder %s28, 1
    %p397 = por %p395, %p396
    %p398 = scmp.ne.s32.totalorder %s387, %s388
    %p399 = scmp.eq.s32.totalorder %s28, 0
    %p400 = por %p398, %p399
    %p401 = scmp.ne.s32.totalorder %s387, %s388
    %p402 = scmp.eq.s32.totalorder %s29, 1
    %p403 = por %p401, %p402
    %p405 = scmp.ne.s32.totalorder %s388, %s404
    %p406 = scmp.eq.s32.totalorder %s29, 0
    %p407 = por %p405, %p406
    %p408 = scmp.le.s32.totalorder 1, %s23
    %p409 = scmp.lt.s32.totalorder %s23, 3
    %p410 = pnand %p408, %p409
    %p411 = pneg %p410
    // Predicated region
    $region9: #{age_estimator_fwd.4} parent=5 // pred_check
      _
    $region10: #{age_estimator_fwd.4} parent=5 // pred_check_branch
      %413 = sbr.rel (%p410) target = $region12
    $region11: #{age_estimator_fwd.4} parent=5 // pred_region
      %s414 = ssub.s32 %s23, 1
      // Predicated region
      $region13: #{age_estimator_fwd.4} parent=11 // pred_check
        %p415 = pneg %p96
      $region14: #{age_estimator_fwd.4} parent=11 // pred_check_branch
        %417 = sbr.rel (%p415) target = $region16
      $region15: #{age_estimator_fwd.4} parent=11 // pred_region
        _
      $region16: #{age_estimator_fwd.4} parent=11 // pred_fallthru
        _
      // Predicated region
      $region17: #{age_estimator_fwd.4} parent=11 // pred_check
        %p418 = pneg %p117
      $region18: #{age_estimator_fwd.4} parent=11 // pred_check_branch
        %420 = sbr.rel (%p418) target = $region20
      $region19: #{age_estimator_fwd.4} parent=11 // pred_region
        _
      $region20: #{age_estimator_fwd.4} parent=11 // pred_fallthru
        _
      // Predicated region
      $region21: #{age_estimator_fwd.4} parent=11 // pred_check
        %p421 = pneg %p138
      $region22: #{age_estimator_fwd.4} parent=11 // pred_check_branch
        %423 = sbr.rel (%p421) target = $region24
      $region23: #{age_estimator_fwd.4} parent=11 // pred_region
        _
      $region24: #{age_estimator_fwd.4} parent=11 // pred_fallthru
        _
      // Predicated region
      $region25: #{age_estimator_fwd.4} parent=11 // pred_check
        %p424 = pneg %p159
      $region26: #{age_estimator_fwd.4} parent=11 // pred_check_branch
        %426 = sbr.rel (%p424) target = $region28
      $region27: #{age_estimator_fwd.4} parent=11 // pred_region
        _
      $region28: #{age_estimator_fwd.4} parent=11 // pred_fallthru
        _
      // Predicated region
      $region29: #{age_estimator_fwd.4} parent=11 // pred_check
        %p427 = pneg %p180
      $region30: #{age_estimator_fwd.4} parent=11 // pred_check_branch
        %429 = sbr.rel (%p427) target = $region32
      $region31: #{age_estimator_fwd.4} parent=11 // pred_region
        _
      $region32: #{age_estimator_fwd.4} parent=11 // pred_fallthru
        _
      // Predicated region
      $region33: #{age_estimator_fwd.4} parent=11 // pred_check
        %p430 = pneg %p201
      $region34: #{age_estimator_fwd.4} parent=11 // pred_check_branch
        %432 = sbr.rel (%p430) target = $region36
      $region35: #{age_estimator_fwd.4} parent=11 // pred_region
        _
      $region36: #{age_estimator_fwd.4} parent=11 // pred_fallthru
        _
      // Predicated region
      $region37: #{age_estimator_fwd.4} parent=11 // pred_check
        %p433 = pneg %p222
      $region38: #{age_estimator_fwd.4} parent=11 // pred_check_branch
        %435 = sbr.rel (%p433) target = $region40
      $region39: #{age_estimator_fwd.4} parent=11 // pred_region
        _
      $region40: #{age_estimator_fwd.4} parent=11 // pred_fallthru
        _
      // Predicated region
      $region41: #{age_estimator_fwd.4} parent=11 // pred_check
        %p436 = pneg %p243
      $region42: #{age_estimator_fwd.4} parent=11 // pred_check_branch
        %438 = sbr.rel (%p436) target = $region44
      $region43: #{age_estimator_fwd.4} parent=11 // pred_region
        _
      $region44: #{age_estimator_fwd.4} parent=11 // pred_fallthru
        _
      // Predicated region
      $region45: #{age_estimator_fwd.4} parent=11 // pred_check
        %p439 = pneg %p264
      $region46: #{age_estimator_fwd.4} parent=11 // pred_check_branch
        %441 = sbr.rel (%p439) target = $region48
      $region47: #{age_estimator_fwd.4} parent=11 // pred_region
        _
      $region48: #{age_estimator_fwd.4} parent=11 // pred_fallthru
        _
      // Predicated region
      $region49: #{age_estimator_fwd.4} parent=11 // pred_check
        %p442 = pneg %p285
      $region50: #{age_estimator_fwd.4} parent=11 // pred_check_branch
        %444 = sbr.rel (%p442) target = $region52
      $region51: #{age_estimator_fwd.4} parent=11 // pred_region
        _
      $region52: #{age_estimator_fwd.4} parent=11 // pred_fallthru
        _
      // Predicated region
      $region53: #{age_estimator_fwd.4} parent=11 // pred_check
        %p445 = pneg %p306
      $region54: #{age_estimator_fwd.4} parent=11 // pred_check_branch
        %447 = sbr.rel (%p445) target = $region56
      $region55: #{age_estimator_fwd.4} parent=11 // pred_region
        _
      $region56: #{age_estimator_fwd.4} parent=11 // pred_fallthru
        _
      // Predicated region
      $region57: #{age_estimator_fwd.4} parent=11 // pred_check
        %p448 = pneg %p327
      $region58: #{age_estimator_fwd.4} parent=11 // pred_check_branch
        %450 = sbr.rel (%p448) target = $region60
      $region59: #{age_estimator_fwd.4} parent=11 // pred_region
        _
      $region60: #{age_estimator_fwd.4} parent=11 // pred_fallthru
        _
      // Predicated region
      $region61: #{age_estimator_fwd.4} parent=11 // pred_check
        %p451 = pneg %p348
      $region62: #{age_estimator_fwd.4} parent=11 // pred_check_branch
        %453 = sbr.rel (%p451) target = $region64
      $region63: #{age_estimator_fwd.4} parent=11 // pred_region
        _
      $region64: #{age_estimator_fwd.4} parent=11 // pred_fallthru
        _
    $region12: #{age_estimator_fwd.4} parent=5 // pred_fallthru
      _
    %p454 = scmp.lt.s32.totalorder %s23, 2
    // Predicated region
    $region65: #{age_estimator_fwd.4} parent=5 // pred_check
      %p455 = pneg %p454
    $region66: #{age_estimator_fwd.4} parent=5 // pred_check_branch
      %457 = sbr.rel (%p455) target = $region68
    $region67: #{age_estimator_fwd.4} parent=5 // pred_region
      // Predicated region
      $region69: #{age_estimator_fwd.4} parent=67 // pred_check
        %p458 = pneg %p43
      $region70: #{age_estimator_fwd.4} parent=67 // pred_check_branch
        %460 = sbr.rel (%p458) target = $region72
      $region71: #{age_estimator_fwd.4} parent=67 // pred_region
        %p461 = scmp.lt.s32.totalorder %s23, 1
        %s462 = scalar_select %p461, %s23, 1
        %s463 = smul.addr %s462, 2
        %s464 = smul.addr %s463, 4
        %s465 = scalar_lea.vmem %s0, %s464
      $region72: #{age_estimator_fwd.4} parent=67 // pred_fallthru
        _
      // Predicated region
      $region73: #{age_estimator_fwd.4} parent=67 // pred_check
        %p466 = pneg %p69
      $region74: #{age_estimator_fwd.4} parent=67 // pred_check_branch
        %468 = sbr.rel (%p466) target = $region76
      $region75: #{age_estimator_fwd.4} parent=67 // pred_region
        %p469 = scmp.lt.s32.totalorder %s23, 1
        %s470 = scalar_select %p469, %s23, 1
        %s471 = smul.addr %s470, 2
        %s472 = smul.addr %s471, 4
        %s473 = scalar_lea.vmem %s1, %s472
      $region76: #{age_estimator_fwd.4} parent=67 // pred_fallthru
        _
    $region68: #{age_estimator_fwd.4} parent=5 // pred_fallthru
      _
    %p474 = scmp.le.s32.totalorder 1, %s23
    %p475 = scmp.lt.s32.totalorder %s23, 3
    %p476 = pnand %p474, %p475
    %p477 = pneg %p476
    // Predicated region
    $region77: #{age_estimator_fwd.4} parent=5 // pred_check
      _
    $region78: #{age_estimator_fwd.4} parent=5 // pred_check_branch
      %479 = sbr.rel (%p476) target = $region80
    $region79: #{age_estimator_fwd.4} parent=5 // pred_region
      %s480 = ssub.s32 %s23, 1
      %p481 = scmp.lt.s32.totalorder %s28, 1
      %s482 = scalar_select %p481, %s28, 1
      %s483 = smul.addr %s482, 2
      %s484 = smul.addr %s483, 4
      %s485 = scalar_lea.vmem %s0, %s484
      %p486 = pneg %p49
      %p487 = pneg %p46
      %p488 = scmp.lt.s32.totalorder %s28, 1
      %s489 = scalar_select %p488, %s28, 1
      %s490 = smul.addr %s489, 2
      %s491 = smul.addr %s490, 4
      %s492 = scalar_lea.vmem %s1, %s491
      %p493 = pneg %p75
      %p494 = pneg %p72
      %p495 = pneg %p96
      %p496 = pneg %p93
      %p497 = pneg %p117
      %p498 = pneg %p114
      %p499 = pneg %p138
      %p500 = pneg %p135
      %p501 = pneg %p159
      %p502 = pneg %p156
      %p503 = pneg %p180
      %p504 = pneg %p177
      %p505 = pneg %p201
      %p506 = pneg %p198
      %p507 = pneg %p222
      %p508 = pneg %p219
      %p509 = pneg %p243
      %p510 = pneg %p240
      %p511 = pneg %p264
      %p512 = pneg %p261
      %p513 = pneg %p285
      %p514 = pneg %p282
      %p515 = pneg %p306
      %p516 = pneg %p303
      %p517 = pneg %p327
      %p518 = pneg %p324
      %p519 = pneg %p348
      %p520 = pneg %p345
      %p521 = pneg %p374
      %p522 = pneg %p371
      %p523 = scmp.lt.s32.totalorder %s28, 1
      %s524 = scalar_select %p523, %s28, 1
      %s525 = smul.addr %s524, 2
      %s526 = smul.addr %s525, 4
      %s527 = scalar_lea.vmem %s15, %s526
      %p528 = pneg %p400
      %p529 = pneg %p397
      %p530 = scmp.lt.s32.totalorder %s28, 1
      %s531 = scalar_select %p530, %s28, 1
      %s532 = smul.addr %s531, 2
      %s533 = smul.addr %s532, 4
      %s534 = scalar_lea.vmem %s16, %s533
      %p535 = scmp.lt.s32.totalorder %s28, 1
      %s536 = scalar_select %p535, %s28, 1
      %s537 = smul.addr %s536, 2
      %s538 = smul.addr %s537, 4
      %s539 = scalar_lea.vmem %s0, %s538
      %p540 = scmp.lt.s32.totalorder %s28, 1
      %s541 = scalar_select %p540, %s28, 1
      %s542 = smul.addr %s541, 2
      %s543 = smul.addr %s542, 4
      %s544 = scalar_lea.vmem %s1, %s543
      %p545 = scmp.lt.s32.totalorder %s28, 1
      %s546 = scalar_select %p545, %s28, 1
      %s547 = smul.addr %s546, 2
      %s548 = smul.addr %s547, 4
      %s549 = scalar_lea.vmem %s15, %s548
      %p550 = scmp.lt.s32.totalorder %s28, 1
      %s551 = scalar_select %p550, %s28, 1
      %s552 = smul.addr %s551, 2
      %s553 = smul.addr %s552, 4
      %s554 = scalar_lea.vmem %s16, %s553
      %v556 = vld [vmem:[%s539] sm:$0xf]
      %v557 = vld [vmem:[%s539 + $0x4] sm:$0xf]
      %v558 = vunpack.c.l.bf16 %v556
      %v559 = vunpack.c.l.bf16 %v557
      %v560 = vld [vmem:[%s544] sm:$0xf]
      %v561 = vld [vmem:[%s544 + $0x4] sm:$0xf]
      %v562 = vunpack.c.l.bf16 %v560
      %v563 = vunpack.c.l.bf16 %v561
      %v564 = vld [vmem:[%s2] sm:$0x1]
      %v565 = vld [vmem:[%s3] sm:$0x1]
      %566 = vadd.xlane.f32.xlu0 %v558
      %v567 = vpop.xlane.xlu0 %566
      %568 = vadd.xlane.f32.xlu0 %v559
      %v569 = vpop.xlane.xlu0 %568
      %v570 = vrcp.pop 128.0
      %v571 = vmul.f32 %v567, %v570
      %v572 = vmul.f32 %v569, %v570
      %v573 = vsub.f32 %v558, %v571
      %v574 = vsub.f32 %v559, %v572
      %v575 = vmul.f32 %v573, %v573
      %v576 = vmul.f32 %v574, %v574
      %577 = vadd.xlane.f32.xlu0 %v575
      %v578 = vpop.xlane.xlu0 %577
      %579 = vadd.xlane.f32.xlu0 %v576
      %v580 = vpop.xlane.xlu0 %579
      %v581 = vmul.f32 %v578, %v570
      %v582 = vmul.f32 %v580, %v570
      %v583 = vadd.f32 %v581, 1e-05
      %v584 = vadd.f32 %v582, 1e-05
      %v585 = vrsqrt.pop %v583
      %v586 = vrsqrt.pop %v584
      %v587 = vmul.f32 %v573, %v585
      %v588 = vmul.f32 %v574, %v586
      %v590 = vlaneseq
      %v591 = vshrl.u32 %v590, 7
      %v592 = vsub.s32 0, %v591
      %v593 = vrot.slane %v564, %v592
      %v595 = vmul.f32 %v587, %v593
      %v596 = vmul.f32 %v588, %v593
      %v598 = vlaneseq
      %v599 = vshrl.u32 %v598, 7
      %v600 = vsub.s32 0, %v599
      %v601 = vrot.slane %v565, %v600
      %v603 = vadd.f32 %v595, %v601
      %v604 = vadd.f32 %v596, %v601
      %v605 = vpack.c.bf16 %v604, %v603
      %606 = vadd.xlane.f32.xlu0 %v562
      %v607 = vpop.xlane.xlu0 %606
      %608 = vadd.xlane.f32.xlu0 %v563
      %v609 = vpop.xlane.xlu0 %608
      %v610 = vmul.f32 %v607, %v570
      %v611 = vmul.f32 %v609, %v570
      %v612 = vsub.f32 %v562, %v610
      %v613 = vsub.f32 %v563, %v611
      %v614 = vmul.f32 %v612, %v612
      %v615 = vmul.f32 %v613, %v613
      %616 = vadd.xlane.f32.xlu0 %v614
      %v617 = vpop.xlane.xlu0 %616
      %618 = vadd.xlane.f32.xlu0 %v615
      %v619 = vpop.xlane.xlu0 %618
      %v620 = vmul.f32 %v617, %v570
      %v621 = vmul.f32 %v619, %v570
      %v622 = vadd.f32 %v620, 1e-05
      %v623 = vadd.f32 %v621, 1e-05
      %v624 = vrsqrt.pop %v622
      %v625 = vrsqrt.pop %v623
      %v626 = vmul.f32 %v612, %v624
      %v627 = vmul.f32 %v613, %v625
      %v628 = vmul.f32 %v626, %v593
      %v629 = vmul.f32 %v627, %v593
      %v630 = vadd.f32 %v628, %v601
      %v631 = vadd.f32 %v629, %v601
      %v632 = vpack.c.bf16 %v631, %v630
      %v633 = vld [vmem:[%s4] sm:$0xf]
      %v634 = vld [vmem:[%s4 + $0x4] sm:$0xf]
      %v635 = vld [vmem:[%s4 + $0x8] sm:$0xf]
      %v636 = vld [vmem:[%s4 + $0xc] sm:$0xf]
      %v637 = vld [vmem:[%s4 + $0x10] sm:$0xf]
      %v638 = vld [vmem:[%s4 + $0x14] sm:$0xf]
      %v639 = vld [vmem:[%s4 + $0x18] sm:$0xf]
      %v640 = vld [vmem:[%s4 + $0x1c] sm:$0xf]
      %v641 = vld [vmem:[%s4 + $0x20] sm:$0xf]
      %v642 = vld [vmem:[%s4 + $0x24] sm:$0xf]
      %v643 = vld [vmem:[%s4 + $0x28] sm:$0xf]
      %v644 = vld [vmem:[%s4 + $0x2c] sm:$0xf]
      %v645 = vld [vmem:[%s4 + $0x30] sm:$0xf]
      %v646 = vld [vmem:[%s4 + $0x34] sm:$0xf]
      %v647 = vld [vmem:[%s4 + $0x38] sm:$0xf]
      %v648 = vld [vmem:[%s4 + $0x3c] sm:$0xf]
      %v665 = vunpack.c.l.b16 %v633
      %v666 = vunpack.c.l.b16 %v634
      %v667 = vunpack.c.l.b16 %v635
      %v668 = vunpack.c.l.b16 %v636
      %v669 = vunpack.c.l.b16 %v637
      %v670 = vunpack.c.l.b16 %v638
      %v671 = vunpack.c.l.b16 %v639
      %v672 = vunpack.c.l.b16 %v640
      %v673 = vunpack.c.l.b16 %v641
      %v674 = vunpack.c.l.b16 %v642
      %v675 = vunpack.c.l.b16 %v643
      %v676 = vunpack.c.l.b16 %v644
      %v677 = vunpack.c.l.b16 %v645
      %v678 = vunpack.c.l.b16 %v646
      %v679 = vunpack.c.l.b16 %v647
      %v680 = vunpack.c.l.b16 %v648
      %v681 = vpack.c.b16 %v666, %v665
      %v682 = vpack.c.b16 %v668, %v667
      %v683 = vpack.c.b16 %v670, %v669
      %v684 = vpack.c.b16 %v672, %v671
      %v685 = vpack.c.b16 %v674, %v673
      %v686 = vpack.c.b16 %v676, %v675
      %v687 = vpack.c.b16 %v678, %v677
      %v688 = vpack.c.b16 %v680, %v679
      %697 = vmatprep.subr.bf16.mxu0 0
      %698 = vmatpush1.bf16.msra.mxu0 %v688
      %699 = vmatprep.subr.bf16.mxu0 0
      %700 = vmatpush1.bf16.msra.mxu0 %v687
      %701 = vmatprep.subr.bf16.mxu0 0
      %702 = vmatpush1.bf16.msra.mxu0 %v686
      %703 = vmatprep.subr.bf16.mxu0 0
      %704 = vmatpush1.bf16.msra.mxu0 %v685
      %705 = vmatprep.subr.bf16.mxu0 0
      %706 = vmatpush1.bf16.msra.mxu0 %v684
      %707 = vmatprep.subr.bf16.mxu0 0
      %708 = vmatpush1.bf16.msra.mxu0 %v683
      %709 = vmatprep.subr.bf16.mxu0 0
      %710 = vmatpush1.bf16.msra.mxu0 %v682
      %711 = vmatprep.subr.bf16.mxu0 0
      %712 = vmatpush1.bf16.msra.mxu0 %v681
      %713 = vmatprep.subr.bf16.mxu0 0
      %714 = vmatpush2.bf16.msra.mxu0 0
      %715 = vmatprep.subr.bf16.mxu0 0
      %716 = vmatpush2.bf16.msra.mxu0 0
      %717 = vmatprep.subr.bf16.mxu0 0
      %718 = vmatpush2.bf16.msra.mxu0 0
      %719 = vmatprep.subr.bf16.mxu0 0
      %720 = vmatpush2.bf16.msra.mxu0 0
      %721 = vmatprep.subr.bf16.mxu0 0
      %722 = vmatpush2.bf16.msra.mxu0 0
      %723 = vmatprep.subr.bf16.mxu0 0
      %724 = vmatpush2.bf16.msra.mxu0 0
      %725 = vmatprep.subr.bf16.mxu0 0
      %726 = vmatpush2.bf16.msra.mxu0 0
      %727 = vmatprep.subr.bf16.mxu0 0
      %728 = vmatpush2.bf16.msra.mxu0 0
      %729 = vmatprep.mubr.bf16.mxu0 0
      %730 = vmatmul.mubr.bf16.gmra.mxu0 %v605
      %v731 = vpop.f32.mrf.mxu0
      %v732 = vadd.f32 0.0, %v731
      %v733 = vpop.f32.mrf.mxu0
      %v734 = vpop.f32.mrf.mxu0
      %v735 = vadd.f32 0.0, %v734
      %v736 = vpop.f32.mrf.mxu0
      %737 = vdwg.mxu0
      %v738 = vld [vmem:[%s5] sm:$0xf]
      %v739 = vld [vmem:[%s5 + $0x4] sm:$0xf]
      %v740 = vld [vmem:[%s5 + $0x8] sm:$0xf]
      %v741 = vld [vmem:[%s5 + $0xc] sm:$0xf]
      %v742 = vld [vmem:[%s5 + $0x10] sm:$0xf]
      %v743 = vld [vmem:[%s5 + $0x14] sm:$0xf]
      %v744 = vld [vmem:[%s5 + $0x18] sm:$0xf]
      %v745 = vld [vmem:[%s5 + $0x1c] sm:$0xf]
      %v746 = vld [vmem:[%s5 + $0x20] sm:$0xf]
      %v747 = vld [vmem:[%s5 + $0x24] sm:$0xf]
      %v748 = vld [vmem:[%s5 + $0x28] sm:$0xf]
      %v749 = vld [vmem:[%s5 + $0x2c] sm:$0xf]
      %v750 = vld [vmem:[%s5 + $0x30] sm:$0xf]
      %v751 = vld [vmem:[%s5 + $0x34] sm:$0xf]
      %v752 = vld [vmem:[%s5 + $0x38] sm:$0xf]
      %v753 = vld [vmem:[%s5 + $0x3c] sm:$0xf]
      %v770 = vunpack.c.l.b16 %v738
      %v771 = vunpack.c.l.b16 %v739
      %v772 = vunpack.c.l.b16 %v740
      %v773 = vunpack.c.l.b16 %v741
      %v774 = vunpack.c.l.b16 %v742
      %v775 = vunpack.c.l.b16 %v743
      %v776 = vunpack.c.l.b16 %v744
      %v777 = vunpack.c.l.b16 %v745
      %v778 = vunpack.c.l.b16 %v746
      %v779 = vunpack.c.l.b16 %v747
      %v780 = vunpack.c.l.b16 %v748
      %v781 = vunpack.c.l.b16 %v749
      %v782 = vunpack.c.l.b16 %v750
      %v783 = vunpack.c.l.b16 %v751
      %v784 = vunpack.c.l.b16 %v752
      %v785 = vunpack.c.l.b16 %v753
      %v786 = vpack.c.b16 %v771, %v770
      %v787 = vpack.c.b16 %v773, %v772
      %v788 = vpack.c.b16 %v775, %v774
      %v789 = vpack.c.b16 %v777, %v776
      %v790 = vpack.c.b16 %v779, %v778
      %v791 = vpack.c.b16 %v781, %v780
      %v792 = vpack.c.b16 %v783, %v782
      %v793 = vpack.c.b16 %v785, %v784
      %802 = vmatprep.subr.bf16.mxu0 0
      %803 = vmatpush1.bf16.msra.mxu0 %v793
      %804 = vmatprep.subr.bf16.mxu0 0
      %805 = vmatpush1.bf16.msra.mxu0 %v792
      %806 = vmatprep.subr.bf16.mxu0 0
      %807 = vmatpush1.bf16.msra.mxu0 %v791
      %808 = vmatprep.subr.bf16.mxu0 0
      %809 = vmatpush1.bf16.msra.mxu0 %v790
      %810 = vmatprep.subr.bf16.mxu0 0
      %811 = vmatpush1.bf16.msra.mxu0 %v789
      %812 = vmatprep.subr.bf16.mxu0 0
      %813 = vmatpush1.bf16.msra.mxu0 %v788
      %814 = vmatprep.subr.bf16.mxu0 0
      %815 = vmatpush1.bf16.msra.mxu0 %v787
      %816 = vmatprep.subr.bf16.mxu0 0
      %817 = vmatpush1.bf16.msra.mxu0 %v786
      %818 = vmatprep.subr.bf16.mxu0 0
      %819 = vmatpush2.bf16.msra.mxu0 0
      %820 = vmatprep.subr.bf16.mxu0 0
      %821 = vmatpush2.bf16.msra.mxu0 0
      %822 = vmatprep.subr.bf16.mxu0 0
      %823 = vmatpush2.bf16.msra.mxu0 0
      %824 = vmatprep.subr.bf16.mxu0 0
      %825 = vmatpush2.bf16.msra.mxu0 0
      %826 = vmatprep.subr.bf16.mxu0 0
      %827 = vmatpush2.bf16.msra.mxu0 0
      %828 = vmatprep.subr.bf16.mxu0 0
      %829 = vmatpush2.bf16.msra.mxu0 0
      %830 = vmatprep.subr.bf16.mxu0 0
      %831 = vmatpush2.bf16.msra.mxu0 0
      %832 = vmatprep.subr.bf16.mxu0 0
      %833 = vmatpush2.bf16.msra.mxu0 0
      %834 = vmatprep.mubr.bf16.mxu0 0
      %835 = vmatmul.mubr.bf16.gmra.mxu0 %v632
      %v836 = vpop.f32.mrf.mxu0
      %v837 = vadd.f32 0.0, %v836
      %v838 = vpop.f32.mrf.mxu0
      %v839 = vpop.f32.mrf.mxu0
      %v840 = vadd.f32 0.0, %v839
      %v841 = vpop.f32.mrf.mxu0
      %842 = vdwg.mxu0
      %v843 = vld [vmem:[%s6] sm:$0xf]
      %v844 = vld [vmem:[%s6 + $0x4] sm:$0xf]
      %v845 = vld [vmem:[%s6 + $0x8] sm:$0xf]
      %v846 = vld [vmem:[%s6 + $0xc] sm:$0xf]
      %v847 = vld [vmem:[%s6 + $0x10] sm:$0xf]
      %v848 = vld [vmem:[%s6 + $0x14] sm:$0xf]
      %v849 = vld [vmem:[%s6 + $0x18] sm:$0xf]
      %v850 = vld [vmem:[%s6 + $0x1c] sm:$0xf]
      %v851 = vld [vmem:[%s6 + $0x20] sm:$0xf]
      %v852 = vld [vmem:[%s6 + $0x24] sm:$0xf]
      %v853 = vld [vmem:[%s6 + $0x28] sm:$0xf]
      %v854 = vld [vmem:[%s6 + $0x2c] sm:$0xf]
      %v855 = vld [vmem:[%s6 + $0x30] sm:$0xf]
      %v856 = vld [vmem:[%s6 + $0x34] sm:$0xf]
      %v857 = vld [vmem:[%s6 + $0x38] sm:$0xf]
      %v858 = vld [vmem:[%s6 + $0x3c] sm:$0xf]
      %v875 = vunpack.c.l.b16 %v843
      %v876 = vunpack.c.l.b16 %v844
      %v877 = vunpack.c.l.b16 %v845
      %v878 = vunpack.c.l.b16 %v846
      %v879 = vunpack.c.l.b16 %v847
      %v880 = vunpack.c.l.b16 %v848
      %v881 = vunpack.c.l.b16 %v849
      %v882 = vunpack.c.l.b16 %v850
      %v883 = vunpack.c.l.b16 %v851
      %v884 = vunpack.c.l.b16 %v852
      %v885 = vunpack.c.l.b16 %v853
      %v886 = vunpack.c.l.b16 %v854
      %v887 = vunpack.c.l.b16 %v855
      %v888 = vunpack.c.l.b16 %v856
      %v889 = vunpack.c.l.b16 %v857
      %v890 = vunpack.c.l.b16 %v858
      %v891 = vpack.c.b16 %v876, %v875
      %v892 = vpack.c.b16 %v878, %v877
      %v893 = vpack.c.b16 %v880, %v879
      %v894 = vpack.c.b16 %v882, %v881
      %v895 = vpack.c.b16 %v884, %v883
      %v896 = vpack.c.b16 %v886, %v885
      %v897 = vpack.c.b16 %v888, %v887
      %v898 = vpack.c.b16 %v890, %v889
      %907 = vmatprep.subr.bf16.mxu0 0
      %908 = vmatpush1.bf16.msra.mxu0 %v898
      %909 = vmatprep.subr.bf16.mxu0 0
      %910 = vmatpush1.bf16.msra.mxu0 %v897
      %911 = vmatprep.subr.bf16.mxu0 0
      %912 = vmatpush1.bf16.msra.mxu0 %v896
      %913 = vmatprep.subr.bf16.mxu0 0
      %914 = vmatpush1.bf16.msra.mxu0 %v895
      %915 = vmatprep.subr.bf16.mxu0 0
      %916 = vmatpush1.bf16.msra.mxu0 %v894
      %917 = vmatprep.subr.bf16.mxu0 0
      %918 = vmatpush1.bf16.msra.mxu0 %v893
      %919 = vmatprep.subr.bf16.mxu0 0
      %920 = vmatpush1.bf16.msra.mxu0 %v892
      %921 = vmatprep.subr.bf16.mxu0 0
      %922 = vmatpush1.bf16.msra.mxu0 %v891
      %923 = vmatprep.subr.bf16.mxu0 0
      %924 = vmatpush2.bf16.msra.mxu0 0
      %925 = vmatprep.subr.bf16.mxu0 0
      %926 = vmatpush2.bf16.msra.mxu0 0
      %927 = vmatprep.subr.bf16.mxu0 0
      %928 = vmatpush2.bf16.msra.mxu0 0
      %929 = vmatprep.subr.bf16.mxu0 0
      %930 = vmatpush2.bf16.msra.mxu0 0
      %931 = vmatprep.subr.bf16.mxu0 0
      %932 = vmatpush2.bf16.msra.mxu0 0
      %933 = vmatprep.subr.bf16.mxu0 0
      %934 = vmatpush2.bf16.msra.mxu0 0
      %935 = vmatprep.subr.bf16.mxu0 0
      %936 = vmatpush2.bf16.msra.mxu0 0
      %937 = vmatprep.subr.bf16.mxu0 0
      %938 = vmatpush2.bf16.msra.mxu0 0
      %939 = vmatprep.mubr.bf16.mxu0 0
      %940 = vmatmul.mubr.bf16.gmra.mxu0 %v632
      %v941 = vpop.f32.mrf.mxu0
      %v942 = vadd.f32 0.0, %v941
      %v943 = vpop.f32.mrf.mxu0
      %v944 = vpop.f32.mrf.mxu0
      %v945 = vadd.f32 0.0, %v944
      %v946 = vpop.f32.mrf.mxu0
      %947 = vdwg.mxu0
      %v948 = vld [vmem:[%s7] sm:$0xf]
      %v949 = vld [vmem:[%s7 + $0x4] sm:$0xf]
      %v950 = vld [vmem:[%s7 + $0x8] sm:$0xf]
      %v951 = vld [vmem:[%s7 + $0xc] sm:$0xf]
      %v952 = vld [vmem:[%s7 + $0x10] sm:$0xf]
      %v953 = vld [vmem:[%s7 + $0x14] sm:$0xf]
      %v954 = vld [vmem:[%s7 + $0x18] sm:$0xf]
      %v955 = vld [vmem:[%s7 + $0x1c] sm:$0xf]
      %v956 = vld [vmem:[%s7 + $0x20] sm:$0xf]
      %v957 = vld [vmem:[%s7 + $0x24] sm:$0xf]
      %v958 = vld [vmem:[%s7 + $0x28] sm:$0xf]
      %v959 = vld [vmem:[%s7 + $0x2c] sm:$0xf]
      %v960 = vld [vmem:[%s7 + $0x30] sm:$0xf]
      %v961 = vld [vmem:[%s7 + $0x34] sm:$0xf]
      %v962 = vld [vmem:[%s7 + $0x38] sm:$0xf]
      %v963 = vld [vmem:[%s7 + $0x3c] sm:$0xf]
      %v964 = vpack.c.bf16 %v735, %v732
      %v965 = vpack.c.bf16 %v840, %v837
      %vm966 = vcmask 523264
      %v968 = vsel %vm966, %v964, 0
      %v971 = vsel %vm966, %v965, 0
      %973 = vmatprep.subr.bf16.mxu0 0
      %974 = vmatpush1.bf16.xpose.msra.mxu0 0
      %975 = vmatprep.subr.bf16.mxu0 0
      %976 = vmatpush1.bf16.xpose.msra.mxu0 0
      %977 = vmatprep.subr.bf16.mxu0 0
      %978 = vmatpush1.bf16.xpose.msra.mxu0 0
      %979 = vmatprep.subr.bf16.mxu0 0
      %980 = vmatpush1.bf16.xpose.msra.mxu0 0
      %981 = vmatprep.subr.bf16.mxu0 0
      %982 = vmatpush1.bf16.xpose.msra.mxu0 0
      %983 = vmatprep.subr.bf16.mxu0 0
      %984 = vmatpush1.bf16.xpose.msra.mxu0 0
      %985 = vmatprep.subr.bf16.mxu0 0
      %986 = vmatpush1.bf16.xpose.msra.mxu0 0
      %987 = vmatprep.subr.bf16.mxu0 0
      %988 = vmatpush1.bf16.xpose.msra.mxu0 %v971
      %989 = vmatprep.subr.bf16.mxu0 0
      %990 = vmatpush2.bf16.xpose.msra.mxu0 0
      %991 = vmatprep.subr.bf16.mxu0 0
      %992 = vmatpush2.bf16.xpose.msra.mxu0 0
      %993 = vmatprep.subr.bf16.mxu0 0
      %994 = vmatpush2.bf16.xpose.msra.mxu0 0
      %995 = vmatprep.subr.bf16.mxu0 0
      %996 = vmatpush2.bf16.xpose.msra.mxu0 0
      %997 = vmatprep.subr.bf16.mxu0 0
      %998 = vmatpush2.bf16.xpose.msra.mxu0 0
      %999 = vmatprep.subr.bf16.mxu0 0
      %1000 = vmatpush2.bf16.xpose.msra.mxu0 0
      %1001 = vmatprep.subr.bf16.mxu0 0
      %1002 = vmatpush2.bf16.xpose.msra.mxu0 0
      %1003 = vmatprep.subr.bf16.mxu0 0
      %1004 = vmatpush2.bf16.xpose.msra.mxu0 0
      %1005 = vmatprep.mubr.bf16.mxu0 0
      %1006 = vmatmul.mubr.bf16.gmra.mxu0 %v968
      %v1007 = vpop.f32.mrf.mxu0
      %v1008 = vadd.f32 0.0, %v1007
      %v1009 = vpop.f32.mrf.mxu0
      %v1010 = vpop.f32.mrf.mxu0
      %v1011 = vadd.f32 0.0, %v1010
      %v1012 = vpop.f32.mrf.mxu0
      %1013 = vdwg.mxu0
      %vm1014 = vcmask 130048
      %v1015 = vsel %vm1014, %v1008, -inf
      %1016 = vmax.xlane.f32.xlu0 %v1015
      %v1017 = vpop.xlane.xlu0 %1016
      %v1018 = vsel %vm1014, %v1011, -inf
      %1019 = vmax.xlane.f32.xlu0 %v1018
      %v1020 = vpop.xlane.xlu0 %1019
      %v1021 = vsub.f32 %v1008, %v1017
      %v1022 = vsub.f32 %v1011, %v1020
      %v1023 = vmul.f32 %v1021, 1.442695
      %v1024 = vpow.pop %v1023
      %v1025 = vmul.f32 %v1022, 1.442695
      %v1026 = vpow.pop %v1025
      %v1027 = vsel %vm1014, %v1024, 0.0
      %1028 = vadd.xlane.f32.xlu0 %v1027
      %v1029 = vpop.xlane.xlu0 %1028
      %v1030 = vsel %vm1014, %v1026, 0.0
      %1031 = vadd.xlane.f32.xlu0 %v1030
      %v1032 = vpop.xlane.xlu0 %1031
      %v1033 = vrcp.pop %v1029
      %v1034 = vrcp.pop %v1032
      %v1035 = vmul.f32 %v1024, %v1033
      %v1036 = vmul.f32 %v1026, %v1034
      %v1037 = vpack.c.bf16 %v1036, %v1035
      %v1038 = vpack.c.bf16 %v945, %v942
      %v1040 = vsel %vm1014, %v1037, 0
      %1042 = vmatprep.subr.bf16.mxu0 0
      %1043 = vmatpush1.bf16.msra.mxu0 0
      %1044 = vmatprep.subr.bf16.mxu0 0
      %1045 = vmatpush1.bf16.msra.mxu0 0
      %1046 = vmatprep.subr.bf16.mxu0 0
      %1047 = vmatpush1.bf16.msra.mxu0 0
      %1048 = vmatprep.subr.bf16.mxu0 0
      %1049 = vmatpush1.bf16.msra.mxu0 0
      %1050 = vmatprep.subr.bf16.mxu0 0
      %1051 = vmatpush1.bf16.msra.mxu0 0
      %1052 = vmatprep.subr.bf16.mxu0 0
      %1053 = vmatpush1.bf16.msra.mxu0 0
      %1054 = vmatprep.subr.bf16.mxu0 0
      %1055 = vmatpush1.bf16.msra.mxu0 0
      %1056 = vmatprep.subr.bf16.mxu0 0
      %1057 = vmatpush1.bf16.msra.mxu0 %v1038
      %1058 = vmatprep.subr.bf16.mxu0 0
      %1059 = vmatpush2.bf16.msra.mxu0 0
      %1060 = vmatprep.subr.bf16.mxu0 0
      %1061 = vmatpush2.bf16.msra.mxu0 0
      %1062 = vmatprep.subr.bf16.mxu0 0
      %1063 = vmatpush2.bf16.msra.mxu0 0
      %1064 = vmatprep.subr.bf16.mxu0 0
      %1065 = vmatpush2.bf16.msra.mxu0 0
      %1066 = vmatprep.subr.bf16.mxu0 0
      %1067 = vmatpush2.bf16.msra.mxu0 0
      %1068 = vmatprep.subr.bf16.mxu0 0
      %1069 = vmatpush2.bf16.msra.mxu0 0
      %1070 = vmatprep.subr.bf16.mxu0 0
      %1071 = vmatpush2.bf16.msra.mxu0 0
      %1072 = vmatprep.subr.bf16.mxu0 0
      %1073 = vmatpush2.bf16.msra.mxu0 0
      %1074 = vmatprep.mubr.bf16.mxu0 0
      %1075 = vmatmul.mubr.bf16.gmra.mxu0 %v1040
      %v1076 = vpop.f32.mrf.mxu0
      %v1077 = vadd.f32 0.0, %v1076
      %v1078 = vpop.f32.mrf.mxu0
      %v1079 = vpop.f32.mrf.mxu0
      %v1080 = vadd.f32 0.0, %v1079
      %v1081 = vpop.f32.mrf.mxu0
      %1082 = vdwg.mxu0
      %v1083 = vpack.c.bf16 %v1080, %v1077
      %1085 = vrot.lane.b32.xlu0 %v964, 64
      %v1086 = vpop.permute.xlu0 %1085
      %1088 = vrot.lane.b32.xlu0 %v965, 64
      %v1089 = vpop.permute.xlu0 %1088
      %v1091 = vsel %vm966, %v1086, 0
      %v1094 = vsel %vm966, %v1089, 0
      %1096 = vmatprep.subr.bf16.mxu0 0
      %1097 = vmatpush1.bf16.xpose.msra.mxu0 0
      %1098 = vmatprep.subr.bf16.mxu0 0
      %1099 = vmatpush1.bf16.xpose.msra.mxu0 0
      %1100 = vmatprep.subr.bf16.mxu0 0
      %1101 = vmatpush1.bf16.xpose.msra.mxu0 0
      %1102 = vmatprep.subr.bf16.mxu0 0
      %1103 = vmatpush1.bf16.xpose.msra.mxu0 0
      %1104 = vmatprep.subr.bf16.mxu0 0
      %1105 = vmatpush1.bf16.xpose.msra.mxu0 0
      %1106 = vmatprep.subr.bf16.mxu0 0
      %1107 = vmatpush1.bf16.xpose.msra.mxu0 0
      %1108 = vmatprep.subr.bf16.mxu0 0
      %1109 = vmatpush1.bf16.xpose.msra.mxu0 0
      %1110 = vmatprep.subr.bf16.mxu0 0
      %1111 = vmatpush1.bf16.xpose.msra.mxu0 %v1094
      %1112 = vmatprep.subr.bf16.mxu0 0
      %1113 = vmatpush2.bf16.xpose.msra.mxu0 0
      %1114 = vmatprep.subr.bf16.mxu0 0
      %1115 = vmatpush2.bf16.xpose.msra.mxu0 0
      %1116 = vmatprep.subr.bf16.mxu0 0
      %1117 = vmatpush2.bf16.xpose.msra.mxu0 0
      %1118 = vmatprep.subr.bf16.mxu0 0
      %1119 = vmatpush2.bf16.xpose.msra.mxu0 0
      %1120 = vmatprep.subr.bf16.mxu0 0
      %1121 = vmatpush2.bf16.xpose.msra.mxu0 0
      %1122 = vmatprep.subr.bf16.mxu0 0
      %1123 = vmatpush2.bf16.xpose.msra.mxu0 0
      %1124 = vmatprep.subr.bf16.mxu0 0
      %1125 = vmatpush2.bf16.xpose.msra.mxu0 0
      %1126 = vmatprep.subr.bf16.mxu0 0
      %1127 = vmatpush2.bf16.xpose.msra.mxu0 0
      %1128 = vmatprep.mubr.bf16.mxu0 0
      %1129 = vmatmul.mubr.bf16.gmra.mxu0 %v1091
      %v1130 = vpop.f32.mrf.mxu0
      %v1131 = vadd.f32 0.0, %v1130
      %v1132 = vpop.f32.mrf.mxu0
      %v1133 = vpop.f32.mrf.mxu0
      %v1134 = vadd.f32 0.0, %v1133
      %v1135 = vpop.f32.mrf.mxu0
      %1136 = vdwg.mxu0
      %v1137 = vsel %vm1014, %v1131, -inf
      %1138 = vmax.xlane.f32.xlu0 %v1137
      %v1139 = vpop.xlane.xlu0 %1138
      %v1140 = vsel %vm1014, %v1134, -inf
      %1141 = vmax.xlane.f32.xlu0 %v1140
      %v1142 = vpop.xlane.xlu0 %1141
      %v1143 = vsub.f32 %v1131, %v1139
      %v1144 = vsub.f32 %v1134, %v1142
      %v1145 = vmul.f32 %v1143, 1.442695
      %v1146 = vpow.pop %v1145
      %v1147 = vmul.f32 %v1144, 1.442695
      %v1148 = vpow.pop %v1147
      %v1149 = vsel %vm1014, %v1146, 0.0
      %1150 = vadd.xlane.f32.xlu0 %v1149
      %v1151 = vpop.xlane.xlu0 %1150
      %v1152 = vsel %vm1014, %v1148, 0.0
      %1153 = vadd.xlane.f32.xlu0 %v1152
      %v1154 = vpop.xlane.xlu0 %1153
      %v1155 = vrcp.pop %v1151
      %v1156 = vrcp.pop %v1154
      %v1157 = vmul.f32 %v1146, %v1155
      %v1158 = vmul.f32 %v1148, %v1156
      %v1159 = vpack.c.bf16 %v1158, %v1157
      %1161 = vrot.lane.b32.xlu0 %v1038, 64
      %v1162 = vpop.permute.xlu0 %1161
      %v1165 = vsel %vm1014, %v1159, 0
      %1167 = vmatprep.subr.bf16.mxu0 0
      %1168 = vmatpush1.bf16.msra.mxu0 0
      %1169 = vmatprep.subr.bf16.mxu0 0
      %1170 = vmatpush1.bf16.msra.mxu0 0
      %1171 = vmatprep.subr.bf16.mxu0 0
      %1172 = vmatpush1.bf16.msra.mxu0 0
      %1173 = vmatprep.subr.bf16.mxu0 0
      %1174 = vmatpush1.bf16.msra.mxu0 0
      %1175 = vmatprep.subr.bf16.mxu0 0
      %1176 = vmatpush1.bf16.msra.mxu0 0
      %1177 = vmatprep.subr.bf16.mxu0 0
      %1178 = vmatpush1.bf16.msra.mxu0 0
      %1179 = vmatprep.subr.bf16.mxu0 0
      %1180 = vmatpush1.bf16.msra.mxu0 0
      %1181 = vmatprep.subr.bf16.mxu0 0
      %1182 = vmatpush1.bf16.msra.mxu0 %v1162
      %1183 = vmatprep.subr.bf16.mxu0 0
      %1184 = vmatpush2.bf16.msra.mxu0 0
      %1185 = vmatprep.subr.bf16.mxu0 0
      %1186 = vmatpush2.bf16.msra.mxu0 0
      %1187 = vmatprep.subr.bf16.mxu0 0
      %1188 = vmatpush2.bf16.msra.mxu0 0
      %1189 = vmatprep.subr.bf16.mxu0 0
      %1190 = vmatpush2.bf16.msra.mxu0 0
      %1191 = vmatprep.subr.bf16.mxu0 0
      %1192 = vmatpush2.bf16.msra.mxu0 0
      %1193 = vmatprep.subr.bf16.mxu0 0
      %1194 = vmatpush2.bf16.msra.mxu0 0
      %1195 = vmatprep.subr.bf16.mxu0 0
      %1196 = vmatpush2.bf16.msra.mxu0 0
      %1197 = vmatprep.subr.bf16.mxu0 0
      %1198 = vmatpush2.bf16.msra.mxu0 0
      %1199 = vmatprep.mubr.bf16.mxu0 0
      %1200 = vmatmul.mubr.bf16.gmra.mxu0 %v1165
      %v1201 = vpop.f32.mrf.mxu0
      %v1202 = vadd.f32 0.0, %v1201
      %v1203 = vpop.f32.mrf.mxu0
      %v1204 = vpop.f32.mrf.mxu0
      %v1205 = vadd.f32 0.0, %v1204
      %v1206 = vpop.f32.mrf.mxu0
      %1207 = vdwg.mxu0
      %v1208 = vpack.c.bf16 %v1205, %v1202
      %v1217 = vunpack.c.l.b16 %v956
      %v1218 = vunpack.c.l.b16 %v957
      %v1219 = vunpack.c.l.b16 %v958
      %v1220 = vunpack.c.l.b16 %v959
      %v1221 = vunpack.c.l.b16 %v960
      %v1222 = vunpack.c.l.b16 %v961
      %v1223 = vunpack.c.l.b16 %v962
      %v1224 = vunpack.c.l.b16 %v963
      %v1225 = vpack.c.b16 %v1218, %v1217
      %v1226 = vpack.c.b16 %v1220, %v1219
      %v1227 = vpack.c.b16 %v1222, %v1221
      %v1228 = vpack.c.b16 %v1224, %v1223
      %v1234 = vsel %vm966, %v1208, 0
      %1236 = vmatprep.subr.bf16.mxu0 0
      %1237 = vmatpush1.bf16.msra.mxu0 0
      %1238 = vmatprep.subr.bf16.mxu0 0
      %1239 = vmatpush1.bf16.msra.mxu0 0
      %1240 = vmatprep.subr.bf16.mxu0 0
      %1241 = vmatpush1.bf16.msra.mxu0 0
      %1242 = vmatprep.subr.bf16.mxu0 0
      %1243 = vmatpush1.bf16.msra.mxu0 0
      %1244 = vmatprep.subr.bf16.mxu0 0
      %1245 = vmatpush1.bf16.msra.mxu0 %v1228
      %1246 = vmatprep.subr.bf16.mxu0 0
      %1247 = vmatpush1.bf16.msra.mxu0 %v1227
      %1248 = vmatprep.subr.bf16.mxu0 0
      %1249 = vmatpush1.bf16.msra.mxu0 %v1226
      %1250 = vmatprep.subr.bf16.mxu0 0
      %1251 = vmatpush1.bf16.msra.mxu0 %v1225
      %1252 = vmatprep.subr.bf16.mxu0 0
      %1253 = vmatpush2.bf16.msra.mxu0 0
      %1254 = vmatprep.subr.bf16.mxu0 0
      %1255 = vmatpush2.bf16.msra.mxu0 0
      %1256 = vmatprep.subr.bf16.mxu0 0
      %1257 = vmatpush2.bf16.msra.mxu0 0
      %1258 = vmatprep.subr.bf16.mxu0 0
      %1259 = vmatpush2.bf16.msra.mxu0 0
      %1260 = vmatprep.subr.bf16.mxu0 0
      %1261 = vmatpush2.bf16.msra.mxu0 0
      %1262 = vmatprep.subr.bf16.mxu0 0
      %1263 = vmatpush2.bf16.msra.mxu0 0
      %1264 = vmatprep.subr.bf16.mxu0 0
      %1265 = vmatpush2.bf16.msra.mxu0 0
      %1266 = vmatprep.subr.bf16.mxu0 0
      %1267 = vmatpush2.bf16.msra.mxu0 0
      %1268 = vmatprep.mubr.bf16.mxu0 0
      %1269 = vmatmul.mubr.bf16.gmra.mxu0 %v1234
      %v1270 = vpop.f32.mrf.mxu0
      %v1271 = vadd.f32 0.0, %v1270
      %v1272 = vpop.f32.mrf.mxu0
      %v1273 = vpop.f32.mrf.mxu0
      %v1274 = vadd.f32 0.0, %v1273
      %v1275 = vpop.f32.mrf.mxu0
      %1276 = vdwg.mxu0
      %v1285 = vunpack.c.l.b16 %v948
      %v1286 = vunpack.c.l.b16 %v949
      %v1287 = vunpack.c.l.b16 %v950
      %v1288 = vunpack.c.l.b16 %v951
      %v1289 = vunpack.c.l.b16 %v952
      %v1290 = vunpack.c.l.b16 %v953
      %v1291 = vunpack.c.l.b16 %v954
      %v1292 = vunpack.c.l.b16 %v955
      %v1293 = vpack.c.b16 %v1286, %v1285
      %v1294 = vpack.c.b16 %v1288, %v1287
      %v1295 = vpack.c.b16 %v1290, %v1289
      %v1296 = vpack.c.b16 %v1292, %v1291
      %v1302 = vsel %vm966, %v1083, 0
      %1304 = vmatprep.subr.bf16.mxu0 0
      %1305 = vmatpush1.bf16.msra.mxu0 0
      %1306 = vmatprep.subr.bf16.mxu0 0
      %1307 = vmatpush1.bf16.msra.mxu0 0
      %1308 = vmatprep.subr.bf16.mxu0 0
      %1309 = vmatpush1.bf16.msra.mxu0 0
      %1310 = vmatprep.subr.bf16.mxu0 0
      %1311 = vmatpush1.bf16.msra.mxu0 0
      %1312 = vmatprep.subr.bf16.mxu0 0
      %1313 = vmatpush1.bf16.msra.mxu0 %v1296
      %1314 = vmatprep.subr.bf16.mxu0 0
      %1315 = vmatpush1.bf16.msra.mxu0 %v1295
      %1316 = vmatprep.subr.bf16.mxu0 0
      %1317 = vmatpush1.bf16.msra.mxu0 %v1294
      %1318 = vmatprep.subr.bf16.mxu0 0
      %1319 = vmatpush1.bf16.msra.mxu0 %v1293
      %1320 = vmatprep.subr.bf16.mxu0 0
      %1321 = vmatpush2.bf16.msra.mxu0 0
      %1322 = vmatprep.subr.bf16.mxu0 0
      %1323 = vmatpush2.bf16.msra.mxu0 0
      %1324 = vmatprep.subr.bf16.mxu0 0
      %1325 = vmatpush2.bf16.msra.mxu0 0
      %1326 = vmatprep.subr.bf16.mxu0 0
      %1327 = vmatpush2.bf16.msra.mxu0 0
      %1328 = vmatprep.subr.bf16.mxu0 0
      %1329 = vmatpush2.bf16.msra.mxu0 0
      %1330 = vmatprep.subr.bf16.mxu0 0
      %1331 = vmatpush2.bf16.msra.mxu0 0
      %1332 = vmatprep.subr.bf16.mxu0 0
      %1333 = vmatpush2.bf16.msra.mxu0 0
      %1334 = vmatprep.subr.bf16.mxu0 0
      %1335 = vmatpush2.bf16.msra.mxu0 0
      %1336 = vmatprep.mubr.bf16.mxu0 0
      %1337 = vmatmul.mubr.bf16.gmra.mxu0 %v1302
      %v1338 = vpop.f32.mrf.mxu0
      %v1339 = vadd.f32 %v1271, %v1338
      %v1340 = vpop.f32.mrf.mxu0
      %v1341 = vpop.f32.mrf.mxu0
      %v1342 = vadd.f32 %v1274, %v1341
      %v1343 = vpop.f32.mrf.mxu0
      %1344 = vdwg.mxu0
      %v1345 = vadd.f32 %v558, %v1339
      %v1346 = vadd.f32 %v559, %v1342
      %v1347 = vld [vmem:[%s8] sm:$0x1]
      %v1349 = vlaneseq
      %v1350 = vshrl.u32 %v1349, 7
      %v1351 = vsub.s32 0, %v1350
      %v1352 = vrot.slane %v1347, %v1351
      %v1354 = vadd.f32 %v1345, %v1352
      %v1355 = vadd.f32 %v1346, %v1352
      %v1356 = vld [vmem:[%s9] sm:$0x1]
      %v1357 = vld [vmem:[%s10] sm:$0x1]
      %1358 = vadd.xlane.f32.xlu0 %v1354
      %v1359 = vpop.xlane.xlu0 %1358
      %1360 = vadd.xlane.f32.xlu0 %v1355
      %v1361 = vpop.xlane.xlu0 %1360
      %v1362 = vmul.f32 %v1359, %v570
      %v1363 = vmul.f32 %v1361, %v570
      %v1364 = vsub.f32 %v1354, %v1362
      %v1365 = vsub.f32 %v1355, %v1363
      %v1366 = vmul.f32 %v1364, %v1364
      %v1367 = vmul.f32 %v1365, %v1365
      %1368 = vadd.xlane.f32.xlu0 %v1366
      %v1369 = vpop.xlane.xlu0 %1368
      %1370 = vadd.xlane.f32.xlu0 %v1367
      %v1371 = vpop.xlane.xlu0 %1370
      %v1372 = vmul.f32 %v1369, %v570
      %v1373 = vmul.f32 %v1371, %v570
      %v1374 = vadd.f32 %v1372, 1e-05
      %v1375 = vadd.f32 %v1373, 1e-05
      %v1376 = vrsqrt.pop %v1374
      %v1377 = vrsqrt.pop %v1375
      %v1378 = vmul.f32 %v1364, %v1376
      %v1379 = vmul.f32 %v1365, %v1377
      %v1381 = vlaneseq
      %v1382 = vshrl.u32 %v1381, 7
      %v1383 = vsub.s32 0, %v1382
      %v1384 = vrot.slane %v1356, %v1383
      %v1386 = vmul.f32 %v1378, %v1384
      %v1387 = vmul.f32 %v1379, %v1384
      %v1389 = vlaneseq
      %v1390 = vshrl.u32 %v1389, 7
      %v1391 = vsub.s32 0, %v1390
      %v1392 = vrot.slane %v1357, %v1391
      %v1394 = vadd.f32 %v1386, %v1392
      %v1395 = vadd.f32 %v1387, %v1392
      %v1396 = vpack.c.bf16 %v1395, %v1394
      %v1397 = vld [vmem:[%s11] sm:$0xff]
      %v1398 = vld [vmem:[%s11 + $0x8] sm:$0xff]
      %v1399 = vld [vmem:[%s11 + $0x10] sm:$0xff]
      %v1400 = vld [vmem:[%s11 + $0x18] sm:$0xff]
      %v1401 = vld [vmem:[%s11 + $0x20] sm:$0xff]
      %v1402 = vld [vmem:[%s11 + $0x28] sm:$0xff]
      %v1403 = vld [vmem:[%s11 + $0x30] sm:$0xff]
      %v1404 = vld [vmem:[%s11 + $0x38] sm:$0xff]
      %v1405 = vld [vmem:[%s11 + $0x40] sm:$0xff]
      %v1406 = vld [vmem:[%s11 + $0x48] sm:$0xff]
      %v1407 = vld [vmem:[%s11 + $0x50] sm:$0xff]
      %v1408 = vld [vmem:[%s11 + $0x58] sm:$0xff]
      %v1409 = vld [vmem:[%s11 + $0x60] sm:$0xff]
      %v1410 = vld [vmem:[%s11 + $0x68] sm:$0xff]
      %v1411 = vld [vmem:[%s11 + $0x70] sm:$0xff]
      %v1412 = vld [vmem:[%s11 + $0x78] sm:$0xff]
      %v1413 = vld [vmem:[%s11 + $0x80] sm:$0xff]
      %v1414 = vld [vmem:[%s11 + $0x88] sm:$0xff]
      %v1415 = vld [vmem:[%s11 + $0x90] sm:$0xff]
      %v1416 = vld [vmem:[%s11 + $0x98] sm:$0xff]
      %v1417 = vld [vmem:[%s11 + $0xa0] sm:$0xff]
      %v1418 = vld [vmem:[%s11 + $0xa8] sm:$0xff]
      %v1419 = vld [vmem:[%s11 + $0xb0] sm:$0xff]
      %v1420 = vld [vmem:[%s11 + $0xb8] sm:$0xff]
      %v1421 = vld [vmem:[%s11 + $0xc0] sm:$0xff]
      %v1422 = vld [vmem:[%s11 + $0xc8] sm:$0xff]
      %v1423 = vld [vmem:[%s11 + $0xd0] sm:$0xff]
      %v1424 = vld [vmem:[%s11 + $0xd8] sm:$0xff]
      %v1425 = vld [vmem:[%s11 + $0xe0] sm:$0xff]
      %v1426 = vld [vmem:[%s11 + $0xe8] sm:$0xff]
      %v1427 = vld [vmem:[%s11 + $0xf0] sm:$0xff]
      %v1428 = vld [vmem:[%s11 + $0xf8] sm:$0xff]
      %v1429 = vld [vmem:[%s12] sm:$0xf]
      %v1431 = vlaneseq
      %v1432 = vshrl.u32 %v1431, 7
      %v1433 = vsub.s32 0, %v1432
      %v1434 = vrot.slane %v1429, %v1433
      %v1435 = vlaneseq
      %v1436 = vshrl.u32 %v1435, 7
      %v1437 = vsub.s32 1, %v1436
      %v1438 = vrot.slane %v1429, %v1437
      %v1439 = vlaneseq
      %v1440 = vshrl.u32 %v1439, 7
      %v1441 = vsub.s32 2, %v1440
      %v1442 = vrot.slane %v1429, %v1441
      %v1443 = vlaneseq
      %v1444 = vshrl.u32 %v1443, 7
      %v1445 = vsub.s32 3, %v1444
      %v1446 = vrot.slane %v1429, %v1445
      %v1483 = vunpack.c.l.b16 %v1397
      %v1484 = vunpack.c.h.b16 %v1397
      %v1485 = vunpack.c.l.b16 %v1398
      %v1486 = vunpack.c.h.b16 %v1398
      %v1487 = vunpack.c.l.b16 %v1399
      %v1488 = vunpack.c.h.b16 %v1399
      %v1489 = vunpack.c.l.b16 %v1400
      %v1490 = vunpack.c.h.b16 %v1400
      %v1491 = vunpack.c.l.b16 %v1401
      %v1492 = vunpack.c.h.b16 %v1401
      %v1493 = vunpack.c.l.b16 %v1402
      %v1494 = vunpack.c.h.b16 %v1402
      %v1495 = vunpack.c.l.b16 %v1403
      %v1496 = vunpack.c.h.b16 %v1403
      %v1497 = vunpack.c.l.b16 %v1404
      %v1498 = vunpack.c.h.b16 %v1404
      %v1499 = vunpack.c.l.b16 %v1405
      %v1500 = vunpack.c.h.b16 %v1405
      %v1501 = vunpack.c.l.b16 %v1406
      %v1502 = vunpack.c.h.b16 %v1406
      %v1503 = vunpack.c.l.b16 %v1407
      %v1504 = vunpack.c.h.b16 %v1407
      %v1505 = vunpack.c.l.b16 %v1408
      %v1506 = vunpack.c.h.b16 %v1408
      %v1507 = vunpack.c.l.b16 %v1409
      %v1508 = vunpack.c.h.b16 %v1409
      %v1509 = vunpack.c.l.b16 %v1410
      %v1510 = vunpack.c.h.b16 %v1410
      %v1511 = vunpack.c.l.b16 %v1411
      %v1512 = vunpack.c.h.b16 %v1411
      %v1513 = vunpack.c.l.b16 %v1412
      %v1514 = vunpack.c.h.b16 %v1412
      %v1515 = vunpack.c.l.b16 %v1413
      %v1516 = vunpack.c.h.b16 %v1413
      %v1517 = vunpack.c.l.b16 %v1414
      %v1518 = vunpack.c.h.b16 %v1414
      %v1519 = vunpack.c.l.b16 %v1415
      %v1520 = vunpack.c.h.b16 %v1415
      %v1521 = vunpack.c.l.b16 %v1416
      %v1522 = vunpack.c.h.b16 %v1416
      %v1523 = vunpack.c.l.b16 %v1417
      %v1524 = vunpack.c.h.b16 %v1417
      %v1525 = vunpack.c.l.b16 %v1418
      %v1526 = vunpack.c.h.b16 %v1418
      %v1527 = vunpack.c.l.b16 %v1419
      %v1528 = vunpack.c.h.b16 %v1419
      %v1529 = vunpack.c.l.b16 %v1420
      %v1530 = vunpack.c.h.b16 %v1420
      %v1531 = vunpack.c.l.b16 %v1421
      %v1532 = vunpack.c.h.b16 %v1421
      %v1533 = vunpack.c.l.b16 %v1422
      %v1534 = vunpack.c.h.b16 %v1422
      %v1535 = vunpack.c.l.b16 %v1423
      %v1536 = vunpack.c.h.b16 %v1423
      %v1537 = vunpack.c.l.b16 %v1424
      %v1538 = vunpack.c.h.b16 %v1424
      %v1539 = vunpack.c.l.b16 %v1425
      %v1540 = vunpack.c.h.b16 %v1425
      %v1541 = vunpack.c.l.b16 %v1426
      %v1542 = vunpack.c.h.b16 %v1426
      %v1543 = vunpack.c.l.b16 %v1427
      %v1544 = vunpack.c.h.b16 %v1427
      %v1545 = vunpack.c.l.b16 %v1428
      %v1546 = vunpack.c.h.b16 %v1428
      %v1547 = vpack.c.b16 %v1487, %v1483
      %v1548 = vpack.c.b16 %v1488, %v1484
      %v1549 = vpack.c.b16 %v1489, %v1485
      %v1550 = vpack.c.b16 %v1490, %v1486
      %v1551 = vpack.c.b16 %v1495, %v1491
      %v1552 = vpack.c.b16 %v1496, %v1492
      %v1553 = vpack.c.b16 %v1497, %v1493
      %v1554 = vpack.c.b16 %v1498, %v1494
      %v1555 = vpack.c.b16 %v1503, %v1499
      %v1556 = vpack.c.b16 %v1504, %v1500
      %v1557 = vpack.c.b16 %v1505, %v1501
      %v1558 = vpack.c.b16 %v1506, %v1502
      %v1559 = vpack.c.b16 %v1511, %v1507
      %v1560 = vpack.c.b16 %v1512, %v1508
      %v1561 = vpack.c.b16 %v1513, %v1509
      %v1562 = vpack.c.b16 %v1514, %v1510
      %v1563 = vpack.c.b16 %v1519, %v1515
      %v1564 = vpack.c.b16 %v1520, %v1516
      %v1565 = vpack.c.b16 %v1521, %v1517
      %v1566 = vpack.c.b16 %v1522, %v1518
      %v1567 = vpack.c.b16 %v1527, %v1523
      %v1568 = vpack.c.b16 %v1528, %v1524
      %v1569 = vpack.c.b16 %v1529, %v1525
      %v1570 = vpack.c.b16 %v1530, %v1526
      %v1571 = vpack.c.b16 %v1535, %v1531
      %v1572 = vpack.c.b16 %v1536, %v1532
      %v1573 = vpack.c.b16 %v1537, %v1533
      %v1574 = vpack.c.b16 %v1538, %v1534
      %v1575 = vpack.c.b16 %v1543, %v1539
      %v1576 = vpack.c.b16 %v1544, %v1540
      %v1577 = vpack.c.b16 %v1545, %v1541
      %v1578 = vpack.c.b16 %v1546, %v1542
      %1611 = vmatprep.subr.bf16.mxu0 %v1576
      %1612 = vmatpush1.bf16.msra.mxu0 %v1575
      %1613 = vmatprep.subr.bf16.mxu0 %v1572
      %1614 = vmatpush1.bf16.msra.mxu0 %v1571
      %1615 = vmatprep.subr.bf16.mxu0 %v1568
      %1616 = vmatpush1.bf16.msra.mxu0 %v1567
      %1617 = vmatprep.subr.bf16.mxu0 %v1564
      %1618 = vmatpush1.bf16.msra.mxu0 %v1563
      %1619 = vmatprep.subr.bf16.mxu0 %v1560
      %1620 = vmatpush1.bf16.msra.mxu0 %v1559
      %1621 = vmatprep.subr.bf16.mxu0 %v1556
      %1622 = vmatpush1.bf16.msra.mxu0 %v1555
      %1623 = vmatprep.subr.bf16.mxu0 %v1552
      %1624 = vmatpush1.bf16.msra.mxu0 %v1551
      %1625 = vmatprep.subr.bf16.mxu0 %v1548
      %1626 = vmatpush1.bf16.msra.mxu0 %v1547
      %1627 = vmatprep.subr.bf16.mxu0 0
      %1628 = vmatpush2.bf16.msra.mxu0 0
      %1629 = vmatprep.subr.bf16.mxu0 0
      %1630 = vmatpush2.bf16.msra.mxu0 0
      %1631 = vmatprep.subr.bf16.mxu0 0
      %1632 = vmatpush2.bf16.msra.mxu0 0
      %1633 = vmatprep.subr.bf16.mxu0 0
      %1634 = vmatpush2.bf16.msra.mxu0 0
      %1635 = vmatprep.subr.bf16.mxu0 0
      %1636 = vmatpush2.bf16.msra.mxu0 0
      %1637 = vmatprep.subr.bf16.mxu0 0
      %1638 = vmatpush2.bf16.msra.mxu0 0
      %1639 = vmatprep.subr.bf16.mxu0 0
      %1640 = vmatpush2.bf16.msra.mxu0 0
      %1641 = vmatprep.subr.bf16.mxu0 0
      %1642 = vmatpush2.bf16.msra.mxu0 0
      %1643 = vmatprep.mubr.bf16.mxu0 0
      %1644 = vmatmul.mubr.bf16.gmra.mxu0 %v1396
      %v1645 = vpop.f32.mrf.mxu0
      %v1646 = vadd.f32 %v1434, %v1645
      %v1647 = vpop.f32.mrf.mxu0
      %v1648 = vadd.f32 %v1438, %v1647
      %v1649 = vpop.f32.mrf.mxu0
      %v1650 = vadd.f32 %v1434, %v1649
      %v1651 = vpop.f32.mrf.mxu0
      %v1652 = vadd.f32 %v1438, %v1651
      %1653 = vdwg.mxu0
      %1654 = vmatprep.subr.bf16.mxu0 %v1578
      %1655 = vmatpush1.bf16.msra.mxu0 %v1577
      %1656 = vmatprep.subr.bf16.mxu0 %v1574
      %1657 = vmatpush1.bf16.msra.mxu0 %v1573
      %1658 = vmatprep.subr.bf16.mxu0 %v1570
      %1659 = vmatpush1.bf16.msra.mxu0 %v1569
      %1660 = vmatprep.subr.bf16.mxu0 %v1566
      %1661 = vmatpush1.bf16.msra.mxu0 %v1565
      %1662 = vmatprep.subr.bf16.mxu0 %v1562
      %1663 = vmatpush1.bf16.msra.mxu0 %v1561
      %1664 = vmatprep.subr.bf16.mxu0 %v1558
      %1665 = vmatpush1.bf16.msra.mxu0 %v1557
      %1666 = vmatprep.subr.bf16.mxu0 %v1554
      %1667 = vmatpush1.bf16.msra.mxu0 %v1553
      %1668 = vmatprep.subr.bf16.mxu0 %v1550
      %1669 = vmatpush1.bf16.msra.mxu0 %v1549
      %1670 = vmatprep.subr.bf16.mxu0 0
      %1671 = vmatpush2.bf16.msra.mxu0 0
      %1672 = vmatprep.subr.bf16.mxu0 0
      %1673 = vmatpush2.bf16.msra.mxu0 0
      %1674 = vmatprep.subr.bf16.mxu0 0
      %1675 = vmatpush2.bf16.msra.mxu0 0
      %1676 = vmatprep.subr.bf16.mxu0 0
      %1677 = vmatpush2.bf16.msra.mxu0 0
      %1678 = vmatprep.subr.bf16.mxu0 0
      %1679 = vmatpush2.bf16.msra.mxu0 0
      %1680 = vmatprep.subr.bf16.mxu0 0
      %1681 = vmatpush2.bf16.msra.mxu0 0
      %1682 = vmatprep.subr.bf16.mxu0 0
      %1683 = vmatpush2.bf16.msra.mxu0 0
      %1684 = vmatprep.subr.bf16.mxu0 0
      %1685 = vmatpush2.bf16.msra.mxu0 0
      %1686 = vmatprep.mubr.bf16.mxu0 0
      %1687 = vmatmul.mubr.bf16.gmra.mxu0 %v1396
      %v1688 = vpop.f32.mrf.mxu0
      %v1689 = vadd.f32 %v1442, %v1688
      %v1690 = vpop.f32.mrf.mxu0
      %v1691 = vadd.f32 %v1446, %v1690
      %v1692 = vpop.f32.mrf.mxu0
      %v1693 = vadd.f32 %v1442, %v1692
      %v1694 = vpop.f32.mrf.mxu0
      %v1695 = vadd.f32 %v1446, %v1694
      %1696 = vdwg.mxu0
      %v1697 = vmul.f32 %v1646, %v1646
      %v1698 = vmul.f32 %v1648, %v1648
      %v1699 = vmul.f32 %v1689, %v1689
      %v1700 = vmul.f32 %v1691, %v1691
      %v1701 = vmul.f32 %v1650, %v1650
      %v1702 = vmul.f32 %v1652, %v1652
      %v1703 = vmul.f32 %v1693, %v1693
      %v1704 = vmul.f32 %v1695, %v1695
      %v1705 = vmul.f32 %v1646, %v1697
      %v1706 = vmul.f32 %v1648, %v1698
      %v1707 = vmul.f32 %v1689, %v1699
      %v1708 = vmul.f32 %v1691, %v1700
      %v1709 = vmul.f32 %v1650, %v1701
      %v1710 = vmul.f32 %v1652, %v1702
      %v1711 = vmul.f32 %v1693, %v1703
      %v1712 = vmul.f32 %v1695, %v1704
      %v1713 = vmul.f32 %v1705, 0.044715
      %v1714 = vmul.f32 %v1706, 0.044715
      %v1715 = vmul.f32 %v1707, 0.044715
      %v1716 = vmul.f32 %v1708, 0.044715
      %v1717 = vmul.f32 %v1709, 0.044715
      %v1718 = vmul.f32 %v1710, 0.044715
      %v1719 = vmul.f32 %v1711, 0.044715
      %v1720 = vmul.f32 %v1712, 0.044715
      %v1721 = vadd.f32 %v1646, %v1713
      %v1722 = vadd.f32 %v1648, %v1714
      %v1723 = vadd.f32 %v1689, %v1715
      %v1724 = vadd.f32 %v1691, %v1716
      %v1725 = vadd.f32 %v1650, %v1717
      %v1726 = vadd.f32 %v1652, %v1718
      %v1727 = vadd.f32 %v1693, %v1719
      %v1728 = vadd.f32 %v1695, %v1720
      %v1729 = vmul.f32 %v1721, 0.7978846
      %v1730 = vmul.f32 %v1722, 0.7978846
      %v1731 = vmul.f32 %v1723, 0.7978846
      %v1732 = vmul.f32 %v1724, 0.7978846
      %v1733 = vmul.f32 %v1725, 0.7978846
      %v1734 = vmul.f32 %v1726, 0.7978846
      %v1735 = vmul.f32 %v1727, 0.7978846
      %v1736 = vmul.f32 %v1728, 0.7978846
      %v1737 = vtanh.pop %v1729
      %v1738 = vtanh.pop %v1730
      %v1739 = vtanh.pop %v1731
      %v1740 = vtanh.pop %v1732
      %v1741 = vtanh.pop %v1733
      %v1742 = vtanh.pop %v1734
      %v1743 = vtanh.pop %v1735
      %v1744 = vtanh.pop %v1736
      %v1745 = vadd.f32 %v1737, 1.0
      %v1746 = vadd.f32 %v1738, 1.0
      %v1747 = vadd.f32 %v1739, 1.0
      %v1748 = vadd.f32 %v1740, 1.0
      %v1749 = vadd.f32 %v1741, 1.0
      %v1750 = vadd.f32 %v1742, 1.0
      %v1751 = vadd.f32 %v1743, 1.0
      %v1752 = vadd.f32 %v1744, 1.0
      %v1753 = vmul.f32 %v1745, 0.5
      %v1754 = vmul.f32 %v1746, 0.5
      %v1755 = vmul.f32 %v1747, 0.5
      %v1756 = vmul.f32 %v1748, 0.5
      %v1757 = vmul.f32 %v1749, 0.5
      %v1758 = vmul.f32 %v1750, 0.5
      %v1759 = vmul.f32 %v1751, 0.5
      %v1760 = vmul.f32 %v1752, 0.5
      %v1761 = vmul.f32 %v1646, %v1753
      %v1762 = vmul.f32 %v1648, %v1754
      %v1763 = vmul.f32 %v1689, %v1755
      %v1764 = vmul.f32 %v1691, %v1756
      %v1765 = vmul.f32 %v1650, %v1757
      %v1766 = vmul.f32 %v1652, %v1758
      %v1767 = vmul.f32 %v1693, %v1759
      %v1768 = vmul.f32 %v1695, %v1760
      %v1769 = vpack.c.bf16 %v1765, %v1761
      %v1770 = vpack.c.bf16 %v1766, %v1762
      %v1771 = vpack.c.bf16 %v1767, %v1763
      %v1772 = vpack.c.bf16 %v1768, %v1764
      %v1773 = vld [vmem:[%s13] sm:$0xf]
      %v1774 = vld [vmem:[%s13 + $0x4] sm:$0xf]
      %v1775 = vld [vmem:[%s13 + $0x8] sm:$0xf]
      %v1776 = vld [vmem:[%s13 + $0xc] sm:$0xf]
      %v1777 = vld [vmem:[%s13 + $0x10] sm:$0xf]
      %v1778 = vld [vmem:[%s13 + $0x14] sm:$0xf]
      %v1779 = vld [vmem:[%s13 + $0x18] sm:$0xf]
      %v1780 = vld [vmem:[%s13 + $0x1c] sm:$0xf]
      %v1781 = vld [vmem:[%s13 + $0x20] sm:$0xf]
      %v1782 = vld [vmem:[%s13 + $0x24] sm:$0xf]
      %v1783 = vld [vmem:[%s13 + $0x28] sm:$0xf]
      %v1784 = vld [vmem:[%s13 + $0x2c] sm:$0xf]
      %v1785 = vld [vmem:[%s13 + $0x30] sm:$0xf]
      %v1786 = vld [vmem:[%s13 + $0x34] sm:$0xf]
      %v1787 = vld [vmem:[%s13 + $0x38] sm:$0xf]
      %v1788 = vld [vmem:[%s13 + $0x3c] sm:$0xf]
      %v1789 = vld [vmem:[%s13 + $0x40] sm:$0xf]
      %v1790 = vld [vmem:[%s13 + $0x44] sm:$0xf]
      %v1791 = vld [vmem:[%s13 + $0x48] sm:$0xf]
      %v1792 = vld [vmem:[%s13 + $0x4c] sm:$0xf]
      %v1793 = vld [vmem:[%s13 + $0x50] sm:$0xf]
      %v1794 = vld [vmem:[%s13 + $0x54] sm:$0xf]
      %v1795 = vld [vmem:[%s13 + $0x58] sm:$0xf]
      %v1796 = vld [vmem:[%s13 + $0x5c] sm:$0xf]
      %v1797 = vld [vmem:[%s13 + $0x60] sm:$0xf]
      %v1798 = vld [vmem:[%s13 + $0x64] sm:$0xf]
      %v1799 = vld [vmem:[%s13 + $0x68] sm:$0xf]
      %v1800 = vld [vmem:[%s13 + $0x6c] sm:$0xf]
      %v1801 = vld [vmem:[%s13 + $0x70] sm:$0xf]
      %v1802 = vld [vmem:[%s13 + $0x74] sm:$0xf]
      %v1803 = vld [vmem:[%s13 + $0x78] sm:$0xf]
      %v1804 = vld [vmem:[%s13 + $0x7c] sm:$0xf]
      %v1805 = vld [vmem:[%s13 + $0x80] sm:$0xf]
      %v1806 = vld [vmem:[%s13 + $0x84] sm:$0xf]
      %v1807 = vld [vmem:[%s13 + $0x88] sm:$0xf]
      %v1808 = vld [vmem:[%s13 + $0x8c] sm:$0xf]
      %v1809 = vld [vmem:[%s13 + $0x90] sm:$0xf]
      %v1810 = vld [vmem:[%s13 + $0x94] sm:$0xf]
      %v1811 = vld [vmem:[%s13 + $0x98] sm:$0xf]
      %v1812 = vld [vmem:[%s13 + $0x9c] sm:$0xf]
      %v1813 = vld [vmem:[%s13 + $0xa0] sm:$0xf]
      %v1814 = vld [vmem:[%s13 + $0xa4] sm:$0xf]
      %v1815 = vld [vmem:[%s13 + $0xa8] sm:$0xf]
      %v1816 = vld [vmem:[%s13 + $0xac] sm:$0xf]
      %v1817 = vld [vmem:[%s13 + $0xb0] sm:$0xf]
      %v1818 = vld [vmem:[%s13 + $0xb4] sm:$0xf]
      %v1819 = vld [vmem:[%s13 + $0xb8] sm:$0xf]
      %v1820 = vld [vmem:[%s13 + $0xbc] sm:$0xf]
      %v1821 = vld [vmem:[%s13 + $0xc0] sm:$0xf]
      %v1822 = vld [vmem:[%s13 + $0xc4] sm:$0xf]
      %v1823 = vld [vmem:[%s13 + $0xc8] sm:$0xf]
      %v1824 = vld [vmem:[%s13 + $0xcc] sm:$0xf]
      %v1825 = vld [vmem:[%s13 + $0xd0] sm:$0xf]
      %v1826 = vld [vmem:[%s13 + $0xd4] sm:$0xf]
      %v1827 = vld [vmem:[%s13 + $0xd8] sm:$0xf]
      %v1828 = vld [vmem:[%s13 + $0xdc] sm:$0xf]
      %v1829 = vld [vmem:[%s13 + $0xe0] sm:$0xf]
      %v1830 = vld [vmem:[%s13 + $0xe4] sm:$0xf]
      %v1831 = vld [vmem:[%s13 + $0xe8] sm:$0xf]
      %v1832 = vld [vmem:[%s13 + $0xec] sm:$0xf]
      %v1833 = vld [vmem:[%s13 + $0xf0] sm:$0xf]
      %v1834 = vld [vmem:[%s13 + $0xf4] sm:$0xf]
      %v1835 = vld [vmem:[%s13 + $0xf8] sm:$0xf]
      %v1836 = vld [vmem:[%s13 + $0xfc] sm:$0xf]
      %v1901 = vunpack.c.l.b16 %v1773
      %v1902 = vunpack.c.l.b16 %v1774
      %v1903 = vunpack.c.l.b16 %v1775
      %v1904 = vunpack.c.l.b16 %v1776
      %v1905 = vunpack.c.l.b16 %v1777
      %v1906 = vunpack.c.l.b16 %v1778
      %v1907 = vunpack.c.l.b16 %v1779
      %v1908 = vunpack.c.l.b16 %v1780
      %v1909 = vunpack.c.l.b16 %v1781
      %v1910 = vunpack.c.l.b16 %v1782
      %v1911 = vunpack.c.l.b16 %v1783
      %v1912 = vunpack.c.l.b16 %v1784
      %v1913 = vunpack.c.l.b16 %v1785
      %v1914 = vunpack.c.l.b16 %v1786
      %v1915 = vunpack.c.l.b16 %v1787
      %v1916 = vunpack.c.l.b16 %v1788
      %v1917 = vunpack.c.l.b16 %v1789
      %v1918 = vunpack.c.l.b16 %v1790
      %v1919 = vunpack.c.l.b16 %v1791
      %v1920 = vunpack.c.l.b16 %v1792
      %v1921 = vunpack.c.l.b16 %v1793
      %v1922 = vunpack.c.l.b16 %v1794
      %v1923 = vunpack.c.l.b16 %v1795
      %v1924 = vunpack.c.l.b16 %v1796
      %v1925 = vunpack.c.l.b16 %v1797
      %v1926 = vunpack.c.l.b16 %v1798
      %v1927 = vunpack.c.l.b16 %v1799
      %v1928 = vunpack.c.l.b16 %v1800
      %v1929 = vunpack.c.l.b16 %v1801
      %v1930 = vunpack.c.l.b16 %v1802
      %v1931 = vunpack.c.l.b16 %v1803
      %v1932 = vunpack.c.l.b16 %v1804
      %v1933 = vunpack.c.l.b16 %v1805
      %v1934 = vunpack.c.l.b16 %v1806
      %v1935 = vunpack.c.l.b16 %v1807
      %v1936 = vunpack.c.l.b16 %v1808
      %v1937 = vunpack.c.l.b16 %v1809
      %v1938 = vunpack.c.l.b16 %v1810
      %v1939 = vunpack.c.l.b16 %v1811
      %v1940 = vunpack.c.l.b16 %v1812
      %v1941 = vunpack.c.l.b16 %v1813
      %v1942 = vunpack.c.l.b16 %v1814
      %v1943 = vunpack.c.l.b16 %v1815
      %v1944 = vunpack.c.l.b16 %v1816
      %v1945 = vunpack.c.l.b16 %v1817
      %v1946 = vunpack.c.l.b16 %v1818
      %v1947 = vunpack.c.l.b16 %v1819
      %v1948 = vunpack.c.l.b16 %v1820
      %v1949 = vunpack.c.l.b16 %v1821
      %v1950 = vunpack.c.l.b16 %v1822
      %v1951 = vunpack.c.l.b16 %v1823
      %v1952 = vunpack.c.l.b16 %v1824
      %v1953 = vunpack.c.l.b16 %v1825
      %v1954 = vunpack.c.l.b16 %v1826
      %v1955 = vunpack.c.l.b16 %v1827
      %v1956 = vunpack.c.l.b16 %v1828
      %v1957 = vunpack.c.l.b16 %v1829
      %v1958 = vunpack.c.l.b16 %v1830
      %v1959 = vunpack.c.l.b16 %v1831
      %v1960 = vunpack.c.l.b16 %v1832
      %v1961 = vunpack.c.l.b16 %v1833
      %v1962 = vunpack.c.l.b16 %v1834
      %v1963 = vunpack.c.l.b16 %v1835
      %v1964 = vunpack.c.l.b16 %v1836
      %v1965 = vpack.c.b16 %v1902, %v1901
      %v1966 = vpack.c.b16 %v1904, %v1903
      %v1967 = vpack.c.b16 %v1906, %v1905
      %v1968 = vpack.c.b16 %v1908, %v1907
      %v1969 = vpack.c.b16 %v1910, %v1909
      %v1970 = vpack.c.b16 %v1912, %v1911
      %v1971 = vpack.c.b16 %v1914, %v1913
      %v1972 = vpack.c.b16 %v1916, %v1915
      %v1973 = vpack.c.b16 %v1918, %v1917
      %v1974 = vpack.c.b16 %v1920, %v1919
      %v1975 = vpack.c.b16 %v1922, %v1921
      %v1976 = vpack.c.b16 %v1924, %v1923
      %v1977 = vpack.c.b16 %v1926, %v1925
      %v1978 = vpack.c.b16 %v1928, %v1927
      %v1979 = vpack.c.b16 %v1930, %v1929
      %v1980 = vpack.c.b16 %v1932, %v1931
      %v1981 = vpack.c.b16 %v1934, %v1933
      %v1982 = vpack.c.b16 %v1936, %v1935
      %v1983 = vpack.c.b16 %v1938, %v1937
      %v1984 = vpack.c.b16 %v1940, %v1939
      %v1985 = vpack.c.b16 %v1942, %v1941
      %v1986 = vpack.c.b16 %v1944, %v1943
      %v1987 = vpack.c.b16 %v1946, %v1945
      %v1988 = vpack.c.b16 %v1948, %v1947
      %v1989 = vpack.c.b16 %v1950, %v1949
      %v1990 = vpack.c.b16 %v1952, %v1951
      %v1991 = vpack.c.b16 %v1954, %v1953
      %v1992 = vpack.c.b16 %v1956, %v1955
      %v1993 = vpack.c.b16 %v1958, %v1957
      %v1994 = vpack.c.b16 %v1960, %v1959
      %v1995 = vpack.c.b16 %v1962, %v1961
      %v1996 = vpack.c.b16 %v1964, %v1963
      %2029 = vmatprep.subr.bf16.mxu0 0
      %2030 = vmatpush1.bf16.msra.mxu0 %v1972
      %2031 = vmatprep.subr.bf16.mxu0 0
      %2032 = vmatpush1.bf16.msra.mxu0 %v1971
      %2033 = vmatprep.subr.bf16.mxu0 0
      %2034 = vmatpush1.bf16.msra.mxu0 %v1970
      %2035 = vmatprep.subr.bf16.mxu0 0
      %2036 = vmatpush1.bf16.msra.mxu0 %v1969
      %2037 = vmatprep.subr.bf16.mxu0 0
      %2038 = vmatpush1.bf16.msra.mxu0 %v1968
      %2039 = vmatprep.subr.bf16.mxu0 0
      %2040 = vmatpush1.bf16.msra.mxu0 %v1967
      %2041 = vmatprep.subr.bf16.mxu0 0
      %2042 = vmatpush1.bf16.msra.mxu0 %v1966
      %2043 = vmatprep.subr.bf16.mxu0 0
      %2044 = vmatpush1.bf16.msra.mxu0 %v1965
      %2045 = vmatprep.subr.bf16.mxu0 0
      %2046 = vmatpush2.bf16.msra.mxu0 %v1980
      %2047 = vmatprep.subr.bf16.mxu0 0
      %2048 = vmatpush2.bf16.msra.mxu0 %v1979
      %2049 = vmatprep.subr.bf16.mxu0 0
      %2050 = vmatpush2.bf16.msra.mxu0 %v1978
      %2051 = vmatprep.subr.bf16.mxu0 0
      %2052 = vmatpush2.bf16.msra.mxu0 %v1977
      %2053 = vmatprep.subr.bf16.mxu0 0
      %2054 = vmatpush2.bf16.msra.mxu0 %v1976
      %2055 = vmatprep.subr.bf16.mxu0 0
      %2056 = vmatpush2.bf16.msra.mxu0 %v1975
      %2057 = vmatprep.subr.bf16.mxu0 0
      %2058 = vmatpush2.bf16.msra.mxu0 %v1974
      %2059 = vmatprep.subr.bf16.mxu0 0
      %2060 = vmatpush2.bf16.msra.mxu0 %v1973
      %2061 = vmatprep.mubr.bf16.mxu0 %v1770
      %2062 = vmatmul.mubr.bf16.gmra.mxu0 %v1769
      %v2063 = vpop.f32.mrf.mxu0
      %v2064 = vadd.f32 0.0, %v2063
      %v2065 = vpop.f32.mrf.mxu0
      %v2066 = vpop.f32.mrf.mxu0
      %v2067 = vadd.f32 0.0, %v2066
      %v2068 = vpop.f32.mrf.mxu0
      %2069 = vdwg.mxu0
      %2070 = vmatprep.subr.bf16.mxu0 0
      %2071 = vmatpush1.bf16.msra.mxu0 %v1988
      %2072 = vmatprep.subr.bf16.mxu0 0
      %2073 = vmatpush1.bf16.msra.mxu0 %v1987
      %2074 = vmatprep.subr.bf16.mxu0 0
      %2075 = vmatpush1.bf16.msra.mxu0 %v1986
      %2076 = vmatprep.subr.bf16.mxu0 0
      %2077 = vmatpush1.bf16.msra.mxu0 %v1985
      %2078 = vmatprep.subr.bf16.mxu0 0
      %2079 = vmatpush1.bf16.msra.mxu0 %v1984
      %2080 = vmatprep.subr.bf16.mxu0 0
      %2081 = vmatpush1.bf16.msra.mxu0 %v1983
      %2082 = vmatprep.subr.bf16.mxu0 0
      %2083 = vmatpush1.bf16.msra.mxu0 %v1982
      %2084 = vmatprep.subr.bf16.mxu0 0
      %2085 = vmatpush1.bf16.msra.mxu0 %v1981
      %2086 = vmatprep.subr.bf16.mxu0 0
      %2087 = vmatpush2.bf16.msra.mxu0 %v1996
      %2088 = vmatprep.subr.bf16.mxu0 0
      %2089 = vmatpush2.bf16.msra.mxu0 %v1995
      %2090 = vmatprep.subr.bf16.mxu0 0
      %2091 = vmatpush2.bf16.msra.mxu0 %v1994
      %2092 = vmatprep.subr.bf16.mxu0 0
      %2093 = vmatpush2.bf16.msra.mxu0 %v1993
      %2094 = vmatprep.subr.bf16.mxu0 0
      %2095 = vmatpush2.bf16.msra.mxu0 %v1992
      %2096 = vmatprep.subr.bf16.mxu0 0
      %2097 = vmatpush2.bf16.msra.mxu0 %v1991
      %2098 = vmatprep.subr.bf16.mxu0 0
      %2099 = vmatpush2.bf16.msra.mxu0 %v1990
      %2100 = vmatprep.subr.bf16.mxu0 0
      %2101 = vmatpush2.bf16.msra.mxu0 %v1989
      %2102 = vmatprep.mubr.bf16.mxu0 %v1772
      %2103 = vmatmul.mubr.bf16.gmra.mxu0 %v1771
      %v2104 = vpop.f32.mrf.mxu0
      %v2105 = vadd.f32 %v2064, %v2104
      %v2106 = vpop.f32.mrf.mxu0
      %v2107 = vpop.f32.mrf.mxu0
      %v2108 = vadd.f32 %v2067, %v2107
      %v2109 = vpop.f32.mrf.mxu0
      %2110 = vdwg.mxu0
      %v2111 = vadd.f32 %v1354, %v2105
      %v2112 = vadd.f32 %v1355, %v2108
      %v2113 = vld [vmem:[%s14] sm:$0x1]
      %v2115 = vlaneseq
      %v2116 = vshrl.u32 %v2115, 7
      %v2117 = vsub.s32 0, %v2116
      %v2118 = vrot.slane %v2113, %v2117
      %v2120 = vadd.f32 %v2111, %v2118
      %v2121 = vadd.f32 %v2112, %v2118
      %2122 = vadd.xlane.f32.xlu0 %v2120
      %v2123 = vpop.xlane.xlu0 %2122
      %2124 = vadd.xlane.f32.xlu0 %v2121
      %v2125 = vpop.xlane.xlu0 %2124
      %v2126 = vmul.f32 %v2123, %v570
      %v2127 = vmul.f32 %v2125, %v570
      %v2128 = vsub.f32 %v2120, %v2126
      %v2129 = vsub.f32 %v2121, %v2127
      %v2130 = vmul.f32 %v2128, %v2128
      %v2131 = vmul.f32 %v2129, %v2129
      %2132 = vadd.xlane.f32.xlu0 %v2130
      %v2133 = vpop.xlane.xlu0 %2132
      %2134 = vadd.xlane.f32.xlu0 %v2131
      %v2135 = vpop.xlane.xlu0 %2134
      %v2136 = vmul.f32 %v2133, %v570
      %v2137 = vmul.f32 %v2135, %v570
      %v2138 = vadd.f32 %v2136, 1e-05
      %v2139 = vadd.f32 %v2137, 1e-05
      %v2140 = vrsqrt.pop %v2138
      %v2141 = vrsqrt.pop %v2139
      %v2142 = vmul.f32 %v2128, %v2140
      %v2143 = vmul.f32 %v2129, %v2141
      %v2144 = vmul.f32 %v2142, %v593
      %v2145 = vmul.f32 %v2143, %v593
      %v2146 = vadd.f32 %v2144, %v601
      %v2147 = vadd.f32 %v2145, %v601
      %v2148 = vpack.c.bf16 %v2147, %v2146
      %2149 = vmatprep.subr.bf16.mxu0 0
      %2150 = vmatpush1.bf16.msra.mxu0 %v688
      %2151 = vmatprep.subr.bf16.mxu0 0
      %2152 = vmatpush1.bf16.msra.mxu0 %v687
      %2153 = vmatprep.subr.bf16.mxu0 0
      %2154 = vmatpush1.bf16.msra.mxu0 %v686
      %2155 = vmatprep.subr.bf16.mxu0 0
      %2156 = vmatpush1.bf16.msra.mxu0 %v685
      %2157 = vmatprep.subr.bf16.mxu0 0
      %2158 = vmatpush1.bf16.msra.mxu0 %v684
      %2159 = vmatprep.subr.bf16.mxu0 0
      %2160 = vmatpush1.bf16.msra.mxu0 %v683
      %2161 = vmatprep.subr.bf16.mxu0 0
      %2162 = vmatpush1.bf16.msra.mxu0 %v682
      %2163 = vmatprep.subr.bf16.mxu0 0
      %2164 = vmatpush1.bf16.msra.mxu0 %v681
      %2165 = vmatprep.subr.bf16.mxu0 0
      %2166 = vmatpush2.bf16.msra.mxu0 0
      %2167 = vmatprep.subr.bf16.mxu0 0
      %2168 = vmatpush2.bf16.msra.mxu0 0
      %2169 = vmatprep.subr.bf16.mxu0 0
      %2170 = vmatpush2.bf16.msra.mxu0 0
      %2171 = vmatprep.subr.bf16.mxu0 0
      %2172 = vmatpush2.bf16.msra.mxu0 0
      %2173 = vmatprep.subr.bf16.mxu0 0
      %2174 = vmatpush2.bf16.msra.mxu0 0
      %2175 = vmatprep.subr.bf16.mxu0 0
      %2176 = vmatpush2.bf16.msra.mxu0 0
      %2177 = vmatprep.subr.bf16.mxu0 0
      %2178 = vmatpush2.bf16.msra.mxu0 0
      %2179 = vmatprep.subr.bf16.mxu0 0
      %2180 = vmatpush2.bf16.msra.mxu0 0
      %2181 = vmatprep.mubr.bf16.mxu0 0
      %2182 = vmatmul.mubr.bf16.gmra.mxu0 %v632
      %v2183 = vpop.f32.mrf.mxu0
      %v2184 = vadd.f32 0.0, %v2183
      %v2185 = vpop.f32.mrf.mxu0
      %v2186 = vpop.f32.mrf.mxu0
      %v2187 = vadd.f32 0.0, %v2186
      %v2188 = vpop.f32.mrf.mxu0
      %2189 = vdwg.mxu0
      %2190 = vmatprep.subr.bf16.mxu0 0
      %2191 = vmatpush1.bf16.msra.mxu0 %v793
      %2192 = vmatprep.subr.bf16.mxu0 0
      %2193 = vmatpush1.bf16.msra.mxu0 %v792
      %2194 = vmatprep.subr.bf16.mxu0 0
      %2195 = vmatpush1.bf16.msra.mxu0 %v791
      %2196 = vmatprep.subr.bf16.mxu0 0
      %2197 = vmatpush1.bf16.msra.mxu0 %v790
      %2198 = vmatprep.subr.bf16.mxu0 0
      %2199 = vmatpush1.bf16.msra.mxu0 %v789
      %2200 = vmatprep.subr.bf16.mxu0 0
      %2201 = vmatpush1.bf16.msra.mxu0 %v788
      %2202 = vmatprep.subr.bf16.mxu0 0
      %2203 = vmatpush1.bf16.msra.mxu0 %v787
      %2204 = vmatprep.subr.bf16.mxu0 0
      %2205 = vmatpush1.bf16.msra.mxu0 %v786
      %2206 = vmatprep.subr.bf16.mxu0 0
      %2207 = vmatpush2.bf16.msra.mxu0 0
      %2208 = vmatprep.subr.bf16.mxu0 0
      %2209 = vmatpush2.bf16.msra.mxu0 0
      %2210 = vmatprep.subr.bf16.mxu0 0
      %2211 = vmatpush2.bf16.msra.mxu0 0
      %2212 = vmatprep.subr.bf16.mxu0 0
      %2213 = vmatpush2.bf16.msra.mxu0 0
      %2214 = vmatprep.subr.bf16.mxu0 0
      %2215 = vmatpush2.bf16.msra.mxu0 0
      %2216 = vmatprep.subr.bf16.mxu0 0
      %2217 = vmatpush2.bf16.msra.mxu0 0
      %2218 = vmatprep.subr.bf16.mxu0 0
      %2219 = vmatpush2.bf16.msra.mxu0 0
      %2220 = vmatprep.subr.bf16.mxu0 0
      %2221 = vmatpush2.bf16.msra.mxu0 0
      %2222 = vmatprep.mubr.bf16.mxu0 0
      %2223 = vmatmul.mubr.bf16.gmra.mxu0 %v2148
      %v2224 = vpop.f32.mrf.mxu0
      %v2225 = vadd.f32 0.0, %v2224
      %v2226 = vpop.f32.mrf.mxu0
      %v2227 = vpop.f32.mrf.mxu0
      %v2228 = vadd.f32 0.0, %v2227
      %v2229 = vpop.f32.mrf.mxu0
      %2230 = vdwg.mxu0
      %2231 = vmatprep.subr.bf16.mxu0 0
      %2232 = vmatpush1.bf16.msra.mxu0 %v898
      %2233 = vmatprep.subr.bf16.mxu0 0
      %2234 = vmatpush1.bf16.msra.mxu0 %v897
      %2235 = vmatprep.subr.bf16.mxu0 0
      %2236 = vmatpush1.bf16.msra.mxu0 %v896
      %2237 = vmatprep.subr.bf16.mxu0 0
      %2238 = vmatpush1.bf16.msra.mxu0 %v895
      %2239 = vmatprep.subr.bf16.mxu0 0
      %2240 = vmatpush1.bf16.msra.mxu0 %v894
      %2241 = vmatprep.subr.bf16.mxu0 0
      %2242 = vmatpush1.bf16.msra.mxu0 %v893
      %2243 = vmatprep.subr.bf16.mxu0 0
      %2244 = vmatpush1.bf16.msra.mxu0 %v892
      %2245 = vmatprep.subr.bf16.mxu0 0
      %2246 = vmatpush1.bf16.msra.mxu0 %v891
      %2247 = vmatprep.subr.bf16.mxu0 0
      %2248 = vmatpush2.bf16.msra.mxu0 0
      %2249 = vmatprep.subr.bf16.mxu0 0
      %2250 = vmatpush2.bf16.msra.mxu0 0
      %2251 = vmatprep.subr.bf16.mxu0 0
      %2252 = vmatpush2.bf16.msra.mxu0 0
      %2253 = vmatprep.subr.bf16.mxu0 0
      %2254 = vmatpush2.bf16.msra.mxu0 0
      %2255 = vmatprep.subr.bf16.mxu0 0
      %2256 = vmatpush2.bf16.msra.mxu0 0
      %2257 = vmatprep.subr.bf16.mxu0 0
      %2258 = vmatpush2.bf16.msra.mxu0 0
      %2259 = vmatprep.subr.bf16.mxu0 0
      %2260 = vmatpush2.bf16.msra.mxu0 0
      %2261 = vmatprep.subr.bf16.mxu0 0
      %2262 = vmatpush2.bf16.msra.mxu0 0
      %2263 = vmatprep.mubr.bf16.mxu0 0
      %2264 = vmatmul.mubr.bf16.gmra.mxu0 %v2148
      %v2265 = vpop.f32.mrf.mxu0
      %v2266 = vadd.f32 0.0, %v2265
      %v2267 = vpop.f32.mrf.mxu0
      %v2268 = vpop.f32.mrf.mxu0
      %v2269 = vadd.f32 0.0, %v2268
      %v2270 = vpop.f32.mrf.mxu0
      %2271 = vdwg.mxu0
      %v2272 = vpack.c.bf16 %v2187, %v2184
      %v2273 = vpack.c.bf16 %v2228, %v2225
      %v2275 = vsel %vm966, %v2272, 0
      %v2278 = vsel %vm966, %v2273, 0
      %2280 = vmatprep.subr.bf16.mxu0 0
      %2281 = vmatpush1.bf16.xpose.msra.mxu0 0
      %2282 = vmatprep.subr.bf16.mxu0 0
      %2283 = vmatpush1.bf16.xpose.msra.mxu0 0
      %2284 = vmatprep.subr.bf16.mxu0 0
      %2285 = vmatpush1.bf16.xpose.msra.mxu0 0
      %2286 = vmatprep.subr.bf16.mxu0 0
      %2287 = vmatpush1.bf16.xpose.msra.mxu0 0
      %2288 = vmatprep.subr.bf16.mxu0 0
      %2289 = vmatpush1.bf16.xpose.msra.mxu0 0
      %2290 = vmatprep.subr.bf16.mxu0 0
      %2291 = vmatpush1.bf16.xpose.msra.mxu0 0
      %2292 = vmatprep.subr.bf16.mxu0 0
      %2293 = vmatpush1.bf16.xpose.msra.mxu0 0
      %2294 = vmatprep.subr.bf16.mxu0 0
      %2295 = vmatpush1.bf16.xpose.msra.mxu0 %v2278
      %2296 = vmatprep.subr.bf16.mxu0 0
      %2297 = vmatpush2.bf16.xpose.msra.mxu0 0
      %2298 = vmatprep.subr.bf16.mxu0 0
      %2299 = vmatpush2.bf16.xpose.msra.mxu0 0
      %2300 = vmatprep.subr.bf16.mxu0 0
      %2301 = vmatpush2.bf16.xpose.msra.mxu0 0
      %2302 = vmatprep.subr.bf16.mxu0 0
      %2303 = vmatpush2.bf16.xpose.msra.mxu0 0
      %2304 = vmatprep.subr.bf16.mxu0 0
      %2305 = vmatpush2.bf16.xpose.msra.mxu0 0
      %2306 = vmatprep.subr.bf16.mxu0 0
      %2307 = vmatpush2.bf16.xpose.msra.mxu0 0
      %2308 = vmatprep.subr.bf16.mxu0 0
      %2309 = vmatpush2.bf16.xpose.msra.mxu0 0
      %2310 = vmatprep.subr.bf16.mxu0 0
      %2311 = vmatpush2.bf16.xpose.msra.mxu0 0
      %2312 = vmatprep.mubr.bf16.mxu0 0
      %2313 = vmatmul.mubr.bf16.gmra.mxu0 %v2275
      %v2314 = vpop.f32.mrf.mxu0
      %v2315 = vadd.f32 0.0, %v2314
      %v2316 = vpop.f32.mrf.mxu0
      %v2317 = vpop.f32.mrf.mxu0
      %v2318 = vadd.f32 0.0, %v2317
      %v2319 = vpop.f32.mrf.mxu0
      %2320 = vdwg.mxu0
      %v2321 = vsel %vm1014, %v2315, -inf
      %2322 = vmax.xlane.f32.xlu0 %v2321
      %v2323 = vpop.xlane.xlu0 %2322
      %v2324 = vsel %vm1014, %v2318, -inf
      %2325 = vmax.xlane.f32.xlu0 %v2324
      %v2326 = vpop.xlane.xlu0 %2325
      %v2327 = vsub.f32 %v2315, %v2323
      %v2328 = vsub.f32 %v2318, %v2326
      %v2329 = vmul.f32 %v2327, 1.442695
      %v2330 = vpow.pop %v2329
      %v2331 = vmul.f32 %v2328, 1.442695
      %v2332 = vpow.pop %v2331
      %v2333 = vsel %vm1014, %v2330, 0.0
      %2334 = vadd.xlane.f32.xlu0 %v2333
      %v2335 = vpop.xlane.xlu0 %2334
      %v2336 = vsel %vm1014, %v2332, 0.0
      %2337 = vadd.xlane.f32.xlu0 %v2336
      %v2338 = vpop.xlane.xlu0 %2337
      %v2339 = vrcp.pop %v2335
      %v2340 = vrcp.pop %v2338
      %v2341 = vmul.f32 %v2330, %v2339
      %v2342 = vmul.f32 %v2332, %v2340
      %v2343 = vpack.c.bf16 %v2342, %v2341
      %v2344 = vpack.c.bf16 %v2269, %v2266
      %v2346 = vsel %vm1014, %v2343, 0
      %2348 = vmatprep.subr.bf16.mxu0 0
      %2349 = vmatpush1.bf16.msra.mxu0 0
      %2350 = vmatprep.subr.bf16.mxu0 0
      %2351 = vmatpush1.bf16.msra.mxu0 0
      %2352 = vmatprep.subr.bf16.mxu0 0
      %2353 = vmatpush1.bf16.msra.mxu0 0
      %2354 = vmatprep.subr.bf16.mxu0 0
      %2355 = vmatpush1.bf16.msra.mxu0 0
      %2356 = vmatprep.subr.bf16.mxu0 0
      %2357 = vmatpush1.bf16.msra.mxu0 0
      %2358 = vmatprep.subr.bf16.mxu0 0
      %2359 = vmatpush1.bf16.msra.mxu0 0
      %2360 = vmatprep.subr.bf16.mxu0 0
      %2361 = vmatpush1.bf16.msra.mxu0 0
      %2362 = vmatprep.subr.bf16.mxu0 0
      %2363 = vmatpush1.bf16.msra.mxu0 %v2344
      %2364 = vmatprep.subr.bf16.mxu0 0
      %2365 = vmatpush2.bf16.msra.mxu0 0
      %2366 = vmatprep.subr.bf16.mxu0 0
      %2367 = vmatpush2.bf16.msra.mxu0 0
      %2368 = vmatprep.subr.bf16.mxu0 0
      %2369 = vmatpush2.bf16.msra.mxu0 0
      %2370 = vmatprep.subr.bf16.mxu0 0
      %2371 = vmatpush2.bf16.msra.mxu0 0
      %2372 = vmatprep.subr.bf16.mxu0 0
      %2373 = vmatpush2.bf16.msra.mxu0 0
      %2374 = vmatprep.subr.bf16.mxu0 0
      %2375 = vmatpush2.bf16.msra.mxu0 0
      %2376 = vmatprep.subr.bf16.mxu0 0
      %2377 = vmatpush2.bf16.msra.mxu0 0
      %2378 = vmatprep.subr.bf16.mxu0 0
      %2379 = vmatpush2.bf16.msra.mxu0 0
      %2380 = vmatprep.mubr.bf16.mxu0 0
      %2381 = vmatmul.mubr.bf16.gmra.mxu0 %v2346
      %v2382 = vpop.f32.mrf.mxu0
      %v2383 = vadd.f32 0.0, %v2382
      %v2384 = vpop.f32.mrf.mxu0
      %v2385 = vpop.f32.mrf.mxu0
      %v2386 = vadd.f32 0.0, %v2385
      %v2387 = vpop.f32.mrf.mxu0
      %2388 = vdwg.mxu0
      %v2389 = vpack.c.bf16 %v2386, %v2383
      %2391 = vrot.lane.b32.xlu0 %v2272, 64
      %v2392 = vpop.permute.xlu0 %2391
      %2394 = vrot.lane.b32.xlu0 %v2273, 64
      %v2395 = vpop.permute.xlu0 %2394
      %v2397 = vsel %vm966, %v2392, 0
      %v2400 = vsel %vm966, %v2395, 0
      %2402 = vmatprep.subr.bf16.mxu0 0
      %2403 = vmatpush1.bf16.xpose.msra.mxu0 0
      %2404 = vmatprep.subr.bf16.mxu0 0
      %2405 = vmatpush1.bf16.xpose.msra.mxu0 0
      %2406 = vmatprep.subr.bf16.mxu0 0
      %2407 = vmatpush1.bf16.xpose.msra.mxu0 0
      %2408 = vmatprep.subr.bf16.mxu0 0
      %2409 = vmatpush1.bf16.xpose.msra.mxu0 0
      %2410 = vmatprep.subr.bf16.mxu0 0
      %2411 = vmatpush1.bf16.xpose.msra.mxu0 0
      %2412 = vmatprep.subr.bf16.mxu0 0
      %2413 = vmatpush1.bf16.xpose.msra.mxu0 0
      %2414 = vmatprep.subr.bf16.mxu0 0
      %2415 = vmatpush1.bf16.xpose.msra.mxu0 0
      %2416 = vmatprep.subr.bf16.mxu0 0
      %2417 = vmatpush1.bf16.xpose.msra.mxu0 %v2400
      %2418 = vmatprep.subr.bf16.mxu0 0
      %2419 = vmatpush2.bf16.xpose.msra.mxu0 0
      %2420 = vmatprep.subr.bf16.mxu0 0
      %2421 = vmatpush2.bf16.xpose.msra.mxu0 0
      %2422 = vmatprep.subr.bf16.mxu0 0
      %2423 = vmatpush2.bf16.xpose.msra.mxu0 0
      %2424 = vmatprep.subr.bf16.mxu0 0
      %2425 = vmatpush2.bf16.xpose.msra.mxu0 0
      %2426 = vmatprep.subr.bf16.mxu0 0
      %2427 = vmatpush2.bf16.xpose.msra.mxu0 0
      %2428 = vmatprep.subr.bf16.mxu0 0
      %2429 = vmatpush2.bf16.xpose.msra.mxu0 0
      %2430 = vmatprep.subr.bf16.mxu0 0
      %2431 = vmatpush2.bf16.xpose.msra.mxu0 0
      %2432 = vmatprep.subr.bf16.mxu0 0
      %2433 = vmatpush2.bf16.xpose.msra.mxu0 0
      %2434 = vmatprep.mubr.bf16.mxu0 0
      %2435 = vmatmul.mubr.bf16.gmra.mxu0 %v2397
      %v2436 = vpop.f32.mrf.mxu0
      %v2437 = vadd.f32 0.0, %v2436
      %v2438 = vpop.f32.mrf.mxu0
      %v2439 = vpop.f32.mrf.mxu0
      %v2440 = vadd.f32 0.0, %v2439
      %v2441 = vpop.f32.mrf.mxu0
      %2442 = vdwg.mxu0
      %v2443 = vsel %vm1014, %v2437, -inf
      %2444 = vmax.xlane.f32.xlu0 %v2443
      %v2445 = vpop.xlane.xlu0 %2444
      %v2446 = vsel %vm1014, %v2440, -inf
      %2447 = vmax.xlane.f32.xlu0 %v2446
      %v2448 = vpop.xlane.xlu0 %2447
      %v2449 = vsub.f32 %v2437, %v2445
      %v2450 = vsub.f32 %v2440, %v2448
      %v2451 = vmul.f32 %v2449, 1.442695
      %v2452 = vpow.pop %v2451
      %v2453 = vmul.f32 %v2450, 1.442695
      %v2454 = vpow.pop %v2453
      %v2455 = vsel %vm1014, %v2452, 0.0
      %2456 = vadd.xlane.f32.xlu0 %v2455
      %v2457 = vpop.xlane.xlu0 %2456
      %v2458 = vsel %vm1014, %v2454, 0.0
      %2459 = vadd.xlane.f32.xlu0 %v2458
      %v2460 = vpop.xlane.xlu0 %2459
      %v2461 = vrcp.pop %v2457
      %v2462 = vrcp.pop %v2460
      %v2463 = vmul.f32 %v2452, %v2461
      %v2464 = vmul.f32 %v2454, %v2462
      %v2465 = vpack.c.bf16 %v2464, %v2463
      %2467 = vrot.lane.b32.xlu0 %v2344, 64
      %v2468 = vpop.permute.xlu0 %2467
      %v2471 = vsel %vm1014, %v2465, 0
      %2473 = vmatprep.subr.bf16.mxu0 0
      %2474 = vmatpush1.bf16.msra.mxu0 0
      %2475 = vmatprep.subr.bf16.mxu0 0
      %2476 = vmatpush1.bf16.msra.mxu0 0
      %2477 = vmatprep.subr.bf16.mxu0 0
      %2478 = vmatpush1.bf16.msra.mxu0 0
      %2479 = vmatprep.subr.bf16.mxu0 0
      %2480 = vmatpush1.bf16.msra.mxu0 0
      %2481 = vmatprep.subr.bf16.mxu0 0
      %2482 = vmatpush1.bf16.msra.mxu0 0
      %2483 = vmatprep.subr.bf16.mxu0 0
      %2484 = vmatpush1.bf16.msra.mxu0 0
      %2485 = vmatprep.subr.bf16.mxu0 0
      %2486 = vmatpush1.bf16.msra.mxu0 0
      %2487 = vmatprep.subr.bf16.mxu0 0
      %2488 = vmatpush1.bf16.msra.mxu0 %v2468
      %2489 = vmatprep.subr.bf16.mxu0 0
      %2490 = vmatpush2.bf16.msra.mxu0 0
      %2491 = vmatprep.subr.bf16.mxu0 0
      %2492 = vmatpush2.bf16.msra.mxu0 0
      %2493 = vmatprep.subr.bf16.mxu0 0
      %2494 = vmatpush2.bf16.msra.mxu0 0
      %2495 = vmatprep.subr.bf16.mxu0 0
      %2496 = vmatpush2.bf16.msra.mxu0 0
      %2497 = vmatprep.subr.bf16.mxu0 0
      %2498 = vmatpush2.bf16.msra.mxu0 0
      %2499 = vmatprep.subr.bf16.mxu0 0
      %2500 = vmatpush2.bf16.msra.mxu0 0
      %2501 = vmatprep.subr.bf16.mxu0 0
      %2502 = vmatpush2.bf16.msra.mxu0 0
      %2503 = vmatprep.subr.bf16.mxu0 0
      %2504 = vmatpush2.bf16.msra.mxu0 0
      %2505 = vmatprep.mubr.bf16.mxu0 0
      %2506 = vmatmul.mubr.bf16.gmra.mxu0 %v2471
      %v2507 = vpop.f32.mrf.mxu0
      %v2508 = vadd.f32 0.0, %v2507
      %v2509 = vpop.f32.mrf.mxu0
      %v2510 = vpop.f32.mrf.mxu0
      %v2511 = vadd.f32 0.0, %v2510
      %v2512 = vpop.f32.mrf.mxu0
      %2513 = vdwg.mxu0
      %v2514 = vpack.c.bf16 %v2511, %v2508
      %v2516 = vsel %vm966, %v2514, 0
      %2518 = vmatprep.subr.bf16.mxu0 0
      %2519 = vmatpush1.bf16.msra.mxu0 0
      %2520 = vmatprep.subr.bf16.mxu0 0
      %2521 = vmatpush1.bf16.msra.mxu0 0
      %2522 = vmatprep.subr.bf16.mxu0 0
      %2523 = vmatpush1.bf16.msra.mxu0 0
      %2524 = vmatprep.subr.bf16.mxu0 0
      %2525 = vmatpush1.bf16.msra.mxu0 0
      %2526 = vmatprep.subr.bf16.mxu0 0
      %2527 = vmatpush1.bf16.msra.mxu0 %v1228
      %2528 = vmatprep.subr.bf16.mxu0 0
      %2529 = vmatpush1.bf16.msra.mxu0 %v1227
      %2530 = vmatprep.subr.bf16.mxu0 0
      %2531 = vmatpush1.bf16.msra.mxu0 %v1226
      %2532 = vmatprep.subr.bf16.mxu0 0
      %2533 = vmatpush1.bf16.msra.mxu0 %v1225
      %2534 = vmatprep.subr.bf16.mxu0 0
      %2535 = vmatpush2.bf16.msra.mxu0 0
      %2536 = vmatprep.subr.bf16.mxu0 0
      %2537 = vmatpush2.bf16.msra.mxu0 0
      %2538 = vmatprep.subr.bf16.mxu0 0
      %2539 = vmatpush2.bf16.msra.mxu0 0
      %2540 = vmatprep.subr.bf16.mxu0 0
      %2541 = vmatpush2.bf16.msra.mxu0 0
      %2542 = vmatprep.subr.bf16.mxu0 0
      %2543 = vmatpush2.bf16.msra.mxu0 0
      %2544 = vmatprep.subr.bf16.mxu0 0
      %2545 = vmatpush2.bf16.msra.mxu0 0
      %2546 = vmatprep.subr.bf16.mxu0 0
      %2547 = vmatpush2.bf16.msra.mxu0 0
      %2548 = vmatprep.subr.bf16.mxu0 0
      %2549 = vmatpush2.bf16.msra.mxu0 0
      %2550 = vmatprep.mubr.bf16.mxu0 0
      %2551 = vmatmul.mubr.bf16.gmra.mxu0 %v2516
      %v2552 = vpop.f32.mrf.mxu0
      %v2553 = vadd.f32 0.0, %v2552
      %v2554 = vpop.f32.mrf.mxu0
      %v2555 = vpop.f32.mrf.mxu0
      %v2556 = vadd.f32 0.0, %v2555
      %v2557 = vpop.f32.mrf.mxu0
      %2558 = vdwg.mxu0
      %v2560 = vsel %vm966, %v2389, 0
      %2562 = vmatprep.subr.bf16.mxu0 0
      %2563 = vmatpush1.bf16.msra.mxu0 0
      %2564 = vmatprep.subr.bf16.mxu0 0
      %2565 = vmatpush1.bf16.msra.mxu0 0
      %2566 = vmatprep.subr.bf16.mxu0 0
      %2567 = vmatpush1.bf16.msra.mxu0 0
      %2568 = vmatprep.subr.bf16.mxu0 0
      %2569 = vmatpush1.bf16.msra.mxu0 0
      %2570 = vmatprep.subr.bf16.mxu0 0
      %2571 = vmatpush1.bf16.msra.mxu0 %v1296
      %2572 = vmatprep.subr.bf16.mxu0 0
      %2573 = vmatpush1.bf16.msra.mxu0 %v1295
      %2574 = vmatprep.subr.bf16.mxu0 0
      %2575 = vmatpush1.bf16.msra.mxu0 %v1294
      %2576 = vmatprep.subr.bf16.mxu0 0
      %2577 = vmatpush1.bf16.msra.mxu0 %v1293
      %2578 = vmatprep.subr.bf16.mxu0 0
      %2579 = vmatpush2.bf16.msra.mxu0 0
      %2580 = vmatprep.subr.bf16.mxu0 0
      %2581 = vmatpush2.bf16.msra.mxu0 0
      %2582 = vmatprep.subr.bf16.mxu0 0
      %2583 = vmatpush2.bf16.msra.mxu0 0
      %2584 = vmatprep.subr.bf16.mxu0 0
      %2585 = vmatpush2.bf16.msra.mxu0 0
      %2586 = vmatprep.subr.bf16.mxu0 0
      %2587 = vmatpush2.bf16.msra.mxu0 0
      %2588 = vmatprep.subr.bf16.mxu0 0
      %2589 = vmatpush2.bf16.msra.mxu0 0
      %2590 = vmatprep.subr.bf16.mxu0 0
      %2591 = vmatpush2.bf16.msra.mxu0 0
      %2592 = vmatprep.subr.bf16.mxu0 0
      %2593 = vmatpush2.bf16.msra.mxu0 0
      %2594 = vmatprep.mubr.bf16.mxu0 0
      %2595 = vmatmul.mubr.bf16.gmra.mxu0 %v2560
      %v2596 = vpop.f32.mrf.mxu0
      %v2597 = vadd.f32 %v2553, %v2596
      %v2598 = vpop.f32.mrf.mxu0
      %v2599 = vpop.f32.mrf.mxu0
      %v2600 = vadd.f32 %v2556, %v2599
      %v2601 = vpop.f32.mrf.mxu0
      %2602 = vdwg.mxu0
      %v2603 = vadd.f32 %v562, %v2597
      %v2604 = vadd.f32 %v563, %v2600
      %v2605 = vadd.f32 %v2603, %v1352
      %v2606 = vadd.f32 %v2604, %v1352
      %2607 = vadd.xlane.f32.xlu0 %v2605
      %v2608 = vpop.xlane.xlu0 %2607
      %2609 = vadd.xlane.f32.xlu0 %v2606
      %v2610 = vpop.xlane.xlu0 %2609
      %v2611 = vmul.f32 %v2608, %v570
      %v2612 = vmul.f32 %v2610, %v570
      %v2613 = vsub.f32 %v2605, %v2611
      %v2614 = vsub.f32 %v2606, %v2612
      %v2615 = vmul.f32 %v2613, %v2613
      %v2616 = vmul.f32 %v2614, %v2614
      %2617 = vadd.xlane.f32.xlu0 %v2615
      %v2618 = vpop.xlane.xlu0 %2617
      %2619 = vadd.xlane.f32.xlu0 %v2616
      %v2620 = vpop.xlane.xlu0 %2619
      %v2621 = vmul.f32 %v2618, %v570
      %v2622 = vmul.f32 %v2620, %v570
      %v2623 = vadd.f32 %v2621, 1e-05
      %v2624 = vadd.f32 %v2622, 1e-05
      %v2625 = vrsqrt.pop %v2623
      %v2626 = vrsqrt.pop %v2624
      %v2627 = vmul.f32 %v2613, %v2625
      %v2628 = vmul.f32 %v2614, %v2626
      %v2629 = vmul.f32 %v2627, %v1384
      %v2630 = vmul.f32 %v2628, %v1384
      %v2631 = vadd.f32 %v2629, %v1392
      %v2632 = vadd.f32 %v2630, %v1392
      %v2633 = vpack.c.bf16 %v2632, %v2631
      %2634 = vmatprep.subr.bf16.mxu0 %v1576
      %2635 = vmatpush1.bf16.msra.mxu0 %v1575
      %2636 = vmatprep.subr.bf16.mxu0 %v1572
      %2637 = vmatpush1.bf16.msra.mxu0 %v1571
      %2638 = vmatprep.subr.bf16.mxu0 %v1568
      %2639 = vmatpush1.bf16.msra.mxu0 %v1567
      %2640 = vmatprep.subr.bf16.mxu0 %v1564
      %2641 = vmatpush1.bf16.msra.mxu0 %v1563
      %2642 = vmatprep.subr.bf16.mxu0 %v1560
      %2643 = vmatpush1.bf16.msra.mxu0 %v1559
      %2644 = vmatprep.subr.bf16.mxu0 %v1556
      %2645 = vmatpush1.bf16.msra.mxu0 %v1555
      %2646 = vmatprep.subr.bf16.mxu0 %v1552
      %2647 = vmatpush1.bf16.msra.mxu0 %v1551
      %2648 = vmatprep.subr.bf16.mxu0 %v1548
      %2649 = vmatpush1.bf16.msra.mxu0 %v1547
      %2650 = vmatprep.subr.bf16.mxu0 0
      %2651 = vmatpush2.bf16.msra.mxu0 0
      %2652 = vmatprep.subr.bf16.mxu0 0
      %2653 = vmatpush2.bf16.msra.mxu0 0
      %2654 = vmatprep.subr.bf16.mxu0 0
      %2655 = vmatpush2.bf16.msra.mxu0 0
      %2656 = vmatprep.subr.bf16.mxu0 0
      %2657 = vmatpush2.bf16.msra.mxu0 0
      %2658 = vmatprep.subr.bf16.mxu0 0
      %2659 = vmatpush2.bf16.msra.mxu0 0
      %2660 = vmatprep.subr.bf16.mxu0 0
      %2661 = vmatpush2.bf16.msra.mxu0 0
      %2662 = vmatprep.subr.bf16.mxu0 0
      %2663 = vmatpush2.bf16.msra.mxu0 0
      %2664 = vmatprep.subr.bf16.mxu0 0
      %2665 = vmatpush2.bf16.msra.mxu0 0
      %2666 = vmatprep.mubr.bf16.mxu0 0
      %2667 = vmatmul.mubr.bf16.gmra.mxu0 %v2633
      %v2668 = vpop.f32.mrf.mxu0
      %v2669 = vadd.f32 %v1434, %v2668
      %v2670 = vpop.f32.mrf.mxu0
      %v2671 = vadd.f32 %v1438, %v2670
      %v2672 = vpop.f32.mrf.mxu0
      %v2673 = vadd.f32 %v1434, %v2672
      %v2674 = vpop.f32.mrf.mxu0
      %v2675 = vadd.f32 %v1438, %v2674
      %2676 = vdwg.mxu0
      %2677 = vmatprep.subr.bf16.mxu0 %v1578
      %2678 = vmatpush1.bf16.msra.mxu0 %v1577
      %2679 = vmatprep.subr.bf16.mxu0 %v1574
      %2680 = vmatpush1.bf16.msra.mxu0 %v1573
      %2681 = vmatprep.subr.bf16.mxu0 %v1570
      %2682 = vmatpush1.bf16.msra.mxu0 %v1569
      %2683 = vmatprep.subr.bf16.mxu0 %v1566
      %2684 = vmatpush1.bf16.msra.mxu0 %v1565
      %2685 = vmatprep.subr.bf16.mxu0 %v1562
      %2686 = vmatpush1.bf16.msra.mxu0 %v1561
      %2687 = vmatprep.subr.bf16.mxu0 %v1558
      %2688 = vmatpush1.bf16.msra.mxu0 %v1557
      %2689 = vmatprep.subr.bf16.mxu0 %v1554
      %2690 = vmatpush1.bf16.msra.mxu0 %v1553
      %2691 = vmatprep.subr.bf16.mxu0 %v1550
      %2692 = vmatpush1.bf16.msra.mxu0 %v1549
      %2693 = vmatprep.subr.bf16.mxu0 0
      %2694 = vmatpush2.bf16.msra.mxu0 0
      %2695 = vmatprep.subr.bf16.mxu0 0
      %2696 = vmatpush2.bf16.msra.mxu0 0
      %2697 = vmatprep.subr.bf16.mxu0 0
      %2698 = vmatpush2.bf16.msra.mxu0 0
      %2699 = vmatprep.subr.bf16.mxu0 0
      %2700 = vmatpush2.bf16.msra.mxu0 0
      %2701 = vmatprep.subr.bf16.mxu0 0
      %2702 = vmatpush2.bf16.msra.mxu0 0
      %2703 = vmatprep.subr.bf16.mxu0 0
      %2704 = vmatpush2.bf16.msra.mxu0 0
      %2705 = vmatprep.subr.bf16.mxu0 0
      %2706 = vmatpush2.bf16.msra.mxu0 0
      %2707 = vmatprep.subr.bf16.mxu0 0
      %2708 = vmatpush2.bf16.msra.mxu0 0
      %2709 = vmatprep.mubr.bf16.mxu0 0
      %2710 = vmatmul.mubr.bf16.gmra.mxu0 %v2633
      %v2711 = vpop.f32.mrf.mxu0
      %v2712 = vadd.f32 %v1442, %v2711
      %v2713 = vpop.f32.mrf.mxu0
      %v2714 = vadd.f32 %v1446, %v2713
      %v2715 = vpop.f32.mrf.mxu0
      %v2716 = vadd.f32 %v1442, %v2715
      %v2717 = vpop.f32.mrf.mxu0
      %v2718 = vadd.f32 %v1446, %v2717
      %2719 = vdwg.mxu0
      %v2720 = vmul.f32 %v2669, %v2669
      %v2721 = vmul.f32 %v2671, %v2671
      %v2722 = vmul.f32 %v2712, %v2712
      %v2723 = vmul.f32 %v2714, %v2714
      %v2724 = vmul.f32 %v2673, %v2673
      %v2725 = vmul.f32 %v2675, %v2675
      %v2726 = vmul.f32 %v2716, %v2716
      %v2727 = vmul.f32 %v2718, %v2718
      %v2728 = vmul.f32 %v2669, %v2720
      %v2729 = vmul.f32 %v2671, %v2721
      %v2730 = vmul.f32 %v2712, %v2722
      %v2731 = vmul.f32 %v2714, %v2723
      %v2732 = vmul.f32 %v2673, %v2724
      %v2733 = vmul.f32 %v2675, %v2725
      %v2734 = vmul.f32 %v2716, %v2726
      %v2735 = vmul.f32 %v2718, %v2727
      %v2736 = vmul.f32 %v2728, 0.044715
      %v2737 = vmul.f32 %v2729, 0.044715
      %v2738 = vmul.f32 %v2730, 0.044715
      %v2739 = vmul.f32 %v2731, 0.044715
      %v2740 = vmul.f32 %v2732, 0.044715
      %v2741 = vmul.f32 %v2733, 0.044715
      %v2742 = vmul.f32 %v2734, 0.044715
      %v2743 = vmul.f32 %v2735, 0.044715
      %v2744 = vadd.f32 %v2669, %v2736
      %v2745 = vadd.f32 %v2671, %v2737
      %v2746 = vadd.f32 %v2712, %v2738
      %v2747 = vadd.f32 %v2714, %v2739
      %v2748 = vadd.f32 %v2673, %v2740
      %v2749 = vadd.f32 %v2675, %v2741
      %v2750 = vadd.f32 %v2716, %v2742
      %v2751 = vadd.f32 %v2718, %v2743
      %v2752 = vmul.f32 %v2744, 0.7978846
      %v2753 = vmul.f32 %v2745, 0.7978846
      %v2754 = vmul.f32 %v2746, 0.7978846
      %v2755 = vmul.f32 %v2747, 0.7978846
      %v2756 = vmul.f32 %v2748, 0.7978846
      %v2757 = vmul.f32 %v2749, 0.7978846
      %v2758 = vmul.f32 %v2750, 0.7978846
      %v2759 = vmul.f32 %v2751, 0.7978846
      %v2760 = vtanh.pop %v2752
      %v2761 = vtanh.pop %v2753
      %v2762 = vtanh.pop %v2754
      %v2763 = vtanh.pop %v2755
      %v2764 = vtanh.pop %v2756
      %v2765 = vtanh.pop %v2757
      %v2766 = vtanh.pop %v2758
      %v2767 = vtanh.pop %v2759
      %v2768 = vadd.f32 %v2760, 1.0
      %v2769 = vadd.f32 %v2761, 1.0
      %v2770 = vadd.f32 %v2762, 1.0
      %v2771 = vadd.f32 %v2763, 1.0
      %v2772 = vadd.f32 %v2764, 1.0
      %v2773 = vadd.f32 %v2765, 1.0
      %v2774 = vadd.f32 %v2766, 1.0
      %v2775 = vadd.f32 %v2767, 1.0
      %v2776 = vmul.f32 %v2768, 0.5
      %v2777 = vmul.f32 %v2769, 0.5
      %v2778 = vmul.f32 %v2770, 0.5
      %v2779 = vmul.f32 %v2771, 0.5
      %v2780 = vmul.f32 %v2772, 0.5
      %v2781 = vmul.f32 %v2773, 0.5
      %v2782 = vmul.f32 %v2774, 0.5
      %v2783 = vmul.f32 %v2775, 0.5
      %v2784 = vmul.f32 %v2669, %v2776
      %v2785 = vmul.f32 %v2671, %v2777
      %v2786 = vmul.f32 %v2712, %v2778
      %v2787 = vmul.f32 %v2714, %v2779
      %v2788 = vmul.f32 %v2673, %v2780
      %v2789 = vmul.f32 %v2675, %v2781
      %v2790 = vmul.f32 %v2716, %v2782
      %v2791 = vmul.f32 %v2718, %v2783
      %v2792 = vpack.c.bf16 %v2788, %v2784
      %v2793 = vpack.c.bf16 %v2789, %v2785
      %v2794 = vpack.c.bf16 %v2790, %v2786
      %v2795 = vpack.c.bf16 %v2791, %v2787
      %2796 = vmatprep.subr.bf16.mxu0 0
      %2797 = vmatpush1.bf16.msra.mxu0 %v1972
      %2798 = vmatprep.subr.bf16.mxu0 0
      %2799 = vmatpush1.bf16.msra.mxu0 %v1971
      %2800 = vmatprep.subr.bf16.mxu0 0
      %2801 = vmatpush1.bf16.msra.mxu0 %v1970
      %2802 = vmatprep.subr.bf16.mxu0 0
      %2803 = vmatpush1.bf16.msra.mxu0 %v1969
      %2804 = vmatprep.subr.bf16.mxu0 0
      %2805 = vmatpush1.bf16.msra.mxu0 %v1968
      %2806 = vmatprep.subr.bf16.mxu0 0
      %2807 = vmatpush1.bf16.msra.mxu0 %v1967
      %2808 = vmatprep.subr.bf16.mxu0 0
      %2809 = vmatpush1.bf16.msra.mxu0 %v1966
      %2810 = vmatprep.subr.bf16.mxu0 0
      %2811 = vmatpush1.bf16.msra.mxu0 %v1965
      %2812 = vmatprep.subr.bf16.mxu0 0
      %2813 = vmatpush2.bf16.msra.mxu0 %v1980
      %2814 = vmatprep.subr.bf16.mxu0 0
      %2815 = vmatpush2.bf16.msra.mxu0 %v1979
      %2816 = vmatprep.subr.bf16.mxu0 0
      %2817 = vmatpush2.bf16.msra.mxu0 %v1978
      %2818 = vmatprep.subr.bf16.mxu0 0
      %2819 = vmatpush2.bf16.msra.mxu0 %v1977
      %2820 = vmatprep.subr.bf16.mxu0 0
      %2821 = vmatpush2.bf16.msra.mxu0 %v1976
      %2822 = vmatprep.subr.bf16.mxu0 0
      %2823 = vmatpush2.bf16.msra.mxu0 %v1975
      %2824 = vmatprep.subr.bf16.mxu0 0
      %2825 = vmatpush2.bf16.msra.mxu0 %v1974
      %2826 = vmatprep.subr.bf16.mxu0 0
      %2827 = vmatpush2.bf16.msra.mxu0 %v1973
      %2828 = vmatprep.mubr.bf16.mxu0 %v2793
      %2829 = vmatmul.mubr.bf16.gmra.mxu0 %v2792
      %v2830 = vpop.f32.mrf.mxu0
      %v2831 = vadd.f32 0.0, %v2830
      %v2832 = vpop.f32.mrf.mxu0
      %v2833 = vpop.f32.mrf.mxu0
      %v2834 = vadd.f32 0.0, %v2833
      %v2835 = vpop.f32.mrf.mxu0
      %2836 = vdwg.mxu0
      %2837 = vmatprep.subr.bf16.mxu0 0
      %2838 = vmatpush1.bf16.msra.mxu0 %v1988
      %2839 = vmatprep.subr.bf16.mxu0 0
      %2840 = vmatpush1.bf16.msra.mxu0 %v1987
      %2841 = vmatprep.subr.bf16.mxu0 0
      %2842 = vmatpush1.bf16.msra.mxu0 %v1986
      %2843 = vmatprep.subr.bf16.mxu0 0
      %2844 = vmatpush1.bf16.msra.mxu0 %v1985
      %2845 = vmatprep.subr.bf16.mxu0 0
      %2846 = vmatpush1.bf16.msra.mxu0 %v1984
      %2847 = vmatprep.subr.bf16.mxu0 0
      %2848 = vmatpush1.bf16.msra.mxu0 %v1983
      %2849 = vmatprep.subr.bf16.mxu0 0
      %2850 = vmatpush1.bf16.msra.mxu0 %v1982
      %2851 = vmatprep.subr.bf16.mxu0 0
      %2852 = vmatpush1.bf16.msra.mxu0 %v1981
      %2853 = vmatprep.subr.bf16.mxu0 0
      %2854 = vmatpush2.bf16.msra.mxu0 %v1996
      %2855 = vmatprep.subr.bf16.mxu0 0
      %2856 = vmatpush2.bf16.msra.mxu0 %v1995
      %2857 = vmatprep.subr.bf16.mxu0 0
      %2858 = vmatpush2.bf16.msra.mxu0 %v1994
      %2859 = vmatprep.subr.bf16.mxu0 0
      %2860 = vmatpush2.bf16.msra.mxu0 %v1993
      %2861 = vmatprep.subr.bf16.mxu0 0
      %2862 = vmatpush2.bf16.msra.mxu0 %v1992
      %2863 = vmatprep.subr.bf16.mxu0 0
      %2864 = vmatpush2.bf16.msra.mxu0 %v1991
      %2865 = vmatprep.subr.bf16.mxu0 0
      %2866 = vmatpush2.bf16.msra.mxu0 %v1990
      %2867 = vmatprep.subr.bf16.mxu0 0
      %2868 = vmatpush2.bf16.msra.mxu0 %v1989
      %2869 = vmatprep.mubr.bf16.mxu0 %v2795
      %2870 = vmatmul.mubr.bf16.gmra.mxu0 %v2794
      %v2871 = vpop.f32.mrf.mxu0
      %v2872 = vadd.f32 %v2831, %v2871
      %v2873 = vpop.f32.mrf.mxu0
      %v2874 = vpop.f32.mrf.mxu0
      %v2875 = vadd.f32 %v2834, %v2874
      %v2876 = vpop.f32.mrf.mxu0
      %2877 = vdwg.mxu0
      %v2878 = vadd.f32 %v2605, %v2872
      %v2879 = vadd.f32 %v2606, %v2875
      %v2880 = vadd.f32 %v2878, %v2118
      %v2881 = vadd.f32 %v2879, %v2118
      %s2882 = scalar_lea.vmem %s2, 1
      %v2883 = vld [vmem:[%s2882] sm:$0x1]
      %s2884 = scalar_lea.vmem %s3, 1
      %v2885 = vld [vmem:[%s2884] sm:$0x1]
      %v2887 = vlaneseq
      %v2888 = vshrl.u32 %v2887, 7
      %v2889 = vsub.s32 0, %v2888
      %v2890 = vrot.slane %v2883, %v2889
      %v2892 = vmul.f32 %v2142, %v2890
      %v2893 = vmul.f32 %v2143, %v2890
      %v2895 = vlaneseq
      %v2896 = vshrl.u32 %v2895, 7
      %v2897 = vsub.s32 0, %v2896
      %v2898 = vrot.slane %v2885, %v2897
      %v2900 = vadd.f32 %v2892, %v2898
      %v2901 = vadd.f32 %v2893, %v2898
      %v2902 = vpack.c.bf16 %v2901, %v2900
      %2903 = vadd.xlane.f32.xlu0 %v2880
      %v2904 = vpop.xlane.xlu0 %2903
      %2905 = vadd.xlane.f32.xlu0 %v2881
      %v2906 = vpop.xlane.xlu0 %2905
      %v2907 = vmul.f32 %v2904, %v570
      %v2908 = vmul.f32 %v2906, %v570
      %v2909 = vsub.f32 %v2880, %v2907
      %v2910 = vsub.f32 %v2881, %v2908
      %v2911 = vmul.f32 %v2909, %v2909
      %v2912 = vmul.f32 %v2910, %v2910
      %2913 = vadd.xlane.f32.xlu0 %v2911
      %v2914 = vpop.xlane.xlu0 %2913
      %2915 = vadd.xlane.f32.xlu0 %v2912
      %v2916 = vpop.xlane.xlu0 %2915
      %v2917 = vmul.f32 %v2914, %v570
      %v2918 = vmul.f32 %v2916, %v570
      %v2919 = vadd.f32 %v2917, 1e-05
      %v2920 = vadd.f32 %v2918, 1e-05
      %v2921 = vrsqrt.pop %v2919
      %v2922 = vrsqrt.pop %v2920
      %v2923 = vmul.f32 %v2909, %v2921
      %v2924 = vmul.f32 %v2910, %v2922
      %v2925 = vmul.f32 %v2923, %v2890
      %v2926 = vmul.f32 %v2924, %v2890
      %v2927 = vadd.f32 %v2925, %v2898
      %v2928 = vadd.f32 %v2926, %v2898
      %v2929 = vpack.c.bf16 %v2928, %v2927
      %s2930 = scalar_lea.vmem %s4, 64
      %v2931 = vld [vmem:[%s2930] sm:$0xf]
      %v2932 = vld [vmem:[%s2930 + $0x4] sm:$0xf]
      %v2933 = vld [vmem:[%s2930 + $0x8] sm:$0xf]
      %v2934 = vld [vmem:[%s2930 + $0xc] sm:$0xf]
      %v2935 = vld [vmem:[%s2930 + $0x10] sm:$0xf]
      %v2936 = vld [vmem:[%s2930 + $0x14] sm:$0xf]
      %v2937 = vld [vmem:[%s2930 + $0x18] sm:$0xf]
      %v2938 = vld [vmem:[%s2930 + $0x1c] sm:$0xf]
      %v2939 = vld [vmem:[%s2930 + $0x20] sm:$0xf]
      %v2940 = vld [vmem:[%s2930 + $0x24] sm:$0xf]
      %v2941 = vld [vmem:[%s2930 + $0x28] sm:$0xf]
      %v2942 = vld [vmem:[%s2930 + $0x2c] sm:$0xf]
      %v2943 = vld [vmem:[%s2930 + $0x30] sm:$0xf]
      %v2944 = vld [vmem:[%s2930 + $0x34] sm:$0xf]
      %v2945 = vld [vmem:[%s2930 + $0x38] sm:$0xf]
      %v2946 = vld [vmem:[%s2930 + $0x3c] sm:$0xf]
      %v2963 = vunpack.c.l.b16 %v2931
      %v2964 = vunpack.c.l.b16 %v2932
      %v2965 = vunpack.c.l.b16 %v2933
      %v2966 = vunpack.c.l.b16 %v2934
      %v2967 = vunpack.c.l.b16 %v2935
      %v2968 = vunpack.c.l.b16 %v2936
      %v2969 = vunpack.c.l.b16 %v2937
      %v2970 = vunpack.c.l.b16 %v2938
      %v2971 = vunpack.c.l.b16 %v2939
      %v2972 = vunpack.c.l.b16 %v2940
      %v2973 = vunpack.c.l.b16 %v2941
      %v2974 = vunpack.c.l.b16 %v2942
      %v2975 = vunpack.c.l.b16 %v2943
      %v2976 = vunpack.c.l.b16 %v2944
      %v2977 = vunpack.c.l.b16 %v2945
      %v2978 = vunpack.c.l.b16 %v2946
      %v2979 = vpack.c.b16 %v2964, %v2963
      %v2980 = vpack.c.b16 %v2966, %v2965
      %v2981 = vpack.c.b16 %v2968, %v2967
      %v2982 = vpack.c.b16 %v2970, %v2969
      %v2983 = vpack.c.b16 %v2972, %v2971
      %v2984 = vpack.c.b16 %v2974, %v2973
      %v2985 = vpack.c.b16 %v2976, %v2975
      %v2986 = vpack.c.b16 %v2978, %v2977
      %2995 = vmatprep.subr.bf16.mxu0 0
      %2996 = vmatpush1.bf16.msra.mxu0 %v2986
      %2997 = vmatprep.subr.bf16.mxu0 0
      %2998 = vmatpush1.bf16.msra.mxu0 %v2985
      %2999 = vmatprep.subr.bf16.mxu0 0
      %3000 = vmatpush1.bf16.msra.mxu0 %v2984
      %3001 = vmatprep.subr.bf16.mxu0 0
      %3002 = vmatpush1.bf16.msra.mxu0 %v2983
      %3003 = vmatprep.subr.bf16.mxu0 0
      %3004 = vmatpush1.bf16.msra.mxu0 %v2982
      %3005 = vmatprep.subr.bf16.mxu0 0
      %3006 = vmatpush1.bf16.msra.mxu0 %v2981
      %3007 = vmatprep.subr.bf16.mxu0 0
      %3008 = vmatpush1.bf16.msra.mxu0 %v2980
      %3009 = vmatprep.subr.bf16.mxu0 0
      %3010 = vmatpush1.bf16.msra.mxu0 %v2979
      %3011 = vmatprep.subr.bf16.mxu0 0
      %3012 = vmatpush2.bf16.msra.mxu0 0
      %3013 = vmatprep.subr.bf16.mxu0 0
      %3014 = vmatpush2.bf16.msra.mxu0 0
      %3015 = vmatprep.subr.bf16.mxu0 0
      %3016 = vmatpush2.bf16.msra.mxu0 0
      %3017 = vmatprep.subr.bf16.mxu0 0
      %3018 = vmatpush2.bf16.msra.mxu0 0
      %3019 = vmatprep.subr.bf16.mxu0 0
      %3020 = vmatpush2.bf16.msra.mxu0 0
      %3021 = vmatprep.subr.bf16.mxu0 0
      %3022 = vmatpush2.bf16.msra.mxu0 0
      %3023 = vmatprep.subr.bf16.mxu0 0
      %3024 = vmatpush2.bf16.msra.mxu0 0
      %3025 = vmatprep.subr.bf16.mxu0 0
      %3026 = vmatpush2.bf16.msra.mxu0 0
      %3027 = vmatprep.mubr.bf16.mxu0 0
      %3028 = vmatmul.mubr.bf16.gmra.mxu0 %v2902
      %v3029 = vpop.f32.mrf.mxu0
      %v3030 = vadd.f32 0.0, %v3029
      %v3031 = vpop.f32.mrf.mxu0
      %v3032 = vpop.f32.mrf.mxu0
      %v3033 = vadd.f32 0.0, %v3032
      %v3034 = vpop.f32.mrf.mxu0
      %3035 = vdwg.mxu0
      %s3036 = scalar_lea.vmem %s5, 64
      %v3037 = vld [vmem:[%s3036] sm:$0xf]
      %v3038 = vld [vmem:[%s3036 + $0x4] sm:$0xf]
      %v3039 = vld [vmem:[%s3036 + $0x8] sm:$0xf]
      %v3040 = vld [vmem:[%s3036 + $0xc] sm:$0xf]
      %v3041 = vld [vmem:[%s3036 + $0x10] sm:$0xf]
      %v3042 = vld [vmem:[%s3036 + $0x14] sm:$0xf]
      %v3043 = vld [vmem:[%s3036 + $0x18] sm:$0xf]
      %v3044 = vld [vmem:[%s3036 + $0x1c] sm:$0xf]
      %v3045 = vld [vmem:[%s3036 + $0x20] sm:$0xf]
      %v3046 = vld [vmem:[%s3036 + $0x24] sm:$0xf]
      %v3047 = vld [vmem:[%s3036 + $0x28] sm:$0xf]
      %v3048 = vld [vmem:[%s3036 + $0x2c] sm:$0xf]
      %v3049 = vld [vmem:[%s3036 + $0x30] sm:$0xf]
      %v3050 = vld [vmem:[%s3036 + $0x34] sm:$0xf]
      %v3051 = vld [vmem:[%s3036 + $0x38] sm:$0xf]
      %v3052 = vld [vmem:[%s3036 + $0x3c] sm:$0xf]
      %v3069 = vunpack.c.l.b16 %v3037
      %v3070 = vunpack.c.l.b16 %v3038
      %v3071 = vunpack.c.l.b16 %v3039
      %v3072 = vunpack.c.l.b16 %v3040
      %v3073 = vunpack.c.l.b16 %v3041
      %v3074 = vunpack.c.l.b16 %v3042
      %v3075 = vunpack.c.l.b16 %v3043
      %v3076 = vunpack.c.l.b16 %v3044
      %v3077 = vunpack.c.l.b16 %v3045
      %v3078 = vunpack.c.l.b16 %v3046
      %v3079 = vunpack.c.l.b16 %v3047
      %v3080 = vunpack.c.l.b16 %v3048
      %v3081 = vunpack.c.l.b16 %v3049
      %v3082 = vunpack.c.l.b16 %v3050
      %v3083 = vunpack.c.l.b16 %v3051
      %v3084 = vunpack.c.l.b16 %v3052
      %v3085 = vpack.c.b16 %v3070, %v3069
      %v3086 = vpack.c.b16 %v3072, %v3071
      %v3087 = vpack.c.b16 %v3074, %v3073
      %v3088 = vpack.c.b16 %v3076, %v3075
      %v3089 = vpack.c.b16 %v3078, %v3077
      %v3090 = vpack.c.b16 %v3080, %v3079
      %v3091 = vpack.c.b16 %v3082, %v3081
      %v3092 = vpack.c.b16 %v3084, %v3083
      %3101 = vmatprep.subr.bf16.mxu0 0
      %3102 = vmatpush1.bf16.msra.mxu0 %v3092
      %3103 = vmatprep.subr.bf16.mxu0 0
      %3104 = vmatpush1.bf16.msra.mxu0 %v3091
      %3105 = vmatprep.subr.bf16.mxu0 0
      %3106 = vmatpush1.bf16.msra.mxu0 %v3090
      %3107 = vmatprep.subr.bf16.mxu0 0
      %3108 = vmatpush1.bf16.msra.mxu0 %v3089
      %3109 = vmatprep.subr.bf16.mxu0 0
      %3110 = vmatpush1.bf16.msra.mxu0 %v3088
      %3111 = vmatprep.subr.bf16.mxu0 0
      %3112 = vmatpush1.bf16.msra.mxu0 %v3087
      %3113 = vmatprep.subr.bf16.mxu0 0
      %3114 = vmatpush1.bf16.msra.mxu0 %v3086
      %3115 = vmatprep.subr.bf16.mxu0 0
      %3116 = vmatpush1.bf16.msra.mxu0 %v3085
      %3117 = vmatprep.subr.bf16.mxu0 0
      %3118 = vmatpush2.bf16.msra.mxu0 0
      %3119 = vmatprep.subr.bf16.mxu0 0
      %3120 = vmatpush2.bf16.msra.mxu0 0
      %3121 = vmatprep.subr.bf16.mxu0 0
      %3122 = vmatpush2.bf16.msra.mxu0 0
      %3123 = vmatprep.subr.bf16.mxu0 0
      %3124 = vmatpush2.bf16.msra.mxu0 0
      %3125 = vmatprep.subr.bf16.mxu0 0
      %3126 = vmatpush2.bf16.msra.mxu0 0
      %3127 = vmatprep.subr.bf16.mxu0 0
      %3128 = vmatpush2.bf16.msra.mxu0 0
      %3129 = vmatprep.subr.bf16.mxu0 0
      %3130 = vmatpush2.bf16.msra.mxu0 0
      %3131 = vmatprep.subr.bf16.mxu0 0
      %3132 = vmatpush2.bf16.msra.mxu0 0
      %3133 = vmatprep.mubr.bf16.mxu0 0
      %3134 = vmatmul.mubr.bf16.gmra.mxu0 %v2929
      %v3135 = vpop.f32.mrf.mxu0
      %v3136 = vadd.f32 0.0, %v3135
      %v3137 = vpop.f32.mrf.mxu0
      %v3138 = vpop.f32.mrf.mxu0
      %v3139 = vadd.f32 0.0, %v3138
      %v3140 = vpop.f32.mrf.mxu0
      %3141 = vdwg.mxu0
      %s3142 = scalar_lea.vmem %s6, 64
      %v3143 = vld [vmem:[%s3142] sm:$0xf]
      %v3144 = vld [vmem:[%s3142 + $0x4] sm:$0xf]
      %v3145 = vld [vmem:[%s3142 + $0x8] sm:$0xf]
      %v3146 = vld [vmem:[%s3142 + $0xc] sm:$0xf]
      %v3147 = vld [vmem:[%s3142 + $0x10] sm:$0xf]
      %v3148 = vld [vmem:[%s3142 + $0x14] sm:$0xf]
      %v3149 = vld [vmem:[%s3142 + $0x18] sm:$0xf]
      %v3150 = vld [vmem:[%s3142 + $0x1c] sm:$0xf]
      %v3151 = vld [vmem:[%s3142 + $0x20] sm:$0xf]
      %v3152 = vld [vmem:[%s3142 + $0x24] sm:$0xf]
      %v3153 = vld [vmem:[%s3142 + $0x28] sm:$0xf]
      %v3154 = vld [vmem:[%s3142 + $0x2c] sm:$0xf]
      %v3155 = vld [vmem:[%s3142 + $0x30] sm:$0xf]
      %v3156 = vld [vmem:[%s3142 + $0x34] sm:$0xf]
      %v3157 = vld [vmem:[%s3142 + $0x38] sm:$0xf]
      %v3158 = vld [vmem:[%s3142 + $0x3c] sm:$0xf]
      %v3175 = vunpack.c.l.b16 %v3143
      %v3176 = vunpack.c.l.b16 %v3144
      %v3177 = vunpack.c.l.b16 %v3145
      %v3178 = vunpack.c.l.b16 %v3146
      %v3179 = vunpack.c.l.b16 %v3147
      %v3180 = vunpack.c.l.b16 %v3148
      %v3181 = vunpack.c.l.b16 %v3149
      %v3182 = vunpack.c.l.b16 %v3150
      %v3183 = vunpack.c.l.b16 %v3151
      %v3184 = vunpack.c.l.b16 %v3152
      %v3185 = vunpack.c.l.b16 %v3153
      %v3186 = vunpack.c.l.b16 %v3154
      %v3187 = vunpack.c.l.b16 %v3155
      %v3188 = vunpack.c.l.b16 %v3156
      %v3189 = vunpack.c.l.b16 %v3157
      %v3190 = vunpack.c.l.b16 %v3158
      %v3191 = vpack.c.b16 %v3176, %v3175
      %v3192 = vpack.c.b16 %v3178, %v3177
      %v3193 = vpack.c.b16 %v3180, %v3179
      %v3194 = vpack.c.b16 %v3182, %v3181
      %v3195 = vpack.c.b16 %v3184, %v3183
      %v3196 = vpack.c.b16 %v3186, %v3185
      %v3197 = vpack.c.b16 %v3188, %v3187
      %v3198 = vpack.c.b16 %v3190, %v3189
      %3207 = vmatprep.subr.bf16.mxu0 0
      %3208 = vmatpush1.bf16.msra.mxu0 %v3198
      %3209 = vmatprep.subr.bf16.mxu0 0
      %3210 = vmatpush1.bf16.msra.mxu0 %v3197
      %3211 = vmatprep.subr.bf16.mxu0 0
      %3212 = vmatpush1.bf16.msra.mxu0 %v3196
      %3213 = vmatprep.subr.bf16.mxu0 0
      %3214 = vmatpush1.bf16.msra.mxu0 %v3195
      %3215 = vmatprep.subr.bf16.mxu0 0
      %3216 = vmatpush1.bf16.msra.mxu0 %v3194
      %3217 = vmatprep.subr.bf16.mxu0 0
      %3218 = vmatpush1.bf16.msra.mxu0 %v3193
      %3219 = vmatprep.subr.bf16.mxu0 0
      %3220 = vmatpush1.bf16.msra.mxu0 %v3192
      %3221 = vmatprep.subr.bf16.mxu0 0
      %3222 = vmatpush1.bf16.msra.mxu0 %v3191
      %3223 = vmatprep.subr.bf16.mxu0 0
      %3224 = vmatpush2.bf16.msra.mxu0 0
      %3225 = vmatprep.subr.bf16.mxu0 0
      %3226 = vmatpush2.bf16.msra.mxu0 0
      %3227 = vmatprep.subr.bf16.mxu0 0
      %3228 = vmatpush2.bf16.msra.mxu0 0
      %3229 = vmatprep.subr.bf16.mxu0 0
      %3230 = vmatpush2.bf16.msra.mxu0 0
      %3231 = vmatprep.subr.bf16.mxu0 0
      %3232 = vmatpush2.bf16.msra.mxu0 0
      %3233 = vmatprep.subr.bf16.mxu0 0
      %3234 = vmatpush2.bf16.msra.mxu0 0
      %3235 = vmatprep.subr.bf16.mxu0 0
      %3236 = vmatpush2.bf16.msra.mxu0 0
      %3237 = vmatprep.subr.bf16.mxu0 0
      %3238 = vmatpush2.bf16.msra.mxu0 0
      %3239 = vmatprep.mubr.bf16.mxu0 0
      %3240 = vmatmul.mubr.bf16.gmra.mxu0 %v2929
      %v3241 = vpop.f32.mrf.mxu0
      %v3242 = vadd.f32 0.0, %v3241
      %v3243 = vpop.f32.mrf.mxu0
      %v3244 = vpop.f32.mrf.mxu0
      %v3245 = vadd.f32 0.0, %v3244
      %v3246 = vpop.f32.mrf.mxu0
      %3247 = vdwg.mxu0
      %s3248 = scalar_lea.vmem %s7, 64
      %v3249 = vld [vmem:[%s3248] sm:$0xf]
      %v3250 = vld [vmem:[%s3248 + $0x4] sm:$0xf]
      %v3251 = vld [vmem:[%s3248 + $0x8] sm:$0xf]
      %v3252 = vld [vmem:[%s3248 + $0xc] sm:$0xf]
      %v3253 = vld [vmem:[%s3248 + $0x10] sm:$0xf]
      %v3254 = vld [vmem:[%s3248 + $0x14] sm:$0xf]
      %v3255 = vld [vmem:[%s3248 + $0x18] sm:$0xf]
      %v3256 = vld [vmem:[%s3248 + $0x1c] sm:$0xf]
      %v3257 = vld [vmem:[%s3248 + $0x20] sm:$0xf]
      %v3258 = vld [vmem:[%s3248 + $0x24] sm:$0xf]
      %v3259 = vld [vmem:[%s3248 + $0x28] sm:$0xf]
      %v3260 = vld [vmem:[%s3248 + $0x2c] sm:$0xf]
      %v3261 = vld [vmem:[%s3248 + $0x30] sm:$0xf]
      %v3262 = vld [vmem:[%s3248 + $0x34] sm:$0xf]
      %v3263 = vld [vmem:[%s3248 + $0x38] sm:$0xf]
      %v3264 = vld [vmem:[%s3248 + $0x3c] sm:$0xf]
      %v3265 = vpack.c.bf16 %v3033, %v3030
      %v3266 = vpack.c.bf16 %v3139, %v3136
      %v3268 = vsel %vm966, %v3265, 0
      %v3271 = vsel %vm966, %v3266, 0
      %3273 = vmatprep.subr.bf16.mxu0 0
      %3274 = vmatpush1.bf16.xpose.msra.mxu0 0
      %3275 = vmatprep.subr.bf16.mxu0 0
      %3276 = vmatpush1.bf16.xpose.msra.mxu0 0
      %3277 = vmatprep.subr.bf16.mxu0 0
      %3278 = vmatpush1.bf16.xpose.msra.mxu0 0
      %3279 = vmatprep.subr.bf16.mxu0 0
      %3280 = vmatpush1.bf16.xpose.msra.mxu0 0
      %3281 = vmatprep.subr.bf16.mxu0 0
      %3282 = vmatpush1.bf16.xpose.msra.mxu0 0
      %3283 = vmatprep.subr.bf16.mxu0 0
      %3284 = vmatpush1.bf16.xpose.msra.mxu0 0
      %3285 = vmatprep.subr.bf16.mxu0 0
      %3286 = vmatpush1.bf16.xpose.msra.mxu0 0
      %3287 = vmatprep.subr.bf16.mxu0 0
      %3288 = vmatpush1.bf16.xpose.msra.mxu0 %v3271
      %3289 = vmatprep.subr.bf16.mxu0 0
      %3290 = vmatpush2.bf16.xpose.msra.mxu0 0
      %3291 = vmatprep.subr.bf16.mxu0 0
      %3292 = vmatpush2.bf16.xpose.msra.mxu0 0
      %3293 = vmatprep.subr.bf16.mxu0 0
      %3294 = vmatpush2.bf16.xpose.msra.mxu0 0
      %3295 = vmatprep.subr.bf16.mxu0 0
      %3296 = vmatpush2.bf16.xpose.msra.mxu0 0
      %3297 = vmatprep.subr.bf16.mxu0 0
      %3298 = vmatpush2.bf16.xpose.msra.mxu0 0
      %3299 = vmatprep.subr.bf16.mxu0 0
      %3300 = vmatpush2.bf16.xpose.msra.mxu0 0
      %3301 = vmatprep.subr.bf16.mxu0 0
      %3302 = vmatpush2.bf16.xpose.msra.mxu0 0
      %3303 = vmatprep.subr.bf16.mxu0 0
      %3304 = vmatpush2.bf16.xpose.msra.mxu0 0
      %3305 = vmatprep.mubr.bf16.mxu0 0
      %3306 = vmatmul.mubr.bf16.gmra.mxu0 %v3268
      %v3307 = vpop.f32.mrf.mxu0
      %v3308 = vadd.f32 0.0, %v3307
      %v3309 = vpop.f32.mrf.mxu0
      %v3310 = vpop.f32.mrf.mxu0
      %v3311 = vadd.f32 0.0, %v3310
      %v3312 = vpop.f32.mrf.mxu0
      %3313 = vdwg.mxu0
      %v3314 = vsel %vm1014, %v3308, -inf
      %3315 = vmax.xlane.f32.xlu0 %v3314
      %v3316 = vpop.xlane.xlu0 %3315
      %v3317 = vsel %vm1014, %v3311, -inf
      %3318 = vmax.xlane.f32.xlu0 %v3317
      %v3319 = vpop.xlane.xlu0 %3318
      %v3320 = vsub.f32 %v3308, %v3316
      %v3321 = vsub.f32 %v3311, %v3319
      %v3322 = vmul.f32 %v3320, 1.442695
      %v3323 = vpow.pop %v3322
      %v3324 = vmul.f32 %v3321, 1.442695
      %v3325 = vpow.pop %v3324
      %v3326 = vsel %vm1014, %v3323, 0.0
      %3327 = vadd.xlane.f32.xlu0 %v3326
      %v3328 = vpop.xlane.xlu0 %3327
      %v3329 = vsel %vm1014, %v3325, 0.0
      %3330 = vadd.xlane.f32.xlu0 %v3329
      %v3331 = vpop.xlane.xlu0 %3330
      %v3332 = vrcp.pop %v3328
      %v3333 = vrcp.pop %v3331
      %v3334 = vmul.f32 %v3323, %v3332
      %v3335 = vmul.f32 %v3325, %v3333
      %v3336 = vpack.c.bf16 %v3335, %v3334
      %v3337 = vpack.c.bf16 %v3245, %v3242
      %v3339 = vsel %vm1014, %v3336, 0
      %3341 = vmatprep.subr.bf16.mxu0 0
      %3342 = vmatpush1.bf16.msra.mxu0 0
      %3343 = vmatprep.subr.bf16.mxu0 0
      %3344 = vmatpush1.bf16.msra.mxu0 0
      %3345 = vmatprep.subr.bf16.mxu0 0
      %3346 = vmatpush1.bf16.msra.mxu0 0
      %3347 = vmatprep.subr.bf16.mxu0 0
      %3348 = vmatpush1.bf16.msra.mxu0 0
      %3349 = vmatprep.subr.bf16.mxu0 0
      %3350 = vmatpush1.bf16.msra.mxu0 0
      %3351 = vmatprep.subr.bf16.mxu0 0
      %3352 = vmatpush1.bf16.msra.mxu0 0
      %3353 = vmatprep.subr.bf16.mxu0 0
      %3354 = vmatpush1.bf16.msra.mxu0 0
      %3355 = vmatprep.subr.bf16.mxu0 0
      %3356 = vmatpush1.bf16.msra.mxu0 %v3337
      %3357 = vmatprep.subr.bf16.mxu0 0
      %3358 = vmatpush2.bf16.msra.mxu0 0
      %3359 = vmatprep.subr.bf16.mxu0 0
      %3360 = vmatpush2.bf16.msra.mxu0 0
      %3361 = vmatprep.subr.bf16.mxu0 0
      %3362 = vmatpush2.bf16.msra.mxu0 0
      %3363 = vmatprep.subr.bf16.mxu0 0
      %3364 = vmatpush2.bf16.msra.mxu0 0
      %3365 = vmatprep.subr.bf16.mxu0 0
      %3366 = vmatpush2.bf16.msra.mxu0 0
      %3367 = vmatprep.subr.bf16.mxu0 0
      %3368 = vmatpush2.bf16.msra.mxu0 0
      %3369 = vmatprep.subr.bf16.mxu0 0
      %3370 = vmatpush2.bf16.msra.mxu0 0
      %3371 = vmatprep.subr.bf16.mxu0 0
      %3372 = vmatpush2.bf16.msra.mxu0 0
      %3373 = vmatprep.mubr.bf16.mxu0 0
      %3374 = vmatmul.mubr.bf16.gmra.mxu0 %v3339
      %v3375 = vpop.f32.mrf.mxu0
      %v3376 = vadd.f32 0.0, %v3375
      %v3377 = vpop.f32.mrf.mxu0
      %v3378 = vpop.f32.mrf.mxu0
      %v3379 = vadd.f32 0.0, %v3378
      %v3380 = vpop.f32.mrf.mxu0
      %3381 = vdwg.mxu0
      %v3382 = vpack.c.bf16 %v3379, %v3376
      %3384 = vrot.lane.b32.xlu0 %v3265, 64
      %v3385 = vpop.permute.xlu0 %3384
      %3387 = vrot.lane.b32.xlu0 %v3266, 64
      %v3388 = vpop.permute.xlu0 %3387
      %v3390 = vsel %vm966, %v3385, 0
      %v3393 = vsel %vm966, %v3388, 0
      %3395 = vmatprep.subr.bf16.mxu0 0
      %3396 = vmatpush1.bf16.xpose.msra.mxu0 0
      %3397 = vmatprep.subr.bf16.mxu0 0
      %3398 = vmatpush1.bf16.xpose.msra.mxu0 0
      %3399 = vmatprep.subr.bf16.mxu0 0
      %3400 = vmatpush1.bf16.xpose.msra.mxu0 0
      %3401 = vmatprep.subr.bf16.mxu0 0
      %3402 = vmatpush1.bf16.xpose.msra.mxu0 0
      %3403 = vmatprep.subr.bf16.mxu0 0
      %3404 = vmatpush1.bf16.xpose.msra.mxu0 0
      %3405 = vmatprep.subr.bf16.mxu0 0
      %3406 = vmatpush1.bf16.xpose.msra.mxu0 0
      %3407 = vmatprep.subr.bf16.mxu0 0
      %3408 = vmatpush1.bf16.xpose.msra.mxu0 0
      %3409 = vmatprep.subr.bf16.mxu0 0
      %3410 = vmatpush1.bf16.xpose.msra.mxu0 %v3393
      %3411 = vmatprep.subr.bf16.mxu0 0
      %3412 = vmatpush2.bf16.xpose.msra.mxu0 0
      %3413 = vmatprep.subr.bf16.mxu0 0
      %3414 = vmatpush2.bf16.xpose.msra.mxu0 0
      %3415 = vmatprep.subr.bf16.mxu0 0
      %3416 = vmatpush2.bf16.xpose.msra.mxu0 0
      %3417 = vmatprep.subr.bf16.mxu0 0
      %3418 = vmatpush2.bf16.xpose.msra.mxu0 0
      %3419 = vmatprep.subr.bf16.mxu0 0
      %3420 = vmatpush2.bf16.xpose.msra.mxu0 0
      %3421 = vmatprep.subr.bf16.mxu0 0
      %3422 = vmatpush2.bf16.xpose.msra.mxu0 0
      %3423 = vmatprep.subr.bf16.mxu0 0
      %3424 = vmatpush2.bf16.xpose.msra.mxu0 0
      %3425 = vmatprep.subr.bf16.mxu0 0
      %3426 = vmatpush2.bf16.xpose.msra.mxu0 0
      %3427 = vmatprep.mubr.bf16.mxu0 0
      %3428 = vmatmul.mubr.bf16.gmra.mxu0 %v3390
      %v3429 = vpop.f32.mrf.mxu0
      %v3430 = vadd.f32 0.0, %v3429
      %v3431 = vpop.f32.mrf.mxu0
      %v3432 = vpop.f32.mrf.mxu0
      %v3433 = vadd.f32 0.0, %v3432
      %v3434 = vpop.f32.mrf.mxu0
      %3435 = vdwg.mxu0
      %v3436 = vsel %vm1014, %v3430, -inf
      %3437 = vmax.xlane.f32.xlu0 %v3436
      %v3438 = vpop.xlane.xlu0 %3437
      %v3439 = vsel %vm1014, %v3433, -inf
      %3440 = vmax.xlane.f32.xlu0 %v3439
      %v3441 = vpop.xlane.xlu0 %3440
      %v3442 = vsub.f32 %v3430, %v3438
      %v3443 = vsub.f32 %v3433, %v3441
      %v3444 = vmul.f32 %v3442, 1.442695
      %v3445 = vpow.pop %v3444
      %v3446 = vmul.f32 %v3443, 1.442695
      %v3447 = vpow.pop %v3446
      %v3448 = vsel %vm1014, %v3445, 0.0
      %3449 = vadd.xlane.f32.xlu0 %v3448
      %v3450 = vpop.xlane.xlu0 %3449
      %v3451 = vsel %vm1014, %v3447, 0.0
      %3452 = vadd.xlane.f32.xlu0 %v3451
      %v3453 = vpop.xlane.xlu0 %3452
      %v3454 = vrcp.pop %v3450
      %v3455 = vrcp.pop %v3453
      %v3456 = vmul.f32 %v3445, %v3454
      %v3457 = vmul.f32 %v3447, %v3455
      %v3458 = vpack.c.bf16 %v3457, %v3456
      %3460 = vrot.lane.b32.xlu0 %v3337, 64
      %v3461 = vpop.permute.xlu0 %3460
      %v3464 = vsel %vm1014, %v3458, 0
      %3466 = vmatprep.subr.bf16.mxu0 0
      %3467 = vmatpush1.bf16.msra.mxu0 0
      %3468 = vmatprep.subr.bf16.mxu0 0
      %3469 = vmatpush1.bf16.msra.mxu0 0
      %3470 = vmatprep.subr.bf16.mxu0 0
      %3471 = vmatpush1.bf16.msra.mxu0 0
      %3472 = vmatprep.subr.bf16.mxu0 0
      %3473 = vmatpush1.bf16.msra.mxu0 0
      %3474 = vmatprep.subr.bf16.mxu0 0
      %3475 = vmatpush1.bf16.msra.mxu0 0
      %3476 = vmatprep.subr.bf16.mxu0 0
      %3477 = vmatpush1.bf16.msra.mxu0 0
      %3478 = vmatprep.subr.bf16.mxu0 0
      %3479 = vmatpush1.bf16.msra.mxu0 0
      %3480 = vmatprep.subr.bf16.mxu0 0
      %3481 = vmatpush1.bf16.msra.mxu0 %v3461
      %3482 = vmatprep.subr.bf16.mxu0 0
      %3483 = vmatpush2.bf16.msra.mxu0 0
      %3484 = vmatprep.subr.bf16.mxu0 0
      %3485 = vmatpush2.bf16.msra.mxu0 0
      %3486 = vmatprep.subr.bf16.mxu0 0
      %3487 = vmatpush2.bf16.msra.mxu0 0
      %3488 = vmatprep.subr.bf16.mxu0 0
      %3489 = vmatpush2.bf16.msra.mxu0 0
      %3490 = vmatprep.subr.bf16.mxu0 0
      %3491 = vmatpush2.bf16.msra.mxu0 0
      %3492 = vmatprep.subr.bf16.mxu0 0
      %3493 = vmatpush2.bf16.msra.mxu0 0
      %3494 = vmatprep.subr.bf16.mxu0 0
      %3495 = vmatpush2.bf16.msra.mxu0 0
      %3496 = vmatprep.subr.bf16.mxu0 0
      %3497 = vmatpush2.bf16.msra.mxu0 0
      %3498 = vmatprep.mubr.bf16.mxu0 0
      %3499 = vmatmul.mubr.bf16.gmra.mxu0 %v3464
      %v3500 = vpop.f32.mrf.mxu0
      %v3501 = vadd.f32 0.0, %v3500
      %v3502 = vpop.f32.mrf.mxu0
      %v3503 = vpop.f32.mrf.mxu0
      %v3504 = vadd.f32 0.0, %v3503
      %v3505 = vpop.f32.mrf.mxu0
      %3506 = vdwg.mxu0
      %v3507 = vpack.c.bf16 %v3504, %v3501
      %v3516 = vunpack.c.l.b16 %v3257
      %v3517 = vunpack.c.l.b16 %v3258
      %v3518 = vunpack.c.l.b16 %v3259
      %v3519 = vunpack.c.l.b16 %v3260
      %v3520 = vunpack.c.l.b16 %v3261
      %v3521 = vunpack.c.l.b16 %v3262
      %v3522 = vunpack.c.l.b16 %v3263
      %v3523 = vunpack.c.l.b16 %v3264
      %v3524 = vpack.c.b16 %v3517, %v3516
      %v3525 = vpack.c.b16 %v3519, %v3518
      %v3526 = vpack.c.b16 %v3521, %v3520
      %v3527 = vpack.c.b16 %v3523, %v3522
      %v3533 = vsel %vm966, %v3507, 0
      %3535 = vmatprep.subr.bf16.mxu0 0
      %3536 = vmatpush1.bf16.msra.mxu0 0
      %3537 = vmatprep.subr.bf16.mxu0 0
      %3538 = vmatpush1.bf16.msra.mxu0 0
      %3539 = vmatprep.subr.bf16.mxu0 0
      %3540 = vmatpush1.bf16.msra.mxu0 0
      %3541 = vmatprep.subr.bf16.mxu0 0
      %3542 = vmatpush1.bf16.msra.mxu0 0
      %3543 = vmatprep.subr.bf16.mxu0 0
      %3544 = vmatpush1.bf16.msra.mxu0 %v3527
      %3545 = vmatprep.subr.bf16.mxu0 0
      %3546 = vmatpush1.bf16.msra.mxu0 %v3526
      %3547 = vmatprep.subr.bf16.mxu0 0
      %3548 = vmatpush1.bf16.msra.mxu0 %v3525
      %3549 = vmatprep.subr.bf16.mxu0 0
      %3550 = vmatpush1.bf16.msra.mxu0 %v3524
      %3551 = vmatprep.subr.bf16.mxu0 0
      %3552 = vmatpush2.bf16.msra.mxu0 0
      %3553 = vmatprep.subr.bf16.mxu0 0
      %3554 = vmatpush2.bf16.msra.mxu0 0
      %3555 = vmatprep.subr.bf16.mxu0 0
      %3556 = vmatpush2.bf16.msra.mxu0 0
      %3557 = vmatprep.subr.bf16.mxu0 0
      %3558 = vmatpush2.bf16.msra.mxu0 0
      %3559 = vmatprep.subr.bf16.mxu0 0
      %3560 = vmatpush2.bf16.msra.mxu0 0
      %3561 = vmatprep.subr.bf16.mxu0 0
      %3562 = vmatpush2.bf16.msra.mxu0 0
      %3563 = vmatprep.subr.bf16.mxu0 0
      %3564 = vmatpush2.bf16.msra.mxu0 0
      %3565 = vmatprep.subr.bf16.mxu0 0
      %3566 = vmatpush2.bf16.msra.mxu0 0
      %3567 = vmatprep.mubr.bf16.mxu0 0
      %3568 = vmatmul.mubr.bf16.gmra.mxu0 %v3533
      %v3569 = vpop.f32.mrf.mxu0
      %v3570 = vadd.f32 0.0, %v3569
      %v3571 = vpop.f32.mrf.mxu0
      %v3572 = vpop.f32.mrf.mxu0
      %v3573 = vadd.f32 0.0, %v3572
      %v3574 = vpop.f32.mrf.mxu0
      %3575 = vdwg.mxu0
      %v3584 = vunpack.c.l.b16 %v3249
      %v3585 = vunpack.c.l.b16 %v3250
      %v3586 = vunpack.c.l.b16 %v3251
      %v3587 = vunpack.c.l.b16 %v3252
      %v3588 = vunpack.c.l.b16 %v3253
      %v3589 = vunpack.c.l.b16 %v3254
      %v3590 = vunpack.c.l.b16 %v3255
      %v3591 = vunpack.c.l.b16 %v3256
      %v3592 = vpack.c.b16 %v3585, %v3584
      %v3593 = vpack.c.b16 %v3587, %v3586
      %v3594 = vpack.c.b16 %v3589, %v3588
      %v3595 = vpack.c.b16 %v3591, %v3590
      %v3601 = vsel %vm966, %v3382, 0
      %3603 = vmatprep.subr.bf16.mxu0 0
      %3604 = vmatpush1.bf16.msra.mxu0 0
      %3605 = vmatprep.subr.bf16.mxu0 0
      %3606 = vmatpush1.bf16.msra.mxu0 0
      %3607 = vmatprep.subr.bf16.mxu0 0
      %3608 = vmatpush1.bf16.msra.mxu0 0
      %3609 = vmatprep.subr.bf16.mxu0 0
      %3610 = vmatpush1.bf16.msra.mxu0 0
      %3611 = vmatprep.subr.bf16.mxu0 0
      %3612 = vmatpush1.bf16.msra.mxu0 %v3595
      %3613 = vmatprep.subr.bf16.mxu0 0
      %3614 = vmatpush1.bf16.msra.mxu0 %v3594
      %3615 = vmatprep.subr.bf16.mxu0 0
      %3616 = vmatpush1.bf16.msra.mxu0 %v3593
      %3617 = vmatprep.subr.bf16.mxu0 0
      %3618 = vmatpush1.bf16.msra.mxu0 %v3592
      %3619 = vmatprep.subr.bf16.mxu0 0
      %3620 = vmatpush2.bf16.msra.mxu0 0
      %3621 = vmatprep.subr.bf16.mxu0 0
      %3622 = vmatpush2.bf16.msra.mxu0 0
      %3623 = vmatprep.subr.bf16.mxu0 0
      %3624 = vmatpush2.bf16.msra.mxu0 0
      %3625 = vmatprep.subr.bf16.mxu0 0
      %3626 = vmatpush2.bf16.msra.mxu0 0
      %3627 = vmatprep.subr.bf16.mxu0 0
      %3628 = vmatpush2.bf16.msra.mxu0 0
      %3629 = vmatprep.subr.bf16.mxu0 0
      %3630 = vmatpush2.bf16.msra.mxu0 0
      %3631 = vmatprep.subr.bf16.mxu0 0
      %3632 = vmatpush2.bf16.msra.mxu0 0
      %3633 = vmatprep.subr.bf16.mxu0 0
      %3634 = vmatpush2.bf16.msra.mxu0 0
      %3635 = vmatprep.mubr.bf16.mxu0 0
      %3636 = vmatmul.mubr.bf16.gmra.mxu0 %v3601
      %v3637 = vpop.f32.mrf.mxu0
      %v3638 = vadd.f32 %v3570, %v3637
      %v3639 = vpop.f32.mrf.mxu0
      %v3640 = vpop.f32.mrf.mxu0
      %v3641 = vadd.f32 %v3573, %v3640
      %v3642 = vpop.f32.mrf.mxu0
      %3643 = vdwg.mxu0
      %v3644 = vadd.f32 %v2120, %v3638
      %v3645 = vadd.f32 %v2121, %v3641
      %s3646 = scalar_lea.vmem %s8, 1
      %v3647 = vld [vmem:[%s3646] sm:$0x1]
      %v3649 = vlaneseq
      %v3650 = vshrl.u32 %v3649, 7
      %v3651 = vsub.s32 0, %v3650
      %v3652 = vrot.slane %v3647, %v3651
      %v3654 = vadd.f32 %v3644, %v3652
      %v3655 = vadd.f32 %v3645, %v3652
      %s3656 = scalar_lea.vmem %s9, 1
      %v3657 = vld [vmem:[%s3656] sm:$0x1]
      %s3658 = scalar_lea.vmem %s10, 1
      %v3659 = vld [vmem:[%s3658] sm:$0x1]
      %3660 = vadd.xlane.f32.xlu0 %v3654
      %v3661 = vpop.xlane.xlu0 %3660
      %3662 = vadd.xlane.f32.xlu0 %v3655
      %v3663 = vpop.xlane.xlu0 %3662
      %v3664 = vmul.f32 %v3661, %v570
      %v3665 = vmul.f32 %v3663, %v570
      %v3666 = vsub.f32 %v3654, %v3664
      %v3667 = vsub.f32 %v3655, %v3665
      %v3668 = vmul.f32 %v3666, %v3666
      %v3669 = vmul.f32 %v3667, %v3667
      %3670 = vadd.xlane.f32.xlu0 %v3668
      %v3671 = vpop.xlane.xlu0 %3670
      %3672 = vadd.xlane.f32.xlu0 %v3669
      %v3673 = vpop.xlane.xlu0 %3672
      %v3674 = vmul.f32 %v3671, %v570
      %v3675 = vmul.f32 %v3673, %v570
      %v3676 = vadd.f32 %v3674, 1e-05
      %v3677 = vadd.f32 %v3675, 1e-05
      %v3678 = vrsqrt.pop %v3676
      %v3679 = vrsqrt.pop %v3677
      %v3680 = vmul.f32 %v3666, %v3678
      %v3681 = vmul.f32 %v3667, %v3679
      %v3683 = vlaneseq
      %v3684 = vshrl.u32 %v3683, 7
      %v3685 = vsub.s32 0, %v3684
      %v3686 = vrot.slane %v3657, %v3685
      %v3688 = vmul.f32 %v3680, %v3686
      %v3689 = vmul.f32 %v3681, %v3686
      %v3691 = vlaneseq
      %v3692 = vshrl.u32 %v3691, 7
      %v3693 = vsub.s32 0, %v3692
      %v3694 = vrot.slane %v3659, %v3693
      %v3696 = vadd.f32 %v3688, %v3694
      %v3697 = vadd.f32 %v3689, %v3694
      %v3698 = vpack.c.bf16 %v3697, %v3696
      %s3699 = scalar_lea.vmem %s11, 256
      %v3700 = vld [vmem:[%s3699] sm:$0xff]
      %v3701 = vld [vmem:[%s3699 + $0x8] sm:$0xff]
      %v3702 = vld [vmem:[%s3699 + $0x10] sm:$0xff]
      %v3703 = vld [vmem:[%s3699 + $0x18] sm:$0xff]
      %v3704 = vld [vmem:[%s3699 + $0x20] sm:$0xff]
      %v3705 = vld [vmem:[%s3699 + $0x28] sm:$0xff]
      %v3706 = vld [vmem:[%s3699 + $0x30] sm:$0xff]
      %v3707 = vld [vmem:[%s3699 + $0x38] sm:$0xff]
      %v3708 = vld [vmem:[%s3699 + $0x40] sm:$0xff]
      %v3709 = vld [vmem:[%s3699 + $0x48] sm:$0xff]
      %v3710 = vld [vmem:[%s3699 + $0x50] sm:$0xff]
      %v3711 = vld [vmem:[%s3699 + $0x58] sm:$0xff]
      %v3712 = vld [vmem:[%s3699 + $0x60] sm:$0xff]
      %v3713 = vld [vmem:[%s3699 + $0x68] sm:$0xff]
      %v3714 = vld [vmem:[%s3699 + $0x70] sm:$0xff]
      %v3715 = vld [vmem:[%s3699 + $0x78] sm:$0xff]
      %v3716 = vld [vmem:[%s3699 + $0x80] sm:$0xff]
      %v3717 = vld [vmem:[%s3699 + $0x88] sm:$0xff]
      %v3718 = vld [vmem:[%s3699 + $0x90] sm:$0xff]
      %v3719 = vld [vmem:[%s3699 + $0x98] sm:$0xff]
      %v3720 = vld [vmem:[%s3699 + $0xa0] sm:$0xff]
      %v3721 = vld [vmem:[%s3699 + $0xa8] sm:$0xff]
      %v3722 = vld [vmem:[%s3699 + $0xb0] sm:$0xff]
      %v3723 = vld [vmem:[%s3699 + $0xb8] sm:$0xff]
      %v3724 = vld [vmem:[%s3699 + $0xc0] sm:$0xff]
      %v3725 = vld [vmem:[%s3699 + $0xc8] sm:$0xff]
      %v3726 = vld [vmem:[%s3699 + $0xd0] sm:$0xff]
      %v3727 = vld [vmem:[%s3699 + $0xd8] sm:$0xff]
      %v3728 = vld [vmem:[%s3699 + $0xe0] sm:$0xff]
      %v3729 = vld [vmem:[%s3699 + $0xe8] sm:$0xff]
      %v3730 = vld [vmem:[%s3699 + $0xf0] sm:$0xff]
      %v3731 = vld [vmem:[%s3699 + $0xf8] sm:$0xff]
      %s3732 = scalar_lea.vmem %s12, 4
      %v3733 = vld [vmem:[%s3732] sm:$0xf]
      %v3735 = vlaneseq
      %v3736 = vshrl.u32 %v3735, 7
      %v3737 = vsub.s32 0, %v3736
      %v3738 = vrot.slane %v3733, %v3737
      %v3739 = vlaneseq
      %v3740 = vshrl.u32 %v3739, 7
      %v3741 = vsub.s32 1, %v3740
      %v3742 = vrot.slane %v3733, %v3741
      %v3743 = vlaneseq
      %v3744 = vshrl.u32 %v3743, 7
      %v3745 = vsub.s32 2, %v3744
      %v3746 = vrot.slane %v3733, %v3745
      %v3747 = vlaneseq
      %v3748 = vshrl.u32 %v3747, 7
      %v3749 = vsub.s32 3, %v3748
      %v3750 = vrot.slane %v3733, %v3749
      %v3787 = vunpack.c.l.b16 %v3700
      %v3788 = vunpack.c.h.b16 %v3700
      %v3789 = vunpack.c.l.b16 %v3701
      %v3790 = vunpack.c.h.b16 %v3701
      %v3791 = vunpack.c.l.b16 %v3702
      %v3792 = vunpack.c.h.b16 %v3702
      %v3793 = vunpack.c.l.b16 %v3703
      %v3794 = vunpack.c.h.b16 %v3703
      %v3795 = vunpack.c.l.b16 %v3704
      %v3796 = vunpack.c.h.b16 %v3704
      %v3797 = vunpack.c.l.b16 %v3705
      %v3798 = vunpack.c.h.b16 %v3705
      %v3799 = vunpack.c.l.b16 %v3706
      %v3800 = vunpack.c.h.b16 %v3706
      %v3801 = vunpack.c.l.b16 %v3707
      %v3802 = vunpack.c.h.b16 %v3707
      %v3803 = vunpack.c.l.b16 %v3708
      %v3804 = vunpack.c.h.b16 %v3708
      %v3805 = vunpack.c.l.b16 %v3709
      %v3806 = vunpack.c.h.b16 %v3709
      %v3807 = vunpack.c.l.b16 %v3710
      %v3808 = vunpack.c.h.b16 %v3710
      %v3809 = vunpack.c.l.b16 %v3711
      %v3810 = vunpack.c.h.b16 %v3711
      %v3811 = vunpack.c.l.b16 %v3712
      %v3812 = vunpack.c.h.b16 %v3712
      %v3813 = vunpack.c.l.b16 %v3713
      %v3814 = vunpack.c.h.b16 %v3713
      %v3815 = vunpack.c.l.b16 %v3714
      %v3816 = vunpack.c.h.b16 %v3714
      %v3817 = vunpack.c.l.b16 %v3715
      %v3818 = vunpack.c.h.b16 %v3715
      %v3819 = vunpack.c.l.b16 %v3716
      %v3820 = vunpack.c.h.b16 %v3716
      %v3821 = vunpack.c.l.b16 %v3717
      %v3822 = vunpack.c.h.b16 %v3717
      %v3823 = vunpack.c.l.b16 %v3718
      %v3824 = vunpack.c.h.b16 %v3718
      %v3825 = vunpack.c.l.b16 %v3719
      %v3826 = vunpack.c.h.b16 %v3719
      %v3827 = vunpack.c.l.b16 %v3720
      %v3828 = vunpack.c.h.b16 %v3720
      %v3829 = vunpack.c.l.b16 %v3721
      %v3830 = vunpack.c.h.b16 %v3721
      %v3831 = vunpack.c.l.b16 %v3722
      %v3832 = vunpack.c.h.b16 %v3722
      %v3833 = vunpack.c.l.b16 %v3723
      %v3834 = vunpack.c.h.b16 %v3723
      %v3835 = vunpack.c.l.b16 %v3724
      %v3836 = vunpack.c.h.b16 %v3724
      %v3837 = vunpack.c.l.b16 %v3725
      %v3838 = vunpack.c.h.b16 %v3725
      %v3839 = vunpack.c.l.b16 %v3726
      %v3840 = vunpack.c.h.b16 %v3726
      %v3841 = vunpack.c.l.b16 %v3727
      %v3842 = vunpack.c.h.b16 %v3727
      %v3843 = vunpack.c.l.b16 %v3728
      %v3844 = vunpack.c.h.b16 %v3728
      %v3845 = vunpack.c.l.b16 %v3729
      %v3846 = vunpack.c.h.b16 %v3729
      %v3847 = vunpack.c.l.b16 %v3730
      %v3848 = vunpack.c.h.b16 %v3730
      %v3849 = vunpack.c.l.b16 %v3731
      %v3850 = vunpack.c.h.b16 %v3731
      %v3851 = vpack.c.b16 %v3791, %v3787
      %v3852 = vpack.c.b16 %v3792, %v3788
      %v3853 = vpack.c.b16 %v3793, %v3789
      %v3854 = vpack.c.b16 %v3794, %v3790
      %v3855 = vpack.c.b16 %v3799, %v3795
      %v3856 = vpack.c.b16 %v3800, %v3796
      %v3857 = vpack.c.b16 %v3801, %v3797
      %v3858 = vpack.c.b16 %v3802, %v3798
      %v3859 = vpack.c.b16 %v3807, %v3803
      %v3860 = vpack.c.b16 %v3808, %v3804
      %v3861 = vpack.c.b16 %v3809, %v3805
      %v3862 = vpack.c.b16 %v3810, %v3806
      %v3863 = vpack.c.b16 %v3815, %v3811
      %v3864 = vpack.c.b16 %v3816, %v3812
      %v3865 = vpack.c.b16 %v3817, %v3813
      %v3866 = vpack.c.b16 %v3818, %v3814
      %v3867 = vpack.c.b16 %v3823, %v3819
      %v3868 = vpack.c.b16 %v3824, %v3820
      %v3869 = vpack.c.b16 %v3825, %v3821
      %v3870 = vpack.c.b16 %v3826, %v3822
      %v3871 = vpack.c.b16 %v3831, %v3827
      %v3872 = vpack.c.b16 %v3832, %v3828
      %v3873 = vpack.c.b16 %v3833, %v3829
      %v3874 = vpack.c.b16 %v3834, %v3830
      %v3875 = vpack.c.b16 %v3839, %v3835
      %v3876 = vpack.c.b16 %v3840, %v3836
      %v3877 = vpack.c.b16 %v3841, %v3837
      %v3878 = vpack.c.b16 %v3842, %v3838
      %v3879 = vpack.c.b16 %v3847, %v3843
      %v3880 = vpack.c.b16 %v3848, %v3844
      %v3881 = vpack.c.b16 %v3849, %v3845
      %v3882 = vpack.c.b16 %v3850, %v3846
      %3915 = vmatprep.subr.bf16.mxu0 %v3880
      %3916 = vmatpush1.bf16.msra.mxu0 %v3879
      %3917 = vmatprep.subr.bf16.mxu0 %v3876
      %3918 = vmatpush1.bf16.msra.mxu0 %v3875
      %3919 = vmatprep.subr.bf16.mxu0 %v3872
      %3920 = vmatpush1.bf16.msra.mxu0 %v3871
      %3921 = vmatprep.subr.bf16.mxu0 %v3868
      %3922 = vmatpush1.bf16.msra.mxu0 %v3867
      %3923 = vmatprep.subr.bf16.mxu0 %v3864
      %3924 = vmatpush1.bf16.msra.mxu0 %v3863
      %3925 = vmatprep.subr.bf16.mxu0 %v3860
      %3926 = vmatpush1.bf16.msra.mxu0 %v3859
      %3927 = vmatprep.subr.bf16.mxu0 %v3856
      %3928 = vmatpush1.bf16.msra.mxu0 %v3855
      %3929 = vmatprep.subr.bf16.mxu0 %v3852
      %3930 = vmatpush1.bf16.msra.mxu0 %v3851
      %3931 = vmatprep.subr.bf16.mxu0 0
      %3932 = vmatpush2.bf16.msra.mxu0 0
      %3933 = vmatprep.subr.bf16.mxu0 0
      %3934 = vmatpush2.bf16.msra.mxu0 0
      %3935 = vmatprep.subr.bf16.mxu0 0
      %3936 = vmatpush2.bf16.msra.mxu0 0
      %3937 = vmatprep.subr.bf16.mxu0 0
      %3938 = vmatpush2.bf16.msra.mxu0 0
      %3939 = vmatprep.subr.bf16.mxu0 0
      %3940 = vmatpush2.bf16.msra.mxu0 0
      %3941 = vmatprep.subr.bf16.mxu0 0
      %3942 = vmatpush2.bf16.msra.mxu0 0
      %3943 = vmatprep.subr.bf16.mxu0 0
      %3944 = vmatpush2.bf16.msra.mxu0 0
      %3945 = vmatprep.subr.bf16.mxu0 0
      %3946 = vmatpush2.bf16.msra.mxu0 0
      %3947 = vmatprep.mubr.bf16.mxu0 0
      %3948 = vmatmul.mubr.bf16.gmra.mxu0 %v3698
      %v3949 = vpop.f32.mrf.mxu0
      %v3950 = vadd.f32 %v3738, %v3949
      %v3951 = vpop.f32.mrf.mxu0
      %v3952 = vadd.f32 %v3742, %v3951
      %v3953 = vpop.f32.mrf.mxu0
      %v3954 = vadd.f32 %v3738, %v3953
      %v3955 = vpop.f32.mrf.mxu0
      %v3956 = vadd.f32 %v3742, %v3955
      %3957 = vdwg.mxu0
      %3958 = vmatprep.subr.bf16.mxu0 %v3882
      %3959 = vmatpush1.bf16.msra.mxu0 %v3881
      %3960 = vmatprep.subr.bf16.mxu0 %v3878
      %3961 = vmatpush1.bf16.msra.mxu0 %v3877
      %3962 = vmatprep.subr.bf16.mxu0 %v3874
      %3963 = vmatpush1.bf16.msra.mxu0 %v3873
      %3964 = vmatprep.subr.bf16.mxu0 %v3870
      %3965 = vmatpush1.bf16.msra.mxu0 %v3869
      %3966 = vmatprep.subr.bf16.mxu0 %v3866
      %3967 = vmatpush1.bf16.msra.mxu0 %v3865
      %3968 = vmatprep.subr.bf16.mxu0 %v3862
      %3969 = vmatpush1.bf16.msra.mxu0 %v3861
      %3970 = vmatprep.subr.bf16.mxu0 %v3858
      %3971 = vmatpush1.bf16.msra.mxu0 %v3857
      %3972 = vmatprep.subr.bf16.mxu0 %v3854
      %3973 = vmatpush1.bf16.msra.mxu0 %v3853
      %3974 = vmatprep.subr.bf16.mxu0 0
      %3975 = vmatpush2.bf16.msra.mxu0 0
      %3976 = vmatprep.subr.bf16.mxu0 0
      %3977 = vmatpush2.bf16.msra.mxu0 0
      %3978 = vmatprep.subr.bf16.mxu0 0
      %3979 = vmatpush2.bf16.msra.mxu0 0
      %3980 = vmatprep.subr.bf16.mxu0 0
      %3981 = vmatpush2.bf16.msra.mxu0 0
      %3982 = vmatprep.subr.bf16.mxu0 0
      %3983 = vmatpush2.bf16.msra.mxu0 0
      %3984 = vmatprep.subr.bf16.mxu0 0
      %3985 = vmatpush2.bf16.msra.mxu0 0
      %3986 = vmatprep.subr.bf16.mxu0 0
      %3987 = vmatpush2.bf16.msra.mxu0 0
      %3988 = vmatprep.subr.bf16.mxu0 0
      %3989 = vmatpush2.bf16.msra.mxu0 0
      %3990 = vmatprep.mubr.bf16.mxu0 0
      %3991 = vmatmul.mubr.bf16.gmra.mxu0 %v3698
      %v3992 = vpop.f32.mrf.mxu0
      %v3993 = vadd.f32 %v3746, %v3992
      %v3994 = vpop.f32.mrf.mxu0
      %v3995 = vadd.f32 %v3750, %v3994
      %v3996 = vpop.f32.mrf.mxu0
      %v3997 = vadd.f32 %v3746, %v3996
      %v3998 = vpop.f32.mrf.mxu0
      %v3999 = vadd.f32 %v3750, %v3998
      %4000 = vdwg.mxu0
      %v4001 = vmul.f32 %v3950, %v3950
      %v4002 = vmul.f32 %v3952, %v3952
      %v4003 = vmul.f32 %v3993, %v3993
      %v4004 = vmul.f32 %v3995, %v3995
      %v4005 = vmul.f32 %v3954, %v3954
      %v4006 = vmul.f32 %v3956, %v3956
      %v4007 = vmul.f32 %v3997, %v3997
      %v4008 = vmul.f32 %v3999, %v3999
      %v4009 = vmul.f32 %v3950, %v4001
      %v4010 = vmul.f32 %v3952, %v4002
      %v4011 = vmul.f32 %v3993, %v4003
      %v4012 = vmul.f32 %v3995, %v4004
      %v4013 = vmul.f32 %v3954, %v4005
      %v4014 = vmul.f32 %v3956, %v4006
      %v4015 = vmul.f32 %v3997, %v4007
      %v4016 = vmul.f32 %v3999, %v4008
      %v4017 = vmul.f32 %v4009, 0.044715
      %v4018 = vmul.f32 %v4010, 0.044715
      %v4019 = vmul.f32 %v4011, 0.044715
      %v4020 = vmul.f32 %v4012, 0.044715
      %v4021 = vmul.f32 %v4013, 0.044715
      %v4022 = vmul.f32 %v4014, 0.044715
      %v4023 = vmul.f32 %v4015, 0.044715
      %v4024 = vmul.f32 %v4016, 0.044715
      %v4025 = vadd.f32 %v3950, %v4017
      %v4026 = vadd.f32 %v3952, %v4018
      %v4027 = vadd.f32 %v3993, %v4019
      %v4028 = vadd.f32 %v3995, %v4020
      %v4029 = vadd.f32 %v3954, %v4021
      %v4030 = vadd.f32 %v3956, %v4022
      %v4031 = vadd.f32 %v3997, %v4023
      %v4032 = vadd.f32 %v3999, %v4024
      %v4033 = vmul.f32 %v4025, 0.7978846
      %v4034 = vmul.f32 %v4026, 0.7978846
      %v4035 = vmul.f32 %v4027, 0.7978846
      %v4036 = vmul.f32 %v4028, 0.7978846
      %v4037 = vmul.f32 %v4029, 0.7978846
      %v4038 = vmul.f32 %v4030, 0.7978846
      %v4039 = vmul.f32 %v4031, 0.7978846
      %v4040 = vmul.f32 %v4032, 0.7978846
      %v4041 = vtanh.pop %v4033
      %v4042 = vtanh.pop %v4034
      %v4043 = vtanh.pop %v4035
      %v4044 = vtanh.pop %v4036
      %v4045 = vtanh.pop %v4037
      %v4046 = vtanh.pop %v4038
      %v4047 = vtanh.pop %v4039
      %v4048 = vtanh.pop %v4040
      %v4049 = vadd.f32 %v4041, 1.0
      %v4050 = vadd.f32 %v4042, 1.0
      %v4051 = vadd.f32 %v4043, 1.0
      %v4052 = vadd.f32 %v4044, 1.0
      %v4053 = vadd.f32 %v4045, 1.0
      %v4054 = vadd.f32 %v4046, 1.0
      %v4055 = vadd.f32 %v4047, 1.0
      %v4056 = vadd.f32 %v4048, 1.0
      %v4057 = vmul.f32 %v4049, 0.5
      %v4058 = vmul.f32 %v4050, 0.5
      %v4059 = vmul.f32 %v4051, 0.5
      %v4060 = vmul.f32 %v4052, 0.5
      %v4061 = vmul.f32 %v4053, 0.5
      %v4062 = vmul.f32 %v4054, 0.5
      %v4063 = vmul.f32 %v4055, 0.5
      %v4064 = vmul.f32 %v4056, 0.5
      %v4065 = vmul.f32 %v3950, %v4057
      %v4066 = vmul.f32 %v3952, %v4058
      %v4067 = vmul.f32 %v3993, %v4059
      %v4068 = vmul.f32 %v3995, %v4060
      %v4069 = vmul.f32 %v3954, %v4061
      %v4070 = vmul.f32 %v3956, %v4062
      %v4071 = vmul.f32 %v3997, %v4063
      %v4072 = vmul.f32 %v3999, %v4064
      %v4073 = vpack.c.bf16 %v4069, %v4065
      %v4074 = vpack.c.bf16 %v4070, %v4066
      %v4075 = vpack.c.bf16 %v4071, %v4067
      %v4076 = vpack.c.bf16 %v4072, %v4068
      %s4077 = scalar_lea.vmem %s13, 256
      %v4078 = vld [vmem:[%s4077] sm:$0xf]
      %v4079 = vld [vmem:[%s4077 + $0x4] sm:$0xf]
      %v4080 = vld [vmem:[%s4077 + $0x8] sm:$0xf]
      %v4081 = vld [vmem:[%s4077 + $0xc] sm:$0xf]
      %v4082 = vld [vmem:[%s4077 + $0x10] sm:$0xf]
      %v4083 = vld [vmem:[%s4077 + $0x14] sm:$0xf]
      %v4084 = vld [vmem:[%s4077 + $0x18] sm:$0xf]
      %v4085 = vld [vmem:[%s4077 + $0x1c] sm:$0xf]
      %v4086 = vld [vmem:[%s4077 + $0x20] sm:$0xf]
      %v4087 = vld [vmem:[%s4077 + $0x24] sm:$0xf]
      %v4088 = vld [vmem:[%s4077 + $0x28] sm:$0xf]
      %v4089 = vld [vmem:[%s4077 + $0x2c] sm:$0xf]
      %v4090 = vld [vmem:[%s4077 + $0x30] sm:$0xf]
      %v4091 = vld [vmem:[%s4077 + $0x34] sm:$0xf]
      %v4092 = vld [vmem:[%s4077 + $0x38] sm:$0xf]
      %v4093 = vld [vmem:[%s4077 + $0x3c] sm:$0xf]
      %v4094 = vld [vmem:[%s4077 + $0x40] sm:$0xf]
      %v4095 = vld [vmem:[%s4077 + $0x44] sm:$0xf]
      %v4096 = vld [vmem:[%s4077 + $0x48] sm:$0xf]
      %v4097 = vld [vmem:[%s4077 + $0x4c] sm:$0xf]
      %v4098 = vld [vmem:[%s4077 + $0x50] sm:$0xf]
      %v4099 = vld [vmem:[%s4077 + $0x54] sm:$0xf]
      %v4100 = vld [vmem:[%s4077 + $0x58] sm:$0xf]
      %v4101 = vld [vmem:[%s4077 + $0x5c] sm:$0xf]
      %v4102 = vld [vmem:[%s4077 + $0x60] sm:$0xf]
      %v4103 = vld [vmem:[%s4077 + $0x64] sm:$0xf]
      %v4104 = vld [vmem:[%s4077 + $0x68] sm:$0xf]
      %v4105 = vld [vmem:[%s4077 + $0x6c] sm:$0xf]
      %v4106 = vld [vmem:[%s4077 + $0x70] sm:$0xf]
      %v4107 = vld [vmem:[%s4077 + $0x74] sm:$0xf]
      %v4108 = vld [vmem:[%s4077 + $0x78] sm:$0xf]
      %v4109 = vld [vmem:[%s4077 + $0x7c] sm:$0xf]
      %v4110 = vld [vmem:[%s4077 + $0x80] sm:$0xf]
      %v4111 = vld [vmem:[%s4077 + $0x84] sm:$0xf]
      %v4112 = vld [vmem:[%s4077 + $0x88] sm:$0xf]
      %v4113 = vld [vmem:[%s4077 + $0x8c] sm:$0xf]
      %v4114 = vld [vmem:[%s4077 + $0x90] sm:$0xf]
      %v4115 = vld [vmem:[%s4077 + $0x94] sm:$0xf]
      %v4116 = vld [vmem:[%s4077 + $0x98] sm:$0xf]
      %v4117 = vld [vmem:[%s4077 + $0x9c] sm:$0xf]
      %v4118 = vld [vmem:[%s4077 + $0xa0] sm:$0xf]
      %v4119 = vld [vmem:[%s4077 + $0xa4] sm:$0xf]
      %v4120 = vld [vmem:[%s4077 + $0xa8] sm:$0xf]
      %v4121 = vld [vmem:[%s4077 + $0xac] sm:$0xf]
      %v4122 = vld [vmem:[%s4077 + $0xb0] sm:$0xf]
      %v4123 = vld [vmem:[%s4077 + $0xb4] sm:$0xf]
      %v4124 = vld [vmem:[%s4077 + $0xb8] sm:$0xf]
      %v4125 = vld [vmem:[%s4077 + $0xbc] sm:$0xf]
      %v4126 = vld [vmem:[%s4077 + $0xc0] sm:$0xf]
      %v4127 = vld [vmem:[%s4077 + $0xc4] sm:$0xf]
      %v4128 = vld [vmem:[%s4077 + $0xc8] sm:$0xf]
      %v4129 = vld [vmem:[%s4077 + $0xcc] sm:$0xf]
      %v4130 = vld [vmem:[%s4077 + $0xd0] sm:$0xf]
      %v4131 = vld [vmem:[%s4077 + $0xd4] sm:$0xf]
      %v4132 = vld [vmem:[%s4077 + $0xd8] sm:$0xf]
      %v4133 = vld [vmem:[%s4077 + $0xdc] sm:$0xf]
      %v4134 = vld [vmem:[%s4077 + $0xe0] sm:$0xf]
      %v4135 = vld [vmem:[%s4077 + $0xe4] sm:$0xf]
      %v4136 = vld [vmem:[%s4077 + $0xe8] sm:$0xf]
      %v4137 = vld [vmem:[%s4077 + $0xec] sm:$0xf]
      %v4138 = vld [vmem:[%s4077 + $0xf0] sm:$0xf]
      %v4139 = vld [vmem:[%s4077 + $0xf4] sm:$0xf]
      %v4140 = vld [vmem:[%s4077 + $0xf8] sm:$0xf]
      %v4141 = vld [vmem:[%s4077 + $0xfc] sm:$0xf]
      %v4206 = vunpack.c.l.b16 %v4078
      %v4207 = vunpack.c.l.b16 %v4079
      %v4208 = vunpack.c.l.b16 %v4080
      %v4209 = vunpack.c.l.b16 %v4081
      %v4210 = vunpack.c.l.b16 %v4082
      %v4211 = vunpack.c.l.b16 %v4083
      %v4212 = vunpack.c.l.b16 %v4084
      %v4213 = vunpack.c.l.b16 %v4085
      %v4214 = vunpack.c.l.b16 %v4086
      %v4215 = vunpack.c.l.b16 %v4087
      %v4216 = vunpack.c.l.b16 %v4088
      %v4217 = vunpack.c.l.b16 %v4089
      %v4218 = vunpack.c.l.b16 %v4090
      %v4219 = vunpack.c.l.b16 %v4091
      %v4220 = vunpack.c.l.b16 %v4092
      %v4221 = vunpack.c.l.b16 %v4093
      %v4222 = vunpack.c.l.b16 %v4094
      %v4223 = vunpack.c.l.b16 %v4095
      %v4224 = vunpack.c.l.b16 %v4096
      %v4225 = vunpack.c.l.b16 %v4097
      %v4226 = vunpack.c.l.b16 %v4098
      %v4227 = vunpack.c.l.b16 %v4099
      %v4228 = vunpack.c.l.b16 %v4100
      %v4229 = vunpack.c.l.b16 %v4101
      %v4230 = vunpack.c.l.b16 %v4102
      %v4231 = vunpack.c.l.b16 %v4103
      %v4232 = vunpack.c.l.b16 %v4104
      %v4233 = vunpack.c.l.b16 %v4105
      %v4234 = vunpack.c.l.b16 %v4106
      %v4235 = vunpack.c.l.b16 %v4107
      %v4236 = vunpack.c.l.b16 %v4108
      %v4237 = vunpack.c.l.b16 %v4109
      %v4238 = vunpack.c.l.b16 %v4110
      %v4239 = vunpack.c.l.b16 %v4111
      %v4240 = vunpack.c.l.b16 %v4112
      %v4241 = vunpack.c.l.b16 %v4113
      %v4242 = vunpack.c.l.b16 %v4114
      %v4243 = vunpack.c.l.b16 %v4115
      %v4244 = vunpack.c.l.b16 %v4116
      %v4245 = vunpack.c.l.b16 %v4117
      %v4246 = vunpack.c.l.b16 %v4118
      %v4247 = vunpack.c.l.b16 %v4119
      %v4248 = vunpack.c.l.b16 %v4120
      %v4249 = vunpack.c.l.b16 %v4121
      %v4250 = vunpack.c.l.b16 %v4122
      %v4251 = vunpack.c.l.b16 %v4123
      %v4252 = vunpack.c.l.b16 %v4124
      %v4253 = vunpack.c.l.b16 %v4125
      %v4254 = vunpack.c.l.b16 %v4126
      %v4255 = vunpack.c.l.b16 %v4127
      %v4256 = vunpack.c.l.b16 %v4128
      %v4257 = vunpack.c.l.b16 %v4129
      %v4258 = vunpack.c.l.b16 %v4130
      %v4259 = vunpack.c.l.b16 %v4131
      %v4260 = vunpack.c.l.b16 %v4132
      %v4261 = vunpack.c.l.b16 %v4133
      %v4262 = vunpack.c.l.b16 %v4134
      %v4263 = vunpack.c.l.b16 %v4135
      %v4264 = vunpack.c.l.b16 %v4136
      %v4265 = vunpack.c.l.b16 %v4137
      %v4266 = vunpack.c.l.b16 %v4138
      %v4267 = vunpack.c.l.b16 %v4139
      %v4268 = vunpack.c.l.b16 %v4140
      %v4269 = vunpack.c.l.b16 %v4141
      %v4270 = vpack.c.b16 %v4207, %v4206
      %v4271 = vpack.c.b16 %v4209, %v4208
      %v4272 = vpack.c.b16 %v4211, %v4210
      %v4273 = vpack.c.b16 %v4213, %v4212
      %v4274 = vpack.c.b16 %v4215, %v4214
      %v4275 = vpack.c.b16 %v4217, %v4216
      %v4276 = vpack.c.b16 %v4219, %v4218
      %v4277 = vpack.c.b16 %v4221, %v4220
      %v4278 = vpack.c.b16 %v4223, %v4222
      %v4279 = vpack.c.b16 %v4225, %v4224
      %v4280 = vpack.c.b16 %v4227, %v4226
      %v4281 = vpack.c.b16 %v4229, %v4228
      %v4282 = vpack.c.b16 %v4231, %v4230
      %v4283 = vpack.c.b16 %v4233, %v4232
      %v4284 = vpack.c.b16 %v4235, %v4234
      %v4285 = vpack.c.b16 %v4237, %v4236
      %v4286 = vpack.c.b16 %v4239, %v4238
      %v4287 = vpack.c.b16 %v4241, %v4240
      %v4288 = vpack.c.b16 %v4243, %v4242
      %v4289 = vpack.c.b16 %v4245, %v4244
      %v4290 = vpack.c.b16 %v4247, %v4246
      %v4291 = vpack.c.b16 %v4249, %v4248
      %v4292 = vpack.c.b16 %v4251, %v4250
      %v4293 = vpack.c.b16 %v4253, %v4252
      %v4294 = vpack.c.b16 %v4255, %v4254
      %v4295 = vpack.c.b16 %v4257, %v4256
      %v4296 = vpack.c.b16 %v4259, %v4258
      %v4297 = vpack.c.b16 %v4261, %v4260
      %v4298 = vpack.c.b16 %v4263, %v4262
      %v4299 = vpack.c.b16 %v4265, %v4264
      %v4300 = vpack.c.b16 %v4267, %v4266
      %v4301 = vpack.c.b16 %v4269, %v4268
      %4334 = vmatprep.subr.bf16.mxu0 0
      %4335 = vmatpush1.bf16.msra.mxu0 %v4277
      %4336 = vmatprep.subr.bf16.mxu0 0
      %4337 = vmatpush1.bf16.msra.mxu0 %v4276
      %4338 = vmatprep.subr.bf16.mxu0 0
      %4339 = vmatpush1.bf16.msra.mxu0 %v4275
      %4340 = vmatprep.subr.bf16.mxu0 0
      %4341 = vmatpush1.bf16.msra.mxu0 %v4274
      %4342 = vmatprep.subr.bf16.mxu0 0
      %4343 = vmatpush1.bf16.msra.mxu0 %v4273
      %4344 = vmatprep.subr.bf16.mxu0 0
      %4345 = vmatpush1.bf16.msra.mxu0 %v4272
      %4346 = vmatprep.subr.bf16.mxu0 0
      %4347 = vmatpush1.bf16.msra.mxu0 %v4271
      %4348 = vmatprep.subr.bf16.mxu0 0
      %4349 = vmatpush1.bf16.msra.mxu0 %v4270
      %4350 = vmatprep.subr.bf16.mxu0 0
      %4351 = vmatpush2.bf16.msra.mxu0 %v4285
      %4352 = vmatprep.subr.bf16.mxu0 0
      %4353 = vmatpush2.bf16.msra.mxu0 %v4284
      %4354 = vmatprep.subr.bf16.mxu0 0
      %4355 = vmatpush2.bf16.msra.mxu0 %v4283
      %4356 = vmatprep.subr.bf16.mxu0 0
      %4357 = vmatpush2.bf16.msra.mxu0 %v4282
      %4358 = vmatprep.subr.bf16.mxu0 0
      %4359 = vmatpush2.bf16.msra.mxu0 %v4281
      %4360 = vmatprep.subr.bf16.mxu0 0
      %4361 = vmatpush2.bf16.msra.mxu0 %v4280
      %4362 = vmatprep.subr.bf16.mxu0 0
      %4363 = vmatpush2.bf16.msra.mxu0 %v4279
      %4364 = vmatprep.subr.bf16.mxu0 0
      %4365 = vmatpush2.bf16.msra.mxu0 %v4278
      %4366 = vmatprep.mubr.bf16.mxu0 %v4074
      %4367 = vmatmul.mubr.bf16.gmra.mxu0 %v4073
      %v4368 = vpop.f32.mrf.mxu0
      %v4369 = vadd.f32 0.0, %v4368
      %v4370 = vpop.f32.mrf.mxu0
      %v4371 = vpop.f32.mrf.mxu0
      %v4372 = vadd.f32 0.0, %v4371
      %v4373 = vpop.f32.mrf.mxu0
      %4374 = vdwg.mxu0
      %4375 = vmatprep.subr.bf16.mxu0 0
      %4376 = vmatpush1.bf16.msra.mxu0 %v4293
      %4377 = vmatprep.subr.bf16.mxu0 0
      %4378 = vmatpush1.bf16.msra.mxu0 %v4292
      %4379 = vmatprep.subr.bf16.mxu0 0
      %4380 = vmatpush1.bf16.msra.mxu0 %v4291
      %4381 = vmatprep.subr.bf16.mxu0 0
      %4382 = vmatpush1.bf16.msra.mxu0 %v4290
      %4383 = vmatprep.subr.bf16.mxu0 0
      %4384 = vmatpush1.bf16.msra.mxu0 %v4289
      %4385 = vmatprep.subr.bf16.mxu0 0
      %4386 = vmatpush1.bf16.msra.mxu0 %v4288
      %4387 = vmatprep.subr.bf16.mxu0 0
      %4388 = vmatpush1.bf16.msra.mxu0 %v4287
      %4389 = vmatprep.subr.bf16.mxu0 0
      %4390 = vmatpush1.bf16.msra.mxu0 %v4286
      %4391 = vmatprep.subr.bf16.mxu0 0
      %4392 = vmatpush2.bf16.msra.mxu0 %v4301
      %4393 = vmatprep.subr.bf16.mxu0 0
      %4394 = vmatpush2.bf16.msra.mxu0 %v4300
      %4395 = vmatprep.subr.bf16.mxu0 0
      %4396 = vmatpush2.bf16.msra.mxu0 %v4299
      %4397 = vmatprep.subr.bf16.mxu0 0
      %4398 = vmatpush2.bf16.msra.mxu0 %v4298
      %4399 = vmatprep.subr.bf16.mxu0 0
      %4400 = vmatpush2.bf16.msra.mxu0 %v4297
      %4401 = vmatprep.subr.bf16.mxu0 0
      %4402 = vmatpush2.bf16.msra.mxu0 %v4296
      %4403 = vmatprep.subr.bf16.mxu0 0
      %4404 = vmatpush2.bf16.msra.mxu0 %v4295
      %4405 = vmatprep.subr.bf16.mxu0 0
      %4406 = vmatpush2.bf16.msra.mxu0 %v4294
      %4407 = vmatprep.mubr.bf16.mxu0 %v4076
      %4408 = vmatmul.mubr.bf16.gmra.mxu0 %v4075
      %v4409 = vpop.f32.mrf.mxu0
      %v4410 = vadd.f32 %v4369, %v4409
      %v4411 = vpop.f32.mrf.mxu0
      %v4412 = vpop.f32.mrf.mxu0
      %v4413 = vadd.f32 %v4372, %v4412
      %v4414 = vpop.f32.mrf.mxu0
      %4415 = vdwg.mxu0
      %v4416 = vadd.f32 %v3654, %v4410
      %v4417 = vadd.f32 %v3655, %v4413
      %s4418 = scalar_lea.vmem %s14, 1
      %v4419 = vld [vmem:[%s4418] sm:$0x1]
      %v4421 = vlaneseq
      %v4422 = vshrl.u32 %v4421, 7
      %v4423 = vsub.s32 0, %v4422
      %v4424 = vrot.slane %v4419, %v4423
      %v4426 = vadd.f32 %v4416, %v4424
      %v4427 = vadd.f32 %v4417, %v4424
      %4428 = vadd.xlane.f32.xlu0 %v4426
      %v4429 = vpop.xlane.xlu0 %4428
      %4430 = vadd.xlane.f32.xlu0 %v4427
      %v4431 = vpop.xlane.xlu0 %4430
      %v4432 = vmul.f32 %v4429, %v570
      %v4433 = vmul.f32 %v4431, %v570
      %v4434 = vsub.f32 %v4426, %v4432
      %v4435 = vsub.f32 %v4427, %v4433
      %v4436 = vmul.f32 %v4434, %v4434
      %v4437 = vmul.f32 %v4435, %v4435
      %4438 = vadd.xlane.f32.xlu0 %v4436
      %v4439 = vpop.xlane.xlu0 %4438
      %4440 = vadd.xlane.f32.xlu0 %v4437
      %v4441 = vpop.xlane.xlu0 %4440
      %v4442 = vmul.f32 %v4439, %v570
      %v4443 = vmul.f32 %v4441, %v570
      %v4444 = vadd.f32 %v4442, 1e-05
      %v4445 = vadd.f32 %v4443, 1e-05
      %v4446 = vrsqrt.pop %v4444
      %v4447 = vrsqrt.pop %v4445
      %v4448 = vmul.f32 %v4434, %v4446
      %v4449 = vmul.f32 %v4435, %v4447
      %v4450 = vmul.f32 %v4448, %v2890
      %v4451 = vmul.f32 %v4449, %v2890
      %v4452 = vadd.f32 %v4450, %v2898
      %v4453 = vadd.f32 %v4451, %v2898
      %v4454 = vpack.c.bf16 %v4453, %v4452
      %4455 = vmatprep.subr.bf16.mxu0 0
      %4456 = vmatpush1.bf16.msra.mxu0 %v2986
      %4457 = vmatprep.subr.bf16.mxu0 0
      %4458 = vmatpush1.bf16.msra.mxu0 %v2985
      %4459 = vmatprep.subr.bf16.mxu0 0
      %4460 = vmatpush1.bf16.msra.mxu0 %v2984
      %4461 = vmatprep.subr.bf16.mxu0 0
      %4462 = vmatpush1.bf16.msra.mxu0 %v2983
      %4463 = vmatprep.subr.bf16.mxu0 0
      %4464 = vmatpush1.bf16.msra.mxu0 %v2982
      %4465 = vmatprep.subr.bf16.mxu0 0
      %4466 = vmatpush1.bf16.msra.mxu0 %v2981
      %4467 = vmatprep.subr.bf16.mxu0 0
      %4468 = vmatpush1.bf16.msra.mxu0 %v2980
      %4469 = vmatprep.subr.bf16.mxu0 0
      %4470 = vmatpush1.bf16.msra.mxu0 %v2979
      %4471 = vmatprep.subr.bf16.mxu0 0
      %4472 = vmatpush2.bf16.msra.mxu0 0
      %4473 = vmatprep.subr.bf16.mxu0 0
      %4474 = vmatpush2.bf16.msra.mxu0 0
      %4475 = vmatprep.subr.bf16.mxu0 0
      %4476 = vmatpush2.bf16.msra.mxu0 0
      %4477 = vmatprep.subr.bf16.mxu0 0
      %4478 = vmatpush2.bf16.msra.mxu0 0
      %4479 = vmatprep.subr.bf16.mxu0 0
      %4480 = vmatpush2.bf16.msra.mxu0 0
      %4481 = vmatprep.subr.bf16.mxu0 0
      %4482 = vmatpush2.bf16.msra.mxu0 0
      %4483 = vmatprep.subr.bf16.mxu0 0
      %4484 = vmatpush2.bf16.msra.mxu0 0
      %4485 = vmatprep.subr.bf16.mxu0 0
      %4486 = vmatpush2.bf16.msra.mxu0 0
      %4487 = vmatprep.mubr.bf16.mxu0 0
      %4488 = vmatmul.mubr.bf16.gmra.mxu0 %v2929
      %v4489 = vpop.f32.mrf.mxu0
      %v4490 = vadd.f32 0.0, %v4489
      %v4491 = vpop.f32.mrf.mxu0
      %v4492 = vpop.f32.mrf.mxu0
      %v4493 = vadd.f32 0.0, %v4492
      %v4494 = vpop.f32.mrf.mxu0
      %4495 = vdwg.mxu0
      %4496 = vmatprep.subr.bf16.mxu0 0
      %4497 = vmatpush1.bf16.msra.mxu0 %v3092
      %4498 = vmatprep.subr.bf16.mxu0 0
      %4499 = vmatpush1.bf16.msra.mxu0 %v3091
      %4500 = vmatprep.subr.bf16.mxu0 0
      %4501 = vmatpush1.bf16.msra.mxu0 %v3090
      %4502 = vmatprep.subr.bf16.mxu0 0
      %4503 = vmatpush1.bf16.msra.mxu0 %v3089
      %4504 = vmatprep.subr.bf16.mxu0 0
      %4505 = vmatpush1.bf16.msra.mxu0 %v3088
      %4506 = vmatprep.subr.bf16.mxu0 0
      %4507 = vmatpush1.bf16.msra.mxu0 %v3087
      %4508 = vmatprep.subr.bf16.mxu0 0
      %4509 = vmatpush1.bf16.msra.mxu0 %v3086
      %4510 = vmatprep.subr.bf16.mxu0 0
      %4511 = vmatpush1.bf16.msra.mxu0 %v3085
      %4512 = vmatprep.subr.bf16.mxu0 0
      %4513 = vmatpush2.bf16.msra.mxu0 0
      %4514 = vmatprep.subr.bf16.mxu0 0
      %4515 = vmatpush2.bf16.msra.mxu0 0
      %4516 = vmatprep.subr.bf16.mxu0 0
      %4517 = vmatpush2.bf16.msra.mxu0 0
      %4518 = vmatprep.subr.bf16.mxu0 0
      %4519 = vmatpush2.bf16.msra.mxu0 0
      %4520 = vmatprep.subr.bf16.mxu0 0
      %4521 = vmatpush2.bf16.msra.mxu0 0
      %4522 = vmatprep.subr.bf16.mxu0 0
      %4523 = vmatpush2.bf16.msra.mxu0 0
      %4524 = vmatprep.subr.bf16.mxu0 0
      %4525 = vmatpush2.bf16.msra.mxu0 0
      %4526 = vmatprep.subr.bf16.mxu0 0
      %4527 = vmatpush2.bf16.msra.mxu0 0
      %4528 = vmatprep.mubr.bf16.mxu0 0
      %4529 = vmatmul.mubr.bf16.gmra.mxu0 %v4454
      %v4530 = vpop.f32.mrf.mxu0
      %v4531 = vadd.f32 0.0, %v4530
      %v4532 = vpop.f32.mrf.mxu0
      %v4533 = vpop.f32.mrf.mxu0
      %v4534 = vadd.f32 0.0, %v4533
      %v4535 = vpop.f32.mrf.mxu0
      %4536 = vdwg.mxu0
      %4537 = vmatprep.subr.bf16.mxu0 0
      %4538 = vmatpush1.bf16.msra.mxu0 %v3198
      %4539 = vmatprep.subr.bf16.mxu0 0
      %4540 = vmatpush1.bf16.msra.mxu0 %v3197
      %4541 = vmatprep.subr.bf16.mxu0 0
      %4542 = vmatpush1.bf16.msra.mxu0 %v3196
      %4543 = vmatprep.subr.bf16.mxu0 0
      %4544 = vmatpush1.bf16.msra.mxu0 %v3195
      %4545 = vmatprep.subr.bf16.mxu0 0
      %4546 = vmatpush1.bf16.msra.mxu0 %v3194
      %4547 = vmatprep.subr.bf16.mxu0 0
      %4548 = vmatpush1.bf16.msra.mxu0 %v3193
      %4549 = vmatprep.subr.bf16.mxu0 0
      %4550 = vmatpush1.bf16.msra.mxu0 %v3192
      %4551 = vmatprep.subr.bf16.mxu0 0
      %4552 = vmatpush1.bf16.msra.mxu0 %v3191
      %4553 = vmatprep.subr.bf16.mxu0 0
      %4554 = vmatpush2.bf16.msra.mxu0 0
      %4555 = vmatprep.subr.bf16.mxu0 0
      %4556 = vmatpush2.bf16.msra.mxu0 0
      %4557 = vmatprep.subr.bf16.mxu0 0
      %4558 = vmatpush2.bf16.msra.mxu0 0
      %4559 = vmatprep.subr.bf16.mxu0 0
      %4560 = vmatpush2.bf16.msra.mxu0 0
      %4561 = vmatprep.subr.bf16.mxu0 0
      %4562 = vmatpush2.bf16.msra.mxu0 0
      %4563 = vmatprep.subr.bf16.mxu0 0
      %4564 = vmatpush2.bf16.msra.mxu0 0
      %4565 = vmatprep.subr.bf16.mxu0 0
      %4566 = vmatpush2.bf16.msra.mxu0 0
      %4567 = vmatprep.subr.bf16.mxu0 0
      %4568 = vmatpush2.bf16.msra.mxu0 0
      %4569 = vmatprep.mubr.bf16.mxu0 0
      %4570 = vmatmul.mubr.bf16.gmra.mxu0 %v4454
      %v4571 = vpop.f32.mrf.mxu0
      %v4572 = vadd.f32 0.0, %v4571
      %v4573 = vpop.f32.mrf.mxu0
      %v4574 = vpop.f32.mrf.mxu0
      %v4575 = vadd.f32 0.0, %v4574
      %v4576 = vpop.f32.mrf.mxu0
      %4577 = vdwg.mxu0
      %v4578 = vpack.c.bf16 %v4493, %v4490
      %v4579 = vpack.c.bf16 %v4534, %v4531
      %v4581 = vsel %vm966, %v4578, 0
      %v4584 = vsel %vm966, %v4579, 0
      %4586 = vmatprep.subr.bf16.mxu0 0
      %4587 = vmatpush1.bf16.xpose.msra.mxu0 0
      %4588 = vmatprep.subr.bf16.mxu0 0
      %4589 = vmatpush1.bf16.xpose.msra.mxu0 0
      %4590 = vmatprep.subr.bf16.mxu0 0
      %4591 = vmatpush1.bf16.xpose.msra.mxu0 0
      %4592 = vmatprep.subr.bf16.mxu0 0
      %4593 = vmatpush1.bf16.xpose.msra.mxu0 0
      %4594 = vmatprep.subr.bf16.mxu0 0
      %4595 = vmatpush1.bf16.xpose.msra.mxu0 0
      %4596 = vmatprep.subr.bf16.mxu0 0
      %4597 = vmatpush1.bf16.xpose.msra.mxu0 0
      %4598 = vmatprep.subr.bf16.mxu0 0
      %4599 = vmatpush1.bf16.xpose.msra.mxu0 0
      %4600 = vmatprep.subr.bf16.mxu0 0
      %4601 = vmatpush1.bf16.xpose.msra.mxu0 %v4584
      %4602 = vmatprep.subr.bf16.mxu0 0
      %4603 = vmatpush2.bf16.xpose.msra.mxu0 0
      %4604 = vmatprep.subr.bf16.mxu0 0
      %4605 = vmatpush2.bf16.xpose.msra.mxu0 0
      %4606 = vmatprep.subr.bf16.mxu0 0
      %4607 = vmatpush2.bf16.xpose.msra.mxu0 0
      %4608 = vmatprep.subr.bf16.mxu0 0
      %4609 = vmatpush2.bf16.xpose.msra.mxu0 0
      %4610 = vmatprep.subr.bf16.mxu0 0
      %4611 = vmatpush2.bf16.xpose.msra.mxu0 0
      %4612 = vmatprep.subr.bf16.mxu0 0
      %4613 = vmatpush2.bf16.xpose.msra.mxu0 0
      %4614 = vmatprep.subr.bf16.mxu0 0
      %4615 = vmatpush2.bf16.xpose.msra.mxu0 0
      %4616 = vmatprep.subr.bf16.mxu0 0
      %4617 = vmatpush2.bf16.xpose.msra.mxu0 0
      %4618 = vmatprep.mubr.bf16.mxu0 0
      %4619 = vmatmul.mubr.bf16.gmra.mxu0 %v4581
      %v4620 = vpop.f32.mrf.mxu0
      %v4621 = vadd.f32 0.0, %v4620
      %v4622 = vpop.f32.mrf.mxu0
      %v4623 = vpop.f32.mrf.mxu0
      %v4624 = vadd.f32 0.0, %v4623
      %v4625 = vpop.f32.mrf.mxu0
      %4626 = vdwg.mxu0
      %v4627 = vsel %vm1014, %v4621, -inf
      %4628 = vmax.xlane.f32.xlu0 %v4627
      %v4629 = vpop.xlane.xlu0 %4628
      %v4630 = vsel %vm1014, %v4624, -inf
      %4631 = vmax.xlane.f32.xlu0 %v4630
      %v4632 = vpop.xlane.xlu0 %4631
      %v4633 = vsub.f32 %v4621, %v4629
      %v4634 = vsub.f32 %v4624, %v4632
      %v4635 = vmul.f32 %v4633, 1.442695
      %v4636 = vpow.pop %v4635
      %v4637 = vmul.f32 %v4634, 1.442695
      %v4638 = vpow.pop %v4637
      %v4639 = vsel %vm1014, %v4636, 0.0
      %4640 = vadd.xlane.f32.xlu0 %v4639
      %v4641 = vpop.xlane.xlu0 %4640
      %v4642 = vsel %vm1014, %v4638, 0.0
      %4643 = vadd.xlane.f32.xlu0 %v4642
      %v4644 = vpop.xlane.xlu0 %4643
      %v4645 = vrcp.pop %v4641
      %v4646 = vrcp.pop %v4644
      %v4647 = vmul.f32 %v4636, %v4645
      %v4648 = vmul.f32 %v4638, %v4646
      %v4649 = vpack.c.bf16 %v4648, %v4647
      %v4650 = vpack.c.bf16 %v4575, %v4572
      %v4652 = vsel %vm1014, %v4649, 0
      %4654 = vmatprep.subr.bf16.mxu0 0
      %4655 = vmatpush1.bf16.msra.mxu0 0
      %4656 = vmatprep.subr.bf16.mxu0 0
      %4657 = vmatpush1.bf16.msra.mxu0 0
      %4658 = vmatprep.subr.bf16.mxu0 0
      %4659 = vmatpush1.bf16.msra.mxu0 0
      %4660 = vmatprep.subr.bf16.mxu0 0
      %4661 = vmatpush1.bf16.msra.mxu0 0
      %4662 = vmatprep.subr.bf16.mxu0 0
      %4663 = vmatpush1.bf16.msra.mxu0 0
      %4664 = vmatprep.subr.bf16.mxu0 0
      %4665 = vmatpush1.bf16.msra.mxu0 0
      %4666 = vmatprep.subr.bf16.mxu0 0
      %4667 = vmatpush1.bf16.msra.mxu0 0
      %4668 = vmatprep.subr.bf16.mxu0 0
      %4669 = vmatpush1.bf16.msra.mxu0 %v4650
      %4670 = vmatprep.subr.bf16.mxu0 0
      %4671 = vmatpush2.bf16.msra.mxu0 0
      %4672 = vmatprep.subr.bf16.mxu0 0
      %4673 = vmatpush2.bf16.msra.mxu0 0
      %4674 = vmatprep.subr.bf16.mxu0 0
      %4675 = vmatpush2.bf16.msra.mxu0 0
      %4676 = vmatprep.subr.bf16.mxu0 0
      %4677 = vmatpush2.bf16.msra.mxu0 0
      %4678 = vmatprep.subr.bf16.mxu0 0
      %4679 = vmatpush2.bf16.msra.mxu0 0
      %4680 = vmatprep.subr.bf16.mxu0 0
      %4681 = vmatpush2.bf16.msra.mxu0 0
      %4682 = vmatprep.subr.bf16.mxu0 0
      %4683 = vmatpush2.bf16.msra.mxu0 0
      %4684 = vmatprep.subr.bf16.mxu0 0
      %4685 = vmatpush2.bf16.msra.mxu0 0
      %4686 = vmatprep.mubr.bf16.mxu0 0
      %4687 = vmatmul.mubr.bf16.gmra.mxu0 %v4652
      %v4688 = vpop.f32.mrf.mxu0
      %v4689 = vadd.f32 0.0, %v4688
      %v4690 = vpop.f32.mrf.mxu0
      %v4691 = vpop.f32.mrf.mxu0
      %v4692 = vadd.f32 0.0, %v4691
      %v4693 = vpop.f32.mrf.mxu0
      %4694 = vdwg.mxu0
      %v4695 = vpack.c.bf16 %v4692, %v4689
      %4697 = vrot.lane.b32.xlu0 %v4578, 64
      %v4698 = vpop.permute.xlu0 %4697
      %4700 = vrot.lane.b32.xlu0 %v4579, 64
      %v4701 = vpop.permute.xlu0 %4700
      %v4703 = vsel %vm966, %v4698, 0
      %v4706 = vsel %vm966, %v4701, 0
      %4708 = vmatprep.subr.bf16.mxu0 0
      %4709 = vmatpush1.bf16.xpose.msra.mxu0 0
      %4710 = vmatprep.subr.bf16.mxu0 0
      %4711 = vmatpush1.bf16.xpose.msra.mxu0 0
      %4712 = vmatprep.subr.bf16.mxu0 0
      %4713 = vmatpush1.bf16.xpose.msra.mxu0 0
      %4714 = vmatprep.subr.bf16.mxu0 0
      %4715 = vmatpush1.bf16.xpose.msra.mxu0 0
      %4716 = vmatprep.subr.bf16.mxu0 0
      %4717 = vmatpush1.bf16.xpose.msra.mxu0 0
      %4718 = vmatprep.subr.bf16.mxu0 0
      %4719 = vmatpush1.bf16.xpose.msra.mxu0 0
      %4720 = vmatprep.subr.bf16.mxu0 0
      %4721 = vmatpush1.bf16.xpose.msra.mxu0 0
      %4722 = vmatprep.subr.bf16.mxu0 0
      %4723 = vmatpush1.bf16.xpose.msra.mxu0 %v4706
      %4724 = vmatprep.subr.bf16.mxu0 0
      %4725 = vmatpush2.bf16.xpose.msra.mxu0 0
      %4726 = vmatprep.subr.bf16.mxu0 0
      %4727 = vmatpush2.bf16.xpose.msra.mxu0 0
      %4728 = vmatprep.subr.bf16.mxu0 0
      %4729 = vmatpush2.bf16.xpose.msra.mxu0 0
      %4730 = vmatprep.subr.bf16.mxu0 0
      %4731 = vmatpush2.bf16.xpose.msra.mxu0 0
      %4732 = vmatprep.subr.bf16.mxu0 0
      %4733 = vmatpush2.bf16.xpose.msra.mxu0 0
      %4734 = vmatprep.subr.bf16.mxu0 0
      %4735 = vmatpush2.bf16.xpose.msra.mxu0 0
      %4736 = vmatprep.subr.bf16.mxu0 0
      %4737 = vmatpush2.bf16.xpose.msra.mxu0 0
      %4738 = vmatprep.subr.bf16.mxu0 0
      %4739 = vmatpush2.bf16.xpose.msra.mxu0 0
      %4740 = vmatprep.mubr.bf16.mxu0 0
      %4741 = vmatmul.mubr.bf16.gmra.mxu0 %v4703
      %v4742 = vpop.f32.mrf.mxu0
      %v4743 = vadd.f32 0.0, %v4742
      %v4744 = vpop.f32.mrf.mxu0
      %v4745 = vpop.f32.mrf.mxu0
      %v4746 = vadd.f32 0.0, %v4745
      %v4747 = vpop.f32.mrf.mxu0
      %4748 = vdwg.mxu0
      %v4749 = vsel %vm1014, %v4743, -inf
      %4750 = vmax.xlane.f32.xlu0 %v4749
      %v4751 = vpop.xlane.xlu0 %4750
      %v4752 = vsel %vm1014, %v4746, -inf
      %4753 = vmax.xlane.f32.xlu0 %v4752
      %v4754 = vpop.xlane.xlu0 %4753
      %v4755 = vsub.f32 %v4743, %v4751
      %v4756 = vsub.f32 %v4746, %v4754
      %v4757 = vmul.f32 %v4755, 1.442695
      %v4758 = vpow.pop %v4757
      %v4759 = vmul.f32 %v4756, 1.442695
      %v4760 = vpow.pop %v4759
      %v4761 = vsel %vm1014, %v4758, 0.0
      %4762 = vadd.xlane.f32.xlu0 %v4761
      %v4763 = vpop.xlane.xlu0 %4762
      %v4764 = vsel %vm1014, %v4760, 0.0
      %4765 = vadd.xlane.f32.xlu0 %v4764
      %v4766 = vpop.xlane.xlu0 %4765
      %v4767 = vrcp.pop %v4763
      %v4768 = vrcp.pop %v4766
      %v4769 = vmul.f32 %v4758, %v4767
      %v4770 = vmul.f32 %v4760, %v4768
      %v4771 = vpack.c.bf16 %v4770, %v4769
      %4773 = vrot.lane.b32.xlu0 %v4650, 64
      %v4774 = vpop.permute.xlu0 %4773
      %v4777 = vsel %vm1014, %v4771, 0
      %4779 = vmatprep.subr.bf16.mxu0 0
      %4780 = vmatpush1.bf16.msra.mxu0 0
      %4781 = vmatprep.subr.bf16.mxu0 0
      %4782 = vmatpush1.bf16.msra.mxu0 0
      %4783 = vmatprep.subr.bf16.mxu0 0
      %4784 = vmatpush1.bf16.msra.mxu0 0
      %4785 = vmatprep.subr.bf16.mxu0 0
      %4786 = vmatpush1.bf16.msra.mxu0 0
      %4787 = vmatprep.subr.bf16.mxu0 0
      %4788 = vmatpush1.bf16.msra.mxu0 0
      %4789 = vmatprep.subr.bf16.mxu0 0
      %4790 = vmatpush1.bf16.msra.mxu0 0
      %4791 = vmatprep.subr.bf16.mxu0 0
      %4792 = vmatpush1.bf16.msra.mxu0 0
      %4793 = vmatprep.subr.bf16.mxu0 0
      %4794 = vmatpush1.bf16.msra.mxu0 %v4774
      %4795 = vmatprep.subr.bf16.mxu0 0
      %4796 = vmatpush2.bf16.msra.mxu0 0
      %4797 = vmatprep.subr.bf16.mxu0 0
      %4798 = vmatpush2.bf16.msra.mxu0 0
      %4799 = vmatprep.subr.bf16.mxu0 0
      %4800 = vmatpush2.bf16.msra.mxu0 0
      %4801 = vmatprep.subr.bf16.mxu0 0
      %4802 = vmatpush2.bf16.msra.mxu0 0
      %4803 = vmatprep.subr.bf16.mxu0 0
      %4804 = vmatpush2.bf16.msra.mxu0 0
      %4805 = vmatprep.subr.bf16.mxu0 0
      %4806 = vmatpush2.bf16.msra.mxu0 0
      %4807 = vmatprep.subr.bf16.mxu0 0
      %4808 = vmatpush2.bf16.msra.mxu0 0
      %4809 = vmatprep.subr.bf16.mxu0 0
      %4810 = vmatpush2.bf16.msra.mxu0 0
      %4811 = vmatprep.mubr.bf16.mxu0 0
      %4812 = vmatmul.mubr.bf16.gmra.mxu0 %v4777
      %v4813 = vpop.f32.mrf.mxu0
      %v4814 = vadd.f32 0.0, %v4813
      %v4815 = vpop.f32.mrf.mxu0
      %v4816 = vpop.f32.mrf.mxu0
      %v4817 = vadd.f32 0.0, %v4816
      %v4818 = vpop.f32.mrf.mxu0
      %4819 = vdwg.mxu0
      %v4820 = vpack.c.bf16 %v4817, %v4814
      %v4822 = vsel %vm966, %v4820, 0
      %4824 = vmatprep.subr.bf16.mxu0 0
      %4825 = vmatpush1.bf16.msra.mxu0 0
      %4826 = vmatprep.subr.bf16.mxu0 0
      %4827 = vmatpush1.bf16.msra.mxu0 0
      %4828 = vmatprep.subr.bf16.mxu0 0
      %4829 = vmatpush1.bf16.msra.mxu0 0
      %4830 = vmatprep.subr.bf16.mxu0 0
      %4831 = vmatpush1.bf16.msra.mxu0 0
      %4832 = vmatprep.subr.bf16.mxu0 0
      %4833 = vmatpush1.bf16.msra.mxu0 %v3527
      %4834 = vmatprep.subr.bf16.mxu0 0
      %4835 = vmatpush1.bf16.msra.mxu0 %v3526
      %4836 = vmatprep.subr.bf16.mxu0 0
      %4837 = vmatpush1.bf16.msra.mxu0 %v3525
      %4838 = vmatprep.subr.bf16.mxu0 0
      %4839 = vmatpush1.bf16.msra.mxu0 %v3524
      %4840 = vmatprep.subr.bf16.mxu0 0
      %4841 = vmatpush2.bf16.msra.mxu0 0
      %4842 = vmatprep.subr.bf16.mxu0 0
      %4843 = vmatpush2.bf16.msra.mxu0 0
      %4844 = vmatprep.subr.bf16.mxu0 0
      %4845 = vmatpush2.bf16.msra.mxu0 0
      %4846 = vmatprep.subr.bf16.mxu0 0
      %4847 = vmatpush2.bf16.msra.mxu0 0
      %4848 = vmatprep.subr.bf16.mxu0 0
      %4849 = vmatpush2.bf16.msra.mxu0 0
      %4850 = vmatprep.subr.bf16.mxu0 0
      %4851 = vmatpush2.bf16.msra.mxu0 0
      %4852 = vmatprep.subr.bf16.mxu0 0
      %4853 = vmatpush2.bf16.msra.mxu0 0
      %4854 = vmatprep.subr.bf16.mxu0 0
      %4855 = vmatpush2.bf16.msra.mxu0 0
      %4856 = vmatprep.mubr.bf16.mxu0 0
      %4857 = vmatmul.mubr.bf16.gmra.mxu0 %v4822
      %v4858 = vpop.f32.mrf.mxu0
      %v4859 = vadd.f32 0.0, %v4858
      %v4860 = vpop.f32.mrf.mxu0
      %v4861 = vpop.f32.mrf.mxu0
      %v4862 = vadd.f32 0.0, %v4861
      %v4863 = vpop.f32.mrf.mxu0
      %4864 = vdwg.mxu0
      %v4866 = vsel %vm966, %v4695, 0
      %4868 = vmatprep.subr.bf16.mxu0 0
      %4869 = vmatpush1.bf16.msra.mxu0 0
      %4870 = vmatprep.subr.bf16.mxu0 0
      %4871 = vmatpush1.bf16.msra.mxu0 0
      %4872 = vmatprep.subr.bf16.mxu0 0
      %4873 = vmatpush1.bf16.msra.mxu0 0
      %4874 = vmatprep.subr.bf16.mxu0 0
      %4875 = vmatpush1.bf16.msra.mxu0 0
      %4876 = vmatprep.subr.bf16.mxu0 0
      %4877 = vmatpush1.bf16.msra.mxu0 %v3595
      %4878 = vmatprep.subr.bf16.mxu0 0
      %4879 = vmatpush1.bf16.msra.mxu0 %v3594
      %4880 = vmatprep.subr.bf16.mxu0 0
      %4881 = vmatpush1.bf16.msra.mxu0 %v3593
      %4882 = vmatprep.subr.bf16.mxu0 0
      %4883 = vmatpush1.bf16.msra.mxu0 %v3592
      %4884 = vmatprep.subr.bf16.mxu0 0
      %4885 = vmatpush2.bf16.msra.mxu0 0
      %4886 = vmatprep.subr.bf16.mxu0 0
      %4887 = vmatpush2.bf16.msra.mxu0 0
      %4888 = vmatprep.subr.bf16.mxu0 0
      %4889 = vmatpush2.bf16.msra.mxu0 0
      %4890 = vmatprep.subr.bf16.mxu0 0
      %4891 = vmatpush2.bf16.msra.mxu0 0
      %4892 = vmatprep.subr.bf16.mxu0 0
      %4893 = vmatpush2.bf16.msra.mxu0 0
      %4894 = vmatprep.subr.bf16.mxu0 0
      %4895 = vmatpush2.bf16.msra.mxu0 0
      %4896 = vmatprep.subr.bf16.mxu0 0
      %4897 = vmatpush2.bf16.msra.mxu0 0
      %4898 = vmatprep.subr.bf16.mxu0 0
      %4899 = vmatpush2.bf16.msra.mxu0 0
      %4900 = vmatprep.mubr.bf16.mxu0 0
      %4901 = vmatmul.mubr.bf16.gmra.mxu0 %v4866
      %v4902 = vpop.f32.mrf.mxu0
      %v4903 = vadd.f32 %v4859, %v4902
      %v4904 = vpop.f32.mrf.mxu0
      %v4905 = vpop.f32.mrf.mxu0
      %v4906 = vadd.f32 %v4862, %v4905
      %v4907 = vpop.f32.mrf.mxu0
      %4908 = vdwg.mxu0
      %v4909 = vadd.f32 %v2880, %v4903
      %v4910 = vadd.f32 %v2881, %v4906
      %v4911 = vadd.f32 %v4909, %v3652
      %v4912 = vadd.f32 %v4910, %v3652
      %4913 = vadd.xlane.f32.xlu0 %v4911
      %v4914 = vpop.xlane.xlu0 %4913
      %4915 = vadd.xlane.f32.xlu0 %v4912
      %v4916 = vpop.xlane.xlu0 %4915
      %v4917 = vmul.f32 %v4914, %v570
      %v4918 = vmul.f32 %v4916, %v570
      %v4919 = vsub.f32 %v4911, %v4917
      %v4920 = vsub.f32 %v4912, %v4918
      %v4921 = vmul.f32 %v4919, %v4919
      %v4922 = vmul.f32 %v4920, %v4920
      %4923 = vadd.xlane.f32.xlu0 %v4921
      %v4924 = vpop.xlane.xlu0 %4923
      %4925 = vadd.xlane.f32.xlu0 %v4922
      %v4926 = vpop.xlane.xlu0 %4925
      %v4927 = vmul.f32 %v4924, %v570
      %v4928 = vmul.f32 %v4926, %v570
      %v4929 = vadd.f32 %v4927, 1e-05
      %v4930 = vadd.f32 %v4928, 1e-05
      %v4931 = vrsqrt.pop %v4929
      %v4932 = vrsqrt.pop %v4930
      %v4933 = vmul.f32 %v4919, %v4931
      %v4934 = vmul.f32 %v4920, %v4932
      %v4935 = vmul.f32 %v4933, %v3686
      %v4936 = vmul.f32 %v4934, %v3686
      %v4937 = vadd.f32 %v4935, %v3694
      %v4938 = vadd.f32 %v4936, %v3694
      %v4939 = vpack.c.bf16 %v4938, %v4937
      %4940 = vmatprep.subr.bf16.mxu0 %v3880
      %4941 = vmatpush1.bf16.msra.mxu0 %v3879
      %4942 = vmatprep.subr.bf16.mxu0 %v3876
      %4943 = vmatpush1.bf16.msra.mxu0 %v3875
      %4944 = vmatprep.subr.bf16.mxu0 %v3872
      %4945 = vmatpush1.bf16.msra.mxu0 %v3871
      %4946 = vmatprep.subr.bf16.mxu0 %v3868
      %4947 = vmatpush1.bf16.msra.mxu0 %v3867
      %4948 = vmatprep.subr.bf16.mxu0 %v3864
      %4949 = vmatpush1.bf16.msra.mxu0 %v3863
      %4950 = vmatprep.subr.bf16.mxu0 %v3860
      %4951 = vmatpush1.bf16.msra.mxu0 %v3859
      %4952 = vmatprep.subr.bf16.mxu0 %v3856
      %4953 = vmatpush1.bf16.msra.mxu0 %v3855
      %4954 = vmatprep.subr.bf16.mxu0 %v3852
      %4955 = vmatpush1.bf16.msra.mxu0 %v3851
      %4956 = vmatprep.subr.bf16.mxu0 0
      %4957 = vmatpush2.bf16.msra.mxu0 0
      %4958 = vmatprep.subr.bf16.mxu0 0
      %4959 = vmatpush2.bf16.msra.mxu0 0
      %4960 = vmatprep.subr.bf16.mxu0 0
      %4961 = vmatpush2.bf16.msra.mxu0 0
      %4962 = vmatprep.subr.bf16.mxu0 0
      %4963 = vmatpush2.bf16.msra.mxu0 0
      %4964 = vmatprep.subr.bf16.mxu0 0
      %4965 = vmatpush2.bf16.msra.mxu0 0
      %4966 = vmatprep.subr.bf16.mxu0 0
      %4967 = vmatpush2.bf16.msra.mxu0 0
      %4968 = vmatprep.subr.bf16.mxu0 0
      %4969 = vmatpush2.bf16.msra.mxu0 0
      %4970 = vmatprep.subr.bf16.mxu0 0
      %4971 = vmatpush2.bf16.msra.mxu0 0
      %4972 = vmatprep.mubr.bf16.mxu0 0
      %4973 = vmatmul.mubr.bf16.gmra.mxu0 %v4939
      %v4974 = vpop.f32.mrf.mxu0
      %v4975 = vadd.f32 %v3738, %v4974
      %v4976 = vpop.f32.mrf.mxu0
      %v4977 = vadd.f32 %v3742, %v4976
      %v4978 = vpop.f32.mrf.mxu0
      %v4979 = vadd.f32 %v3738, %v4978
      %v4980 = vpop.f32.mrf.mxu0
      %v4981 = vadd.f32 %v3742, %v4980
      %4982 = vdwg.mxu0
      %4983 = vmatprep.subr.bf16.mxu0 %v3882
      %4984 = vmatpush1.bf16.msra.mxu0 %v3881
      %4985 = vmatprep.subr.bf16.mxu0 %v3878
      %4986 = vmatpush1.bf16.msra.mxu0 %v3877
      %4987 = vmatprep.subr.bf16.mxu0 %v3874
      %4988 = vmatpush1.bf16.msra.mxu0 %v3873
      %4989 = vmatprep.subr.bf16.mxu0 %v3870
      %4990 = vmatpush1.bf16.msra.mxu0 %v3869
      %4991 = vmatprep.subr.bf16.mxu0 %v3866
      %4992 = vmatpush1.bf16.msra.mxu0 %v3865
      %4993 = vmatprep.subr.bf16.mxu0 %v3862
      %4994 = vmatpush1.bf16.msra.mxu0 %v3861
      %4995 = vmatprep.subr.bf16.mxu0 %v3858
      %4996 = vmatpush1.bf16.msra.mxu0 %v3857
      %4997 = vmatprep.subr.bf16.mxu0 %v3854
      %4998 = vmatpush1.bf16.msra.mxu0 %v3853
      %4999 = vmatprep.subr.bf16.mxu0 0
      %5000 = vmatpush2.bf16.msra.mxu0 0
      %5001 = vmatprep.subr.bf16.mxu0 0
      %5002 = vmatpush2.bf16.msra.mxu0 0
      %5003 = vmatprep.subr.bf16.mxu0 0
      %5004 = vmatpush2.bf16.msra.mxu0 0
      %5005 = vmatprep.subr.bf16.mxu0 0
      %5006 = vmatpush2.bf16.msra.mxu0 0
      %5007 = vmatprep.subr.bf16.mxu0 0
      %5008 = vmatpush2.bf16.msra.mxu0 0
      %5009 = vmatprep.subr.bf16.mxu0 0
      %5010 = vmatpush2.bf16.msra.mxu0 0
      %5011 = vmatprep.subr.bf16.mxu0 0
      %5012 = vmatpush2.bf16.msra.mxu0 0
      %5013 = vmatprep.subr.bf16.mxu0 0
      %5014 = vmatpush2.bf16.msra.mxu0 0
      %5015 = vmatprep.mubr.bf16.mxu0 0
      %5016 = vmatmul.mubr.bf16.gmra.mxu0 %v4939
      %v5017 = vpop.f32.mrf.mxu0
      %v5018 = vadd.f32 %v3746, %v5017
      %v5019 = vpop.f32.mrf.mxu0
      %v5020 = vadd.f32 %v3750, %v5019
      %v5021 = vpop.f32.mrf.mxu0
      %v5022 = vadd.f32 %v3746, %v5021
      %v5023 = vpop.f32.mrf.mxu0
      %v5024 = vadd.f32 %v3750, %v5023
      %5025 = vdwg.mxu0
      %v5026 = vmul.f32 %v4975, %v4975
      %v5027 = vmul.f32 %v4977, %v4977
      %v5028 = vmul.f32 %v5018, %v5018
      %v5029 = vmul.f32 %v5020, %v5020
      %v5030 = vmul.f32 %v4979, %v4979
      %v5031 = vmul.f32 %v4981, %v4981
      %v5032 = vmul.f32 %v5022, %v5022
      %v5033 = vmul.f32 %v5024, %v5024
      %v5034 = vmul.f32 %v4975, %v5026
      %v5035 = vmul.f32 %v4977, %v5027
      %v5036 = vmul.f32 %v5018, %v5028
      %v5037 = vmul.f32 %v5020, %v5029
      %v5038 = vmul.f32 %v4979, %v5030
      %v5039 = vmul.f32 %v4981, %v5031
      %v5040 = vmul.f32 %v5022, %v5032
      %v5041 = vmul.f32 %v5024, %v5033
      %v5042 = vmul.f32 %v5034, 0.044715
      %v5043 = vmul.f32 %v5035, 0.044715
      %v5044 = vmul.f32 %v5036, 0.044715
      %v5045 = vmul.f32 %v5037, 0.044715
      %v5046 = vmul.f32 %v5038, 0.044715
      %v5047 = vmul.f32 %v5039, 0.044715
      %v5048 = vmul.f32 %v5040, 0.044715
      %v5049 = vmul.f32 %v5041, 0.044715
      %v5050 = vadd.f32 %v4975, %v5042
      %v5051 = vadd.f32 %v4977, %v5043
      %v5052 = vadd.f32 %v5018, %v5044
      %v5053 = vadd.f32 %v5020, %v5045
      %v5054 = vadd.f32 %v4979, %v5046
      %v5055 = vadd.f32 %v4981, %v5047
      %v5056 = vadd.f32 %v5022, %v5048
      %v5057 = vadd.f32 %v5024, %v5049
      %v5058 = vmul.f32 %v5050, 0.7978846
      %v5059 = vmul.f32 %v5051, 0.7978846
      %v5060 = vmul.f32 %v5052, 0.7978846
      %v5061 = vmul.f32 %v5053, 0.7978846
      %v5062 = vmul.f32 %v5054, 0.7978846
      %v5063 = vmul.f32 %v5055, 0.7978846
      %v5064 = vmul.f32 %v5056, 0.7978846
      %v5065 = vmul.f32 %v5057, 0.7978846
      %v5066 = vtanh.pop %v5058
      %v5067 = vtanh.pop %v5059
      %v5068 = vtanh.pop %v5060
      %v5069 = vtanh.pop %v5061
      %v5070 = vtanh.pop %v5062
      %v5071 = vtanh.pop %v5063
      %v5072 = vtanh.pop %v5064
      %v5073 = vtanh.pop %v5065
      %v5074 = vadd.f32 %v5066, 1.0
      %v5075 = vadd.f32 %v5067, 1.0
      %v5076 = vadd.f32 %v5068, 1.0
      %v5077 = vadd.f32 %v5069, 1.0
      %v5078 = vadd.f32 %v5070, 1.0
      %v5079 = vadd.f32 %v5071, 1.0
      %v5080 = vadd.f32 %v5072, 1.0
      %v5081 = vadd.f32 %v5073, 1.0
      %v5082 = vmul.f32 %v5074, 0.5
      %v5083 = vmul.f32 %v5075, 0.5
      %v5084 = vmul.f32 %v5076, 0.5
      %v5085 = vmul.f32 %v5077, 0.5
      %v5086 = vmul.f32 %v5078, 0.5
      %v5087 = vmul.f32 %v5079, 0.5
      %v5088 = vmul.f32 %v5080, 0.5
      %v5089 = vmul.f32 %v5081, 0.5
      %v5090 = vmul.f32 %v4975, %v5082
      %v5091 = vmul.f32 %v4977, %v5083
      %v5092 = vmul.f32 %v5018, %v5084
      %v5093 = vmul.f32 %v5020, %v5085
      %v5094 = vmul.f32 %v4979, %v5086
      %v5095 = vmul.f32 %v4981, %v5087
      %v5096 = vmul.f32 %v5022, %v5088
      %v5097 = vmul.f32 %v5024, %v5089
      %v5098 = vpack.c.bf16 %v5094, %v5090
      %v5099 = vpack.c.bf16 %v5095, %v5091
      %v5100 = vpack.c.bf16 %v5096, %v5092
      %v5101 = vpack.c.bf16 %v5097, %v5093
      %5102 = vmatprep.subr.bf16.mxu0 0
      %5103 = vmatpush1.bf16.msra.mxu0 %v4277
      %5104 = vmatprep.subr.bf16.mxu0 0
      %5105 = vmatpush1.bf16.msra.mxu0 %v4276
      %5106 = vmatprep.subr.bf16.mxu0 0
      %5107 = vmatpush1.bf16.msra.mxu0 %v4275
      %5108 = vmatprep.subr.bf16.mxu0 0
      %5109 = vmatpush1.bf16.msra.mxu0 %v4274
      %5110 = vmatprep.subr.bf16.mxu0 0
      %5111 = vmatpush1.bf16.msra.mxu0 %v4273
      %5112 = vmatprep.subr.bf16.mxu0 0
      %5113 = vmatpush1.bf16.msra.mxu0 %v4272
      %5114 = vmatprep.subr.bf16.mxu0 0
      %5115 = vmatpush1.bf16.msra.mxu0 %v4271
      %5116 = vmatprep.subr.bf16.mxu0 0
      %5117 = vmatpush1.bf16.msra.mxu0 %v4270
      %5118 = vmatprep.subr.bf16.mxu0 0
      %5119 = vmatpush2.bf16.msra.mxu0 %v4285
      %5120 = vmatprep.subr.bf16.mxu0 0
      %5121 = vmatpush2.bf16.msra.mxu0 %v4284
      %5122 = vmatprep.subr.bf16.mxu0 0
      %5123 = vmatpush2.bf16.msra.mxu0 %v4283
      %5124 = vmatprep.subr.bf16.mxu0 0
      %5125 = vmatpush2.bf16.msra.mxu0 %v4282
      %5126 = vmatprep.subr.bf16.mxu0 0
      %5127 = vmatpush2.bf16.msra.mxu0 %v4281
      %5128 = vmatprep.subr.bf16.mxu0 0
      %5129 = vmatpush2.bf16.msra.mxu0 %v4280
      %5130 = vmatprep.subr.bf16.mxu0 0
      %5131 = vmatpush2.bf16.msra.mxu0 %v4279
      %5132 = vmatprep.subr.bf16.mxu0 0
      %5133 = vmatpush2.bf16.msra.mxu0 %v4278
      %5134 = vmatprep.mubr.bf16.mxu0 %v5099
      %5135 = vmatmul.mubr.bf16.gmra.mxu0 %v5098
      %v5136 = vpop.f32.mrf.mxu0
      %v5137 = vadd.f32 0.0, %v5136
      %v5138 = vpop.f32.mrf.mxu0
      %v5139 = vpop.f32.mrf.mxu0
      %v5140 = vadd.f32 0.0, %v5139
      %v5141 = vpop.f32.mrf.mxu0
      %5142 = vdwg.mxu0
      %5143 = vmatprep.subr.bf16.mxu0 0
      %5144 = vmatpush1.bf16.msra.mxu0 %v4293
      %5145 = vmatprep.subr.bf16.mxu0 0
      %5146 = vmatpush1.bf16.msra.mxu0 %v4292
      %5147 = vmatprep.subr.bf16.mxu0 0
      %5148 = vmatpush1.bf16.msra.mxu0 %v4291
      %5149 = vmatprep.subr.bf16.mxu0 0
      %5150 = vmatpush1.bf16.msra.mxu0 %v4290
      %5151 = vmatprep.subr.bf16.mxu0 0
      %5152 = vmatpush1.bf16.msra.mxu0 %v4289
      %5153 = vmatprep.subr.bf16.mxu0 0
      %5154 = vmatpush1.bf16.msra.mxu0 %v4288
      %5155 = vmatprep.subr.bf16.mxu0 0
      %5156 = vmatpush1.bf16.msra.mxu0 %v4287
      %5157 = vmatprep.subr.bf16.mxu0 0
      %5158 = vmatpush1.bf16.msra.mxu0 %v4286
      %5159 = vmatprep.subr.bf16.mxu0 0
      %5160 = vmatpush2.bf16.msra.mxu0 %v4301
      %5161 = vmatprep.subr.bf16.mxu0 0
      %5162 = vmatpush2.bf16.msra.mxu0 %v4300
      %5163 = vmatprep.subr.bf16.mxu0 0
      %5164 = vmatpush2.bf16.msra.mxu0 %v4299
      %5165 = vmatprep.subr.bf16.mxu0 0
      %5166 = vmatpush2.bf16.msra.mxu0 %v4298
      %5167 = vmatprep.subr.bf16.mxu0 0
      %5168 = vmatpush2.bf16.msra.mxu0 %v4297
      %5169 = vmatprep.subr.bf16.mxu0 0
      %5170 = vmatpush2.bf16.msra.mxu0 %v4296
      %5171 = vmatprep.subr.bf16.mxu0 0
      %5172 = vmatpush2.bf16.msra.mxu0 %v4295
      %5173 = vmatprep.subr.bf16.mxu0 0
      %5174 = vmatpush2.bf16.msra.mxu0 %v4294
      %5175 = vmatprep.mubr.bf16.mxu0 %v5101
      %5176 = vmatmul.mubr.bf16.gmra.mxu0 %v5100
      %v5177 = vpop.f32.mrf.mxu0
      %v5178 = vadd.f32 %v5137, %v5177
      %v5179 = vpop.f32.mrf.mxu0
      %v5180 = vpop.f32.mrf.mxu0
      %v5181 = vadd.f32 %v5140, %v5180
      %v5182 = vpop.f32.mrf.mxu0
      %5183 = vdwg.mxu0
      %v5184 = vadd.f32 %v4911, %v5178
      %v5185 = vadd.f32 %v4912, %v5181
      %v5186 = vadd.f32 %v5184, %v4424
      %v5187 = vadd.f32 %v5185, %v4424
      %v5188 = vpack.c.bf16 %v4427, %v4426
      %v5190 = vunpack.c.l.b16 %v5188
      %v5191 = vunpack.c.h.b16 %v5188
      %v5192 = vpack.c.b16 %v5190, %v5190
      %v5193 = vpack.c.b16 %v5191, %v5191
      %5196 = vst [vmem:[%s549] sm:$0xf] %v5192
      %5197 = vst [vmem:[%s549 + $0x4] sm:$0xf] %v5193
      %v5198 = vpack.c.bf16 %v5187, %v5186
      %v5200 = vunpack.c.l.b16 %v5198
      %v5201 = vunpack.c.h.b16 %v5198
      %v5202 = vpack.c.b16 %v5200, %v5200
      %v5203 = vpack.c.b16 %v5201, %v5201
      %5206 = vst [vmem:[%s554] sm:$0xf] %v5202
      %5207 = vst [vmem:[%s554 + $0x4] sm:$0xf] %v5203
      %p5208 = scmp.lt.s32.totalorder %s28, 1
      %s5209 = scalar_select %p5208, %s28, 1
      %s5210 = smul.addr %s5209, 2
      %s5211 = smul.addr %s5210, 4
      %s5212 = scalar_lea.vmem %s15, %s5211
      %p5213 = scmp.lt.s32.totalorder %s28, 1
      %s5214 = scalar_select %p5213, %s28, 1
      %s5215 = smul.addr %s5214, 2
      %s5216 = smul.addr %s5215, 4
      %s5217 = scalar_lea.vmem %s16, %s5216
      // Predicated region
      $region81: #{age_estimator_fwd.4} parent=79 // pred_check
        %p5218 = pneg %p371
      $region82: #{age_estimator_fwd.4} parent=79 // pred_check_branch
        %5220 = sbr.rel (%p5218) target = $region84
      $region83: #{age_estimator_fwd.4} parent=79 // pred_region
        _
      $region84: #{age_estimator_fwd.4} parent=79 // pred_fallthru
        _
      // Predicated region
      $region85: #{age_estimator_fwd.4} parent=79 // pred_check
        %p5221 = pneg %p397
      $region86: #{age_estimator_fwd.4} parent=79 // pred_check_branch
        %5223 = sbr.rel (%p5221) target = $region88
      $region87: #{age_estimator_fwd.4} parent=79 // pred_region
        _
      $region88: #{age_estimator_fwd.4} parent=79 // pred_fallthru
        _
    $region80: #{age_estimator_fwd.4} parent=5 // pred_fallthru
      _
    %p5224 = scmp.le.s32.totalorder 2, %s23
    // Predicated region
    $region89: #{age_estimator_fwd.4} parent=5 // pred_check
      %p5225 = pneg %p5224
    $region90: #{age_estimator_fwd.4} parent=5 // pred_check_branch
      %5227 = sbr.rel (%p5225) target = $region92
    $region91: #{age_estimator_fwd.4} parent=5 // pred_region
      %s5228 = ssub.s32 %s23, 2
      // Predicated region
      $region93: #{age_estimator_fwd.4} parent=91 // pred_check
        %p5229 = pneg %p377
      $region94: #{age_estimator_fwd.4} parent=91 // pred_check_branch
        %5231 = sbr.rel (%p5229) target = $region96
      $region95: #{age_estimator_fwd.4} parent=91 // pred_region
        %p5232 = scmp.lt.s32.totalorder %s29, 1
        %s5233 = scalar_select %p5232, %s29, 1
        %s5234 = smul.addr %s5233, 2
        %s5235 = smul.addr %s5234, 4
        %s5236 = scalar_lea.vmem %s15, %s5235
      $region96: #{age_estimator_fwd.4} parent=91 // pred_fallthru
        _
      // Predicated region
      $region97: #{age_estimator_fwd.4} parent=91 // pred_check
        %p5237 = pneg %p403
      $region98: #{age_estimator_fwd.4} parent=91 // pred_check_branch
        %5239 = sbr.rel (%p5237) target = $region100
      $region99: #{age_estimator_fwd.4} parent=91 // pred_region
        %p5240 = scmp.lt.s32.totalorder %s29, 1
        %s5241 = scalar_select %p5240, %s29, 1
        %s5242 = smul.addr %s5241, 2
        %s5243 = smul.addr %s5242, 4
        %s5244 = scalar_lea.vmem %s16, %s5243
      $region100: #{age_estimator_fwd.4} parent=91 // pred_fallthru
        _
    $region92: #{age_estimator_fwd.4} parent=5 // pred_fallthru
      _
  $region6: #{age_estimator_fwd.4} parent=0 // loop_footer
    %s27 = sadd.s32 1, %s23
  $region7: #{age_estimator_fwd.4} parent=0 // loop_footer_branch
    %22 = sbr.rel target = $region3
  $region8: #{age_estimator_fwd.4} parent=0 // loop_exit
    _

</llo_original>
